<compile_context>
chip_gen: v7x
topology: tpu7x:2x2x1
jax: 0.10.0
libtpu: 0.0.40
codegen_flags: <defaults>
</compile_context>

<pallas_src>
import functools

import numpy as np
import jax
import jax.numpy as jnp
from jax.experimental import pallas as pl
from jax.experimental.pallas import tpu as pltpu


# --------------------------------------------------------------------------- #
# Helpers
# --------------------------------------------------------------------------- #
def _round_up(x, m):
    return ((x + m - 1) // m) * m


def _row_tile(m, block_m):
    """Row-tile size: multiple of 16 sublanes (bf16 packing), capped at block_m,
    and >= 2 grid steps whenever possible (v7x two-TC megacore sharding)."""
    if m > block_m:
        return block_m
    half = _round_up(pl.cdiv(m, 2), 16)
    return m if half >= m else half


# --------------------------------------------------------------------------- #
# Pallas kernels
# --------------------------------------------------------------------------- #
def _mm_bias_act_kernel(x_ref, w_ref, b_ref, o_ref, *, relu):
    """One row-tile of y = x @ W + b (optional ReLU).  bf16 in, f32 accumulate."""
    y = jnp.dot(x_ref[...], w_ref[...], preferred_element_type=jnp.float32)
    y = y + b_ref[...]
    if relu:
        y = jnp.maximum(y, 0.0)
    o_ref[...] = y.astype(o_ref.dtype)


def _head_kernel(fv_ref, fp_ref, w1v_ref, b1v_ref, w1p_ref, b1p_ref,
                 whv_ref, whp_ref, bh_ref, o_ref):
    """fc1+ReLU for both bodies, then both heads fused into one [bm,128] tile.

    whv has the value-head weight in lane 0, whp has the policy-head weight in
    lanes 1:1+A (disjoint lane support), so summing the two dots yields a single
    lane-dense output tile.
    """
    hv = jnp.maximum(
        jnp.dot(fv_ref[...], w1v_ref[...], preferred_element_type=jnp.float32)
        + b1v_ref[...], 0.0)
    hp = jnp.maximum(
        jnp.dot(fp_ref[...], w1p_ref[...], preferred_element_type=jnp.float32)
        + b1p_ref[...], 0.0)
    o_ref[...] = (
        jnp.dot(hv.astype(jnp.bfloat16), whv_ref[...],
                preferred_element_type=jnp.float32)
        + jnp.dot(hp.astype(jnp.bfloat16), whp_ref[...],
                  preferred_element_type=jnp.float32)
        + bh_ref[...])


# --------------------------------------------------------------------------- #
# Pallas call wrappers
# --------------------------------------------------------------------------- #
def matmul_bias(x, w, b, *, relu, block_m=2048):
    """y = relu?(x @ w + b), bf16 in / bf16 out, f32 accumulate.

    Row-parallel grid (partial tail tile handled by Pallas — no pad/slice copies);
    fused weight and bias are VMEM-resident via constant index_maps.
    """
    M, K = x.shape
    N = w.shape[1]
    bm = _row_tile(M, block_m)
    grid = (pl.cdiv(M, bm),)
    return pl.pallas_call(
        functools.partial(_mm_bias_act_kernel, relu=relu),
        out_shape=jax.ShapeDtypeStruct((M, N), jnp.bfloat16),
        grid=grid,
        in_specs=[
            pl.BlockSpec((bm, K), lambda i: (i, 0)),   # activation row tile
            # TODO(synk): pipeline_mode=pl.Buffered(1) on the two constant-index
            # specs below would drop one redundant weight buffer (v7x VMEM headroom).
            pl.BlockSpec((K, N), lambda i: (0, 0)),    # fused weight (VMEM-resident)
            pl.BlockSpec((1, N), lambda i: (0, 0)),    # bias        (VMEM-resident)
        ],
        out_specs=pl.BlockSpec((bm, N), lambda i: (i, 0)),
        compiler_params=pltpu.CompilerParams(
            dimension_semantics=("parallel",)),
        cost_estimate=pl.CostEstimate(
            flops=2 * M * K * N,
            transcendentals=0,
            bytes_accessed=2 * (M * K + K * N + M * N) + 4 * N),
    )(x, w, b)


def fused_head(fv, fp, params, *, block_b=256):
    """[B,1568] x2 (bf16) -> [B,128] f32 (lane 0 = value, lanes 1:1+A = logits).

    Row grid over B so large batches never exceed v7x VMEM; weights use constant
    index_maps and stay resident.
    """
    B, Kf = fv.shape
    bm = _row_tile(B, block_b)
    grid = (pl.cdiv(B, bm),)
    row = lambda i: (i, 0)
    const = lambda i: (0, 0)
    return pl.pallas_call(
        _head_kernel,
        out_shape=jax.ShapeDtypeStruct((B, 128), jnp.float32),
        grid=grid,
        in_specs=[
            pl.BlockSpec((bm, Kf), row),
            pl.BlockSpec((bm, Kf), row),
            pl.BlockSpec((Kf, 512), const),
            pl.BlockSpec((1, 512), const),
            pl.BlockSpec((Kf, 512), const),
            pl.BlockSpec((1, 512), const),
            pl.BlockSpec((512, 128), const),
            pl.BlockSpec((512, 128), const),
            pl.BlockSpec((1, 128), const),
        ],
        out_specs=pl.BlockSpec((bm, 128), row),
        compiler_params=pltpu.CompilerParams(
            dimension_semantics=("parallel",)),
        cost_estimate=pl.CostEstimate(
            flops=2 * B * (2 * Kf * 512 + 2 * 512 * 128),
            transcendentals=0,
            bytes_accessed=2 * (2 * B * Kf + 2 * Kf * 512 + 2 * 512 * 128)
                           + 4 * (2 * 512 + 128 + B * 128)),
    )(fv, fp,
      params["fc1v_b"], params["bfc1"], params["fc1p_b"], params["bfc1"],
      params["whv"], params["whp"], params["bh"])


# --------------------------------------------------------------------------- #
# Host-side layout plumbing (im2col) and full forward
# --------------------------------------------------------------------------- #
def _im2col(x, k, s):
    """x: [B,H,W,C] -> [B,Ho,Wo,k*k*C] patches, feature order (kh, kw, c)."""
    B, H, W, C = x.shape
    Ho = (H - k) // s + 1
    Wo = (W - k) // s + 1
    cols = []
    for kh in range(k):
        for kw in range(k):
            cols.append(x[:, kh:kh + s * (Ho - 1) + 1:s,
                          kw:kw + s * (Wo - 1) + 1:s, :])
    return jnp.concatenate(cols, axis=-1)


def sep_body_conv_forward(x_nchw, params, action_dim):
    """x_nchw: [B, C, 84, 84] -> (values [B,1], logits [B,action_dim])."""
    assert x_nchw.shape[2] == 84 and x_nchw.shape[3] == 84, "NatureCNN expects 84x84"
    assert 1 <= action_dim <= 127, "fused head packs logits into lanes 1..127"
    x = jnp.transpose(x_nchw, (0, 2, 3, 1)).astype(jnp.bfloat16)    # NHWC, bf16
    B, _, _, C = x.shape

    # TODO(synk): patch extraction still happens host-side (XLA strided slices); an
    # in-kernel im2col (per-image feature map in VMEM, static kxk taps) would remove
    # the remaining 3-5x HBM patch expansion — the largest further win.

    # ---- conv1 (8x8 s4): shared input, both bodies concatenated along N ------
    p1 = _im2col(x, 8, 4).reshape(B * 20 * 20, 8 * 8 * C)           # [B*400, 256]
    h1 = matmul_bias(p1, params["w1f"], params["b1f"], relu=True)   # [B*400, 64] bf16
    h1 = h1.reshape(B, 20, 20, 64)                                  # ch 0:32 value | 32:64 policy

    # ---- conv2 (4x4 s2): im2col of the FULL map, block-diag fused weight -----
    p2 = _im2col(h1, 4, 2).reshape(B * 9 * 9, 16 * 64)              # [B*81, 1024]
    h2 = matmul_bias(p2, params["w2f"], params["b2f"], relu=True)   # [B*81, 128] bf16
    h2 = h2.reshape(B, 9, 9, 128)                                   # ch 0:64 value | 64:128 policy

    # ---- conv3 (3x3 s1): same scheme ------------------------------------------
    p3 = _im2col(h2, 3, 1).reshape(B * 7 * 7, 9 * 128)              # [B*49, 1152]
    h3 = matmul_bias(p3, params["w3f"], params["b3f"], relu=True)   # [B*49, 64] bf16
    h3 = h3.reshape(B, 7, 7, 64)

    # flatten in (h, w, c) order (fc1 weights are generated in this order); the
    # h3 split is tiny (B*1568 elems per body) and required by the head layout.
    f_v = h3[..., :32].reshape(B, 7 * 7 * 32)
    f_p = h3[..., 32:].reshape(B, 7 * 7 * 32)

    # ---- fc1 + ReLU + fused heads (single lane-dense [B,128] output) ----------
    out = fused_head(f_v, f_p, params)
    values = out[:, 0:1]
    logits = out[:, 1:1 + action_dim]
    return values, logits


# --------------------------------------------------------------------------- #
# Parameter creation (PyTorch-style orthogonal init, biases zero)
# --------------------------------------------------------------------------- #
def orthogonal(key, out_f, in_f, gain):
    """torch.nn.init.orthogonal_ on a [out_f, in_f] weight, returned as [in_f, out_f]."""
    rows, cols = out_f, in_f
    a = jax.random.normal(key, (max(rows, cols), min(rows, cols)), dtype=jnp.float32)
    q, r = jnp.linalg.qr(a)
    q = q * jnp.sign(jnp.diagonal(r))
    w = q.T if rows < cols else q
    w = gain * w[:rows, :cols]
    return w.T                                       # [in, out]


def conv_weight(key, cout, cin, k, gain):
    """Orthogonal conv weight in HWIO layout [k, k, cin, cout]."""
    w = orthogonal(key, cout, cin * k * k, gain)     # rows ordered (cin, kh, kw)
    return w.reshape(cin, k, k, cout).transpose(1, 2, 0, 3)


def make_params(key, in_channels, action_dim):
    assert 1 <= action_dim <= 127, "fused head packs logits into lanes 1..127"
    g = float(np.sqrt(2.0))                          # relu gain
    ks = jax.random.split(key, 10)

    def q(w):  # round-trip through bf16 so kernel and reference share identical weights
        return w.astype(jnp.bfloat16).astype(jnp.float32)

    # value body
    c1v = q(conv_weight(ks[0], 32, in_channels, 8, g))
    c2v = q(conv_weight(ks[1], 64, 32, 4, g))
    c3v = q(conv_weight(ks[2], 32, 64, 3, g))
    fc1v = q(orthogonal(ks[3], 512, 32 * 7 * 7, g))   # [1568, 512]
    hv = q(orthogonal(ks[4], 1, 512, 1.0))            # [512, 1]
    # policy body
    c1p = q(conv_weight(ks[5], 32, in_channels, 8, g))
    c2p = q(conv_weight(ks[6], 64, 32, 4, g))
    c3p = q(conv_weight(ks[7], 32, 64, 3, g))
    fc1p = q(orthogonal(ks[8], 512, 32 * 7 * 7, g))
    hp = q(orthogonal(ks[9], action_dim, 512, 0.01))  # [512, A]

    bf = jnp.bfloat16

    # ---- fused bf16 matmul-form weights consumed by the Pallas kernels ----
    # conv1: shared input -> concatenate along output channels: [k*k*Cin, 64]
    w1f = jnp.concatenate([c1v.reshape(-1, 32), c1p.reshape(-1, 32)], axis=1).astype(bf)
    b1f = jnp.zeros((1, 64), jnp.float32)

    # conv2/conv3: block-diagonal fused weights whose row order matches the
    # (kh, kw, c) feature order of im2col applied to the FULL previous-stage map
    # (value channels 0:half, policy channels half:) -- no host-side channel split.
    z2 = jnp.zeros((4, 4, 32, 64), jnp.float32)
    w2f = jnp.concatenate([
        jnp.concatenate([c2v, z2], axis=-1),   # value input ch  -> out lanes 0:64
        jnp.concatenate([z2, c2p], axis=-1),   # policy input ch -> out lanes 64:128
    ], axis=2).reshape(4 * 4 * 64, 128).astype(bf)
    b2f = jnp.zeros((1, 128), jnp.float32)

    z3 = jnp.zeros((3, 3, 64, 32), jnp.float32)
    w3f = jnp.concatenate([
        jnp.concatenate([c3v, z3], axis=-1),
        jnp.concatenate([z3, c3p], axis=-1),
    ], axis=2).reshape(3 * 3 * 128, 64).astype(bf)
    b3f = jnp.zeros((1, 64), jnp.float32)
    # TODO(synk): when bf16 makes conv2/conv3 MXU-limited (v6e/v7x), split the
    # block-diagonal dot into two half-K dots to halve MXU pushes.

    whv = jnp.zeros((512, 128), jnp.float32).at[:, 0:1].set(hv).astype(bf)               # lane 0
    whp = jnp.zeros((512, 128), jnp.float32).at[:, 1:1 + action_dim].set(hp).astype(bf)  # lanes 1:1+A
    bh = jnp.zeros((1, 128), jnp.float32)
    bfc1 = jnp.zeros((1, 512), jnp.float32)

    return dict(
        # raw per-body weights (f32, bf16-representable) for the reference
        c1v=c1v, c2v=c2v, c3v=c3v, fc1v=fc1v, hv=hv,
        c1p=c1p, c2p=c2p, c3p=c3p, fc1p=fc1p, hp=hp,
        # fused bf16 matmul-form weights for the Pallas kernels
        w1f=w1f, b1f=b1f, w2f=w2f, b2f=b2f, w3f=w3f, b3f=b3f,
        fc1v_b=fc1v.astype(bf), fc1p_b=fc1p.astype(bf),
        bfc1=bfc1, whv=whv, whp=whp, bh=bh,
    )


# --------------------------------------------------------------------------- #
# Pure-JAX reference (independent formulation: direct convolutions, f32 activations)
# --------------------------------------------------------------------------- #
def _conv_nhwc(x, w_hwio, stride):
    return jax.lax.conv_general_dilated(
        x, w_hwio, window_strides=(stride, stride), padding="VALID",
        dimension_numbers=("NHWC", "HWIO", "NHWC"))


def reference_forward(x_nchw, params, action_dim):
    # All biases are zero-initialized (per the module's init), so they are omitted.
    x = jnp.transpose(x_nchw, (0, 2, 3, 1)).astype(jnp.float32)

    def body(c1, c2, c3, fc1, wh):
        h = jax.nn.relu(_conv_nhwc(x, c1, 4))
        h = jax.nn.relu(_conv_nhwc(h, c2, 2))
        h = jax.nn.relu(_conv_nhwc(h, c3, 1))
        f = h.reshape(h.shape[0], -1)            # (h, w, c) flatten order
        f = jax.nn.relu(f @ fc1)
        return f @ wh

    values = body(params["c1v"], params["c2v"], params["c3v"], params["fc1v"], params["hv"])
    logits = body(params["c1p"], params["c2p"], params["c3p"], params["fc1p"], params["hp"])
    return values, logits


# --------------------------------------------------------------------------- #
if __name__ == "__main__":
    B, in_channels, action_dim = 2, 4, 6          # NatureCNN requires 84x84 spatial

    key = jax.random.PRNGKey(0)
    kx, kp = jax.random.split(key)
    x = jax.random.normal(kx, (B, in_channels, 84, 84), dtype=jnp.float32)
    params = make_params(kp, in_channels, action_dim)

    fwd = jax.jit(sep_body_conv_forward, static_argnums=2)
    values, logits = fwd(x, params, action_dim)
    values, logits = jax.block_until_ready((values, logits))

    ref_v, ref_p = reference_forward(x, params, action_dim)
    assert values.shape == (B, 1) and logits.shape == (B, action_dim)

    # Tolerance sized for bf16 activations / f32 accumulation vs an f32-activation
    # direct-conv reference using the same (bf16-representable) weights.
    np.testing.assert_allclose(np.asarray(values), np.asarray(ref_v), rtol=5e-2, atol=3e-2)
    np.testing.assert_allclose(np.asarray(logits), np.asarray(ref_p), rtol=5e-2, atol=3e-2)

    print("KERNEL_OK")
</pallas_src>

<mosaic_0001>
module attributes {stable_mosaic.version = 11 : i64} {
  func.func @_mm_bias_act_kernel(%arg0: i32, %arg1: memref<400x256xbf16, #tpu.memory_space<vmem>>, %arg2: memref<256x64xbf16, #tpu.memory_space<vmem>>, %arg3: memref<1x64xf32, #tpu.memory_space<vmem>>, %arg4: memref<400x64xbf16, #tpu.memory_space<vmem>>) attributes {dimension_semantics = [#tpu.dimension_semantics<parallel>], iteration_bounds = array<i64: 2>, scalar_prefetch = 0 : i64, scratch_operands = 0 : i64, tpu.core_type = #tpu.core_type<tc>, window_params = [{transform_indices = @transform_0, window_bounds = array<i64: 400, 256>}, {pipeline_mode = #tpu.pipeline_mode<synchronous>, transform_indices = @transform_1, window_bounds = array<i64: 256, 64>}, {pipeline_mode = #tpu.pipeline_mode<synchronous>, transform_indices = @transform_2, window_bounds = array<i64: 1, 64>}, {transform_indices = @transform_3, window_bounds = array<i64: 400, 64>}]} {
    %c0 = arith.constant 0 : index
    %c0_0 = arith.constant 0 : index
    %0 = vector.load %arg1[%c0, %c0_0] : memref<400x256xbf16, #tpu.memory_space<vmem>>, vector<400x256xbf16>
    %c0_1 = arith.constant 0 : index
    %c0_2 = arith.constant 0 : index
    %1 = vector.load %arg2[%c0_1, %c0_2] : memref<256x64xbf16, #tpu.memory_space<vmem>>, vector<256x64xbf16>
    %cst = arith.constant dense<0.000000e+00> : vector<400x64xf32>
    %2 = tpu.matmul %0, %1, %cst {dimension_numbers = #tpu.dot_dimension_numbers<[1], [0], [0], [1], [0, 0, 1, 1], [], []>} : vector<400x256xbf16>, vector<256x64xbf16>, vector<400x64xf32> -> vector<400x64xf32>
    %c0_3 = arith.constant 0 : index
    %c0_4 = arith.constant 0 : index
    %3 = vector.load %arg3[%c0_3, %c0_4] : memref<1x64xf32, #tpu.memory_space<vmem>>, vector<1x64xf32>
    %4 = vector.broadcast %3 : vector<1x64xf32> to vector<400x64xf32>
    %5 = arith.addf %2, %4 : vector<400x64xf32>
    %cst_5 = arith.constant 0.000000e+00 : f32
    %6 = vector.broadcast %cst_5 : f32 to vector<400x64xf32>
    %7 = arith.maximumf %5, %6 : vector<400x64xf32>
    %8 = arith.truncf %7 : vector<400x64xf32> to vector<400x64xbf16>
    %c0_6 = arith.constant 0 : index
    %c0_7 = arith.constant 0 : index
    %9 = vector.load %arg4[%c0_6, %c0_7] : memref<400x64xbf16, #tpu.memory_space<vmem>>, vector<400x64xbf16>
    tpu.vector_store %arg4[%c0_6, %c0_7], %8 {strides = array<i32>} : memref<400x64xbf16, #tpu.memory_space<vmem>>, vector<400x64xbf16>,
    return
  }
  func.func @transform_0(%arg0: i32) -> (i32, i32) {
    %c0_i32 = arith.constant 0 : i32
    %c0_i32_0 = arith.constant 0 : i32
    return %arg0, %c0_i32 : i32, i32
  }
  func.func @transform_1(%arg0: i32) -> (i32, i32) {
    %c0_i32 = arith.constant 0 : i32
    %c0_i32_0 = arith.constant 0 : i32
    %c0_i32_1 = arith.constant 0 : i32
    return %c0_i32, %c0_i32_0 : i32, i32
  }
  func.func @transform_2(%arg0: i32) -> (i32, i32) {
    %c0_i32 = arith.constant 0 : i32
    %c0_i32_0 = arith.constant 0 : i32
    %c0_i32_1 = arith.constant 0 : i32
    return %c0_i32, %c0_i32_0 : i32, i32
  }
  func.func @transform_3(%arg0: i32) -> (i32, i32) {
    %c0_i32 = arith.constant 0 : i32
    %c0_i32_0 = arith.constant 0 : i32
    return %arg0, %c0_i32 : i32, i32
  }
}

module attributes {stable_mosaic.version = 11 : i64} {
  func.func @_mm_bias_act_kernel(%arg0: i32, %arg1: memref<96x1024xbf16, #tpu.memory_space<vmem>>, %arg2: memref<1024x128xbf16, #tpu.memory_space<vmem>>, %arg3: memref<1x128xf32, #tpu.memory_space<vmem>>, %arg4: memref<96x128xbf16, #tpu.memory_space<vmem>>) attributes {dimension_semantics = [#tpu.dimension_semantics<parallel>], iteration_bounds = array<i64: 2>, scalar_prefetch = 0 : i64, scratch_operands = 0 : i64, tpu.core_type = #tpu.core_type<tc>, window_params = [{transform_indices = @transform_0, window_bounds = array<i64: 96, 1024>}, {pipeline_mode = #tpu.pipeline_mode<synchronous>, transform_indices = @transform_1, window_bounds = array<i64: 1024, 128>}, {pipeline_mode = #tpu.pipeline_mode<synchronous>, transform_indices = @transform_2, window_bounds = array<i64: 1, 128>}, {transform_indices = @transform_3, window_bounds = array<i64: 96, 128>}]} {
    %c0 = arith.constant 0 : index
    %c0_0 = arith.constant 0 : index
    %0 = vector.load %arg1[%c0, %c0_0] : memref<96x1024xbf16, #tpu.memory_space<vmem>>, vector<96x1024xbf16>
    %c0_1 = arith.constant 0 : index
    %c0_2 = arith.constant 0 : index
    %1 = vector.load %arg2[%c0_1, %c0_2] : memref<1024x128xbf16, #tpu.memory_space<vmem>>, vector<1024x128xbf16>
    %cst = arith.constant dense<0.000000e+00> : vector<96x128xf32>
    %2 = tpu.matmul %0, %1, %cst {dimension_numbers = #tpu.dot_dimension_numbers<[1], [0], [0], [1], [0, 0, 1, 1], [], []>} : vector<96x1024xbf16>, vector<1024x128xbf16>, vector<96x128xf32> -> vector<96x128xf32>
    %c0_3 = arith.constant 0 : index
    %c0_4 = arith.constant 0 : index
    %3 = vector.load %arg3[%c0_3, %c0_4] : memref<1x128xf32, #tpu.memory_space<vmem>>, vector<1x128xf32>
    %4 = vector.broadcast %3 : vector<1x128xf32> to vector<96x128xf32>
    %5 = arith.addf %2, %4 : vector<96x128xf32>
    %cst_5 = arith.constant 0.000000e+00 : f32
    %6 = vector.broadcast %cst_5 : f32 to vector<96x128xf32>
    %7 = arith.maximumf %5, %6 : vector<96x128xf32>
    %8 = arith.truncf %7 : vector<96x128xf32> to vector<96x128xbf16>
    %c0_6 = arith.constant 0 : index
    %c0_7 = arith.constant 0 : index
    %9 = vector.load %arg4[%c0_6, %c0_7] : memref<96x128xbf16, #tpu.memory_space<vmem>>, vector<96x128xbf16>
    tpu.vector_store %arg4[%c0_6, %c0_7], %8 {strides = array<i32>} : memref<96x128xbf16, #tpu.memory_space<vmem>>, vector<96x128xbf16>,
    return
  }
  func.func @transform_0(%arg0: i32) -> (i32, i32) {
    %c0_i32 = arith.constant 0 : i32
    %c0_i32_0 = arith.constant 0 : i32
    return %arg0, %c0_i32 : i32, i32
  }
  func.func @transform_1(%arg0: i32) -> (i32, i32) {
    %c0_i32 = arith.constant 0 : i32
    %c0_i32_0 = arith.constant 0 : i32
    %c0_i32_1 = arith.constant 0 : i32
    return %c0_i32, %c0_i32_0 : i32, i32
  }
  func.func @transform_2(%arg0: i32) -> (i32, i32) {
    %c0_i32 = arith.constant 0 : i32
    %c0_i32_0 = arith.constant 0 : i32
    %c0_i32_1 = arith.constant 0 : i32
    return %c0_i32, %c0_i32_0 : i32, i32
  }
  func.func @transform_3(%arg0: i32) -> (i32, i32) {
    %c0_i32 = arith.constant 0 : i32
    %c0_i32_0 = arith.constant 0 : i32
    return %arg0, %c0_i32 : i32, i32
  }
}

module attributes {stable_mosaic.version = 11 : i64} {
  func.func @_mm_bias_act_kernel(%arg0: i32, %arg1: memref<64x1152xbf16, #tpu.memory_space<vmem>>, %arg2: memref<1152x64xbf16, #tpu.memory_space<vmem>>, %arg3: memref<1x64xf32, #tpu.memory_space<vmem>>, %arg4: memref<64x64xbf16, #tpu.memory_space<vmem>>) attributes {dimension_semantics = [#tpu.dimension_semantics<parallel>], iteration_bounds = array<i64: 2>, scalar_prefetch = 0 : i64, scratch_operands = 0 : i64, tpu.core_type = #tpu.core_type<tc>, window_params = [{transform_indices = @transform_0, window_bounds = array<i64: 64, 1152>}, {pipeline_mode = #tpu.pipeline_mode<synchronous>, transform_indices = @transform_1, window_bounds = array<i64: 1152, 64>}, {pipeline_mode = #tpu.pipeline_mode<synchronous>, transform_indices = @transform_2, window_bounds = array<i64: 1, 64>}, {transform_indices = @transform_3, window_bounds = array<i64: 64, 64>}]} {
    %c0 = arith.constant 0 : index
    %c0_0 = arith.constant 0 : index
    %0 = vector.load %arg1[%c0, %c0_0] : memref<64x1152xbf16, #tpu.memory_space<vmem>>, vector<64x1152xbf16>
    %c0_1 = arith.constant 0 : index
    %c0_2 = arith.constant 0 : index
    %1 = vector.load %arg2[%c0_1, %c0_2] : memref<1152x64xbf16, #tpu.memory_space<vmem>>, vector<1152x64xbf16>
    %cst = arith.constant dense<0.000000e+00> : vector<64x64xf32>
    %2 = tpu.matmul %0, %1, %cst {dimension_numbers = #tpu.dot_dimension_numbers<[1], [0], [0], [1], [0, 0, 1, 1], [], []>} : vector<64x1152xbf16>, vector<1152x64xbf16>, vector<64x64xf32> -> vector<64x64xf32>
    %c0_3 = arith.constant 0 : index
    %c0_4 = arith.constant 0 : index
    %3 = vector.load %arg3[%c0_3, %c0_4] : memref<1x64xf32, #tpu.memory_space<vmem>>, vector<1x64xf32>
    %4 = vector.broadcast %3 : vector<1x64xf32> to vector<64x64xf32>
    %5 = arith.addf %2, %4 : vector<64x64xf32>
    %cst_5 = arith.constant 0.000000e+00 : f32
    %6 = vector.broadcast %cst_5 : f32 to vector<64x64xf32>
    %7 = arith.maximumf %5, %6 : vector<64x64xf32>
    %8 = arith.truncf %7 : vector<64x64xf32> to vector<64x64xbf16>
    %c0_6 = arith.constant 0 : index
    %c0_7 = arith.constant 0 : index
    %9 = vector.load %arg4[%c0_6, %c0_7] : memref<64x64xbf16, #tpu.memory_space<vmem>>, vector<64x64xbf16>
    tpu.vector_store %arg4[%c0_6, %c0_7], %8 {strides = array<i32>} : memref<64x64xbf16, #tpu.memory_space<vmem>>, vector<64x64xbf16>,
    return
  }
  func.func @transform_0(%arg0: i32) -> (i32, i32) {
    %c0_i32 = arith.constant 0 : i32
    %c0_i32_0 = arith.constant 0 : i32
    return %arg0, %c0_i32 : i32, i32
  }
  func.func @transform_1(%arg0: i32) -> (i32, i32) {
    %c0_i32 = arith.constant 0 : i32
    %c0_i32_0 = arith.constant 0 : i32
    %c0_i32_1 = arith.constant 0 : i32
    return %c0_i32, %c0_i32_0 : i32, i32
  }
  func.func @transform_2(%arg0: i32) -> (i32, i32) {
    %c0_i32 = arith.constant 0 : i32
    %c0_i32_0 = arith.constant 0 : i32
    %c0_i32_1 = arith.constant 0 : i32
    return %c0_i32, %c0_i32_0 : i32, i32
  }
  func.func @transform_3(%arg0: i32) -> (i32, i32) {
    %c0_i32 = arith.constant 0 : i32
    %c0_i32_0 = arith.constant 0 : i32
    return %arg0, %c0_i32 : i32, i32
  }
}

module attributes {stable_mosaic.version = 11 : i64} {
  func.func @_head_kernel(%arg0: i32, %arg1: memref<2x1568xbf16, #tpu.memory_space<vmem>>, %arg2: memref<2x1568xbf16, #tpu.memory_space<vmem>>, %arg3: memref<1568x512xbf16, #tpu.memory_space<vmem>>, %arg4: memref<1x512xf32, #tpu.memory_space<vmem>>, %arg5: memref<1568x512xbf16, #tpu.memory_space<vmem>>, %arg6: memref<1x512xf32, #tpu.memory_space<vmem>>, %arg7: memref<512x128xbf16, #tpu.memory_space<vmem>>, %arg8: memref<512x128xbf16, #tpu.memory_space<vmem>>, %arg9: memref<1x128xf32, #tpu.memory_space<vmem>>, %arg10: memref<2x128xf32, #tpu.memory_space<vmem>>) attributes {dimension_semantics = [#tpu.dimension_semantics<parallel>], iteration_bounds = array<i64: 1>, scalar_prefetch = 0 : i64, scratch_operands = 0 : i64, tpu.core_type = #tpu.core_type<tc>, window_params = [{transform_indices = @transform_0, window_bounds = array<i64: 2, 1568>}, {transform_indices = @transform_1, window_bounds = array<i64: 2, 1568>}, {pipeline_mode = #tpu.pipeline_mode<synchronous>, transform_indices = @transform_2, window_bounds = array<i64: 1568, 512>}, {pipeline_mode = #tpu.pipeline_mode<synchronous>, transform_indices = @transform_3, window_bounds = array<i64: 1, 512>}, {pipeline_mode = #tpu.pipeline_mode<synchronous>, transform_indices = @transform_4, window_bounds = array<i64: 1568, 512>}, {pipeline_mode = #tpu.pipeline_mode<synchronous>, transform_indices = @transform_5, window_bounds = array<i64: 1, 512>}, {pipeline_mode = #tpu.pipeline_mode<synchronous>, transform_indices = @transform_6, window_bounds = array<i64: 512, 128>}, {pipeline_mode = #tpu.pipeline_mode<synchronous>, transform_indices = @transform_7, window_bounds = array<i64: 512, 128>}, {pipeline_mode = #tpu.pipeline_mode<synchronous>, transform_indices = @transform_8, window_bounds = array<i64: 1, 128>}, {transform_indices = @transform_9, window_bounds = array<i64: 2, 128>}]} {
    %c0 = arith.constant 0 : index
    %c0_0 = arith.constant 0 : index
    %0 = vector.load %arg1[%c0, %c0_0] : memref<2x1568xbf16, #tpu.memory_space<vmem>>, vector<2x1568xbf16>
    %c0_1 = arith.constant 0 : index
    %c0_2 = arith.constant 0 : index
    %1 = vector.load %arg3[%c0_1, %c0_2] : memref<1568x512xbf16, #tpu.memory_space<vmem>>, vector<1568x512xbf16>
    %cst = arith.constant dense<0.000000e+00> : vector<2x512xf32>
    %2 = tpu.matmul %0, %1, %cst {dimension_numbers = #tpu.dot_dimension_numbers<[1], [0], [0], [1], [0, 0, 1, 1], [], []>} : vector<2x1568xbf16>, vector<1568x512xbf16>, vector<2x512xf32> -> vector<2x512xf32>
    %c0_3 = arith.constant 0 : index
    %c0_4 = arith.constant 0 : index
    %3 = vector.load %arg4[%c0_3, %c0_4] : memref<1x512xf32, #tpu.memory_space<vmem>>, vector<1x512xf32>
    %4 = vector.broadcast %3 : vector<1x512xf32> to vector<2x512xf32>
    %5 = arith.addf %2, %4 : vector<2x512xf32>
    %cst_5 = arith.constant 0.000000e+00 : f32
    %6 = vector.broadcast %cst_5 : f32 to vector<2x512xf32>
    %7 = arith.maximumf %5, %6 : vector<2x512xf32>
    %c0_6 = arith.constant 0 : index
    %c0_7 = arith.constant 0 : index
    %8 = vector.load %arg2[%c0_6, %c0_7] : memref<2x1568xbf16, #tpu.memory_space<vmem>>, vector<2x1568xbf16>
    %c0_8 = arith.constant 0 : index
    %c0_9 = arith.constant 0 : index
    %9 = vector.load %arg5[%c0_8, %c0_9] : memref<1568x512xbf16, #tpu.memory_space<vmem>>, vector<1568x512xbf16>
    %cst_10 = arith.constant dense<0.000000e+00> : vector<2x512xf32>
    %10 = tpu.matmul %8, %9, %cst_10 {dimension_numbers = #tpu.dot_dimension_numbers<[1], [0], [0], [1], [0, 0, 1, 1], [], []>} : vector<2x1568xbf16>, vector<1568x512xbf16>, vector<2x512xf32> -> vector<2x512xf32>
    %c0_11 = arith.constant 0 : index
    %c0_12 = arith.constant 0 : index
    %11 = vector.load %arg6[%c0_11, %c0_12] : memref<1x512xf32, #tpu.memory_space<vmem>>, vector<1x512xf32>
    %12 = vector.broadcast %11 : vector<1x512xf32> to vector<2x512xf32>
    %13 = arith.addf %10, %12 : vector<2x512xf32>
    %cst_13 = arith.constant 0.000000e+00 : f32
    %14 = vector.broadcast %cst_13 : f32 to vector<2x512xf32>
    %15 = arith.maximumf %13, %14 : vector<2x512xf32>
    %16 = arith.truncf %7 : vector<2x512xf32> to vector<2x512xbf16>
    %c0_14 = arith.constant 0 : index
    %c0_15 = arith.constant 0 : index
    %17 = vector.load %arg7[%c0_14, %c0_15] : memref<512x128xbf16, #tpu.memory_space<vmem>>, vector<512x128xbf16>
    %cst_16 = arith.constant dense<0.000000e+00> : vector<2x128xf32>
    %18 = tpu.matmul %16, %17, %cst_16 {dimension_numbers = #tpu.dot_dimension_numbers<[1], [0], [0], [1], [0, 0, 1, 1], [], []>} : vector<2x512xbf16>, vector<512x128xbf16>, vector<2x128xf32> -> vector<2x128xf32>
    %19 = arith.truncf %15 : vector<2x512xf32> to vector<2x512xbf16>
    %c0_17 = arith.constant 0 : index
    %c0_18 = arith.constant 0 : index
    %20 = vector.load %arg8[%c0_17, %c0_18] : memref<512x128xbf16, #tpu.memory_space<vmem>>, vector<512x128xbf16>
    %cst_19 = arith.constant dense<0.000000e+00> : vector<2x128xf32>
    %21 = tpu.matmul %19, %20, %cst_19 {dimension_numbers = #tpu.dot_dimension_numbers<[1], [0], [0], [1], [0, 0, 1, 1], [], []>} : vector<2x512xbf16>, vector<512x128xbf16>, vector<2x128xf32> -> vector<2x128xf32>
    %22 = arith.addf %18, %21 : vector<2x128xf32>
    %c0_20 = arith.constant 0 : index
    %c0_21 = arith.constant 0 : index
    %23 = vector.load %arg9[%c0_20, %c0_21] : memref<1x128xf32, #tpu.memory_space<vmem>>, vector<1x128xf32>
    %24 = vector.broadcast %23 : vector<1x128xf32> to vector<2x128xf32>
    %25 = arith.addf %22, %24 : vector<2x128xf32>
    %c0_22 = arith.constant 0 : index
    %c0_23 = arith.constant 0 : index
    %26 = vector.load %arg10[%c0_22, %c0_23] : memref<2x128xf32, #tpu.memory_space<vmem>>, vector<2x128xf32>
    tpu.vector_store %arg10[%c0_22, %c0_23], %25 {strides = array<i32>} : memref<2x128xf32, #tpu.memory_space<vmem>>, vector<2x128xf32>,
    return
  }
  func.func @transform_0(%arg0: i32) -> (i32, i32) {
    %c0_i32 = arith.constant 0 : i32
    %c0_i32_0 = arith.constant 0 : i32
    return %arg0, %c0_i32 : i32, i32
  }
  func.func @transform_1(%arg0: i32) -> (i32, i32) {
    %c0_i32 = arith.constant 0 : i32
    %c0_i32_0 = arith.constant 0 : i32
    return %arg0, %c0_i32 : i32, i32
  }
  func.func @transform_2(%arg0: i32) -> (i32, i32) {
    %c0_i32 = arith.constant 0 : i32
    %c0_i32_0 = arith.constant 0 : i32
    %c0_i32_1 = arith.constant 0 : i32
    return %c0_i32, %c0_i32_0 : i32, i32
  }
  func.func @transform_3(%arg0: i32) -> (i32, i32) {
    %c0_i32 = arith.constant 0 : i32
    %c0_i32_0 = arith.constant 0 : i32
    %c0_i32_1 = arith.constant 0 : i32
    return %c0_i32, %c0_i32_0 : i32, i32
  }
  func.func @transform_4(%arg0: i32) -> (i32, i32) {
    %c0_i32 = arith.constant 0 : i32
    %c0_i32_0 = arith.constant 0 : i32
    %c0_i32_1 = arith.constant 0 : i32
    return %c0_i32, %c0_i32_0 : i32, i32
  }
  func.func @transform_5(%arg0: i32) -> (i32, i32) {
    %c0_i32 = arith.constant 0 : i32
    %c0_i32_0 = arith.constant 0 : i32
    %c0_i32_1 = arith.constant 0 : i32
    return %c0_i32, %c0_i32_0 : i32, i32
  }
  func.func @transform_6(%arg0: i32) -> (i32, i32) {
    %c0_i32 = arith.constant 0 : i32
    %c0_i32_0 = arith.constant 0 : i32
    %c0_i32_1 = arith.constant 0 : i32
    return %c0_i32, %c0_i32_0 : i32, i32
  }
  func.func @transform_7(%arg0: i32) -> (i32, i32) {
    %c0_i32 = arith.constant 0 : i32
    %c0_i32_0 = arith.constant 0 : i32
    %c0_i32_1 = arith.constant 0 : i32
    return %c0_i32, %c0_i32_0 : i32, i32
  }
  func.func @transform_8(%arg0: i32) -> (i32, i32) {
    %c0_i32 = arith.constant 0 : i32
    %c0_i32_0 = arith.constant 0 : i32
    %c0_i32_1 = arith.constant 0 : i32
    return %c0_i32, %c0_i32_0 : i32, i32
  }
  func.func @transform_9(%arg0: i32) -> (i32, i32) {
    %c0_i32 = arith.constant 0 : i32
    %c0_i32_0 = arith.constant 0 : i32
    return %arg0, %c0_i32 : i32, i32
  }
}

</mosaic_0001>

<llo_original>
// kernel: sep_body_conv_forward.4
$region0: #{sep_body_conv_forward.4}
  #allocation0 [shape = 'u32[]', space=smem, size = 0x4, offset = 0x4, fixed_abs, tag = 'smem constant byte address 0x4 - core index']
  #allocation1 [shape = 'u32[144,128]{1,0:T(1,128)}', space=vmem, size = 0x12000, scoped, tag = 'internal scratch']
  %s0 = inlined_call_operand.vmem [shape: bf16[800,256], index: 0, kind: input, shape index: {}]
  %s1 = inlined_call_operand.vmem [shape: bf16[256,64], index: 1, kind: input, shape index: {}]
  %s2 = inlined_call_operand.vmem [shape: f32[1,64], index: 2, kind: input, shape index: {}]
  %s3 = inlined_call_operand.vmem [shape: bf16[800,64], index: 3, kind: output, shape index: {}]
  %s4 = sld [smem:[#allocation0]]
  $region45: #{sep_body_conv_forward.4} parent=0
    _
  %s6 = ssub.s32 1, %s4
  %s7 = scalar_select 0, %s6, %s4
  loop: start=0, step=1, limit=4
  $region2: #{sep_body_conv_forward.4} parent=0 // loop_pre_header
    _
  $region3: #{sep_body_conv_forward.4} parent=0 // loop_header
    %s9 = sphi 0, %s13
    %p10 = scmp.ge.s32.totalorder %s9, 4
    %s19 = sphi 0, %s21
    %s22 = sphi 0, %s19
    %s23 = sphi 0, %s22
    %s39 = sphi 0, %s23
    %s43 = sphi 0, %s43
    %s45 = sphi 0, %s43
    %s46 = sphi 0, %s45
    %s60 = sphi 0, %s46
    %s64 = sphi 0, %s64
    %s66 = sphi 0, %s64
    %s67 = sphi 0, %s66
    %s81 = sphi 0, %s67
    %s87 = sphi 0, %s89
    %s90 = sphi 0, %s87
    %s91 = sphi 0, %s90
    %s107 = sphi 0, %s91
  $region4: #{sep_body_conv_forward.4} parent=0 // loop_header_branch
    %12 = sbr.rel (%p10) target = $region8
  $region5: #{sep_body_conv_forward.4} parent=0 // loop_body
    %s14 = ssub.s32 %s9, 1
    %s15 = ssub.s32 %s9, 2
    %s16 = sadd.s32 %s9, 1
    %s17 = ssub.s32 %s9, %s16
    %p18 = scmp.eq.s32.totalorder %s17, 0
    %s20 = sadd.s32 %s19, 1
    %s21 = scalar_select %p18, %s19, %s20
    %p24 = pneg %p18
    %p25 = scmp.eq.s32.totalorder %s9, 1
    %p26 = por %p24, %p25
    %p27 = scmp.ne.s32.totalorder %s19, %s22
    %p28 = scmp.eq.s32.totalorder %s9, 0
    %p29 = por %p27, %p28
    %p30 = scmp.ne.s32.totalorder %s19, %s22
    %p31 = scmp.eq.s32.totalorder %s14, 1
    %p32 = por %p30, %p31
    %p33 = scmp.ne.s32.totalorder %s22, %s23
    %p34 = scmp.eq.s32.totalorder %s14, 0
    %p35 = por %p33, %p34
    %p36 = scmp.ne.s32.totalorder %s22, %s23
    %p37 = scmp.eq.s32.totalorder %s15, 1
    %p38 = por %p36, %p37
    %p40 = scmp.ne.s32.totalorder %s23, %s39
    %p41 = scmp.eq.s32.totalorder %s15, 0
    %p42 = por %p40, %p41
    %s44 = sadd.s32 %s43, 1
    %p47 = scmp.eq.s32.totalorder %s9, 1
    %p48 = scmp.ne.s32.totalorder %s43, %s45
    %p49 = scmp.eq.s32.totalorder %s9, 0
    %p50 = por %p48, %p49
    %p51 = scmp.ne.s32.totalorder %s43, %s45
    %p52 = scmp.eq.s32.totalorder %s14, 1
    %p53 = por %p51, %p52
    %p54 = scmp.ne.s32.totalorder %s45, %s46
    %p55 = scmp.eq.s32.totalorder %s14, 0
    %p56 = por %p54, %p55
    %p57 = scmp.ne.s32.totalorder %s45, %s46
    %p58 = scmp.eq.s32.totalorder %s15, 1
    %p59 = por %p57, %p58
    %p61 = scmp.ne.s32.totalorder %s46, %s60
    %p62 = scmp.eq.s32.totalorder %s15, 0
    %p63 = por %p61, %p62
    %s65 = sadd.s32 %s64, 1
    %p68 = scmp.eq.s32.totalorder %s9, 1
    %p69 = scmp.ne.s32.totalorder %s64, %s66
    %p70 = scmp.eq.s32.totalorder %s9, 0
    %p71 = por %p69, %p70
    %p72 = scmp.ne.s32.totalorder %s64, %s66
    %p73 = scmp.eq.s32.totalorder %s14, 1
    %p74 = por %p72, %p73
    %p75 = scmp.ne.s32.totalorder %s66, %s67
    %p76 = scmp.eq.s32.totalorder %s14, 0
    %p77 = por %p75, %p76
    %p78 = scmp.ne.s32.totalorder %s66, %s67
    %p79 = scmp.eq.s32.totalorder %s15, 1
    %p80 = por %p78, %p79
    %p82 = scmp.ne.s32.totalorder %s67, %s81
    %p83 = scmp.eq.s32.totalorder %s15, 0
    %p84 = por %p82, %p83
    %s85 = ssub.s32 %s9, %s16
    %p86 = scmp.eq.s32.totalorder %s85, 0
    %s88 = sadd.s32 %s87, 1
    %s89 = scalar_select %p86, %s87, %s88
    %p92 = pneg %p86
    %p93 = scmp.eq.s32.totalorder %s9, 1
    %p94 = por %p92, %p93
    %p95 = scmp.ne.s32.totalorder %s87, %s90
    %p96 = scmp.eq.s32.totalorder %s9, 0
    %p97 = por %p95, %p96
    %p98 = scmp.ne.s32.totalorder %s87, %s90
    %p99 = scmp.eq.s32.totalorder %s14, 1
    %p100 = por %p98, %p99
    %p101 = scmp.ne.s32.totalorder %s90, %s91
    %p102 = scmp.eq.s32.totalorder %s14, 0
    %p103 = por %p101, %p102
    %p104 = scmp.ne.s32.totalorder %s90, %s91
    %p105 = scmp.eq.s32.totalorder %s15, 1
    %p106 = por %p104, %p105
    %p108 = scmp.ne.s32.totalorder %s91, %s107
    %p109 = scmp.eq.s32.totalorder %s15, 0
    %p110 = por %p108, %p109
    %p111 = scmp.le.s32.totalorder 1, %s9
    %p112 = scmp.lt.s32.totalorder %s9, 3
    %p113 = pnand %p111, %p112
    %p114 = pneg %p113
    // Predicated region
    $region9: #{sep_body_conv_forward.4} parent=5 // pred_check
      _
    $region10: #{sep_body_conv_forward.4} parent=5 // pred_check_branch
      %116 = sbr.rel (%p113) target = $region12
    $region11: #{sep_body_conv_forward.4} parent=5 // pred_region
      %s117 = ssub.s32 %s9, 1
      // Predicated region
      $region13: #{sep_body_conv_forward.4} parent=11 // pred_check
        %p118 = pneg %p56
      $region14: #{sep_body_conv_forward.4} parent=11 // pred_check_branch
        %120 = sbr.rel (%p118) target = $region16
      $region15: #{sep_body_conv_forward.4} parent=11 // pred_region
        _
      $region16: #{sep_body_conv_forward.4} parent=11 // pred_fallthru
        _
      // Predicated region
      $region17: #{sep_body_conv_forward.4} parent=11 // pred_check
        %p121 = pneg %p77
      $region18: #{sep_body_conv_forward.4} parent=11 // pred_check_branch
        %123 = sbr.rel (%p121) target = $region20
      $region19: #{sep_body_conv_forward.4} parent=11 // pred_region
        _
      $region20: #{sep_body_conv_forward.4} parent=11 // pred_fallthru
        _
    $region12: #{sep_body_conv_forward.4} parent=5 // pred_fallthru
      _
    %p124 = scmp.lt.s32.totalorder %s9, 2
    // Predicated region
    $region21: #{sep_body_conv_forward.4} parent=5 // pred_check
      %p125 = pneg %p124
    $region22: #{sep_body_conv_forward.4} parent=5 // pred_check_branch
      %127 = sbr.rel (%p125) target = $region24
    $region23: #{sep_body_conv_forward.4} parent=5 // pred_region
      // Predicated region
      $region25: #{sep_body_conv_forward.4} parent=23 // pred_check
        %p128 = pneg %p29
      $region26: #{sep_body_conv_forward.4} parent=23 // pred_check_branch
        %130 = sbr.rel (%p128) target = $region28
      $region27: #{sep_body_conv_forward.4} parent=23 // pred_region
        %s131 = smul.u32 50, %s9
        %p132 = scmp.lt.s32.totalorder %s131, 99
        %s133 = scalar_select %p132, %s131, 99
        %s134 = smul.addr %s133, 2
        %s135 = smul.addr %s134, 4
        %s136 = scalar_lea.vmem %s0, %s135
        %s137 = smul.u32 50, %s9
      $region28: #{sep_body_conv_forward.4} parent=23 // pred_fallthru
        _
    $region24: #{sep_body_conv_forward.4} parent=5 // pred_fallthru
      _
    %p138 = scmp.le.s32.totalorder 1, %s9
    %p139 = scmp.lt.s32.totalorder %s9, 3
    %p140 = pnand %p138, %p139
    %p141 = pneg %p140
    // Predicated region
    $region29: #{sep_body_conv_forward.4} parent=5 // pred_check
      _
    $region30: #{sep_body_conv_forward.4} parent=5 // pred_check_branch
      %143 = sbr.rel (%p140) target = $region32
    $region31: #{sep_body_conv_forward.4} parent=5 // pred_region
      %s144 = ssub.s32 %s9, 1
      %s145 = smul.u32 50, %s14
      %p146 = scmp.lt.s32.totalorder %s145, 99
      %s147 = scalar_select %p146, %s145, 99
      %s148 = smul.addr %s147, 2
      %s149 = smul.addr %s148, 4
      %s150 = scalar_lea.vmem %s0, %s149
      %p151 = pneg %p35
      %p152 = pneg %p32
      %p153 = pneg %p56
      %p154 = pneg %p53
      %p155 = pneg %p77
      %p156 = pneg %p74
      %p157 = pneg %p103
      %p158 = pneg %p100
      %s159 = smul.u32 50, %s14
      %p160 = scmp.lt.s32.totalorder %s159, 99
      %s161 = scalar_select %p160, %s159, 99
      %s162 = smul.addr %s161, 4
      %s163 = scalar_lea.vmem %s3, %s162
      %s164 = smul.u32 50, %s14
      %p165 = scmp.lt.s32.totalorder %s164, 99
      %s166 = scalar_select %p165, %s164, 99
      %s167 = smul.addr %s166, 2
      %s168 = smul.addr %s167, 4
      %s169 = scalar_lea.vmem %s0, %s168
      %s170 = smul.u32 50, %s14
      %s171 = smul.u32 50, %s14
      %p172 = scmp.lt.s32.totalorder %s171, 99
      %s173 = scalar_select %p172, %s171, 99
      %s174 = smul.addr %s173, 4
      %s175 = scalar_lea.vmem %s3, %s174
      %s176 = smul.u32 50, %s14
      %v178 = vld [vmem:[%s169] sm:$0xff]
      %v179 = vld [vmem:[%s169 + $0x8] sm:$0xff]
      %v180 = vld [vmem:[%s169 + $0x10] sm:$0xff]
      %v181 = vld [vmem:[%s169 + $0x18] sm:$0xff]
      %v182 = vld [vmem:[%s169 + $0x20] sm:$0xff]
      %v183 = vld [vmem:[%s169 + $0x28] sm:$0xff]
      %v184 = vld [vmem:[%s169 + $0x30] sm:$0xff]
      %v185 = vld [vmem:[%s169 + $0x38] sm:$0xff]
      %v186 = vld [vmem:[%s169 + $0x40] sm:$0xff]
      %v187 = vld [vmem:[%s169 + $0x48] sm:$0xff]
      %v188 = vld [vmem:[%s169 + $0x50] sm:$0xff]
      %v189 = vld [vmem:[%s169 + $0x58] sm:$0xff]
      %v190 = vld [vmem:[%s169 + $0x60] sm:$0xff]
      %v191 = vld [vmem:[%s169 + $0x68] sm:$0xff]
      %v192 = vld [vmem:[%s169 + $0x70] sm:$0xff]
      %v193 = vld [vmem:[%s169 + $0x78] sm:$0xff]
      %v194 = vld [vmem:[%s169 + $0x80] sm:$0xff]
      %v195 = vld [vmem:[%s169 + $0x88] sm:$0xff]
      %v196 = vld [vmem:[%s169 + $0x90] sm:$0xff]
      %v197 = vld [vmem:[%s169 + $0x98] sm:$0xff]
      %v198 = vld [vmem:[%s169 + $0xa0] sm:$0xff]
      %v199 = vld [vmem:[%s169 + $0xa8] sm:$0xff]
      %v200 = vld [vmem:[%s169 + $0xb0] sm:$0xff]
      %v201 = vld [vmem:[%s169 + $0xb8] sm:$0xff]
      %v202 = vld [vmem:[%s169 + $0xc0] sm:$0xff]
      %v203 = vld [vmem:[%s169 + $0xc8] sm:$0xff]
      %v204 = vld [vmem:[%s169 + $0xd0] sm:$0xff]
      %v205 = vld [vmem:[%s169 + $0xd8] sm:$0xff]
      %v206 = vld [vmem:[%s169 + $0xe0] sm:$0xff]
      %v207 = vld [vmem:[%s169 + $0xe8] sm:$0xff]
      %v208 = vld [vmem:[%s169 + $0xf0] sm:$0xff]
      %v209 = vld [vmem:[%s169 + $0xf8] sm:$0xff]
      %v210 = vld [vmem:[%s169 + $0x100] sm:$0xff]
      %v211 = vld [vmem:[%s169 + $0x108] sm:$0xff]
      %v212 = vld [vmem:[%s169 + $0x110] sm:$0xff]
      %v213 = vld [vmem:[%s169 + $0x118] sm:$0xff]
      %v214 = vld [vmem:[%s169 + $0x120] sm:$0xff]
      %v215 = vld [vmem:[%s169 + $0x128] sm:$0xff]
      %v216 = vld [vmem:[%s169 + $0x130] sm:$0xff]
      %v217 = vld [vmem:[%s169 + $0x138] sm:$0xff]
      %v218 = vld [vmem:[%s169 + $0x140] sm:$0xff]
      %v219 = vld [vmem:[%s169 + $0x148] sm:$0xff]
      %v220 = vld [vmem:[%s169 + $0x150] sm:$0xff]
      %v221 = vld [vmem:[%s169 + $0x158] sm:$0xff]
      %v222 = vld [vmem:[%s169 + $0x160] sm:$0xff]
      %v223 = vld [vmem:[%s169 + $0x168] sm:$0xff]
      %v224 = vld [vmem:[%s169 + $0x170] sm:$0xff]
      %v225 = vld [vmem:[%s169 + $0x178] sm:$0xff]
      %v226 = vld [vmem:[%s169 + $0x180] sm:$0xff]
      %v227 = vld [vmem:[%s169 + $0x188] sm:$0xff]
      %v228 = vld [vmem:[%s1] sm:$0xf]
      %v229 = vld [vmem:[%s1 + $0x4] sm:$0xf]
      %v230 = vld [vmem:[%s1 + $0x8] sm:$0xf]
      %v231 = vld [vmem:[%s1 + $0xc] sm:$0xf]
      %v232 = vld [vmem:[%s1 + $0x10] sm:$0xf]
      %v233 = vld [vmem:[%s1 + $0x14] sm:$0xf]
      %v234 = vld [vmem:[%s1 + $0x18] sm:$0xf]
      %v235 = vld [vmem:[%s1 + $0x1c] sm:$0xf]
      %v236 = vld [vmem:[%s1 + $0x20] sm:$0xf]
      %v237 = vld [vmem:[%s1 + $0x24] sm:$0xf]
      %v238 = vld [vmem:[%s1 + $0x28] sm:$0xf]
      %v239 = vld [vmem:[%s1 + $0x2c] sm:$0xf]
      %v240 = vld [vmem:[%s1 + $0x30] sm:$0xf]
      %v241 = vld [vmem:[%s1 + $0x34] sm:$0xf]
      %v242 = vld [vmem:[%s1 + $0x38] sm:$0xf]
      %v243 = vld [vmem:[%s1 + $0x3c] sm:$0xf]
      %v244 = vld [vmem:[%s1 + $0x40] sm:$0xf]
      %v245 = vld [vmem:[%s1 + $0x44] sm:$0xf]
      %v246 = vld [vmem:[%s1 + $0x48] sm:$0xf]
      %v247 = vld [vmem:[%s1 + $0x4c] sm:$0xf]
      %v248 = vld [vmem:[%s1 + $0x50] sm:$0xf]
      %v249 = vld [vmem:[%s1 + $0x54] sm:$0xf]
      %v250 = vld [vmem:[%s1 + $0x58] sm:$0xf]
      %v251 = vld [vmem:[%s1 + $0x5c] sm:$0xf]
      %v252 = vld [vmem:[%s1 + $0x60] sm:$0xf]
      %v253 = vld [vmem:[%s1 + $0x64] sm:$0xf]
      %v254 = vld [vmem:[%s1 + $0x68] sm:$0xf]
      %v255 = vld [vmem:[%s1 + $0x6c] sm:$0xf]
      %v256 = vld [vmem:[%s1 + $0x70] sm:$0xf]
      %v257 = vld [vmem:[%s1 + $0x74] sm:$0xf]
      %v258 = vld [vmem:[%s1 + $0x78] sm:$0xf]
      %v259 = vld [vmem:[%s1 + $0x7c] sm:$0xf]
      %v260 = vld [vmem:[%s2] sm:$0x1]
      %v262 = vlaneseq
      %v263 = vshrl.u32 %v262, 7
      %v264 = vsub.s32 0, %v263
      %v265 = vrot.slane %v260, %v264
      %v317 = vunpack.c.l.b16 %v178
      %v318 = vunpack.c.h.b16 %v178
      %v319 = vunpack.c.l.b16 %v179
      %v320 = vunpack.c.h.b16 %v179
      %v321 = vunpack.c.l.b16 %v180
      %v322 = vunpack.c.h.b16 %v180
      %v323 = vunpack.c.l.b16 %v181
      %v324 = vunpack.c.h.b16 %v181
      %v325 = vunpack.c.l.b16 %v182
      %v326 = vunpack.c.h.b16 %v182
      %v327 = vunpack.c.l.b16 %v183
      %v328 = vunpack.c.h.b16 %v183
      %v329 = vunpack.c.l.b16 %v184
      %v330 = vunpack.c.h.b16 %v184
      %v331 = vunpack.c.l.b16 %v185
      %v332 = vunpack.c.h.b16 %v185
      %v333 = vunpack.c.l.b16 %v186
      %v334 = vunpack.c.h.b16 %v186
      %v335 = vunpack.c.l.b16 %v187
      %v336 = vunpack.c.h.b16 %v187
      %v337 = vunpack.c.l.b16 %v188
      %v338 = vunpack.c.h.b16 %v188
      %v339 = vunpack.c.l.b16 %v189
      %v340 = vunpack.c.h.b16 %v189
      %v341 = vunpack.c.l.b16 %v190
      %v342 = vunpack.c.h.b16 %v190
      %v343 = vunpack.c.l.b16 %v191
      %v344 = vunpack.c.h.b16 %v191
      %v345 = vunpack.c.l.b16 %v192
      %v346 = vunpack.c.h.b16 %v192
      %v347 = vunpack.c.l.b16 %v193
      %v348 = vunpack.c.h.b16 %v193
      %v349 = vunpack.c.l.b16 %v194
      %v350 = vunpack.c.h.b16 %v194
      %v351 = vunpack.c.l.b16 %v195
      %v352 = vunpack.c.h.b16 %v195
      %v353 = vunpack.c.l.b16 %v196
      %v354 = vunpack.c.h.b16 %v196
      %v355 = vunpack.c.l.b16 %v197
      %v356 = vunpack.c.h.b16 %v197
      %v357 = vunpack.c.l.b16 %v198
      %v358 = vunpack.c.h.b16 %v198
      %v359 = vunpack.c.l.b16 %v199
      %v360 = vunpack.c.h.b16 %v199
      %v361 = vunpack.c.l.b16 %v200
      %v362 = vunpack.c.h.b16 %v200
      %v363 = vunpack.c.l.b16 %v201
      %v364 = vunpack.c.h.b16 %v201
      %v365 = vunpack.c.l.b16 %v202
      %v366 = vunpack.c.h.b16 %v202
      %v367 = vunpack.c.l.b16 %v203
      %v368 = vunpack.c.h.b16 %v203
      %v369 = vunpack.c.l.b16 %v204
      %v370 = vunpack.c.h.b16 %v204
      %v371 = vunpack.c.l.b16 %v205
      %v372 = vunpack.c.h.b16 %v205
      %v373 = vunpack.c.l.b16 %v206
      %v374 = vunpack.c.h.b16 %v206
      %v375 = vunpack.c.l.b16 %v207
      %v376 = vunpack.c.h.b16 %v207
      %v377 = vunpack.c.l.b16 %v208
      %v378 = vunpack.c.h.b16 %v208
      %v379 = vunpack.c.l.b16 %v209
      %v380 = vunpack.c.h.b16 %v209
      %v381 = vunpack.c.l.b16 %v210
      %v382 = vunpack.c.h.b16 %v210
      %v383 = vunpack.c.l.b16 %v211
      %v384 = vunpack.c.h.b16 %v211
      %v385 = vunpack.c.l.b16 %v212
      %v386 = vunpack.c.h.b16 %v212
      %v387 = vunpack.c.l.b16 %v213
      %v388 = vunpack.c.h.b16 %v213
      %v389 = vunpack.c.l.b16 %v214
      %v390 = vunpack.c.h.b16 %v214
      %v391 = vunpack.c.l.b16 %v215
      %v392 = vunpack.c.h.b16 %v215
      %v393 = vunpack.c.l.b16 %v216
      %v394 = vunpack.c.h.b16 %v216
      %v395 = vunpack.c.l.b16 %v217
      %v396 = vunpack.c.h.b16 %v217
      %v397 = vunpack.c.l.b16 %v218
      %v398 = vunpack.c.h.b16 %v218
      %v399 = vunpack.c.l.b16 %v219
      %v400 = vunpack.c.h.b16 %v219
      %v401 = vunpack.c.l.b16 %v220
      %v402 = vunpack.c.h.b16 %v220
      %v403 = vunpack.c.l.b16 %v221
      %v404 = vunpack.c.h.b16 %v221
      %v405 = vunpack.c.l.b16 %v222
      %v406 = vunpack.c.h.b16 %v222
      %v407 = vunpack.c.l.b16 %v223
      %v408 = vunpack.c.h.b16 %v223
      %v409 = vunpack.c.l.b16 %v224
      %v410 = vunpack.c.h.b16 %v224
      %v411 = vunpack.c.l.b16 %v225
      %v412 = vunpack.c.h.b16 %v225
      %v413 = vunpack.c.l.b16 %v226
      %v414 = vunpack.c.h.b16 %v226
      %v415 = vunpack.c.l.b16 %v227
      %v416 = vunpack.c.h.b16 %v227
      %v417 = vpack.c.b16 %v319, %v317
      %v418 = vpack.c.b16 %v320, %v318
      %v419 = vpack.c.b16 %v323, %v321
      %v420 = vpack.c.b16 %v324, %v322
      %v421 = vpack.c.b16 %v327, %v325
      %v422 = vpack.c.b16 %v328, %v326
      %v423 = vpack.c.b16 %v331, %v329
      %v424 = vpack.c.b16 %v332, %v330
      %v425 = vpack.c.b16 %v335, %v333
      %v426 = vpack.c.b16 %v336, %v334
      %v427 = vpack.c.b16 %v339, %v337
      %v428 = vpack.c.b16 %v340, %v338
      %v429 = vpack.c.b16 %v343, %v341
      %v430 = vpack.c.b16 %v344, %v342
      %v431 = vpack.c.b16 %v347, %v345
      %v432 = vpack.c.b16 %v348, %v346
      %v433 = vpack.c.b16 %v351, %v349
      %v434 = vpack.c.b16 %v352, %v350
      %v435 = vpack.c.b16 %v355, %v353
      %v436 = vpack.c.b16 %v356, %v354
      %v437 = vpack.c.b16 %v359, %v357
      %v438 = vpack.c.b16 %v360, %v358
      %v439 = vpack.c.b16 %v363, %v361
      %v440 = vpack.c.b16 %v364, %v362
      %v441 = vpack.c.b16 %v367, %v365
      %v442 = vpack.c.b16 %v368, %v366
      %v443 = vpack.c.b16 %v371, %v369
      %v444 = vpack.c.b16 %v372, %v370
      %v445 = vpack.c.b16 %v375, %v373
      %v446 = vpack.c.b16 %v376, %v374
      %v447 = vpack.c.b16 %v379, %v377
      %v448 = vpack.c.b16 %v380, %v378
      %v449 = vpack.c.b16 %v383, %v381
      %v450 = vpack.c.b16 %v384, %v382
      %v451 = vpack.c.b16 %v387, %v385
      %v452 = vpack.c.b16 %v388, %v386
      %v453 = vpack.c.b16 %v391, %v389
      %v454 = vpack.c.b16 %v392, %v390
      %v455 = vpack.c.b16 %v395, %v393
      %v456 = vpack.c.b16 %v396, %v394
      %v457 = vpack.c.b16 %v399, %v397
      %v458 = vpack.c.b16 %v400, %v398
      %v459 = vpack.c.b16 %v403, %v401
      %v460 = vpack.c.b16 %v404, %v402
      %v461 = vpack.c.b16 %v407, %v405
      %v462 = vpack.c.b16 %v408, %v406
      %v463 = vpack.c.b16 %v411, %v409
      %v464 = vpack.c.b16 %v412, %v410
      %v465 = vpack.c.b16 %v415, %v413
      %v466 = vpack.c.b16 %v416, %v414
      %v549 = vunpack.c.l.b16 %v228
      %v550 = vunpack.c.l.b16 %v229
      %v551 = vunpack.c.l.b16 %v230
      %v552 = vunpack.c.l.b16 %v231
      %v553 = vunpack.c.l.b16 %v232
      %v554 = vunpack.c.l.b16 %v233
      %v555 = vunpack.c.l.b16 %v234
      %v556 = vunpack.c.l.b16 %v235
      %v557 = vunpack.c.l.b16 %v236
      %v558 = vunpack.c.l.b16 %v237
      %v559 = vunpack.c.l.b16 %v238
      %v560 = vunpack.c.l.b16 %v239
      %v561 = vunpack.c.l.b16 %v240
      %v562 = vunpack.c.l.b16 %v241
      %v563 = vunpack.c.l.b16 %v242
      %v564 = vunpack.c.l.b16 %v243
      %v565 = vunpack.c.l.b16 %v244
      %v566 = vunpack.c.l.b16 %v245
      %v567 = vunpack.c.l.b16 %v246
      %v568 = vunpack.c.l.b16 %v247
      %v569 = vunpack.c.l.b16 %v248
      %v570 = vunpack.c.l.b16 %v249
      %v571 = vunpack.c.l.b16 %v250
      %v572 = vunpack.c.l.b16 %v251
      %v573 = vunpack.c.l.b16 %v252
      %v574 = vunpack.c.l.b16 %v253
      %v575 = vunpack.c.l.b16 %v254
      %v576 = vunpack.c.l.b16 %v255
      %v577 = vunpack.c.l.b16 %v256
      %v578 = vunpack.c.l.b16 %v257
      %v579 = vunpack.c.l.b16 %v258
      %v580 = vunpack.c.l.b16 %v259
      %v581 = vpack.c.b16 %v550, %v549
      %v582 = vpack.c.b16 %v552, %v551
      %v583 = vpack.c.b16 %v554, %v553
      %v584 = vpack.c.b16 %v556, %v555
      %v585 = vpack.c.b16 %v558, %v557
      %v586 = vpack.c.b16 %v560, %v559
      %v587 = vpack.c.b16 %v562, %v561
      %v588 = vpack.c.b16 %v564, %v563
      %v589 = vpack.c.b16 %v566, %v565
      %v590 = vpack.c.b16 %v568, %v567
      %v591 = vpack.c.b16 %v570, %v569
      %v592 = vpack.c.b16 %v572, %v571
      %v593 = vpack.c.b16 %v574, %v573
      %v594 = vpack.c.b16 %v576, %v575
      %v595 = vpack.c.b16 %v578, %v577
      %v596 = vpack.c.b16 %v580, %v579
      %613 = vmatprep.subr.bf16.mxu0 0
      %614 = vmatpush1.bf16.msra.mxu0 %v581
      %615 = vmatprep.subr.bf16.mxu0 0
      %616 = vmatpush1.bf16.msra.mxu0 %v582
      %617 = vmatprep.subr.bf16.mxu0 0
      %618 = vmatpush1.bf16.msra.mxu0 %v583
      %619 = vmatprep.subr.bf16.mxu0 0
      %620 = vmatpush1.bf16.msra.mxu0 %v584
      %621 = vmatprep.subr.bf16.mxu0 0
      %622 = vmatpush1.bf16.msra.mxu0 %v585
      %623 = vmatprep.subr.bf16.mxu0 0
      %624 = vmatpush1.bf16.msra.mxu0 %v586
      %625 = vmatprep.subr.bf16.mxu0 0
      %626 = vmatpush1.bf16.msra.mxu0 %v587
      %627 = vmatprep.subr.bf16.mxu0 0
      %628 = vmatpush1.bf16.msra.mxu0 %v588
      %629 = vmatprep.subr.bf16.mxu0 0
      %630 = vmatpush1.bf16.msra.mxu0 %v589
      %631 = vmatprep.subr.bf16.mxu0 0
      %632 = vmatpush1.bf16.msra.mxu0 %v590
      %633 = vmatprep.subr.bf16.mxu0 0
      %634 = vmatpush1.bf16.msra.mxu0 %v591
      %635 = vmatprep.subr.bf16.mxu0 0
      %636 = vmatpush1.bf16.msra.mxu0 %v592
      %637 = vmatprep.subr.bf16.mxu0 0
      %638 = vmatpush1.bf16.msra.mxu0 %v593
      %639 = vmatprep.subr.bf16.mxu0 0
      %640 = vmatpush1.bf16.msra.mxu0 %v594
      %641 = vmatprep.subr.bf16.mxu0 0
      %642 = vmatpush1.bf16.msra.mxu0 %v595
      %643 = vmatprep.subr.bf16.mxu0 0
      %644 = vmatpush1.bf16.msra.mxu0 %v596
      %645 = vmatprep.mubr.bf16.mxu0 %v418
      %646 = vmatmul.mubr.bf16.gmra.mrb[0].mxu0 %v417
      %v647 = vpop.f32.mrb[0].mxu0
      %v648 = vadd.f32 %v265, %v647
      %v649 = vpop.f32.mrb[0].mxu0
      %v650 = vpop.f32.mrb[0].mxu0
      %v651 = vadd.f32 %v265, %v650
      %v652 = vpop.f32.mrb[0].mxu0
      %653 = vmatprep.mubr.bf16.mxu0 %v420
      %654 = vmatmul.mubr.bf16.gmra.mrb[0].mxu0 %v419
      %v655 = vpop.f32.mrb[0].mxu0
      %v656 = vadd.f32 %v265, %v655
      %v657 = vpop.f32.mrb[0].mxu0
      %v658 = vpop.f32.mrb[0].mxu0
      %v659 = vadd.f32 %v265, %v658
      %v660 = vpop.f32.mrb[0].mxu0
      %661 = vmatprep.mubr.bf16.mxu0 %v422
      %662 = vmatmul.mubr.bf16.gmra.mrb[0].mxu0 %v421
      %v663 = vpop.f32.mrb[0].mxu0
      %v664 = vadd.f32 %v265, %v663
      %v665 = vpop.f32.mrb[0].mxu0
      %v666 = vpop.f32.mrb[0].mxu0
      %v667 = vadd.f32 %v265, %v666
      %v668 = vpop.f32.mrb[0].mxu0
      %669 = vmatprep.mubr.bf16.mxu0 %v424
      %670 = vmatmul.mubr.bf16.gmra.mrb[0].mxu0 %v423
      %v671 = vpop.f32.mrb[0].mxu0
      %v672 = vadd.f32 %v265, %v671
      %v673 = vpop.f32.mrb[0].mxu0
      %v674 = vpop.f32.mrb[0].mxu0
      %v675 = vadd.f32 %v265, %v674
      %v676 = vpop.f32.mrb[0].mxu0
      %677 = vmatprep.mubr.bf16.mxu0 %v426
      %678 = vmatmul.mubr.bf16.gmra.mrb[0].mxu0 %v425
      %v679 = vpop.f32.mrb[0].mxu0
      %v680 = vadd.f32 %v265, %v679
      %v681 = vpop.f32.mrb[0].mxu0
      %v682 = vpop.f32.mrb[0].mxu0
      %v683 = vadd.f32 %v265, %v682
      %v684 = vpop.f32.mrb[0].mxu0
      %685 = vmatprep.mubr.bf16.mxu0 %v428
      %686 = vmatmul.mubr.bf16.gmra.mrb[0].mxu0 %v427
      %v687 = vpop.f32.mrb[0].mxu0
      %v688 = vadd.f32 %v265, %v687
      %v689 = vpop.f32.mrb[0].mxu0
      %v690 = vpop.f32.mrb[0].mxu0
      %v691 = vadd.f32 %v265, %v690
      %v692 = vpop.f32.mrb[0].mxu0
      %693 = vmatprep.mubr.bf16.mxu0 %v430
      %694 = vmatmul.mubr.bf16.gmra.mrb[0].mxu0 %v429
      %v695 = vpop.f32.mrb[0].mxu0
      %v696 = vadd.f32 %v265, %v695
      %v697 = vpop.f32.mrb[0].mxu0
      %v698 = vpop.f32.mrb[0].mxu0
      %v699 = vadd.f32 %v265, %v698
      %v700 = vpop.f32.mrb[0].mxu0
      %701 = vmatprep.mubr.bf16.mxu0 %v432
      %702 = vmatmul.mubr.bf16.gmra.mrb[0].mxu0 %v431
      %v703 = vpop.f32.mrb[0].mxu0
      %v704 = vadd.f32 %v265, %v703
      %v705 = vpop.f32.mrb[0].mxu0
      %v706 = vpop.f32.mrb[0].mxu0
      %v707 = vadd.f32 %v265, %v706
      %v708 = vpop.f32.mrb[0].mxu0
      %709 = vmatprep.mubr.bf16.mxu0 %v434
      %710 = vmatmul.mubr.bf16.gmra.mrb[0].mxu0 %v433
      %v711 = vpop.f32.mrb[0].mxu0
      %v712 = vadd.f32 %v265, %v711
      %v713 = vpop.f32.mrb[0].mxu0
      %v714 = vpop.f32.mrb[0].mxu0
      %v715 = vadd.f32 %v265, %v714
      %v716 = vpop.f32.mrb[0].mxu0
      %717 = vmatprep.mubr.bf16.mxu0 %v436
      %718 = vmatmul.mubr.bf16.gmra.mrb[0].mxu0 %v435
      %v719 = vpop.f32.mrb[0].mxu0
      %v720 = vadd.f32 %v265, %v719
      %v721 = vpop.f32.mrb[0].mxu0
      %v722 = vpop.f32.mrb[0].mxu0
      %v723 = vadd.f32 %v265, %v722
      %v724 = vpop.f32.mrb[0].mxu0
      %725 = vmatprep.mubr.bf16.mxu0 %v438
      %726 = vmatmul.mubr.bf16.gmra.mrb[0].mxu0 %v437
      %v727 = vpop.f32.mrb[0].mxu0
      %v728 = vadd.f32 %v265, %v727
      %v729 = vpop.f32.mrb[0].mxu0
      %v730 = vpop.f32.mrb[0].mxu0
      %v731 = vadd.f32 %v265, %v730
      %v732 = vpop.f32.mrb[0].mxu0
      %733 = vmatprep.mubr.bf16.mxu0 %v440
      %734 = vmatmul.mubr.bf16.gmra.mrb[0].mxu0 %v439
      %v735 = vpop.f32.mrb[0].mxu0
      %v736 = vadd.f32 %v265, %v735
      %v737 = vpop.f32.mrb[0].mxu0
      %v738 = vpop.f32.mrb[0].mxu0
      %v739 = vadd.f32 %v265, %v738
      %v740 = vpop.f32.mrb[0].mxu0
      %741 = vmatprep.mubr.bf16.mxu0 %v442
      %742 = vmatmul.mubr.bf16.gmra.mrb[0].mxu0 %v441
      %v743 = vpop.f32.mrb[0].mxu0
      %v744 = vadd.f32 %v265, %v743
      %v745 = vpop.f32.mrb[0].mxu0
      %v746 = vpop.f32.mrb[0].mxu0
      %v747 = vadd.f32 %v265, %v746
      %v748 = vpop.f32.mrb[0].mxu0
      %749 = vmatprep.mubr.bf16.mxu0 %v444
      %750 = vmatmul.mubr.bf16.gmra.mrb[0].mxu0 %v443
      %v751 = vpop.f32.mrb[0].mxu0
      %v752 = vadd.f32 %v265, %v751
      %v753 = vpop.f32.mrb[0].mxu0
      %v754 = vpop.f32.mrb[0].mxu0
      %v755 = vadd.f32 %v265, %v754
      %v756 = vpop.f32.mrb[0].mxu0
      %757 = vmatprep.mubr.bf16.mxu0 %v446
      %758 = vmatmul.mubr.bf16.gmra.mrb[0].mxu0 %v445
      %v759 = vpop.f32.mrb[0].mxu0
      %v760 = vadd.f32 %v265, %v759
      %v761 = vpop.f32.mrb[0].mxu0
      %v762 = vpop.f32.mrb[0].mxu0
      %v763 = vadd.f32 %v265, %v762
      %v764 = vpop.f32.mrb[0].mxu0
      %765 = vmatprep.mubr.bf16.mxu0 %v448
      %766 = vmatmul.mubr.bf16.gmra.mrb[0].mxu0 %v447
      %v767 = vpop.f32.mrb[0].mxu0
      %v768 = vadd.f32 %v265, %v767
      %v769 = vpop.f32.mrb[0].mxu0
      %v770 = vpop.f32.mrb[0].mxu0
      %v771 = vadd.f32 %v265, %v770
      %v772 = vpop.f32.mrb[0].mxu0
      %773 = vmatprep.mubr.bf16.mxu0 %v450
      %774 = vmatmul.mubr.bf16.gmra.mrb[0].mxu0 %v449
      %v775 = vpop.f32.mrb[0].mxu0
      %v776 = vadd.f32 %v265, %v775
      %v777 = vpop.f32.mrb[0].mxu0
      %v778 = vpop.f32.mrb[0].mxu0
      %v779 = vadd.f32 %v265, %v778
      %v780 = vpop.f32.mrb[0].mxu0
      %781 = vmatprep.mubr.bf16.mxu0 %v452
      %782 = vmatmul.mubr.bf16.gmra.mrb[0].mxu0 %v451
      %v783 = vpop.f32.mrb[0].mxu0
      %v784 = vadd.f32 %v265, %v783
      %v785 = vpop.f32.mrb[0].mxu0
      %v786 = vpop.f32.mrb[0].mxu0
      %v787 = vadd.f32 %v265, %v786
      %v788 = vpop.f32.mrb[0].mxu0
      %789 = vmatprep.mubr.bf16.mxu0 %v454
      %790 = vmatmul.mubr.bf16.gmra.mrb[0].mxu0 %v453
      %v791 = vpop.f32.mrb[0].mxu0
      %v792 = vadd.f32 %v265, %v791
      %v793 = vpop.f32.mrb[0].mxu0
      %v794 = vpop.f32.mrb[0].mxu0
      %v795 = vadd.f32 %v265, %v794
      %v796 = vpop.f32.mrb[0].mxu0
      %797 = vmatprep.mubr.bf16.mxu0 %v456
      %798 = vmatmul.mubr.bf16.gmra.mrb[0].mxu0 %v455
      %v799 = vpop.f32.mrb[0].mxu0
      %v800 = vadd.f32 %v265, %v799
      %v801 = vpop.f32.mrb[0].mxu0
      %v802 = vpop.f32.mrb[0].mxu0
      %v803 = vadd.f32 %v265, %v802
      %v804 = vpop.f32.mrb[0].mxu0
      %805 = vmatprep.mubr.bf16.mxu0 %v458
      %806 = vmatmul.mubr.bf16.gmra.mrb[0].mxu0 %v457
      %v807 = vpop.f32.mrb[0].mxu0
      %v808 = vadd.f32 %v265, %v807
      %v809 = vpop.f32.mrb[0].mxu0
      %v810 = vpop.f32.mrb[0].mxu0
      %v811 = vadd.f32 %v265, %v810
      %v812 = vpop.f32.mrb[0].mxu0
      %813 = vmatprep.mubr.bf16.mxu0 %v460
      %814 = vmatmul.mubr.bf16.gmra.mrb[0].mxu0 %v459
      %v815 = vpop.f32.mrb[0].mxu0
      %v816 = vadd.f32 %v265, %v815
      %v817 = vpop.f32.mrb[0].mxu0
      %v818 = vpop.f32.mrb[0].mxu0
      %v819 = vadd.f32 %v265, %v818
      %v820 = vpop.f32.mrb[0].mxu0
      %821 = vmatprep.mubr.bf16.mxu0 %v462
      %822 = vmatmul.mubr.bf16.gmra.mrb[0].mxu0 %v461
      %v823 = vpop.f32.mrb[0].mxu0
      %v824 = vadd.f32 %v265, %v823
      %v825 = vpop.f32.mrb[0].mxu0
      %v826 = vpop.f32.mrb[0].mxu0
      %v827 = vadd.f32 %v265, %v826
      %v828 = vpop.f32.mrb[0].mxu0
      %829 = vmatprep.mubr.bf16.mxu0 %v464
      %830 = vmatmul.mubr.bf16.gmra.mrb[0].mxu0 %v463
      %v831 = vpop.f32.mrb[0].mxu0
      %v832 = vadd.f32 %v265, %v831
      %v833 = vpop.f32.mrb[0].mxu0
      %v834 = vpop.f32.mrb[0].mxu0
      %v835 = vadd.f32 %v265, %v834
      %v836 = vpop.f32.mrb[0].mxu0
      %837 = vmatprep.mubr.bf16.mxu0 %v466
      %838 = vmatmul.mubr.bf16.gmra.mrb[0].mxu0 %v465
      %v839 = vpop.f32.mrb[0].mxu0
      %v840 = vadd.f32 %v265, %v839
      %v841 = vpop.f32.mrb[0].mxu0
      %v842 = vpop.f32.mrb[0].mxu0
      %v843 = vadd.f32 %v265, %v842
      %v844 = vpop.f32.mrb[0].mxu0
      %845 = vdwg.mxu0
      %v846 = vmax.f32 %v648, 0.0
      %v847 = vmax.f32 %v651, 0.0
      %v848 = vmax.f32 %v656, 0.0
      %v849 = vmax.f32 %v659, 0.0
      %v850 = vmax.f32 %v664, 0.0
      %v851 = vmax.f32 %v667, 0.0
      %v852 = vmax.f32 %v672, 0.0
      %v853 = vmax.f32 %v675, 0.0
      %v854 = vmax.f32 %v680, 0.0
      %v855 = vmax.f32 %v683, 0.0
      %v856 = vmax.f32 %v688, 0.0
      %v857 = vmax.f32 %v691, 0.0
      %v858 = vmax.f32 %v696, 0.0
      %v859 = vmax.f32 %v699, 0.0
      %v860 = vmax.f32 %v704, 0.0
      %v861 = vmax.f32 %v707, 0.0
      %v862 = vmax.f32 %v712, 0.0
      %v863 = vmax.f32 %v715, 0.0
      %v864 = vmax.f32 %v720, 0.0
      %v865 = vmax.f32 %v723, 0.0
      %v866 = vmax.f32 %v728, 0.0
      %v867 = vmax.f32 %v731, 0.0
      %v868 = vmax.f32 %v736, 0.0
      %v869 = vmax.f32 %v739, 0.0
      %v870 = vmax.f32 %v744, 0.0
      %v871 = vmax.f32 %v747, 0.0
      %v872 = vmax.f32 %v752, 0.0
      %v873 = vmax.f32 %v755, 0.0
      %v874 = vmax.f32 %v760, 0.0
      %v875 = vmax.f32 %v763, 0.0
      %v876 = vmax.f32 %v768, 0.0
      %v877 = vmax.f32 %v771, 0.0
      %v878 = vmax.f32 %v776, 0.0
      %v879 = vmax.f32 %v779, 0.0
      %v880 = vmax.f32 %v784, 0.0
      %v881 = vmax.f32 %v787, 0.0
      %v882 = vmax.f32 %v792, 0.0
      %v883 = vmax.f32 %v795, 0.0
      %v884 = vmax.f32 %v800, 0.0
      %v885 = vmax.f32 %v803, 0.0
      %v886 = vmax.f32 %v808, 0.0
      %v887 = vmax.f32 %v811, 0.0
      %v888 = vmax.f32 %v816, 0.0
      %v889 = vmax.f32 %v819, 0.0
      %v890 = vmax.f32 %v824, 0.0
      %v891 = vmax.f32 %v827, 0.0
      %v892 = vmax.f32 %v832, 0.0
      %v893 = vmax.f32 %v835, 0.0
      %v894 = vmax.f32 %v840, 0.0
      %v895 = vmax.f32 %v843, 0.0
      %v896 = vpack.c.bf16 %v847, %v846
      %v897 = vpack.c.bf16 %v849, %v848
      %v898 = vpack.c.bf16 %v851, %v850
      %v899 = vpack.c.bf16 %v853, %v852
      %v900 = vpack.c.bf16 %v855, %v854
      %v901 = vpack.c.bf16 %v857, %v856
      %v902 = vpack.c.bf16 %v859, %v858
      %v903 = vpack.c.bf16 %v861, %v860
      %v904 = vpack.c.bf16 %v863, %v862
      %v905 = vpack.c.bf16 %v865, %v864
      %v906 = vpack.c.bf16 %v867, %v866
      %v907 = vpack.c.bf16 %v869, %v868
      %v908 = vpack.c.bf16 %v871, %v870
      %v909 = vpack.c.bf16 %v873, %v872
      %v910 = vpack.c.bf16 %v875, %v874
      %v911 = vpack.c.bf16 %v877, %v876
      %v912 = vpack.c.bf16 %v879, %v878
      %v913 = vpack.c.bf16 %v881, %v880
      %v914 = vpack.c.bf16 %v883, %v882
      %v915 = vpack.c.bf16 %v885, %v884
      %v916 = vpack.c.bf16 %v887, %v886
      %v917 = vpack.c.bf16 %v889, %v888
      %v918 = vpack.c.bf16 %v891, %v890
      %v919 = vpack.c.bf16 %v893, %v892
      %v920 = vpack.c.bf16 %v895, %v894
      %v946 = vunpack.c.l.b16 %v896
      %v947 = vunpack.c.h.b16 %v896
      %v948 = vunpack.c.l.b16 %v897
      %v949 = vunpack.c.h.b16 %v897
      %v950 = vunpack.c.l.b16 %v898
      %v951 = vunpack.c.h.b16 %v898
      %v952 = vunpack.c.l.b16 %v899
      %v953 = vunpack.c.h.b16 %v899
      %v954 = vunpack.c.l.b16 %v900
      %v955 = vunpack.c.h.b16 %v900
      %v956 = vunpack.c.l.b16 %v901
      %v957 = vunpack.c.h.b16 %v901
      %v958 = vunpack.c.l.b16 %v902
      %v959 = vunpack.c.h.b16 %v902
      %v960 = vunpack.c.l.b16 %v903
      %v961 = vunpack.c.h.b16 %v903
      %v962 = vunpack.c.l.b16 %v904
      %v963 = vunpack.c.h.b16 %v904
      %v964 = vunpack.c.l.b16 %v905
      %v965 = vunpack.c.h.b16 %v905
      %v966 = vunpack.c.l.b16 %v906
      %v967 = vunpack.c.h.b16 %v906
      %v968 = vunpack.c.l.b16 %v907
      %v969 = vunpack.c.h.b16 %v907
      %v970 = vunpack.c.l.b16 %v908
      %v971 = vunpack.c.h.b16 %v908
      %v972 = vunpack.c.l.b16 %v909
      %v973 = vunpack.c.h.b16 %v909
      %v974 = vunpack.c.l.b16 %v910
      %v975 = vunpack.c.h.b16 %v910
      %v976 = vunpack.c.l.b16 %v911
      %v977 = vunpack.c.h.b16 %v911
      %v978 = vunpack.c.l.b16 %v912
      %v979 = vunpack.c.h.b16 %v912
      %v980 = vunpack.c.l.b16 %v913
      %v981 = vunpack.c.h.b16 %v913
      %v982 = vunpack.c.l.b16 %v914
      %v983 = vunpack.c.h.b16 %v914
      %v984 = vunpack.c.l.b16 %v915
      %v985 = vunpack.c.h.b16 %v915
      %v986 = vunpack.c.l.b16 %v916
      %v987 = vunpack.c.h.b16 %v916
      %v988 = vunpack.c.l.b16 %v917
      %v989 = vunpack.c.h.b16 %v917
      %v990 = vunpack.c.l.b16 %v918
      %v991 = vunpack.c.h.b16 %v918
      %v992 = vunpack.c.l.b16 %v919
      %v993 = vunpack.c.h.b16 %v919
      %v994 = vunpack.c.l.b16 %v920
      %v995 = vunpack.c.h.b16 %v920
      %v996 = vpack.c.b16 %v946, %v946
      %v997 = vpack.c.b16 %v947, %v947
      %v998 = vpack.c.b16 %v948, %v948
      %v999 = vpack.c.b16 %v949, %v949
      %v1000 = vpack.c.b16 %v950, %v950
      %v1001 = vpack.c.b16 %v951, %v951
      %v1002 = vpack.c.b16 %v952, %v952
      %v1003 = vpack.c.b16 %v953, %v953
      %v1004 = vpack.c.b16 %v954, %v954
      %v1005 = vpack.c.b16 %v955, %v955
      %v1006 = vpack.c.b16 %v956, %v956
      %v1007 = vpack.c.b16 %v957, %v957
      %v1008 = vpack.c.b16 %v958, %v958
      %v1009 = vpack.c.b16 %v959, %v959
      %v1010 = vpack.c.b16 %v960, %v960
      %v1011 = vpack.c.b16 %v961, %v961
      %v1012 = vpack.c.b16 %v962, %v962
      %v1013 = vpack.c.b16 %v963, %v963
      %v1014 = vpack.c.b16 %v964, %v964
      %v1015 = vpack.c.b16 %v965, %v965
      %v1016 = vpack.c.b16 %v966, %v966
      %v1017 = vpack.c.b16 %v967, %v967
      %v1018 = vpack.c.b16 %v968, %v968
      %v1019 = vpack.c.b16 %v969, %v969
      %v1020 = vpack.c.b16 %v970, %v970
      %v1021 = vpack.c.b16 %v971, %v971
      %v1022 = vpack.c.b16 %v972, %v972
      %v1023 = vpack.c.b16 %v973, %v973
      %v1024 = vpack.c.b16 %v974, %v974
      %v1025 = vpack.c.b16 %v975, %v975
      %v1026 = vpack.c.b16 %v976, %v976
      %v1027 = vpack.c.b16 %v977, %v977
      %v1028 = vpack.c.b16 %v978, %v978
      %v1029 = vpack.c.b16 %v979, %v979
      %v1030 = vpack.c.b16 %v980, %v980
      %v1031 = vpack.c.b16 %v981, %v981
      %v1032 = vpack.c.b16 %v982, %v982
      %v1033 = vpack.c.b16 %v983, %v983
      %v1034 = vpack.c.b16 %v984, %v984
      %v1035 = vpack.c.b16 %v985, %v985
      %v1036 = vpack.c.b16 %v986, %v986
      %v1037 = vpack.c.b16 %v987, %v987
      %v1038 = vpack.c.b16 %v988, %v988
      %v1039 = vpack.c.b16 %v989, %v989
      %v1040 = vpack.c.b16 %v990, %v990
      %v1041 = vpack.c.b16 %v991, %v991
      %v1042 = vpack.c.b16 %v992, %v992
      %v1043 = vpack.c.b16 %v993, %v993
      %v1044 = vpack.c.b16 %v994, %v994
      %v1045 = vpack.c.b16 %v995, %v995
      %vm1096 = vcmask 519168
      %1097 = vst.msk [vmem:[%s175] sm:$0xf] %vm1096, %v996
      %1098 = vst.msk [vmem:[%s175 + $0x4] sm:$0xf] %vm1096, %v997
      %1099 = vst.msk [vmem:[%s175 + $0x8] sm:$0xf] %vm1096, %v998
      %1100 = vst.msk [vmem:[%s175 + $0xc] sm:$0xf] %vm1096, %v999
      %1101 = vst.msk [vmem:[%s175 + $0x10] sm:$0xf] %vm1096, %v1000
      %1102 = vst.msk [vmem:[%s175 + $0x14] sm:$0xf] %vm1096, %v1001
      %1103 = vst.msk [vmem:[%s175 + $0x18] sm:$0xf] %vm1096, %v1002
      %1104 = vst.msk [vmem:[%s175 + $0x1c] sm:$0xf] %vm1096, %v1003
      %1105 = vst.msk [vmem:[%s175 + $0x20] sm:$0xf] %vm1096, %v1004
      %1106 = vst.msk [vmem:[%s175 + $0x24] sm:$0xf] %vm1096, %v1005
      %1107 = vst.msk [vmem:[%s175 + $0x28] sm:$0xf] %vm1096, %v1006
      %1108 = vst.msk [vmem:[%s175 + $0x2c] sm:$0xf] %vm1096, %v1007
      %1109 = vst.msk [vmem:[%s175 + $0x30] sm:$0xf] %vm1096, %v1008
      %1110 = vst.msk [vmem:[%s175 + $0x34] sm:$0xf] %vm1096, %v1009
      %1111 = vst.msk [vmem:[%s175 + $0x38] sm:$0xf] %vm1096, %v1010
      %1112 = vst.msk [vmem:[%s175 + $0x3c] sm:$0xf] %vm1096, %v1011
      %1113 = vst.msk [vmem:[%s175 + $0x40] sm:$0xf] %vm1096, %v1012
      %1114 = vst.msk [vmem:[%s175 + $0x44] sm:$0xf] %vm1096, %v1013
      %1115 = vst.msk [vmem:[%s175 + $0x48] sm:$0xf] %vm1096, %v1014
      %1116 = vst.msk [vmem:[%s175 + $0x4c] sm:$0xf] %vm1096, %v1015
      %1117 = vst.msk [vmem:[%s175 + $0x50] sm:$0xf] %vm1096, %v1016
      %1118 = vst.msk [vmem:[%s175 + $0x54] sm:$0xf] %vm1096, %v1017
      %1119 = vst.msk [vmem:[%s175 + $0x58] sm:$0xf] %vm1096, %v1018
      %1120 = vst.msk [vmem:[%s175 + $0x5c] sm:$0xf] %vm1096, %v1019
      %1121 = vst.msk [vmem:[%s175 + $0x60] sm:$0xf] %vm1096, %v1020
      %1122 = vst.msk [vmem:[%s175 + $0x64] sm:$0xf] %vm1096, %v1021
      %1123 = vst.msk [vmem:[%s175 + $0x68] sm:$0xf] %vm1096, %v1022
      %1124 = vst.msk [vmem:[%s175 + $0x6c] sm:$0xf] %vm1096, %v1023
      %1125 = vst.msk [vmem:[%s175 + $0x70] sm:$0xf] %vm1096, %v1024
      %1126 = vst.msk [vmem:[%s175 + $0x74] sm:$0xf] %vm1096, %v1025
      %1127 = vst.msk [vmem:[%s175 + $0x78] sm:$0xf] %vm1096, %v1026
      %1128 = vst.msk [vmem:[%s175 + $0x7c] sm:$0xf] %vm1096, %v1027
      %1129 = vst.msk [vmem:[%s175 + $0x80] sm:$0xf] %vm1096, %v1028
      %1130 = vst.msk [vmem:[%s175 + $0x84] sm:$0xf] %vm1096, %v1029
      %1131 = vst.msk [vmem:[%s175 + $0x88] sm:$0xf] %vm1096, %v1030
      %1132 = vst.msk [vmem:[%s175 + $0x8c] sm:$0xf] %vm1096, %v1031
      %1133 = vst.msk [vmem:[%s175 + $0x90] sm:$0xf] %vm1096, %v1032
      %1134 = vst.msk [vmem:[%s175 + $0x94] sm:$0xf] %vm1096, %v1033
      %1135 = vst.msk [vmem:[%s175 + $0x98] sm:$0xf] %vm1096, %v1034
      %1136 = vst.msk [vmem:[%s175 + $0x9c] sm:$0xf] %vm1096, %v1035
      %1137 = vst.msk [vmem:[%s175 + $0xa0] sm:$0xf] %vm1096, %v1036
      %1138 = vst.msk [vmem:[%s175 + $0xa4] sm:$0xf] %vm1096, %v1037
      %1139 = vst.msk [vmem:[%s175 + $0xa8] sm:$0xf] %vm1096, %v1038
      %1140 = vst.msk [vmem:[%s175 + $0xac] sm:$0xf] %vm1096, %v1039
      %1141 = vst.msk [vmem:[%s175 + $0xb0] sm:$0xf] %vm1096, %v1040
      %1142 = vst.msk [vmem:[%s175 + $0xb4] sm:$0xf] %vm1096, %v1041
      %1143 = vst.msk [vmem:[%s175 + $0xb8] sm:$0xf] %vm1096, %v1042
      %1144 = vst.msk [vmem:[%s175 + $0xbc] sm:$0xf] %vm1096, %v1043
      %1145 = vst.msk [vmem:[%s175 + $0xc0] sm:$0xf] %vm1096, %v1044
      %1146 = vst.msk [vmem:[%s175 + $0xc4] sm:$0xf] %vm1096, %v1045
      %s1147 = smul.u32 50, %s14
      %p1148 = scmp.lt.s32.totalorder %s1147, 99
      %s1149 = scalar_select %p1148, %s1147, 99
      %s1150 = smul.addr %s1149, 4
      %s1151 = scalar_lea.vmem %s3, %s1150
      // Predicated region
      $region33: #{sep_body_conv_forward.4} parent=31 // pred_check
        %p1152 = pneg %p100
      $region34: #{sep_body_conv_forward.4} parent=31 // pred_check_branch
        %1154 = sbr.rel (%p1152) target = $region36
      $region35: #{sep_body_conv_forward.4} parent=31 // pred_region
        %s1155 = smul.u32 50, %s14
      $region36: #{sep_body_conv_forward.4} parent=31 // pred_fallthru
        _
    $region32: #{sep_body_conv_forward.4} parent=5 // pred_fallthru
      _
    %p1156 = scmp.le.s32.totalorder 2, %s9
    // Predicated region
    $region37: #{sep_body_conv_forward.4} parent=5 // pred_check
      %p1157 = pneg %p1156
    $region38: #{sep_body_conv_forward.4} parent=5 // pred_check_branch
      %1159 = sbr.rel (%p1157) target = $region40
    $region39: #{sep_body_conv_forward.4} parent=5 // pred_region
      %s1160 = ssub.s32 %s9, 2
      // Predicated region
      $region41: #{sep_body_conv_forward.4} parent=39 // pred_check
        %p1161 = pneg %p106
      $region42: #{sep_body_conv_forward.4} parent=39 // pred_check_branch
        %1163 = sbr.rel (%p1161) target = $region44
      $region43: #{sep_body_conv_forward.4} parent=39 // pred_region
        %s1164 = smul.u32 50, %s15
        %p1165 = scmp.lt.s32.totalorder %s1164, 99
        %s1166 = scalar_select %p1165, %s1164, 99
        %s1167 = smul.addr %s1166, 4
        %s1168 = scalar_lea.vmem %s3, %s1167
      $region44: #{sep_body_conv_forward.4} parent=39 // pred_fallthru
        _
    $region40: #{sep_body_conv_forward.4} parent=5 // pred_fallthru
      _
  $region6: #{sep_body_conv_forward.4} parent=0 // loop_footer
    %s13 = sadd.s32 1, %s9
  $region7: #{sep_body_conv_forward.4} parent=0 // loop_footer_branch
    %8 = sbr.rel target = $region3
  $region8: #{sep_body_conv_forward.4} parent=0 // loop_exit
    _

// kernel: sep_body_conv_forward.5
$region0: #{sep_body_conv_forward.5}
  #allocation0 [shape = 'u32[]', space=smem, size = 0x4, offset = 0x4, fixed_abs, tag = 'smem constant byte address 0x4 - core index']
  #allocation1 [shape = 'u32[144,128]{1,0:T(1,128)}', space=vmem, size = 0x12000, scoped, tag = 'internal scratch']
  %s0 = inlined_call_operand.vmem [shape: bf16[162,1024], index: 0, kind: input, shape index: {}]
  %s1 = inlined_call_operand.vmem [shape: bf16[1024,128], index: 1, kind: input, shape index: {}]
  %s2 = inlined_call_operand.vmem [shape: f32[1,128], index: 2, kind: input, shape index: {}]
  %s3 = inlined_call_operand.vmem [shape: bf16[162,128], index: 3, kind: output, shape index: {}]
  %s4 = sld [smem:[#allocation0]]
  $region89: #{sep_body_conv_forward.5} parent=0
    _
  %s6 = ssub.s32 1, %s4
  %s7 = scalar_select 0, %s6, %s4
  $region1: #{sep_body_conv_forward.5} parent=0
    #allocation2 [shape = 'u8[49152]{0}', space=vmem, size = 0xc000, scoped, tag = 'output window, operand 0']
    loop: start=0, step=1, limit=4
    $region2: #{sep_body_conv_forward.5} parent=1 // loop_pre_header
      _
    $region3: #{sep_body_conv_forward.5} parent=1 // loop_header
      %s9 = sphi 0, %s13
      %p10 = scmp.ge.s32.totalorder %s9, 4
      %s19 = sphi 0, %s21
      %s22 = sphi 0, %s19
      %s23 = sphi 0, %s22
      %s39 = sphi 0, %s23
      %s43 = sphi 0, %s43
      %s45 = sphi 0, %s43
      %s46 = sphi 0, %s45
      %s60 = sphi 0, %s46
      %s64 = sphi 0, %s64
      %s66 = sphi 0, %s64
      %s67 = sphi 0, %s66
      %s81 = sphi 0, %s67
      %s87 = sphi 0, %s89
      %s90 = sphi 0, %s87
      %s91 = sphi 0, %s90
      %s107 = sphi 0, %s91
    $region4: #{sep_body_conv_forward.5} parent=1 // loop_header_branch
      %12 = sbr.rel (%p10) target = $region8
    $region5: #{sep_body_conv_forward.5} parent=1 // loop_body
      %s14 = ssub.s32 %s9, 1
      %s15 = ssub.s32 %s9, 2
      %s16 = sadd.s32 %s9, 1
      %s17 = ssub.s32 %s9, %s16
      %p18 = scmp.eq.s32.totalorder %s17, 0
      %s20 = sadd.s32 %s19, 1
      %s21 = scalar_select %p18, %s19, %s20
      %p24 = pneg %p18
      %p25 = scmp.eq.s32.totalorder %s9, 1
      %p26 = por %p24, %p25
      %p27 = scmp.ne.s32.totalorder %s19, %s22
      %p28 = scmp.eq.s32.totalorder %s9, 0
      %p29 = por %p27, %p28
      %p30 = scmp.ne.s32.totalorder %s19, %s22
      %p31 = scmp.eq.s32.totalorder %s14, 1
      %p32 = por %p30, %p31
      %p33 = scmp.ne.s32.totalorder %s22, %s23
      %p34 = scmp.eq.s32.totalorder %s14, 0
      %p35 = por %p33, %p34
      %p36 = scmp.ne.s32.totalorder %s22, %s23
      %p37 = scmp.eq.s32.totalorder %s15, 1
      %p38 = por %p36, %p37
      %p40 = scmp.ne.s32.totalorder %s23, %s39
      %p41 = scmp.eq.s32.totalorder %s15, 0
      %p42 = por %p40, %p41
      %s44 = sadd.s32 %s43, 1
      %p47 = scmp.eq.s32.totalorder %s9, 1
      %p48 = scmp.ne.s32.totalorder %s43, %s45
      %p49 = scmp.eq.s32.totalorder %s9, 0
      %p50 = por %p48, %p49
      %p51 = scmp.ne.s32.totalorder %s43, %s45
      %p52 = scmp.eq.s32.totalorder %s14, 1
      %p53 = por %p51, %p52
      %p54 = scmp.ne.s32.totalorder %s45, %s46
      %p55 = scmp.eq.s32.totalorder %s14, 0
      %p56 = por %p54, %p55
      %p57 = scmp.ne.s32.totalorder %s45, %s46
      %p58 = scmp.eq.s32.totalorder %s15, 1
      %p59 = por %p57, %p58
      %p61 = scmp.ne.s32.totalorder %s46, %s60
      %p62 = scmp.eq.s32.totalorder %s15, 0
      %p63 = por %p61, %p62
      %s65 = sadd.s32 %s64, 1
      %p68 = scmp.eq.s32.totalorder %s9, 1
      %p69 = scmp.ne.s32.totalorder %s64, %s66
      %p70 = scmp.eq.s32.totalorder %s9, 0
      %p71 = por %p69, %p70
      %p72 = scmp.ne.s32.totalorder %s64, %s66
      %p73 = scmp.eq.s32.totalorder %s14, 1
      %p74 = por %p72, %p73
      %p75 = scmp.ne.s32.totalorder %s66, %s67
      %p76 = scmp.eq.s32.totalorder %s14, 0
      %p77 = por %p75, %p76
      %p78 = scmp.ne.s32.totalorder %s66, %s67
      %p79 = scmp.eq.s32.totalorder %s15, 1
      %p80 = por %p78, %p79
      %p82 = scmp.ne.s32.totalorder %s67, %s81
      %p83 = scmp.eq.s32.totalorder %s15, 0
      %p84 = por %p82, %p83
      %s85 = ssub.s32 %s9, %s16
      %p86 = scmp.eq.s32.totalorder %s85, 0
      %s88 = sadd.s32 %s87, 1
      %s89 = scalar_select %p86, %s87, %s88
      %p92 = pneg %p86
      %p93 = scmp.eq.s32.totalorder %s9, 1
      %p94 = por %p92, %p93
      %p95 = scmp.ne.s32.totalorder %s87, %s90
      %p96 = scmp.eq.s32.totalorder %s9, 0
      %p97 = por %p95, %p96
      %p98 = scmp.ne.s32.totalorder %s87, %s90
      %p99 = scmp.eq.s32.totalorder %s14, 1
      %p100 = por %p98, %p99
      %p101 = scmp.ne.s32.totalorder %s90, %s91
      %p102 = scmp.eq.s32.totalorder %s14, 0
      %p103 = por %p101, %p102
      %p104 = scmp.ne.s32.totalorder %s90, %s91
      %p105 = scmp.eq.s32.totalorder %s15, 1
      %p106 = por %p104, %p105
      %p108 = scmp.ne.s32.totalorder %s91, %s107
      %p109 = scmp.eq.s32.totalorder %s15, 0
      %p110 = por %p108, %p109
      %p111 = scmp.le.s32.totalorder 1, %s9
      %p112 = scmp.lt.s32.totalorder %s9, 3
      %p113 = pnand %p111, %p112
      %p114 = pneg %p113
      // Predicated region
      $region9: #{sep_body_conv_forward.5} parent=5 // pred_check
        _
      $region10: #{sep_body_conv_forward.5} parent=5 // pred_check_branch
        %116 = sbr.rel (%p113) target = $region12
      $region11: #{sep_body_conv_forward.5} parent=5 // pred_region
        %s117 = ssub.s32 %s9, 1
        // Predicated region
        $region13: #{sep_body_conv_forward.5} parent=11 // pred_check
          %p118 = pneg %p56
        $region14: #{sep_body_conv_forward.5} parent=11 // pred_check_branch
          %120 = sbr.rel (%p118) target = $region16
        $region15: #{sep_body_conv_forward.5} parent=11 // pred_region
          _
        $region16: #{sep_body_conv_forward.5} parent=11 // pred_fallthru
          _
        // Predicated region
        $region17: #{sep_body_conv_forward.5} parent=11 // pred_check
          %p121 = pneg %p77
        $region18: #{sep_body_conv_forward.5} parent=11 // pred_check_branch
          %123 = sbr.rel (%p121) target = $region20
        $region19: #{sep_body_conv_forward.5} parent=11 // pred_region
          _
        $region20: #{sep_body_conv_forward.5} parent=11 // pred_fallthru
          _
      $region12: #{sep_body_conv_forward.5} parent=5 // pred_fallthru
        _
      %p124 = scmp.lt.s32.totalorder %s9, 2
      // Predicated region
      $region21: #{sep_body_conv_forward.5} parent=5 // pred_check
        %p125 = pneg %p124
      $region22: #{sep_body_conv_forward.5} parent=5 // pred_check_branch
        %127 = sbr.rel (%p125) target = $region24
      $region23: #{sep_body_conv_forward.5} parent=5 // pred_region
        // Predicated region
        $region25: #{sep_body_conv_forward.5} parent=23 // pred_check
          %p128 = pneg %p29
        $region26: #{sep_body_conv_forward.5} parent=23 // pred_check_branch
          %130 = sbr.rel (%p128) target = $region28
        $region27: #{sep_body_conv_forward.5} parent=23 // pred_region
          %s131 = smul.u32 12, %s9
          %s132 = ssub.s32 21, %s131
          %p133 = scmp.lt.s32.totalorder %s132, 12
          %s134 = scalar_select %p133, %s132, 12
          %s135 = smul.u32 64, %s134
          %s136 = smul.u32 %s135, 8
          %p137 = scmp.lt.s32.totalorder %s131, 20
          %s138 = scalar_select %p137, %s131, 20
          %s139 = smul.addr %s138, 8
          %s140 = smul.addr %s139, 4
          %s141 = scalar_lea.vmem %s0, %s140
          %s142 = smul.u32 12, %s9
          %s143 = ssub.s32 21, %s142
          %p144 = scmp.lt.s32.totalorder %s143, 12
          %s145 = scalar_select %p144, %s143, 12
          %s146 = smul.u32 64, %s145
          %s147 = smul.u32 %s146, 8
        $region28: #{sep_body_conv_forward.5} parent=23 // pred_fallthru
          _
      $region24: #{sep_body_conv_forward.5} parent=5 // pred_fallthru
        _
      %p148 = scmp.le.s32.totalorder 1, %s9
      %p149 = scmp.lt.s32.totalorder %s9, 3
      %p150 = pnand %p148, %p149
      %p151 = pneg %p150
      // Predicated region
      $region29: #{sep_body_conv_forward.5} parent=5 // pred_check
        _
      $region30: #{sep_body_conv_forward.5} parent=5 // pred_check_branch
        %153 = sbr.rel (%p150) target = $region32
      $region31: #{sep_body_conv_forward.5} parent=5 // pred_region
        %s154 = ssub.s32 %s9, 1
        %s155 = smul.u32 12, %s14
        %s156 = ssub.s32 21, %s155
        %p157 = scmp.lt.s32.totalorder %s156, 12
        %s158 = scalar_select %p157, %s156, 12
        %s159 = smul.u32 64, %s158
        %s160 = smul.u32 %s159, 8
        %p161 = scmp.lt.s32.totalorder %s155, 20
        %s162 = scalar_select %p161, %s155, 20
        %s163 = smul.addr %s162, 8
        %s164 = smul.addr %s163, 4
        %s165 = scalar_lea.vmem %s0, %s164
        %p166 = pneg %p35
        %p167 = pneg %p32
        %p168 = pneg %p56
        %p169 = pneg %p53
        %p170 = pneg %p77
        %p171 = pneg %p74
        %p172 = pneg %p103
        %p173 = pneg %p100
        %s174 = sand.u32 %s90, 1
        %s175 = sand.u32 %s90, 1
        %s176 = smul.addr %s175, 48
        %s177 = scalar_lea.vmem [#allocation2], %s176
        %s178 = smul.u32 12, %s14
        %s179 = ssub.s32 21, %s178
        %p180 = scmp.lt.s32.totalorder %s179, 12
        %s181 = scalar_select %p180, %s179, 12
        %s182 = smul.u32 64, %s181
        %s183 = smul.u32 %s182, 8
        %p184 = scmp.lt.s32.totalorder %s178, 20
        %s185 = scalar_select %p184, %s178, 20
        %s186 = smul.addr %s185, 8
        %s187 = smul.addr %s186, 4
        %s188 = scalar_lea.vmem %s0, %s187
        %s189 = smul.u32 12, %s14
        %s190 = ssub.s32 21, %s189
        %p191 = scmp.lt.s32.totalorder %s190, 12
        %s192 = scalar_select %p191, %s190, 12
        %s193 = smul.u32 64, %s192
        %s194 = smul.u32 %s193, 8
        %s195 = smul.u32 12, %s14
        %s196 = ssub.s32 21, %s195
        %p197 = scmp.lt.s32.totalorder %s196, 12
        %s198 = scalar_select %p197, %s196, 12
        %s199 = smul.u32 64, %s198
        %v201 = vld [vmem:[%s188] sm:$0xff]
        %v202 = vld [vmem:[%s188 + $0x8] sm:$0xff]
        %v203 = vld [vmem:[%s188 + $0x10] sm:$0xff]
        %v204 = vld [vmem:[%s188 + $0x18] sm:$0xff]
        %v205 = vld [vmem:[%s188 + $0x20] sm:$0xff]
        %v206 = vld [vmem:[%s188 + $0x28] sm:$0xff]
        %v207 = vld [vmem:[%s188 + $0x30] sm:$0xff]
        %v208 = vld [vmem:[%s188 + $0x38] sm:$0xff]
        %v209 = vld [vmem:[%s188 + $0x40] sm:$0xff]
        %v210 = vld [vmem:[%s188 + $0x48] sm:$0xff]
        %v211 = vld [vmem:[%s188 + $0x50] sm:$0xff]
        %v212 = vld [vmem:[%s188 + $0x58] sm:$0xff]
        %v213 = vld [vmem:[%s188 + $0x60] sm:$0xff]
        %v214 = vld [vmem:[%s188 + $0x68] sm:$0xff]
        %v215 = vld [vmem:[%s188 + $0x70] sm:$0xff]
        %v216 = vld [vmem:[%s188 + $0x78] sm:$0xff]
        %v217 = vld [vmem:[%s188 + $0x80] sm:$0xff]
        %v218 = vld [vmem:[%s188 + $0x88] sm:$0xff]
        %v219 = vld [vmem:[%s188 + $0x90] sm:$0xff]
        %v220 = vld [vmem:[%s188 + $0x98] sm:$0xff]
        %v221 = vld [vmem:[%s188 + $0xa0] sm:$0xff]
        %v222 = vld [vmem:[%s188 + $0xa8] sm:$0xff]
        %v223 = vld [vmem:[%s188 + $0xb0] sm:$0xff]
        %v224 = vld [vmem:[%s188 + $0xb8] sm:$0xff]
        %v225 = vld [vmem:[%s188 + $0xc0] sm:$0xff]
        %v226 = vld [vmem:[%s188 + $0xc8] sm:$0xff]
        %v227 = vld [vmem:[%s188 + $0xd0] sm:$0xff]
        %v228 = vld [vmem:[%s188 + $0xd8] sm:$0xff]
        %v229 = vld [vmem:[%s188 + $0xe0] sm:$0xff]
        %v230 = vld [vmem:[%s188 + $0xe8] sm:$0xff]
        %v231 = vld [vmem:[%s188 + $0xf0] sm:$0xff]
        %v232 = vld [vmem:[%s188 + $0xf8] sm:$0xff]
        %v233 = vld [vmem:[%s188 + $0x100] sm:$0xff]
        %v234 = vld [vmem:[%s188 + $0x108] sm:$0xff]
        %v235 = vld [vmem:[%s188 + $0x110] sm:$0xff]
        %v236 = vld [vmem:[%s188 + $0x118] sm:$0xff]
        %v237 = vld [vmem:[%s188 + $0x120] sm:$0xff]
        %v238 = vld [vmem:[%s188 + $0x128] sm:$0xff]
        %v239 = vld [vmem:[%s188 + $0x130] sm:$0xff]
        %v240 = vld [vmem:[%s188 + $0x138] sm:$0xff]
        %v241 = vld [vmem:[%s188 + $0x140] sm:$0xff]
        %v242 = vld [vmem:[%s188 + $0x148] sm:$0xff]
        %v243 = vld [vmem:[%s188 + $0x150] sm:$0xff]
        %v244 = vld [vmem:[%s188 + $0x158] sm:$0xff]
        %v245 = vld [vmem:[%s188 + $0x160] sm:$0xff]
        %v246 = vld [vmem:[%s188 + $0x168] sm:$0xff]
        %v247 = vld [vmem:[%s188 + $0x170] sm:$0xff]
        %v248 = vld [vmem:[%s188 + $0x178] sm:$0xff]
        %v249 = vld [vmem:[%s1] sm:$0xf]
        %v250 = vld [vmem:[%s1 + $0x4] sm:$0xf]
        %v251 = vld [vmem:[%s1 + $0x8] sm:$0xf]
        %v252 = vld [vmem:[%s1 + $0xc] sm:$0xf]
        %v253 = vld [vmem:[%s1 + $0x10] sm:$0xf]
        %v254 = vld [vmem:[%s1 + $0x14] sm:$0xf]
        %v255 = vld [vmem:[%s1 + $0x18] sm:$0xf]
        %v256 = vld [vmem:[%s1 + $0x1c] sm:$0xf]
        %v257 = vld [vmem:[%s1 + $0x20] sm:$0xf]
        %v258 = vld [vmem:[%s1 + $0x24] sm:$0xf]
        %v259 = vld [vmem:[%s1 + $0x28] sm:$0xf]
        %v260 = vld [vmem:[%s1 + $0x2c] sm:$0xf]
        %v261 = vld [vmem:[%s1 + $0x30] sm:$0xf]
        %v262 = vld [vmem:[%s1 + $0x34] sm:$0xf]
        %v263 = vld [vmem:[%s1 + $0x38] sm:$0xf]
        %v264 = vld [vmem:[%s1 + $0x3c] sm:$0xf]
        %v265 = vld [vmem:[%s1 + $0x40] sm:$0xf]
        %v266 = vld [vmem:[%s1 + $0x44] sm:$0xf]
        %v267 = vld [vmem:[%s1 + $0x48] sm:$0xf]
        %v268 = vld [vmem:[%s1 + $0x4c] sm:$0xf]
        %v269 = vld [vmem:[%s1 + $0x50] sm:$0xf]
        %v270 = vld [vmem:[%s1 + $0x54] sm:$0xf]
        %v271 = vld [vmem:[%s1 + $0x58] sm:$0xf]
        %v272 = vld [vmem:[%s1 + $0x5c] sm:$0xf]
        %v273 = vld [vmem:[%s1 + $0x60] sm:$0xf]
        %v274 = vld [vmem:[%s1 + $0x64] sm:$0xf]
        %v275 = vld [vmem:[%s1 + $0x68] sm:$0xf]
        %v276 = vld [vmem:[%s1 + $0x6c] sm:$0xf]
        %v277 = vld [vmem:[%s1 + $0x70] sm:$0xf]
        %v278 = vld [vmem:[%s1 + $0x74] sm:$0xf]
        %v279 = vld [vmem:[%s1 + $0x78] sm:$0xf]
        %v280 = vld [vmem:[%s1 + $0x7c] sm:$0xf]
        %v281 = vld [vmem:[%s1 + $0x80] sm:$0xf]
        %v282 = vld [vmem:[%s1 + $0x84] sm:$0xf]
        %v283 = vld [vmem:[%s1 + $0x88] sm:$0xf]
        %v284 = vld [vmem:[%s1 + $0x8c] sm:$0xf]
        %v285 = vld [vmem:[%s1 + $0x90] sm:$0xf]
        %v286 = vld [vmem:[%s1 + $0x94] sm:$0xf]
        %v287 = vld [vmem:[%s1 + $0x98] sm:$0xf]
        %v288 = vld [vmem:[%s1 + $0x9c] sm:$0xf]
        %v289 = vld [vmem:[%s1 + $0xa0] sm:$0xf]
        %v290 = vld [vmem:[%s1 + $0xa4] sm:$0xf]
        %v291 = vld [vmem:[%s1 + $0xa8] sm:$0xf]
        %v292 = vld [vmem:[%s1 + $0xac] sm:$0xf]
        %v293 = vld [vmem:[%s1 + $0xb0] sm:$0xf]
        %v294 = vld [vmem:[%s1 + $0xb4] sm:$0xf]
        %v295 = vld [vmem:[%s1 + $0xb8] sm:$0xf]
        %v296 = vld [vmem:[%s1 + $0xbc] sm:$0xf]
        %v297 = vld [vmem:[%s1 + $0xc0] sm:$0xf]
        %v298 = vld [vmem:[%s1 + $0xc4] sm:$0xf]
        %v299 = vld [vmem:[%s1 + $0xc8] sm:$0xf]
        %v300 = vld [vmem:[%s1 + $0xcc] sm:$0xf]
        %v301 = vld [vmem:[%s1 + $0xd0] sm:$0xf]
        %v302 = vld [vmem:[%s1 + $0xd4] sm:$0xf]
        %v303 = vld [vmem:[%s1 + $0xd8] sm:$0xf]
        %v304 = vld [vmem:[%s1 + $0xdc] sm:$0xf]
        %v305 = vld [vmem:[%s1 + $0xe0] sm:$0xf]
        %v306 = vld [vmem:[%s1 + $0xe4] sm:$0xf]
        %v307 = vld [vmem:[%s1 + $0xe8] sm:$0xf]
        %v308 = vld [vmem:[%s1 + $0xec] sm:$0xf]
        %v309 = vld [vmem:[%s1 + $0xf0] sm:$0xf]
        %v310 = vld [vmem:[%s1 + $0xf4] sm:$0xf]
        %v311 = vld [vmem:[%s1 + $0xf8] sm:$0xf]
        %v312 = vld [vmem:[%s1 + $0xfc] sm:$0xf]
        %v313 = vld [vmem:[%s1 + $0x100] sm:$0xf]
        %v314 = vld [vmem:[%s1 + $0x104] sm:$0xf]
        %v315 = vld [vmem:[%s1 + $0x108] sm:$0xf]
        %v316 = vld [vmem:[%s1 + $0x10c] sm:$0xf]
        %v317 = vld [vmem:[%s1 + $0x110] sm:$0xf]
        %v318 = vld [vmem:[%s1 + $0x114] sm:$0xf]
        %v319 = vld [vmem:[%s1 + $0x118] sm:$0xf]
        %v320 = vld [vmem:[%s1 + $0x11c] sm:$0xf]
        %v321 = vld [vmem:[%s1 + $0x120] sm:$0xf]
        %v322 = vld [vmem:[%s1 + $0x124] sm:$0xf]
        %v323 = vld [vmem:[%s1 + $0x128] sm:$0xf]
        %v324 = vld [vmem:[%s1 + $0x12c] sm:$0xf]
        %v325 = vld [vmem:[%s1 + $0x130] sm:$0xf]
        %v326 = vld [vmem:[%s1 + $0x134] sm:$0xf]
        %v327 = vld [vmem:[%s1 + $0x138] sm:$0xf]
        %v328 = vld [vmem:[%s1 + $0x13c] sm:$0xf]
        %v329 = vld [vmem:[%s1 + $0x140] sm:$0xf]
        %v330 = vld [vmem:[%s1 + $0x144] sm:$0xf]
        %v331 = vld [vmem:[%s1 + $0x148] sm:$0xf]
        %v332 = vld [vmem:[%s1 + $0x14c] sm:$0xf]
        %v333 = vld [vmem:[%s1 + $0x150] sm:$0xf]
        %v334 = vld [vmem:[%s1 + $0x154] sm:$0xf]
        %v335 = vld [vmem:[%s1 + $0x158] sm:$0xf]
        %v336 = vld [vmem:[%s1 + $0x15c] sm:$0xf]
        %v337 = vld [vmem:[%s1 + $0x160] sm:$0xf]
        %v338 = vld [vmem:[%s1 + $0x164] sm:$0xf]
        %v339 = vld [vmem:[%s1 + $0x168] sm:$0xf]
        %v340 = vld [vmem:[%s1 + $0x16c] sm:$0xf]
        %v341 = vld [vmem:[%s1 + $0x170] sm:$0xf]
        %v342 = vld [vmem:[%s1 + $0x174] sm:$0xf]
        %v343 = vld [vmem:[%s1 + $0x178] sm:$0xf]
        %v344 = vld [vmem:[%s1 + $0x17c] sm:$0xf]
        %v345 = vld [vmem:[%s1 + $0x180] sm:$0xf]
        %v346 = vld [vmem:[%s1 + $0x184] sm:$0xf]
        %v347 = vld [vmem:[%s1 + $0x188] sm:$0xf]
        %v348 = vld [vmem:[%s1 + $0x18c] sm:$0xf]
        %v349 = vld [vmem:[%s1 + $0x190] sm:$0xf]
        %v350 = vld [vmem:[%s1 + $0x194] sm:$0xf]
        %v351 = vld [vmem:[%s1 + $0x198] sm:$0xf]
        %v352 = vld [vmem:[%s1 + $0x19c] sm:$0xf]
        %v353 = vld [vmem:[%s1 + $0x1a0] sm:$0xf]
        %v354 = vld [vmem:[%s1 + $0x1a4] sm:$0xf]
        %v355 = vld [vmem:[%s1 + $0x1a8] sm:$0xf]
        %v356 = vld [vmem:[%s1 + $0x1ac] sm:$0xf]
        %v357 = vld [vmem:[%s1 + $0x1b0] sm:$0xf]
        %v358 = vld [vmem:[%s1 + $0x1b4] sm:$0xf]
        %v359 = vld [vmem:[%s1 + $0x1b8] sm:$0xf]
        %v360 = vld [vmem:[%s1 + $0x1bc] sm:$0xf]
        %v361 = vld [vmem:[%s1 + $0x1c0] sm:$0xf]
        %v362 = vld [vmem:[%s1 + $0x1c4] sm:$0xf]
        %v363 = vld [vmem:[%s1 + $0x1c8] sm:$0xf]
        %v364 = vld [vmem:[%s1 + $0x1cc] sm:$0xf]
        %v365 = vld [vmem:[%s1 + $0x1d0] sm:$0xf]
        %v366 = vld [vmem:[%s1 + $0x1d4] sm:$0xf]
        %v367 = vld [vmem:[%s1 + $0x1d8] sm:$0xf]
        %v368 = vld [vmem:[%s1 + $0x1dc] sm:$0xf]
        %v369 = vld [vmem:[%s1 + $0x1e0] sm:$0xf]
        %v370 = vld [vmem:[%s1 + $0x1e4] sm:$0xf]
        %v371 = vld [vmem:[%s1 + $0x1e8] sm:$0xf]
        %v372 = vld [vmem:[%s1 + $0x1ec] sm:$0xf]
        %v373 = vld [vmem:[%s1 + $0x1f0] sm:$0xf]
        %v374 = vld [vmem:[%s1 + $0x1f4] sm:$0xf]
        %v375 = vld [vmem:[%s1 + $0x1f8] sm:$0xf]
        %v376 = vld [vmem:[%s1 + $0x1fc] sm:$0xf]
        %v377 = vld [vmem:[%s2] sm:$0x1]
        %v379 = vlaneseq
        %v380 = vshrl.u32 %v379, 7
        %v381 = vsub.s32 0, %v380
        %v382 = vrot.slane %v377, %v381
        %v432 = vunpack.c.l.b16 %v201
        %v433 = vunpack.c.h.b16 %v201
        %v434 = vunpack.c.l.b16 %v202
        %v435 = vunpack.c.h.b16 %v202
        %v436 = vunpack.c.l.b16 %v203
        %v437 = vunpack.c.h.b16 %v203
        %v438 = vunpack.c.l.b16 %v204
        %v439 = vunpack.c.h.b16 %v204
        %v440 = vunpack.c.l.b16 %v205
        %v441 = vunpack.c.h.b16 %v205
        %v442 = vunpack.c.l.b16 %v206
        %v443 = vunpack.c.h.b16 %v206
        %v444 = vunpack.c.l.b16 %v207
        %v445 = vunpack.c.h.b16 %v207
        %v446 = vunpack.c.l.b16 %v208
        %v447 = vunpack.c.h.b16 %v208
        %v448 = vunpack.c.l.b16 %v209
        %v449 = vunpack.c.h.b16 %v209
        %v450 = vunpack.c.l.b16 %v210
        %v451 = vunpack.c.h.b16 %v210
        %v452 = vunpack.c.l.b16 %v211
        %v453 = vunpack.c.h.b16 %v211
        %v454 = vunpack.c.l.b16 %v212
        %v455 = vunpack.c.h.b16 %v212
        %v456 = vunpack.c.l.b16 %v213
        %v457 = vunpack.c.h.b16 %v213
        %v458 = vunpack.c.l.b16 %v214
        %v459 = vunpack.c.h.b16 %v214
        %v460 = vunpack.c.l.b16 %v215
        %v461 = vunpack.c.h.b16 %v215
        %v462 = vunpack.c.l.b16 %v216
        %v463 = vunpack.c.h.b16 %v216
        %v464 = vunpack.c.l.b16 %v217
        %v465 = vunpack.c.h.b16 %v217
        %v466 = vunpack.c.l.b16 %v218
        %v467 = vunpack.c.h.b16 %v218
        %v468 = vunpack.c.l.b16 %v219
        %v469 = vunpack.c.h.b16 %v219
        %v470 = vunpack.c.l.b16 %v220
        %v471 = vunpack.c.h.b16 %v220
        %v472 = vunpack.c.l.b16 %v221
        %v473 = vunpack.c.h.b16 %v221
        %v474 = vunpack.c.l.b16 %v222
        %v475 = vunpack.c.h.b16 %v222
        %v476 = vunpack.c.l.b16 %v223
        %v477 = vunpack.c.h.b16 %v223
        %v478 = vunpack.c.l.b16 %v224
        %v479 = vunpack.c.h.b16 %v224
        %v480 = vunpack.c.l.b16 %v225
        %v481 = vunpack.c.h.b16 %v225
        %v482 = vunpack.c.l.b16 %v226
        %v483 = vunpack.c.h.b16 %v226
        %v484 = vunpack.c.l.b16 %v227
        %v485 = vunpack.c.h.b16 %v227
        %v486 = vunpack.c.l.b16 %v228
        %v487 = vunpack.c.h.b16 %v228
        %v488 = vunpack.c.l.b16 %v229
        %v489 = vunpack.c.h.b16 %v229
        %v490 = vunpack.c.l.b16 %v230
        %v491 = vunpack.c.h.b16 %v230
        %v492 = vunpack.c.l.b16 %v231
        %v493 = vunpack.c.h.b16 %v231
        %v494 = vunpack.c.l.b16 %v232
        %v495 = vunpack.c.h.b16 %v232
        %v496 = vunpack.c.l.b16 %v233
        %v497 = vunpack.c.h.b16 %v233
        %v498 = vunpack.c.l.b16 %v234
        %v499 = vunpack.c.h.b16 %v234
        %v500 = vunpack.c.l.b16 %v235
        %v501 = vunpack.c.h.b16 %v235
        %v502 = vunpack.c.l.b16 %v236
        %v503 = vunpack.c.h.b16 %v236
        %v504 = vunpack.c.l.b16 %v237
        %v505 = vunpack.c.h.b16 %v237
        %v506 = vunpack.c.l.b16 %v238
        %v507 = vunpack.c.h.b16 %v238
        %v508 = vunpack.c.l.b16 %v239
        %v509 = vunpack.c.h.b16 %v239
        %v510 = vunpack.c.l.b16 %v240
        %v511 = vunpack.c.h.b16 %v240
        %v512 = vunpack.c.l.b16 %v241
        %v513 = vunpack.c.h.b16 %v241
        %v514 = vunpack.c.l.b16 %v242
        %v515 = vunpack.c.h.b16 %v242
        %v516 = vunpack.c.l.b16 %v243
        %v517 = vunpack.c.h.b16 %v243
        %v518 = vunpack.c.l.b16 %v244
        %v519 = vunpack.c.h.b16 %v244
        %v520 = vunpack.c.l.b16 %v245
        %v521 = vunpack.c.h.b16 %v245
        %v522 = vunpack.c.l.b16 %v246
        %v523 = vunpack.c.h.b16 %v246
        %v524 = vunpack.c.l.b16 %v247
        %v525 = vunpack.c.h.b16 %v247
        %v526 = vunpack.c.l.b16 %v248
        %v527 = vunpack.c.h.b16 %v248
        %v528 = vpack.c.b16 %v440, %v432
        %v529 = vpack.c.b16 %v441, %v433
        %v530 = vpack.c.b16 %v442, %v434
        %v531 = vpack.c.b16 %v443, %v435
        %v532 = vpack.c.b16 %v444, %v436
        %v533 = vpack.c.b16 %v445, %v437
        %v534 = vpack.c.b16 %v446, %v438
        %v535 = vpack.c.b16 %v447, %v439
        %v536 = vpack.c.b16 %v456, %v448
        %v537 = vpack.c.b16 %v457, %v449
        %v538 = vpack.c.b16 %v458, %v450
        %v539 = vpack.c.b16 %v459, %v451
        %v540 = vpack.c.b16 %v460, %v452
        %v541 = vpack.c.b16 %v461, %v453
        %v542 = vpack.c.b16 %v462, %v454
        %v543 = vpack.c.b16 %v463, %v455
        %v544 = vpack.c.b16 %v472, %v464
        %v545 = vpack.c.b16 %v473, %v465
        %v546 = vpack.c.b16 %v474, %v466
        %v547 = vpack.c.b16 %v475, %v467
        %v548 = vpack.c.b16 %v476, %v468
        %v549 = vpack.c.b16 %v477, %v469
        %v550 = vpack.c.b16 %v478, %v470
        %v551 = vpack.c.b16 %v479, %v471
        %v552 = vpack.c.b16 %v488, %v480
        %v553 = vpack.c.b16 %v489, %v481
        %v554 = vpack.c.b16 %v490, %v482
        %v555 = vpack.c.b16 %v491, %v483
        %v556 = vpack.c.b16 %v492, %v484
        %v557 = vpack.c.b16 %v493, %v485
        %v558 = vpack.c.b16 %v494, %v486
        %v559 = vpack.c.b16 %v495, %v487
        %v560 = vpack.c.b16 %v504, %v496
        %v561 = vpack.c.b16 %v505, %v497
        %v562 = vpack.c.b16 %v506, %v498
        %v563 = vpack.c.b16 %v507, %v499
        %v564 = vpack.c.b16 %v508, %v500
        %v565 = vpack.c.b16 %v509, %v501
        %v566 = vpack.c.b16 %v510, %v502
        %v567 = vpack.c.b16 %v511, %v503
        %v568 = vpack.c.b16 %v520, %v512
        %v569 = vpack.c.b16 %v521, %v513
        %v570 = vpack.c.b16 %v522, %v514
        %v571 = vpack.c.b16 %v523, %v515
        %v572 = vpack.c.b16 %v524, %v516
        %v573 = vpack.c.b16 %v525, %v517
        %v574 = vpack.c.b16 %v526, %v518
        %v575 = vpack.c.b16 %v527, %v519
        %v752 = vunpack.c.l.b16 %v249
        %v753 = vunpack.c.l.b16 %v250
        %v754 = vunpack.c.l.b16 %v251
        %v755 = vunpack.c.l.b16 %v252
        %v756 = vunpack.c.l.b16 %v253
        %v757 = vunpack.c.l.b16 %v254
        %v758 = vunpack.c.l.b16 %v255
        %v759 = vunpack.c.l.b16 %v256
        %v760 = vunpack.c.l.b16 %v257
        %v761 = vunpack.c.l.b16 %v258
        %v762 = vunpack.c.l.b16 %v259
        %v763 = vunpack.c.l.b16 %v260
        %v764 = vunpack.c.l.b16 %v261
        %v765 = vunpack.c.l.b16 %v262
        %v766 = vunpack.c.l.b16 %v263
        %v767 = vunpack.c.l.b16 %v264
        %v768 = vunpack.c.l.b16 %v265
        %v769 = vunpack.c.l.b16 %v266
        %v770 = vunpack.c.l.b16 %v267
        %v771 = vunpack.c.l.b16 %v268
        %v772 = vunpack.c.l.b16 %v269
        %v773 = vunpack.c.l.b16 %v270
        %v774 = vunpack.c.l.b16 %v271
        %v775 = vunpack.c.l.b16 %v272
        %v776 = vunpack.c.l.b16 %v273
        %v777 = vunpack.c.l.b16 %v274
        %v778 = vunpack.c.l.b16 %v275
        %v779 = vunpack.c.l.b16 %v276
        %v780 = vunpack.c.l.b16 %v277
        %v781 = vunpack.c.l.b16 %v278
        %v782 = vunpack.c.l.b16 %v279
        %v783 = vunpack.c.l.b16 %v280
        %v784 = vunpack.c.l.b16 %v281
        %v785 = vunpack.c.l.b16 %v282
        %v786 = vunpack.c.l.b16 %v283
        %v787 = vunpack.c.l.b16 %v284
        %v788 = vunpack.c.l.b16 %v285
        %v789 = vunpack.c.l.b16 %v286
        %v790 = vunpack.c.l.b16 %v287
        %v791 = vunpack.c.l.b16 %v288
        %v792 = vunpack.c.l.b16 %v289
        %v793 = vunpack.c.l.b16 %v290
        %v794 = vunpack.c.l.b16 %v291
        %v795 = vunpack.c.l.b16 %v292
        %v796 = vunpack.c.l.b16 %v293
        %v797 = vunpack.c.l.b16 %v294
        %v798 = vunpack.c.l.b16 %v295
        %v799 = vunpack.c.l.b16 %v296
        %v800 = vunpack.c.l.b16 %v297
        %v801 = vunpack.c.l.b16 %v298
        %v802 = vunpack.c.l.b16 %v299
        %v803 = vunpack.c.l.b16 %v300
        %v804 = vunpack.c.l.b16 %v301
        %v805 = vunpack.c.l.b16 %v302
        %v806 = vunpack.c.l.b16 %v303
        %v807 = vunpack.c.l.b16 %v304
        %v808 = vunpack.c.l.b16 %v305
        %v809 = vunpack.c.l.b16 %v306
        %v810 = vunpack.c.l.b16 %v307
        %v811 = vunpack.c.l.b16 %v308
        %v812 = vunpack.c.l.b16 %v309
        %v813 = vunpack.c.l.b16 %v310
        %v814 = vunpack.c.l.b16 %v311
        %v815 = vunpack.c.l.b16 %v312
        %v816 = vunpack.c.l.b16 %v313
        %v817 = vunpack.c.l.b16 %v314
        %v818 = vunpack.c.l.b16 %v315
        %v819 = vunpack.c.l.b16 %v316
        %v820 = vunpack.c.l.b16 %v317
        %v821 = vunpack.c.l.b16 %v318
        %v822 = vunpack.c.l.b16 %v319
        %v823 = vunpack.c.l.b16 %v320
        %v824 = vunpack.c.l.b16 %v321
        %v825 = vunpack.c.l.b16 %v322
        %v826 = vunpack.c.l.b16 %v323
        %v827 = vunpack.c.l.b16 %v324
        %v828 = vunpack.c.l.b16 %v325
        %v829 = vunpack.c.l.b16 %v326
        %v830 = vunpack.c.l.b16 %v327
        %v831 = vunpack.c.l.b16 %v328
        %v832 = vunpack.c.l.b16 %v329
        %v833 = vunpack.c.l.b16 %v330
        %v834 = vunpack.c.l.b16 %v331
        %v835 = vunpack.c.l.b16 %v332
        %v836 = vunpack.c.l.b16 %v333
        %v837 = vunpack.c.l.b16 %v334
        %v838 = vunpack.c.l.b16 %v335
        %v839 = vunpack.c.l.b16 %v336
        %v840 = vunpack.c.l.b16 %v337
        %v841 = vunpack.c.l.b16 %v338
        %v842 = vunpack.c.l.b16 %v339
        %v843 = vunpack.c.l.b16 %v340
        %v844 = vunpack.c.l.b16 %v341
        %v845 = vunpack.c.l.b16 %v342
        %v846 = vunpack.c.l.b16 %v343
        %v847 = vunpack.c.l.b16 %v344
        %v848 = vunpack.c.l.b16 %v345
        %v849 = vunpack.c.l.b16 %v346
        %v850 = vunpack.c.l.b16 %v347
        %v851 = vunpack.c.l.b16 %v348
        %v852 = vunpack.c.l.b16 %v349
        %v853 = vunpack.c.l.b16 %v350
        %v854 = vunpack.c.l.b16 %v351
        %v855 = vunpack.c.l.b16 %v352
        %v856 = vunpack.c.l.b16 %v353
        %v857 = vunpack.c.l.b16 %v354
        %v858 = vunpack.c.l.b16 %v355
        %v859 = vunpack.c.l.b16 %v356
        %v860 = vunpack.c.l.b16 %v357
        %v861 = vunpack.c.l.b16 %v358
        %v862 = vunpack.c.l.b16 %v359
        %v863 = vunpack.c.l.b16 %v360
        %v864 = vunpack.c.l.b16 %v361
        %v865 = vunpack.c.l.b16 %v362
        %v866 = vunpack.c.l.b16 %v363
        %v867 = vunpack.c.l.b16 %v364
        %v868 = vunpack.c.l.b16 %v365
        %v869 = vunpack.c.l.b16 %v366
        %v870 = vunpack.c.l.b16 %v367
        %v871 = vunpack.c.l.b16 %v368
        %v872 = vunpack.c.l.b16 %v369
        %v873 = vunpack.c.l.b16 %v370
        %v874 = vunpack.c.l.b16 %v371
        %v875 = vunpack.c.l.b16 %v372
        %v876 = vunpack.c.l.b16 %v373
        %v877 = vunpack.c.l.b16 %v374
        %v878 = vunpack.c.l.b16 %v375
        %v879 = vunpack.c.l.b16 %v376
        %v880 = vpack.c.b16 %v753, %v752
        %v881 = vpack.c.b16 %v755, %v754
        %v882 = vpack.c.b16 %v757, %v756
        %v883 = vpack.c.b16 %v759, %v758
        %v884 = vpack.c.b16 %v761, %v760
        %v885 = vpack.c.b16 %v763, %v762
        %v886 = vpack.c.b16 %v765, %v764
        %v887 = vpack.c.b16 %v767, %v766
        %v888 = vpack.c.b16 %v769, %v768
        %v889 = vpack.c.b16 %v771, %v770
        %v890 = vpack.c.b16 %v773, %v772
        %v891 = vpack.c.b16 %v775, %v774
        %v892 = vpack.c.b16 %v777, %v776
        %v893 = vpack.c.b16 %v779, %v778
        %v894 = vpack.c.b16 %v781, %v780
        %v895 = vpack.c.b16 %v783, %v782
        %v896 = vpack.c.b16 %v785, %v784
        %v897 = vpack.c.b16 %v787, %v786
        %v898 = vpack.c.b16 %v789, %v788
        %v899 = vpack.c.b16 %v791, %v790
        %v900 = vpack.c.b16 %v793, %v792
        %v901 = vpack.c.b16 %v795, %v794
        %v902 = vpack.c.b16 %v797, %v796
        %v903 = vpack.c.b16 %v799, %v798
        %v904 = vpack.c.b16 %v801, %v800
        %v905 = vpack.c.b16 %v803, %v802
        %v906 = vpack.c.b16 %v805, %v804
        %v907 = vpack.c.b16 %v807, %v806
        %v908 = vpack.c.b16 %v809, %v808
        %v909 = vpack.c.b16 %v811, %v810
        %v910 = vpack.c.b16 %v813, %v812
        %v911 = vpack.c.b16 %v815, %v814
        %v912 = vpack.c.b16 %v817, %v816
        %v913 = vpack.c.b16 %v819, %v818
        %v914 = vpack.c.b16 %v821, %v820
        %v915 = vpack.c.b16 %v823, %v822
        %v916 = vpack.c.b16 %v825, %v824
        %v917 = vpack.c.b16 %v827, %v826
        %v918 = vpack.c.b16 %v829, %v828
        %v919 = vpack.c.b16 %v831, %v830
        %v920 = vpack.c.b16 %v833, %v832
        %v921 = vpack.c.b16 %v835, %v834
        %v922 = vpack.c.b16 %v837, %v836
        %v923 = vpack.c.b16 %v839, %v838
        %v924 = vpack.c.b16 %v841, %v840
        %v925 = vpack.c.b16 %v843, %v842
        %v926 = vpack.c.b16 %v845, %v844
        %v927 = vpack.c.b16 %v847, %v846
        %v928 = vpack.c.b16 %v849, %v848
        %v929 = vpack.c.b16 %v851, %v850
        %v930 = vpack.c.b16 %v853, %v852
        %v931 = vpack.c.b16 %v855, %v854
        %v932 = vpack.c.b16 %v857, %v856
        %v933 = vpack.c.b16 %v859, %v858
        %v934 = vpack.c.b16 %v861, %v860
        %v935 = vpack.c.b16 %v863, %v862
        %v936 = vpack.c.b16 %v865, %v864
        %v937 = vpack.c.b16 %v867, %v866
        %v938 = vpack.c.b16 %v869, %v868
        %v939 = vpack.c.b16 %v871, %v870
        %v940 = vpack.c.b16 %v873, %v872
        %v941 = vpack.c.b16 %v875, %v874
        %v942 = vpack.c.b16 %v877, %v876
        %v943 = vpack.c.b16 %v879, %v878
        %1008 = vmatprep.subr.bf16.mxu0 0
        %1009 = vmatpush1.bf16.msra.mxu0 %v880
        %1010 = vmatprep.subr.bf16.mxu0 0
        %1011 = vmatpush1.bf16.msra.mxu0 %v881
        %1012 = vmatprep.subr.bf16.mxu0 0
        %1013 = vmatpush1.bf16.msra.mxu0 %v882
        %1014 = vmatprep.subr.bf16.mxu0 0
        %1015 = vmatpush1.bf16.msra.mxu0 %v883
        %1016 = vmatprep.subr.bf16.mxu0 0
        %1017 = vmatpush1.bf16.msra.mxu0 %v884
        %1018 = vmatprep.subr.bf16.mxu0 0
        %1019 = vmatpush1.bf16.msra.mxu0 %v885
        %1020 = vmatprep.subr.bf16.mxu0 0
        %1021 = vmatpush1.bf16.msra.mxu0 %v886
        %1022 = vmatprep.subr.bf16.mxu0 0
        %1023 = vmatpush1.bf16.msra.mxu0 %v887
        %1024 = vmatprep.subr.bf16.mxu0 0
        %1025 = vmatpush1.bf16.msra.mxu0 %v888
        %1026 = vmatprep.subr.bf16.mxu0 0
        %1027 = vmatpush1.bf16.msra.mxu0 %v889
        %1028 = vmatprep.subr.bf16.mxu0 0
        %1029 = vmatpush1.bf16.msra.mxu0 %v890
        %1030 = vmatprep.subr.bf16.mxu0 0
        %1031 = vmatpush1.bf16.msra.mxu0 %v891
        %1032 = vmatprep.subr.bf16.mxu0 0
        %1033 = vmatpush1.bf16.msra.mxu0 %v892
        %1034 = vmatprep.subr.bf16.mxu0 0
        %1035 = vmatpush1.bf16.msra.mxu0 %v893
        %1036 = vmatprep.subr.bf16.mxu0 0
        %1037 = vmatpush1.bf16.msra.mxu0 %v894
        %1038 = vmatprep.subr.bf16.mxu0 0
        %1039 = vmatpush1.bf16.msra.mxu0 %v895
        %1040 = vmatprep.mubr.bf16.mxu0 %v529
        %1041 = vmatmul.mubr.bf16.gmra.mrb[0].mxu0 %v528
        %v1042 = vpop.f32.mrb[0].mxu0
        %v1043 = vadd.f32 %v382, %v1042
        %v1044 = vpop.f32.mrb[0].mxu0
        %v1045 = vpop.f32.mrb[0].mxu0
        %v1046 = vadd.f32 %v382, %v1045
        %v1047 = vpop.f32.mrb[0].mxu0
        %1048 = vmatprep.mubr.bf16.mxu0 %v537
        %1049 = vmatmul.mubr.bf16.gmra.mrb[0].mxu0 %v536
        %v1050 = vpop.f32.mrb[0].mxu0
        %v1051 = vadd.f32 %v382, %v1050
        %v1052 = vpop.f32.mrb[0].mxu0
        %v1053 = vpop.f32.mrb[0].mxu0
        %v1054 = vadd.f32 %v382, %v1053
        %v1055 = vpop.f32.mrb[0].mxu0
        %1056 = vmatprep.mubr.bf16.mxu0 %v545
        %1057 = vmatmul.mubr.bf16.gmra.mrb[0].mxu0 %v544
        %v1058 = vpop.f32.mrb[0].mxu0
        %v1059 = vadd.f32 %v382, %v1058
        %v1060 = vpop.f32.mrb[0].mxu0
        %v1061 = vpop.f32.mrb[0].mxu0
        %v1062 = vadd.f32 %v382, %v1061
        %v1063 = vpop.f32.mrb[0].mxu0
        %1064 = vmatprep.mubr.bf16.mxu0 %v553
        %1065 = vmatmul.mubr.bf16.gmra.mrb[0].mxu0 %v552
        %v1066 = vpop.f32.mrb[0].mxu0
        %v1067 = vadd.f32 %v382, %v1066
        %v1068 = vpop.f32.mrb[0].mxu0
        %v1069 = vpop.f32.mrb[0].mxu0
        %v1070 = vadd.f32 %v382, %v1069
        %v1071 = vpop.f32.mrb[0].mxu0
        %1072 = vmatprep.mubr.bf16.mxu0 %v561
        %1073 = vmatmul.mubr.bf16.gmra.mrb[0].mxu0 %v560
        %v1074 = vpop.f32.mrb[0].mxu0
        %v1075 = vadd.f32 %v382, %v1074
        %v1076 = vpop.f32.mrb[0].mxu0
        %v1077 = vpop.f32.mrb[0].mxu0
        %v1078 = vadd.f32 %v382, %v1077
        %v1079 = vpop.f32.mrb[0].mxu0
        %1080 = vmatprep.mubr.bf16.mxu0 %v569
        %1081 = vmatmul.mubr.bf16.gmra.mrb[0].mxu0 %v568
        %v1082 = vpop.f32.mrb[0].mxu0
        %v1083 = vadd.f32 %v382, %v1082
        %v1084 = vpop.f32.mrb[0].mxu0
        %v1085 = vpop.f32.mrb[0].mxu0
        %v1086 = vadd.f32 %v382, %v1085
        %v1087 = vpop.f32.mrb[0].mxu0
        %1088 = vdwg.mxu0
        %1089 = vmatprep.subr.bf16.mxu0 0
        %1090 = vmatpush1.bf16.msra.mxu0 %v896
        %1091 = vmatprep.subr.bf16.mxu0 0
        %1092 = vmatpush1.bf16.msra.mxu0 %v897
        %1093 = vmatprep.subr.bf16.mxu0 0
        %1094 = vmatpush1.bf16.msra.mxu0 %v898
        %1095 = vmatprep.subr.bf16.mxu0 0
        %1096 = vmatpush1.bf16.msra.mxu0 %v899
        %1097 = vmatprep.subr.bf16.mxu0 0
        %1098 = vmatpush1.bf16.msra.mxu0 %v900
        %1099 = vmatprep.subr.bf16.mxu0 0
        %1100 = vmatpush1.bf16.msra.mxu0 %v901
        %1101 = vmatprep.subr.bf16.mxu0 0
        %1102 = vmatpush1.bf16.msra.mxu0 %v902
        %1103 = vmatprep.subr.bf16.mxu0 0
        %1104 = vmatpush1.bf16.msra.mxu0 %v903
        %1105 = vmatprep.subr.bf16.mxu0 0
        %1106 = vmatpush1.bf16.msra.mxu0 %v904
        %1107 = vmatprep.subr.bf16.mxu0 0
        %1108 = vmatpush1.bf16.msra.mxu0 %v905
        %1109 = vmatprep.subr.bf16.mxu0 0
        %1110 = vmatpush1.bf16.msra.mxu0 %v906
        %1111 = vmatprep.subr.bf16.mxu0 0
        %1112 = vmatpush1.bf16.msra.mxu0 %v907
        %1113 = vmatprep.subr.bf16.mxu0 0
        %1114 = vmatpush1.bf16.msra.mxu0 %v908
        %1115 = vmatprep.subr.bf16.mxu0 0
        %1116 = vmatpush1.bf16.msra.mxu0 %v909
        %1117 = vmatprep.subr.bf16.mxu0 0
        %1118 = vmatpush1.bf16.msra.mxu0 %v910
        %1119 = vmatprep.subr.bf16.mxu0 0
        %1120 = vmatpush1.bf16.msra.mxu0 %v911
        %1121 = vmatprep.mubr.bf16.mxu0 %v531
        %1122 = vmatmul.mubr.bf16.gmra.mrb[0].mxu0 %v530
        %v1123 = vpop.f32.mrb[0].mxu0
        %v1124 = vadd.f32 %v1043, %v1123
        %v1125 = vpop.f32.mrb[0].mxu0
        %v1126 = vpop.f32.mrb[0].mxu0
        %v1127 = vadd.f32 %v1046, %v1126
        %v1128 = vpop.f32.mrb[0].mxu0
        %1129 = vmatprep.mubr.bf16.mxu0 %v539
        %1130 = vmatmul.mubr.bf16.gmra.mrb[0].mxu0 %v538
        %v1131 = vpop.f32.mrb[0].mxu0
        %v1132 = vadd.f32 %v1051, %v1131
        %v1133 = vpop.f32.mrb[0].mxu0
        %v1134 = vpop.f32.mrb[0].mxu0
        %v1135 = vadd.f32 %v1054, %v1134
        %v1136 = vpop.f32.mrb[0].mxu0
        %1137 = vmatprep.mubr.bf16.mxu0 %v547
        %1138 = vmatmul.mubr.bf16.gmra.mrb[0].mxu0 %v546
        %v1139 = vpop.f32.mrb[0].mxu0
        %v1140 = vadd.f32 %v1059, %v1139
        %v1141 = vpop.f32.mrb[0].mxu0
        %v1142 = vpop.f32.mrb[0].mxu0
        %v1143 = vadd.f32 %v1062, %v1142
        %v1144 = vpop.f32.mrb[0].mxu0
        %1145 = vmatprep.mubr.bf16.mxu0 %v555
        %1146 = vmatmul.mubr.bf16.gmra.mrb[0].mxu0 %v554
        %v1147 = vpop.f32.mrb[0].mxu0
        %v1148 = vadd.f32 %v1067, %v1147
        %v1149 = vpop.f32.mrb[0].mxu0
        %v1150 = vpop.f32.mrb[0].mxu0
        %v1151 = vadd.f32 %v1070, %v1150
        %v1152 = vpop.f32.mrb[0].mxu0
        %1153 = vmatprep.mubr.bf16.mxu0 %v563
        %1154 = vmatmul.mubr.bf16.gmra.mrb[0].mxu0 %v562
        %v1155 = vpop.f32.mrb[0].mxu0
        %v1156 = vadd.f32 %v1075, %v1155
        %v1157 = vpop.f32.mrb[0].mxu0
        %v1158 = vpop.f32.mrb[0].mxu0
        %v1159 = vadd.f32 %v1078, %v1158
        %v1160 = vpop.f32.mrb[0].mxu0
        %1161 = vmatprep.mubr.bf16.mxu0 %v571
        %1162 = vmatmul.mubr.bf16.gmra.mrb[0].mxu0 %v570
        %v1163 = vpop.f32.mrb[0].mxu0
        %v1164 = vadd.f32 %v1083, %v1163
        %v1165 = vpop.f32.mrb[0].mxu0
        %v1166 = vpop.f32.mrb[0].mxu0
        %v1167 = vadd.f32 %v1086, %v1166
        %v1168 = vpop.f32.mrb[0].mxu0
        %1169 = vdwg.mxu0
        %1170 = vmatprep.subr.bf16.mxu0 0
        %1171 = vmatpush1.bf16.msra.mxu0 %v912
        %1172 = vmatprep.subr.bf16.mxu0 0
        %1173 = vmatpush1.bf16.msra.mxu0 %v913
        %1174 = vmatprep.subr.bf16.mxu0 0
        %1175 = vmatpush1.bf16.msra.mxu0 %v914
        %1176 = vmatprep.subr.bf16.mxu0 0
        %1177 = vmatpush1.bf16.msra.mxu0 %v915
        %1178 = vmatprep.subr.bf16.mxu0 0
        %1179 = vmatpush1.bf16.msra.mxu0 %v916
        %1180 = vmatprep.subr.bf16.mxu0 0
        %1181 = vmatpush1.bf16.msra.mxu0 %v917
        %1182 = vmatprep.subr.bf16.mxu0 0
        %1183 = vmatpush1.bf16.msra.mxu0 %v918
        %1184 = vmatprep.subr.bf16.mxu0 0
        %1185 = vmatpush1.bf16.msra.mxu0 %v919
        %1186 = vmatprep.subr.bf16.mxu0 0
        %1187 = vmatpush1.bf16.msra.mxu0 %v920
        %1188 = vmatprep.subr.bf16.mxu0 0
        %1189 = vmatpush1.bf16.msra.mxu0 %v921
        %1190 = vmatprep.subr.bf16.mxu0 0
        %1191 = vmatpush1.bf16.msra.mxu0 %v922
        %1192 = vmatprep.subr.bf16.mxu0 0
        %1193 = vmatpush1.bf16.msra.mxu0 %v923
        %1194 = vmatprep.subr.bf16.mxu0 0
        %1195 = vmatpush1.bf16.msra.mxu0 %v924
        %1196 = vmatprep.subr.bf16.mxu0 0
        %1197 = vmatpush1.bf16.msra.mxu0 %v925
        %1198 = vmatprep.subr.bf16.mxu0 0
        %1199 = vmatpush1.bf16.msra.mxu0 %v926
        %1200 = vmatprep.subr.bf16.mxu0 0
        %1201 = vmatpush1.bf16.msra.mxu0 %v927
        %1202 = vmatprep.mubr.bf16.mxu0 %v533
        %1203 = vmatmul.mubr.bf16.gmra.mrb[0].mxu0 %v532
        %v1204 = vpop.f32.mrb[0].mxu0
        %v1205 = vadd.f32 %v1124, %v1204
        %v1206 = vpop.f32.mrb[0].mxu0
        %v1207 = vpop.f32.mrb[0].mxu0
        %v1208 = vadd.f32 %v1127, %v1207
        %v1209 = vpop.f32.mrb[0].mxu0
        %1210 = vmatprep.mubr.bf16.mxu0 %v541
        %1211 = vmatmul.mubr.bf16.gmra.mrb[0].mxu0 %v540
        %v1212 = vpop.f32.mrb[0].mxu0
        %v1213 = vadd.f32 %v1132, %v1212
        %v1214 = vpop.f32.mrb[0].mxu0
        %v1215 = vpop.f32.mrb[0].mxu0
        %v1216 = vadd.f32 %v1135, %v1215
        %v1217 = vpop.f32.mrb[0].mxu0
        %1218 = vmatprep.mubr.bf16.mxu0 %v549
        %1219 = vmatmul.mubr.bf16.gmra.mrb[0].mxu0 %v548
        %v1220 = vpop.f32.mrb[0].mxu0
        %v1221 = vadd.f32 %v1140, %v1220
        %v1222 = vpop.f32.mrb[0].mxu0
        %v1223 = vpop.f32.mrb[0].mxu0
        %v1224 = vadd.f32 %v1143, %v1223
        %v1225 = vpop.f32.mrb[0].mxu0
        %1226 = vmatprep.mubr.bf16.mxu0 %v557
        %1227 = vmatmul.mubr.bf16.gmra.mrb[0].mxu0 %v556
        %v1228 = vpop.f32.mrb[0].mxu0
        %v1229 = vadd.f32 %v1148, %v1228
        %v1230 = vpop.f32.mrb[0].mxu0
        %v1231 = vpop.f32.mrb[0].mxu0
        %v1232 = vadd.f32 %v1151, %v1231
        %v1233 = vpop.f32.mrb[0].mxu0
        %1234 = vmatprep.mubr.bf16.mxu0 %v565
        %1235 = vmatmul.mubr.bf16.gmra.mrb[0].mxu0 %v564
        %v1236 = vpop.f32.mrb[0].mxu0
        %v1237 = vadd.f32 %v1156, %v1236
        %v1238 = vpop.f32.mrb[0].mxu0
        %v1239 = vpop.f32.mrb[0].mxu0
        %v1240 = vadd.f32 %v1159, %v1239
        %v1241 = vpop.f32.mrb[0].mxu0
        %1242 = vmatprep.mubr.bf16.mxu0 %v573
        %1243 = vmatmul.mubr.bf16.gmra.mrb[0].mxu0 %v572
        %v1244 = vpop.f32.mrb[0].mxu0
        %v1245 = vadd.f32 %v1164, %v1244
        %v1246 = vpop.f32.mrb[0].mxu0
        %v1247 = vpop.f32.mrb[0].mxu0
        %v1248 = vadd.f32 %v1167, %v1247
        %v1249 = vpop.f32.mrb[0].mxu0
        %1250 = vdwg.mxu0
        %1251 = vmatprep.subr.bf16.mxu0 0
        %1252 = vmatpush1.bf16.msra.mxu0 %v928
        %1253 = vmatprep.subr.bf16.mxu0 0
        %1254 = vmatpush1.bf16.msra.mxu0 %v929
        %1255 = vmatprep.subr.bf16.mxu0 0
        %1256 = vmatpush1.bf16.msra.mxu0 %v930
        %1257 = vmatprep.subr.bf16.mxu0 0
        %1258 = vmatpush1.bf16.msra.mxu0 %v931
        %1259 = vmatprep.subr.bf16.mxu0 0
        %1260 = vmatpush1.bf16.msra.mxu0 %v932
        %1261 = vmatprep.subr.bf16.mxu0 0
        %1262 = vmatpush1.bf16.msra.mxu0 %v933
        %1263 = vmatprep.subr.bf16.mxu0 0
        %1264 = vmatpush1.bf16.msra.mxu0 %v934
        %1265 = vmatprep.subr.bf16.mxu0 0
        %1266 = vmatpush1.bf16.msra.mxu0 %v935
        %1267 = vmatprep.subr.bf16.mxu0 0
        %1268 = vmatpush1.bf16.msra.mxu0 %v936
        %1269 = vmatprep.subr.bf16.mxu0 0
        %1270 = vmatpush1.bf16.msra.mxu0 %v937
        %1271 = vmatprep.subr.bf16.mxu0 0
        %1272 = vmatpush1.bf16.msra.mxu0 %v938
        %1273 = vmatprep.subr.bf16.mxu0 0
        %1274 = vmatpush1.bf16.msra.mxu0 %v939
        %1275 = vmatprep.subr.bf16.mxu0 0
        %1276 = vmatpush1.bf16.msra.mxu0 %v940
        %1277 = vmatprep.subr.bf16.mxu0 0
        %1278 = vmatpush1.bf16.msra.mxu0 %v941
        %1279 = vmatprep.subr.bf16.mxu0 0
        %1280 = vmatpush1.bf16.msra.mxu0 %v942
        %1281 = vmatprep.subr.bf16.mxu0 0
        %1282 = vmatpush1.bf16.msra.mxu0 %v943
        %1283 = vmatprep.mubr.bf16.mxu0 %v535
        %1284 = vmatmul.mubr.bf16.gmra.mrb[0].mxu0 %v534
        %v1285 = vpop.f32.mrb[0].mxu0
        %v1286 = vadd.f32 %v1205, %v1285
        %v1287 = vpop.f32.mrb[0].mxu0
        %v1288 = vpop.f32.mrb[0].mxu0
        %v1289 = vadd.f32 %v1208, %v1288
        %v1290 = vpop.f32.mrb[0].mxu0
        %1291 = vmatprep.mubr.bf16.mxu0 %v543
        %1292 = vmatmul.mubr.bf16.gmra.mrb[0].mxu0 %v542
        %v1293 = vpop.f32.mrb[0].mxu0
        %v1294 = vadd.f32 %v1213, %v1293
        %v1295 = vpop.f32.mrb[0].mxu0
        %v1296 = vpop.f32.mrb[0].mxu0
        %v1297 = vadd.f32 %v1216, %v1296
        %v1298 = vpop.f32.mrb[0].mxu0
        %1299 = vmatprep.mubr.bf16.mxu0 %v551
        %1300 = vmatmul.mubr.bf16.gmra.mrb[0].mxu0 %v550
        %v1301 = vpop.f32.mrb[0].mxu0
        %v1302 = vadd.f32 %v1221, %v1301
        %v1303 = vpop.f32.mrb[0].mxu0
        %v1304 = vpop.f32.mrb[0].mxu0
        %v1305 = vadd.f32 %v1224, %v1304
        %v1306 = vpop.f32.mrb[0].mxu0
        %1307 = vmatprep.mubr.bf16.mxu0 %v559
        %1308 = vmatmul.mubr.bf16.gmra.mrb[0].mxu0 %v558
        %v1309 = vpop.f32.mrb[0].mxu0
        %v1310 = vadd.f32 %v1229, %v1309
        %v1311 = vpop.f32.mrb[0].mxu0
        %v1312 = vpop.f32.mrb[0].mxu0
        %v1313 = vadd.f32 %v1232, %v1312
        %v1314 = vpop.f32.mrb[0].mxu0
        %1315 = vmatprep.mubr.bf16.mxu0 %v567
        %1316 = vmatmul.mubr.bf16.gmra.mrb[0].mxu0 %v566
        %v1317 = vpop.f32.mrb[0].mxu0
        %v1318 = vadd.f32 %v1237, %v1317
        %v1319 = vpop.f32.mrb[0].mxu0
        %v1320 = vpop.f32.mrb[0].mxu0
        %v1321 = vadd.f32 %v1240, %v1320
        %v1322 = vpop.f32.mrb[0].mxu0
        %1323 = vmatprep.mubr.bf16.mxu0 %v575
        %1324 = vmatmul.mubr.bf16.gmra.mrb[0].mxu0 %v574
        %v1325 = vpop.f32.mrb[0].mxu0
        %v1326 = vadd.f32 %v1245, %v1325
        %v1327 = vpop.f32.mrb[0].mxu0
        %v1328 = vpop.f32.mrb[0].mxu0
        %v1329 = vadd.f32 %v1248, %v1328
        %v1330 = vpop.f32.mrb[0].mxu0
        %1331 = vdwg.mxu0
        %v1332 = vmax.f32 %v1286, 0.0
        %v1333 = vmax.f32 %v1289, 0.0
        %v1334 = vmax.f32 %v1294, 0.0
        %v1335 = vmax.f32 %v1297, 0.0
        %v1336 = vmax.f32 %v1302, 0.0
        %v1337 = vmax.f32 %v1305, 0.0
        %v1338 = vmax.f32 %v1310, 0.0
        %v1339 = vmax.f32 %v1313, 0.0
        %v1340 = vmax.f32 %v1318, 0.0
        %v1341 = vmax.f32 %v1321, 0.0
        %v1342 = vmax.f32 %v1326, 0.0
        %v1343 = vmax.f32 %v1329, 0.0
        %v1344 = vpack.c.bf16 %v1333, %v1332
        %v1345 = vpack.c.bf16 %v1335, %v1334
        %v1346 = vpack.c.bf16 %v1337, %v1336
        %v1347 = vpack.c.bf16 %v1339, %v1338
        %v1348 = vpack.c.bf16 %v1341, %v1340
        %v1349 = vpack.c.bf16 %v1343, %v1342
        %v1356 = vunpack.c.l.b16 %v1344
        %v1357 = vunpack.c.h.b16 %v1344
        %v1358 = vunpack.c.l.b16 %v1345
        %v1359 = vunpack.c.h.b16 %v1345
        %v1360 = vunpack.c.l.b16 %v1346
        %v1361 = vunpack.c.h.b16 %v1346
        %v1362 = vunpack.c.l.b16 %v1347
        %v1363 = vunpack.c.h.b16 %v1347
        %v1364 = vunpack.c.l.b16 %v1348
        %v1365 = vunpack.c.h.b16 %v1348
        %v1366 = vunpack.c.l.b16 %v1349
        %v1367 = vunpack.c.h.b16 %v1349
        %v1368 = vpack.c.b16 %v1356, %v1356
        %v1369 = vpack.c.b16 %v1357, %v1357
        %v1370 = vpack.c.b16 %v1358, %v1358
        %v1371 = vpack.c.b16 %v1359, %v1359
        %v1372 = vpack.c.b16 %v1360, %v1360
        %v1373 = vpack.c.b16 %v1361, %v1361
        %v1374 = vpack.c.b16 %v1362, %v1362
        %v1375 = vpack.c.b16 %v1363, %v1363
        %v1376 = vpack.c.b16 %v1364, %v1364
        %v1377 = vpack.c.b16 %v1365, %v1365
        %v1378 = vpack.c.b16 %v1366, %v1366
        %v1379 = vpack.c.b16 %v1367, %v1367
        %1392 = vst [vmem:[%s177] sm:$0xf] %v1368
        %1393 = vst [vmem:[%s177 + $0x4] sm:$0xf] %v1369
        %1394 = vst [vmem:[%s177 + $0x8] sm:$0xf] %v1370
        %1395 = vst [vmem:[%s177 + $0xc] sm:$0xf] %v1371
        %1396 = vst [vmem:[%s177 + $0x10] sm:$0xf] %v1372
        %1397 = vst [vmem:[%s177 + $0x14] sm:$0xf] %v1373
        %1398 = vst [vmem:[%s177 + $0x18] sm:$0xf] %v1374
        %1399 = vst [vmem:[%s177 + $0x1c] sm:$0xf] %v1375
        %1400 = vst [vmem:[%s177 + $0x20] sm:$0xf] %v1376
        %1401 = vst [vmem:[%s177 + $0x24] sm:$0xf] %v1377
        %1402 = vst [vmem:[%s177 + $0x28] sm:$0xf] %v1378
        %1403 = vst [vmem:[%s177 + $0x2c] sm:$0xf] %v1379
        %s1404 = sand.u32 %s90, 1
        %s1405 = sand.u32 %s90, 1
        %s1406 = smul.addr %s1405, 48
        %s1407 = scalar_lea.vmem [#allocation2], %s1406
        // Predicated region
        $region33: #{sep_body_conv_forward.5} parent=31 // pred_check
          %p1408 = pneg %p100
        $region34: #{sep_body_conv_forward.5} parent=31 // pred_check_branch
          %1410 = sbr.rel (%p1408) target = $region36
        $region35: #{sep_body_conv_forward.5} parent=31 // pred_region
          %s1411 = smul.u32 12, %s14
          %s1412 = ssub.s32 21, %s1411
          %p1413 = scmp.lt.s32.totalorder %s1412, 12
          %s1414 = scalar_select %p1413, %s1412, 12
          %s1415 = smul.u32 64, %s1414
          %p1416 = scmp.ne.s32.totalorder 0, %s1415
          %s1417 = smul.addr %s1411, 4
          %s1418 = scalar_lea.vmem %s3, %s1417
          // Predicated region
          $region37: #{sep_body_conv_forward.5} parent=35 // pred_check
            %p1419 = pneg %p1416
          $region38: #{sep_body_conv_forward.5} parent=35 // pred_check_branch
            %1421 = sbr.rel (%p1419) target = $region40
          $region39: #{sep_body_conv_forward.5} parent=35 // pred_region
            // Predicated region
            $region41: #{sep_body_conv_forward.5} parent=39 // pred_check
              _
            $region42: #{sep_body_conv_forward.5} parent=39 // pred_check_branch
              %1423 = sbr.rel target = $region44
            $region43: #{sep_body_conv_forward.5} parent=39 // pred_region
              // Predicated region
              $region63: #{sep_body_conv_forward.5} parent=43 // pred_check
                _
              $region64: #{sep_body_conv_forward.5} parent=43 // pred_check_branch
                %1495 = sbr.rel (0) target = $region66
              $region65: #{sep_body_conv_forward.5} parent=43 // pred_region
                %s1497 = sdiv.u32.pop %s1414, 12
                %s1498 = srem.u32.pop %s1414, 12
                // While loop
                $region67: #{sep_body_conv_forward.5} parent=65 // loop_pre_header
                  _
                $region68: #{sep_body_conv_forward.5} parent=65 // loop_header
                  %s1500 = sphi 0, %s1502
                  %p1501 = scmp.ge.s32.totalorder %s1500, %s1497
                  %s1505 = sphi 0, %s1534
                  %s1506 = sphi %s1407, %s1537
                  %s1507 = sphi %s1418, %s1538
                $region69: #{sep_body_conv_forward.5} parent=65 // loop_header_branch
                  %1504 = sbr.rel (%p1501) target = $region73
                $region70: #{sep_body_conv_forward.5} parent=65 // loop_body
                  %v1508 = vld [vmem:[%s1506] sm:$0xf]
                  %1509 = vst [vmem:[%s1507] sm:$0xf] %v1508
                  %v1510 = vld [vmem:[%s1506 + $0x4] sm:$0xf]
                  %1511 = vst [vmem:[%s1507 + $0x4] sm:$0xf] %v1510
                  %v1512 = vld [vmem:[%s1506 + $0x8] sm:$0xf]
                  %1513 = vst [vmem:[%s1507 + $0x8] sm:$0xf] %v1512
                  %v1514 = vld [vmem:[%s1506 + $0xc] sm:$0xf]
                  %1515 = vst [vmem:[%s1507 + $0xc] sm:$0xf] %v1514
                  %v1516 = vld [vmem:[%s1506 + $0x10] sm:$0xf]
                  %1517 = vst [vmem:[%s1507 + $0x10] sm:$0xf] %v1516
                  %v1518 = vld [vmem:[%s1506 + $0x14] sm:$0xf]
                  %1519 = vst [vmem:[%s1507 + $0x14] sm:$0xf] %v1518
                  %v1520 = vld [vmem:[%s1506 + $0x18] sm:$0xf]
                  %1521 = vst [vmem:[%s1507 + $0x18] sm:$0xf] %v1520
                  %v1522 = vld [vmem:[%s1506 + $0x1c] sm:$0xf]
                  %1523 = vst [vmem:[%s1507 + $0x1c] sm:$0xf] %v1522
                  %v1524 = vld [vmem:[%s1506 + $0x20] sm:$0xf]
                  %1525 = vst [vmem:[%s1507 + $0x20] sm:$0xf] %v1524
                  %v1526 = vld [vmem:[%s1506 + $0x24] sm:$0xf]
                  %1527 = vst [vmem:[%s1507 + $0x24] sm:$0xf] %v1526
                  %v1528 = vld [vmem:[%s1506 + $0x28] sm:$0xf]
                  %1529 = vst [vmem:[%s1507 + $0x28] sm:$0xf] %v1528
                  %v1530 = vld [vmem:[%s1506 + $0x2c] sm:$0xf]
                  %1531 = vst [vmem:[%s1507 + $0x2c] sm:$0xf] %v1530
                  %s1532 = sadd.s32 1, %s1505
                  %p1533 = scmp.ge.s32.totalorder %s1532, %s1497
                  %s1534 = scalar_select %p1533, 0, %s1532
                  %s1535 = smul.u32 %s1534, 48
                  %s1536 = smul.u32 %s1534, 48
                  %s1537 = scalar_lea.vmem %s1407, %s1535 [#allocation2]
                  %s1538 = scalar_lea.vmem %s1418, %s1536
                $region71: #{sep_body_conv_forward.5} parent=65 // loop_footer
                  %s1502 = sadd.s32 %s1500, 1
                $region72: #{sep_body_conv_forward.5} parent=65 // loop_footer_branch
                  %1499 = sbr.rel target = $region68
                $region73: #{sep_body_conv_forward.5} parent=65 // loop_exit
                  _
                %s1539 = sdiv.u32.pop %s1414, 12
                %s1540 = srem.u32.pop %s1414, 12
                %s1541 = smul.u32 %s1539, 12
                %s1542 = smul.u32 4, %s1541
                %s1543 = scalar_lea.vmem %s1407, %s1542 [#allocation2]
                %s1544 = smul.u32 4, %s1541
                %s1545 = scalar_lea.vmem %s1418, %s1544
                // While loop
                $region74: #{sep_body_conv_forward.5} parent=65 // loop_pre_header
                  _
                $region75: #{sep_body_conv_forward.5} parent=65 // loop_header
                  %s1547 = sphi 0, %s1549
                  %p1548 = scmp.ge.s32.totalorder %s1547, %s1540
                  %s1552 = sphi 0, %s1559
                  %s1553 = sphi %s1543, %s1562
                  %s1554 = sphi %s1545, %s1563
                $region76: #{sep_body_conv_forward.5} parent=65 // loop_header_branch
                  %1551 = sbr.rel (%p1548) target = $region80
                $region77: #{sep_body_conv_forward.5} parent=65 // loop_body
                  %v1555 = vld [vmem:[%s1553] sm:$0xf]
                  %1556 = vst [vmem:[%s1554] sm:$0xf] %v1555
                  %s1557 = sadd.s32 1, %s1552
                  %p1558 = scmp.ge.s32.totalorder %s1557, %s1540
                  %s1559 = scalar_select %p1558, 0, %s1557
                  %s1560 = smul.u32 %s1559, 4
                  %s1561 = smul.u32 %s1559, 4
                  %s1562 = scalar_lea.vmem %s1543, %s1560 [#allocation2]
                  %s1563 = scalar_lea.vmem %s1545, %s1561
                $region78: #{sep_body_conv_forward.5} parent=65 // loop_footer
                  %s1549 = sadd.s32 %s1547, 1
                $region79: #{sep_body_conv_forward.5} parent=65 // loop_footer_branch
                  %1546 = sbr.rel target = $region75
                $region80: #{sep_body_conv_forward.5} parent=65 // loop_exit
                  _
              $region66: #{sep_body_conv_forward.5} parent=43 // pred_fallthru
                _
            $region44: #{sep_body_conv_forward.5} parent=39 // pred_fallthru
              _
            // Predicated region
            $region45: #{sep_body_conv_forward.5} parent=39 // pred_check
              _
            $region46: #{sep_body_conv_forward.5} parent=39 // pred_check_branch
              %1425 = sbr.rel (0) target = $region48
            $region47: #{sep_body_conv_forward.5} parent=39 // pred_region
              %s1427 = sdiv.u32.pop %s1414, 12
              %s1428 = srem.u32.pop %s1414, 12
              // While loop
              $region49: #{sep_body_conv_forward.5} parent=47 // loop_pre_header
                _
              $region50: #{sep_body_conv_forward.5} parent=47 // loop_header
                %s1430 = sphi 0, %s1432
                %p1431 = scmp.ge.s32.totalorder %s1430, %s1427
                %s1435 = sphi 0, %s1464
                %s1436 = sphi %s1407, %s1467
                %s1437 = sphi %s1418, %s1468
              $region51: #{sep_body_conv_forward.5} parent=47 // loop_header_branch
                %1434 = sbr.rel (%p1431) target = $region55
              $region52: #{sep_body_conv_forward.5} parent=47 // loop_body
                %v1438 = vld [vmem:[%s1436] sm:$0xf]
                %1439 = vst [vmem:[%s1437] sm:$0xf] %v1438
                %v1440 = vld [vmem:[%s1436 + $0x4] sm:$0xf]
                %1441 = vst [vmem:[%s1437 + $0x4] sm:$0xf] %v1440
                %v1442 = vld [vmem:[%s1436 + $0x8] sm:$0xf]
                %1443 = vst [vmem:[%s1437 + $0x8] sm:$0xf] %v1442
                %v1444 = vld [vmem:[%s1436 + $0xc] sm:$0xf]
                %1445 = vst [vmem:[%s1437 + $0xc] sm:$0xf] %v1444
                %v1446 = vld [vmem:[%s1436 + $0x10] sm:$0xf]
                %1447 = vst [vmem:[%s1437 + $0x10] sm:$0xf] %v1446
                %v1448 = vld [vmem:[%s1436 + $0x14] sm:$0xf]
                %1449 = vst [vmem:[%s1437 + $0x14] sm:$0xf] %v1448
                %v1450 = vld [vmem:[%s1436 + $0x18] sm:$0xf]
                %1451 = vst [vmem:[%s1437 + $0x18] sm:$0xf] %v1450
                %v1452 = vld [vmem:[%s1436 + $0x1c] sm:$0xf]
                %1453 = vst [vmem:[%s1437 + $0x1c] sm:$0xf] %v1452
                %v1454 = vld [vmem:[%s1436 + $0x20] sm:$0xf]
                %1455 = vst [vmem:[%s1437 + $0x20] sm:$0xf] %v1454
                %v1456 = vld [vmem:[%s1436 + $0x24] sm:$0xf]
                %1457 = vst [vmem:[%s1437 + $0x24] sm:$0xf] %v1456
                %v1458 = vld [vmem:[%s1436 + $0x28] sm:$0xf]
                %1459 = vst [vmem:[%s1437 + $0x28] sm:$0xf] %v1458
                %v1460 = vld [vmem:[%s1436 + $0x2c] sm:$0xf]
                %1461 = vst [vmem:[%s1437 + $0x2c] sm:$0xf] %v1460
                %s1462 = sadd.s32 1, %s1435
                %p1463 = scmp.ge.s32.totalorder %s1462, %s1427
                %s1464 = scalar_select %p1463, 0, %s1462
                %s1465 = smul.u32 %s1464, 48
                %s1466 = smul.u32 %s1464, 48
                %s1467 = scalar_lea.vmem %s1407, %s1465 [#allocation2]
                %s1468 = scalar_lea.vmem %s1418, %s1466
              $region53: #{sep_body_conv_forward.5} parent=47 // loop_footer
                %s1432 = sadd.s32 %s1430, 1
              $region54: #{sep_body_conv_forward.5} parent=47 // loop_footer_branch
                %1429 = sbr.rel target = $region50
              $region55: #{sep_body_conv_forward.5} parent=47 // loop_exit
                _
              %s1469 = sdiv.u32.pop %s1414, 12
              %s1470 = srem.u32.pop %s1414, 12
              %s1471 = smul.u32 %s1469, 12
              %s1472 = smul.u32 4, %s1471
              %s1473 = scalar_lea.vmem %s1407, %s1472 [#allocation2]
              %s1474 = smul.u32 4, %s1471
              %s1475 = scalar_lea.vmem %s1418, %s1474
              // While loop
              $region56: #{sep_body_conv_forward.5} parent=47 // loop_pre_header
                _
              $region57: #{sep_body_conv_forward.5} parent=47 // loop_header
                %s1477 = sphi 0, %s1479
                %p1478 = scmp.ge.s32.totalorder %s1477, %s1470
                %s1482 = sphi 0, %s1489
                %s1483 = sphi %s1473, %s1492
                %s1484 = sphi %s1475, %s1493
              $region58: #{sep_body_conv_forward.5} parent=47 // loop_header_branch
                %1481 = sbr.rel (%p1478) target = $region62
              $region59: #{sep_body_conv_forward.5} parent=47 // loop_body
                %v1485 = vld [vmem:[%s1483] sm:$0xf]
                %1486 = vst [vmem:[%s1484] sm:$0xf] %v1485
                %s1487 = sadd.s32 1, %s1482
                %p1488 = scmp.ge.s32.totalorder %s1487, %s1470
                %s1489 = scalar_select %p1488, 0, %s1487
                %s1490 = smul.u32 %s1489, 4
                %s1491 = smul.u32 %s1489, 4
                %s1492 = scalar_lea.vmem %s1473, %s1490 [#allocation2]
                %s1493 = scalar_lea.vmem %s1475, %s1491
              $region60: #{sep_body_conv_forward.5} parent=47 // loop_footer
                %s1479 = sadd.s32 %s1477, 1
              $region61: #{sep_body_conv_forward.5} parent=47 // loop_footer_branch
                %1476 = sbr.rel target = $region57
              $region62: #{sep_body_conv_forward.5} parent=47 // loop_exit
                _
            $region48: #{sep_body_conv_forward.5} parent=39 // pred_fallthru
              _
          $region40: #{sep_body_conv_forward.5} parent=35 // pred_fallthru
            _
          %1564 = vnop
        $region36: #{sep_body_conv_forward.5} parent=31 // pred_fallthru
          _
      $region32: #{sep_body_conv_forward.5} parent=5 // pred_fallthru
        _
      %p1565 = scmp.le.s32.totalorder 2, %s9
      // Predicated region
      $region81: #{sep_body_conv_forward.5} parent=5 // pred_check
        %p1566 = pneg %p1565
      $region82: #{sep_body_conv_forward.5} parent=5 // pred_check_branch
        %1568 = sbr.rel (%p1566) target = $region84
      $region83: #{sep_body_conv_forward.5} parent=5 // pred_region
        %s1569 = ssub.s32 %s9, 2
        // Predicated region
        $region85: #{sep_body_conv_forward.5} parent=83 // pred_check
          %p1570 = pneg %p106
        $region86: #{sep_body_conv_forward.5} parent=83 // pred_check_branch
          %1572 = sbr.rel (%p1570) target = $region88
        $region87: #{sep_body_conv_forward.5} parent=83 // pred_region
          %s1573 = sand.u32 %s91, 1
          %s1574 = sand.u32 %s91, 1
          %s1575 = smul.addr %s1574, 48
          %s1576 = scalar_lea.vmem [#allocation2], %s1575
        $region88: #{sep_body_conv_forward.5} parent=83 // pred_fallthru
          _
      $region84: #{sep_body_conv_forward.5} parent=5 // pred_fallthru
        _
    $region6: #{sep_body_conv_forward.5} parent=1 // loop_footer
      %s13 = sadd.s32 1, %s9
    $region7: #{sep_body_conv_forward.5} parent=1 // loop_footer_branch
      %8 = sbr.rel target = $region3
    $region8: #{sep_body_conv_forward.5} parent=1 // loop_exit
      _

// kernel: sep_body_conv_forward.6
$region0: #{sep_body_conv_forward.6}
  #allocation0 [shape = 'u32[]', space=smem, size = 0x4, offset = 0x4, fixed_abs, tag = 'smem constant byte address 0x4 - core index']
  #allocation1 [shape = 'u32[144,128]{1,0:T(1,128)}', space=vmem, size = 0x12000, scoped, tag = 'internal scratch']
  %s0 = inlined_call_operand.vmem [shape: bf16[98,1152], index: 0, kind: input, shape index: {}]
  %s1 = inlined_call_operand.vmem [shape: bf16[1152,64], index: 1, kind: input, shape index: {}]
  %s2 = inlined_call_operand.vmem [shape: f32[1,64], index: 2, kind: input, shape index: {}]
  %s3 = inlined_call_operand.vmem [shape: bf16[98,64], index: 3, kind: output, shape index: {}]
  %s4 = sld [smem:[#allocation0]]
  $region89: #{sep_body_conv_forward.6} parent=0
    _
  %s6 = ssub.s32 1, %s4
  %s7 = scalar_select 0, %s6, %s4
  $region1: #{sep_body_conv_forward.6} parent=0
    #allocation2 [shape = 'u8[32768]{0}', space=vmem, size = 0x8000, scoped, tag = 'output window, operand 0']
    loop: start=0, step=1, limit=4
    $region2: #{sep_body_conv_forward.6} parent=1 // loop_pre_header
      _
    $region3: #{sep_body_conv_forward.6} parent=1 // loop_header
      %s9 = sphi 0, %s13
      %p10 = scmp.ge.s32.totalorder %s9, 4
      %s19 = sphi 0, %s21
      %s22 = sphi 0, %s19
      %s23 = sphi 0, %s22
      %s39 = sphi 0, %s23
      %s43 = sphi 0, %s43
      %s45 = sphi 0, %s43
      %s46 = sphi 0, %s45
      %s60 = sphi 0, %s46
      %s64 = sphi 0, %s64
      %s66 = sphi 0, %s64
      %s67 = sphi 0, %s66
      %s81 = sphi 0, %s67
      %s87 = sphi 0, %s89
      %s90 = sphi 0, %s87
      %s91 = sphi 0, %s90
      %s107 = sphi 0, %s91
    $region4: #{sep_body_conv_forward.6} parent=1 // loop_header_branch
      %12 = sbr.rel (%p10) target = $region8
    $region5: #{sep_body_conv_forward.6} parent=1 // loop_body
      %s14 = ssub.s32 %s9, 1
      %s15 = ssub.s32 %s9, 2
      %s16 = sadd.s32 %s9, 1
      %s17 = ssub.s32 %s9, %s16
      %p18 = scmp.eq.s32.totalorder %s17, 0
      %s20 = sadd.s32 %s19, 1
      %s21 = scalar_select %p18, %s19, %s20
      %p24 = pneg %p18
      %p25 = scmp.eq.s32.totalorder %s9, 1
      %p26 = por %p24, %p25
      %p27 = scmp.ne.s32.totalorder %s19, %s22
      %p28 = scmp.eq.s32.totalorder %s9, 0
      %p29 = por %p27, %p28
      %p30 = scmp.ne.s32.totalorder %s19, %s22
      %p31 = scmp.eq.s32.totalorder %s14, 1
      %p32 = por %p30, %p31
      %p33 = scmp.ne.s32.totalorder %s22, %s23
      %p34 = scmp.eq.s32.totalorder %s14, 0
      %p35 = por %p33, %p34
      %p36 = scmp.ne.s32.totalorder %s22, %s23
      %p37 = scmp.eq.s32.totalorder %s15, 1
      %p38 = por %p36, %p37
      %p40 = scmp.ne.s32.totalorder %s23, %s39
      %p41 = scmp.eq.s32.totalorder %s15, 0
      %p42 = por %p40, %p41
      %s44 = sadd.s32 %s43, 1
      %p47 = scmp.eq.s32.totalorder %s9, 1
      %p48 = scmp.ne.s32.totalorder %s43, %s45
      %p49 = scmp.eq.s32.totalorder %s9, 0
      %p50 = por %p48, %p49
      %p51 = scmp.ne.s32.totalorder %s43, %s45
      %p52 = scmp.eq.s32.totalorder %s14, 1
      %p53 = por %p51, %p52
      %p54 = scmp.ne.s32.totalorder %s45, %s46
      %p55 = scmp.eq.s32.totalorder %s14, 0
      %p56 = por %p54, %p55
      %p57 = scmp.ne.s32.totalorder %s45, %s46
      %p58 = scmp.eq.s32.totalorder %s15, 1
      %p59 = por %p57, %p58
      %p61 = scmp.ne.s32.totalorder %s46, %s60
      %p62 = scmp.eq.s32.totalorder %s15, 0
      %p63 = por %p61, %p62
      %s65 = sadd.s32 %s64, 1
      %p68 = scmp.eq.s32.totalorder %s9, 1
      %p69 = scmp.ne.s32.totalorder %s64, %s66
      %p70 = scmp.eq.s32.totalorder %s9, 0
      %p71 = por %p69, %p70
      %p72 = scmp.ne.s32.totalorder %s64, %s66
      %p73 = scmp.eq.s32.totalorder %s14, 1
      %p74 = por %p72, %p73
      %p75 = scmp.ne.s32.totalorder %s66, %s67
      %p76 = scmp.eq.s32.totalorder %s14, 0
      %p77 = por %p75, %p76
      %p78 = scmp.ne.s32.totalorder %s66, %s67
      %p79 = scmp.eq.s32.totalorder %s15, 1
      %p80 = por %p78, %p79
      %p82 = scmp.ne.s32.totalorder %s67, %s81
      %p83 = scmp.eq.s32.totalorder %s15, 0
      %p84 = por %p82, %p83
      %s85 = ssub.s32 %s9, %s16
      %p86 = scmp.eq.s32.totalorder %s85, 0
      %s88 = sadd.s32 %s87, 1
      %s89 = scalar_select %p86, %s87, %s88
      %p92 = pneg %p86
      %p93 = scmp.eq.s32.totalorder %s9, 1
      %p94 = por %p92, %p93
      %p95 = scmp.ne.s32.totalorder %s87, %s90
      %p96 = scmp.eq.s32.totalorder %s9, 0
      %p97 = por %p95, %p96
      %p98 = scmp.ne.s32.totalorder %s87, %s90
      %p99 = scmp.eq.s32.totalorder %s14, 1
      %p100 = por %p98, %p99
      %p101 = scmp.ne.s32.totalorder %s90, %s91
      %p102 = scmp.eq.s32.totalorder %s14, 0
      %p103 = por %p101, %p102
      %p104 = scmp.ne.s32.totalorder %s90, %s91
      %p105 = scmp.eq.s32.totalorder %s15, 1
      %p106 = por %p104, %p105
      %p108 = scmp.ne.s32.totalorder %s91, %s107
      %p109 = scmp.eq.s32.totalorder %s15, 0
      %p110 = por %p108, %p109
      %p111 = scmp.le.s32.totalorder 1, %s9
      %p112 = scmp.lt.s32.totalorder %s9, 3
      %p113 = pnand %p111, %p112
      %p114 = pneg %p113
      // Predicated region
      $region9: #{sep_body_conv_forward.6} parent=5 // pred_check
        _
      $region10: #{sep_body_conv_forward.6} parent=5 // pred_check_branch
        %116 = sbr.rel (%p113) target = $region12
      $region11: #{sep_body_conv_forward.6} parent=5 // pred_region
        %s117 = ssub.s32 %s9, 1
        // Predicated region
        $region13: #{sep_body_conv_forward.6} parent=11 // pred_check
          %p118 = pneg %p56
        $region14: #{sep_body_conv_forward.6} parent=11 // pred_check_branch
          %120 = sbr.rel (%p118) target = $region16
        $region15: #{sep_body_conv_forward.6} parent=11 // pred_region
          _
        $region16: #{sep_body_conv_forward.6} parent=11 // pred_fallthru
          _
        // Predicated region
        $region17: #{sep_body_conv_forward.6} parent=11 // pred_check
          %p121 = pneg %p77
        $region18: #{sep_body_conv_forward.6} parent=11 // pred_check_branch
          %123 = sbr.rel (%p121) target = $region20
        $region19: #{sep_body_conv_forward.6} parent=11 // pred_region
          _
        $region20: #{sep_body_conv_forward.6} parent=11 // pred_fallthru
          _
      $region12: #{sep_body_conv_forward.6} parent=5 // pred_fallthru
        _
      %p124 = scmp.lt.s32.totalorder %s9, 2
      // Predicated region
      $region21: #{sep_body_conv_forward.6} parent=5 // pred_check
        %p125 = pneg %p124
      $region22: #{sep_body_conv_forward.6} parent=5 // pred_check_branch
        %127 = sbr.rel (%p125) target = $region24
      $region23: #{sep_body_conv_forward.6} parent=5 // pred_region
        // Predicated region
        $region25: #{sep_body_conv_forward.6} parent=23 // pred_check
          %p128 = pneg %p29
        $region26: #{sep_body_conv_forward.6} parent=23 // pred_check_branch
          %130 = sbr.rel (%p128) target = $region28
        $region27: #{sep_body_conv_forward.6} parent=23 // pred_region
          %s131 = smul.u32 8, %s9
          %s132 = ssub.s32 13, %s131
          %p133 = scmp.lt.s32.totalorder %s132, 8
          %s134 = scalar_select %p133, %s132, 8
          %s135 = smul.u32 64, %s134
          %s136 = smul.u32 %s135, 9
          %p137 = scmp.lt.s32.totalorder %s131, 12
          %s138 = scalar_select %p137, %s131, 12
          %s139 = smul.addr %s138, 9
          %s140 = smul.addr %s139, 4
          %s141 = scalar_lea.vmem %s0, %s140
          %s142 = smul.u32 8, %s9
          %s143 = ssub.s32 13, %s142
          %p144 = scmp.lt.s32.totalorder %s143, 8
          %s145 = scalar_select %p144, %s143, 8
          %s146 = smul.u32 64, %s145
          %s147 = smul.u32 %s146, 9
        $region28: #{sep_body_conv_forward.6} parent=23 // pred_fallthru
          _
      $region24: #{sep_body_conv_forward.6} parent=5 // pred_fallthru
        _
      %p148 = scmp.le.s32.totalorder 1, %s9
      %p149 = scmp.lt.s32.totalorder %s9, 3
      %p150 = pnand %p148, %p149
      %p151 = pneg %p150
      // Predicated region
      $region29: #{sep_body_conv_forward.6} parent=5 // pred_check
        _
      $region30: #{sep_body_conv_forward.6} parent=5 // pred_check_branch
        %153 = sbr.rel (%p150) target = $region32
      $region31: #{sep_body_conv_forward.6} parent=5 // pred_region
        %s154 = ssub.s32 %s9, 1
        %s155 = smul.u32 8, %s14
        %s156 = ssub.s32 13, %s155
        %p157 = scmp.lt.s32.totalorder %s156, 8
        %s158 = scalar_select %p157, %s156, 8
        %s159 = smul.u32 64, %s158
        %s160 = smul.u32 %s159, 9
        %p161 = scmp.lt.s32.totalorder %s155, 12
        %s162 = scalar_select %p161, %s155, 12
        %s163 = smul.addr %s162, 9
        %s164 = smul.addr %s163, 4
        %s165 = scalar_lea.vmem %s0, %s164
        %p166 = pneg %p35
        %p167 = pneg %p32
        %p168 = pneg %p56
        %p169 = pneg %p53
        %p170 = pneg %p77
        %p171 = pneg %p74
        %p172 = pneg %p103
        %p173 = pneg %p100
        %s174 = sand.u32 %s90, 1
        %s175 = sand.u32 %s90, 1
        %s176 = smul.addr %s175, 32
        %s177 = scalar_lea.vmem [#allocation2], %s176
        %s178 = smul.u32 8, %s14
        %s179 = ssub.s32 13, %s178
        %p180 = scmp.lt.s32.totalorder %s179, 8
        %s181 = scalar_select %p180, %s179, 8
        %s182 = smul.u32 64, %s181
        %s183 = smul.u32 %s182, 9
        %p184 = scmp.lt.s32.totalorder %s178, 12
        %s185 = scalar_select %p184, %s178, 12
        %s186 = smul.addr %s185, 9
        %s187 = smul.addr %s186, 4
        %s188 = scalar_lea.vmem %s0, %s187
        %s189 = smul.u32 8, %s14
        %s190 = ssub.s32 13, %s189
        %p191 = scmp.lt.s32.totalorder %s190, 8
        %s192 = scalar_select %p191, %s190, 8
        %s193 = smul.u32 64, %s192
        %s194 = smul.u32 %s193, 9
        %s195 = smul.u32 8, %s14
        %s196 = ssub.s32 13, %s195
        %p197 = scmp.lt.s32.totalorder %s196, 8
        %s198 = scalar_select %p197, %s196, 8
        %s199 = smul.u32 64, %s198
        %v201 = vld [vmem:[%s188] sm:$0xff]
        %v202 = vld [vmem:[%s188 + $0x8] sm:$0xff]
        %v203 = vld [vmem:[%s188 + $0x10] sm:$0xff]
        %v204 = vld [vmem:[%s188 + $0x18] sm:$0xff]
        %v205 = vld [vmem:[%s188 + $0x20] sm:$0xf]
        %v206 = vld [vmem:[%s188 + $0x24] sm:$0xff]
        %v207 = vld [vmem:[%s188 + $0x2c] sm:$0xff]
        %v208 = vld [vmem:[%s188 + $0x34] sm:$0xff]
        %v209 = vld [vmem:[%s188 + $0x3c] sm:$0xff]
        %v210 = vld [vmem:[%s188 + $0x44] sm:$0xf]
        %v211 = vld [vmem:[%s188 + $0x48] sm:$0xff]
        %v212 = vld [vmem:[%s188 + $0x50] sm:$0xff]
        %v213 = vld [vmem:[%s188 + $0x58] sm:$0xff]
        %v214 = vld [vmem:[%s188 + $0x60] sm:$0xff]
        %v215 = vld [vmem:[%s188 + $0x68] sm:$0xf]
        %v216 = vld [vmem:[%s188 + $0x6c] sm:$0xff]
        %v217 = vld [vmem:[%s188 + $0x74] sm:$0xff]
        %v218 = vld [vmem:[%s188 + $0x7c] sm:$0xff]
        %v219 = vld [vmem:[%s188 + $0x84] sm:$0xff]
        %v220 = vld [vmem:[%s188 + $0x8c] sm:$0xf]
        %v221 = vld [vmem:[%s188 + $0x90] sm:$0xff]
        %v222 = vld [vmem:[%s188 + $0x98] sm:$0xff]
        %v223 = vld [vmem:[%s188 + $0xa0] sm:$0xff]
        %v224 = vld [vmem:[%s188 + $0xa8] sm:$0xff]
        %v225 = vld [vmem:[%s188 + $0xb0] sm:$0xf]
        %v226 = vld [vmem:[%s188 + $0xb4] sm:$0xff]
        %v227 = vld [vmem:[%s188 + $0xbc] sm:$0xff]
        %v228 = vld [vmem:[%s188 + $0xc4] sm:$0xff]
        %v229 = vld [vmem:[%s188 + $0xcc] sm:$0xff]
        %v230 = vld [vmem:[%s188 + $0xd4] sm:$0xf]
        %v231 = vld [vmem:[%s188 + $0xd8] sm:$0xff]
        %v232 = vld [vmem:[%s188 + $0xe0] sm:$0xff]
        %v233 = vld [vmem:[%s188 + $0xe8] sm:$0xff]
        %v234 = vld [vmem:[%s188 + $0xf0] sm:$0xff]
        %v235 = vld [vmem:[%s188 + $0xf8] sm:$0xf]
        %v236 = vld [vmem:[%s188 + $0xfc] sm:$0xff]
        %v237 = vld [vmem:[%s188 + $0x104] sm:$0xff]
        %v238 = vld [vmem:[%s188 + $0x10c] sm:$0xff]
        %v239 = vld [vmem:[%s188 + $0x114] sm:$0xff]
        %v240 = vld [vmem:[%s188 + $0x11c] sm:$0xf]
        %v241 = vld [vmem:[%s1] sm:$0xf]
        %v242 = vld [vmem:[%s1 + $0x4] sm:$0xf]
        %v243 = vld [vmem:[%s1 + $0x8] sm:$0xf]
        %v244 = vld [vmem:[%s1 + $0xc] sm:$0xf]
        %v245 = vld [vmem:[%s1 + $0x10] sm:$0xf]
        %v246 = vld [vmem:[%s1 + $0x14] sm:$0xf]
        %v247 = vld [vmem:[%s1 + $0x18] sm:$0xf]
        %v248 = vld [vmem:[%s1 + $0x1c] sm:$0xf]
        %v249 = vld [vmem:[%s1 + $0x20] sm:$0xf]
        %v250 = vld [vmem:[%s1 + $0x24] sm:$0xf]
        %v251 = vld [vmem:[%s1 + $0x28] sm:$0xf]
        %v252 = vld [vmem:[%s1 + $0x2c] sm:$0xf]
        %v253 = vld [vmem:[%s1 + $0x30] sm:$0xf]
        %v254 = vld [vmem:[%s1 + $0x34] sm:$0xf]
        %v255 = vld [vmem:[%s1 + $0x38] sm:$0xf]
        %v256 = vld [vmem:[%s1 + $0x3c] sm:$0xf]
        %v257 = vld [vmem:[%s1 + $0x40] sm:$0xf]
        %v258 = vld [vmem:[%s1 + $0x44] sm:$0xf]
        %v259 = vld [vmem:[%s1 + $0x48] sm:$0xf]
        %v260 = vld [vmem:[%s1 + $0x4c] sm:$0xf]
        %v261 = vld [vmem:[%s1 + $0x50] sm:$0xf]
        %v262 = vld [vmem:[%s1 + $0x54] sm:$0xf]
        %v263 = vld [vmem:[%s1 + $0x58] sm:$0xf]
        %v264 = vld [vmem:[%s1 + $0x5c] sm:$0xf]
        %v265 = vld [vmem:[%s1 + $0x60] sm:$0xf]
        %v266 = vld [vmem:[%s1 + $0x64] sm:$0xf]
        %v267 = vld [vmem:[%s1 + $0x68] sm:$0xf]
        %v268 = vld [vmem:[%s1 + $0x6c] sm:$0xf]
        %v269 = vld [vmem:[%s1 + $0x70] sm:$0xf]
        %v270 = vld [vmem:[%s1 + $0x74] sm:$0xf]
        %v271 = vld [vmem:[%s1 + $0x78] sm:$0xf]
        %v272 = vld [vmem:[%s1 + $0x7c] sm:$0xf]
        %v273 = vld [vmem:[%s1 + $0x80] sm:$0xf]
        %v274 = vld [vmem:[%s1 + $0x84] sm:$0xf]
        %v275 = vld [vmem:[%s1 + $0x88] sm:$0xf]
        %v276 = vld [vmem:[%s1 + $0x8c] sm:$0xf]
        %v277 = vld [vmem:[%s1 + $0x90] sm:$0xf]
        %v278 = vld [vmem:[%s1 + $0x94] sm:$0xf]
        %v279 = vld [vmem:[%s1 + $0x98] sm:$0xf]
        %v280 = vld [vmem:[%s1 + $0x9c] sm:$0xf]
        %v281 = vld [vmem:[%s1 + $0xa0] sm:$0xf]
        %v282 = vld [vmem:[%s1 + $0xa4] sm:$0xf]
        %v283 = vld [vmem:[%s1 + $0xa8] sm:$0xf]
        %v284 = vld [vmem:[%s1 + $0xac] sm:$0xf]
        %v285 = vld [vmem:[%s1 + $0xb0] sm:$0xf]
        %v286 = vld [vmem:[%s1 + $0xb4] sm:$0xf]
        %v287 = vld [vmem:[%s1 + $0xb8] sm:$0xf]
        %v288 = vld [vmem:[%s1 + $0xbc] sm:$0xf]
        %v289 = vld [vmem:[%s1 + $0xc0] sm:$0xf]
        %v290 = vld [vmem:[%s1 + $0xc4] sm:$0xf]
        %v291 = vld [vmem:[%s1 + $0xc8] sm:$0xf]
        %v292 = vld [vmem:[%s1 + $0xcc] sm:$0xf]
        %v293 = vld [vmem:[%s1 + $0xd0] sm:$0xf]
        %v294 = vld [vmem:[%s1 + $0xd4] sm:$0xf]
        %v295 = vld [vmem:[%s1 + $0xd8] sm:$0xf]
        %v296 = vld [vmem:[%s1 + $0xdc] sm:$0xf]
        %v297 = vld [vmem:[%s1 + $0xe0] sm:$0xf]
        %v298 = vld [vmem:[%s1 + $0xe4] sm:$0xf]
        %v299 = vld [vmem:[%s1 + $0xe8] sm:$0xf]
        %v300 = vld [vmem:[%s1 + $0xec] sm:$0xf]
        %v301 = vld [vmem:[%s1 + $0xf0] sm:$0xf]
        %v302 = vld [vmem:[%s1 + $0xf4] sm:$0xf]
        %v303 = vld [vmem:[%s1 + $0xf8] sm:$0xf]
        %v304 = vld [vmem:[%s1 + $0xfc] sm:$0xf]
        %v305 = vld [vmem:[%s1 + $0x100] sm:$0xf]
        %v306 = vld [vmem:[%s1 + $0x104] sm:$0xf]
        %v307 = vld [vmem:[%s1 + $0x108] sm:$0xf]
        %v308 = vld [vmem:[%s1 + $0x10c] sm:$0xf]
        %v309 = vld [vmem:[%s1 + $0x110] sm:$0xf]
        %v310 = vld [vmem:[%s1 + $0x114] sm:$0xf]
        %v311 = vld [vmem:[%s1 + $0x118] sm:$0xf]
        %v312 = vld [vmem:[%s1 + $0x11c] sm:$0xf]
        %v313 = vld [vmem:[%s1 + $0x120] sm:$0xf]
        %v314 = vld [vmem:[%s1 + $0x124] sm:$0xf]
        %v315 = vld [vmem:[%s1 + $0x128] sm:$0xf]
        %v316 = vld [vmem:[%s1 + $0x12c] sm:$0xf]
        %v317 = vld [vmem:[%s1 + $0x130] sm:$0xf]
        %v318 = vld [vmem:[%s1 + $0x134] sm:$0xf]
        %v319 = vld [vmem:[%s1 + $0x138] sm:$0xf]
        %v320 = vld [vmem:[%s1 + $0x13c] sm:$0xf]
        %v321 = vld [vmem:[%s1 + $0x140] sm:$0xf]
        %v322 = vld [vmem:[%s1 + $0x144] sm:$0xf]
        %v323 = vld [vmem:[%s1 + $0x148] sm:$0xf]
        %v324 = vld [vmem:[%s1 + $0x14c] sm:$0xf]
        %v325 = vld [vmem:[%s1 + $0x150] sm:$0xf]
        %v326 = vld [vmem:[%s1 + $0x154] sm:$0xf]
        %v327 = vld [vmem:[%s1 + $0x158] sm:$0xf]
        %v328 = vld [vmem:[%s1 + $0x15c] sm:$0xf]
        %v329 = vld [vmem:[%s1 + $0x160] sm:$0xf]
        %v330 = vld [vmem:[%s1 + $0x164] sm:$0xf]
        %v331 = vld [vmem:[%s1 + $0x168] sm:$0xf]
        %v332 = vld [vmem:[%s1 + $0x16c] sm:$0xf]
        %v333 = vld [vmem:[%s1 + $0x170] sm:$0xf]
        %v334 = vld [vmem:[%s1 + $0x174] sm:$0xf]
        %v335 = vld [vmem:[%s1 + $0x178] sm:$0xf]
        %v336 = vld [vmem:[%s1 + $0x17c] sm:$0xf]
        %v337 = vld [vmem:[%s1 + $0x180] sm:$0xf]
        %v338 = vld [vmem:[%s1 + $0x184] sm:$0xf]
        %v339 = vld [vmem:[%s1 + $0x188] sm:$0xf]
        %v340 = vld [vmem:[%s1 + $0x18c] sm:$0xf]
        %v341 = vld [vmem:[%s1 + $0x190] sm:$0xf]
        %v342 = vld [vmem:[%s1 + $0x194] sm:$0xf]
        %v343 = vld [vmem:[%s1 + $0x198] sm:$0xf]
        %v344 = vld [vmem:[%s1 + $0x19c] sm:$0xf]
        %v345 = vld [vmem:[%s1 + $0x1a0] sm:$0xf]
        %v346 = vld [vmem:[%s1 + $0x1a4] sm:$0xf]
        %v347 = vld [vmem:[%s1 + $0x1a8] sm:$0xf]
        %v348 = vld [vmem:[%s1 + $0x1ac] sm:$0xf]
        %v349 = vld [vmem:[%s1 + $0x1b0] sm:$0xf]
        %v350 = vld [vmem:[%s1 + $0x1b4] sm:$0xf]
        %v351 = vld [vmem:[%s1 + $0x1b8] sm:$0xf]
        %v352 = vld [vmem:[%s1 + $0x1bc] sm:$0xf]
        %v353 = vld [vmem:[%s1 + $0x1c0] sm:$0xf]
        %v354 = vld [vmem:[%s1 + $0x1c4] sm:$0xf]
        %v355 = vld [vmem:[%s1 + $0x1c8] sm:$0xf]
        %v356 = vld [vmem:[%s1 + $0x1cc] sm:$0xf]
        %v357 = vld [vmem:[%s1 + $0x1d0] sm:$0xf]
        %v358 = vld [vmem:[%s1 + $0x1d4] sm:$0xf]
        %v359 = vld [vmem:[%s1 + $0x1d8] sm:$0xf]
        %v360 = vld [vmem:[%s1 + $0x1dc] sm:$0xf]
        %v361 = vld [vmem:[%s1 + $0x1e0] sm:$0xf]
        %v362 = vld [vmem:[%s1 + $0x1e4] sm:$0xf]
        %v363 = vld [vmem:[%s1 + $0x1e8] sm:$0xf]
        %v364 = vld [vmem:[%s1 + $0x1ec] sm:$0xf]
        %v365 = vld [vmem:[%s1 + $0x1f0] sm:$0xf]
        %v366 = vld [vmem:[%s1 + $0x1f4] sm:$0xf]
        %v367 = vld [vmem:[%s1 + $0x1f8] sm:$0xf]
        %v368 = vld [vmem:[%s1 + $0x1fc] sm:$0xf]
        %v369 = vld [vmem:[%s1 + $0x200] sm:$0xf]
        %v370 = vld [vmem:[%s1 + $0x204] sm:$0xf]
        %v371 = vld [vmem:[%s1 + $0x208] sm:$0xf]
        %v372 = vld [vmem:[%s1 + $0x20c] sm:$0xf]
        %v373 = vld [vmem:[%s1 + $0x210] sm:$0xf]
        %v374 = vld [vmem:[%s1 + $0x214] sm:$0xf]
        %v375 = vld [vmem:[%s1 + $0x218] sm:$0xf]
        %v376 = vld [vmem:[%s1 + $0x21c] sm:$0xf]
        %v377 = vld [vmem:[%s1 + $0x220] sm:$0xf]
        %v378 = vld [vmem:[%s1 + $0x224] sm:$0xf]
        %v379 = vld [vmem:[%s1 + $0x228] sm:$0xf]
        %v380 = vld [vmem:[%s1 + $0x22c] sm:$0xf]
        %v381 = vld [vmem:[%s1 + $0x230] sm:$0xf]
        %v382 = vld [vmem:[%s1 + $0x234] sm:$0xf]
        %v383 = vld [vmem:[%s1 + $0x238] sm:$0xf]
        %v384 = vld [vmem:[%s1 + $0x23c] sm:$0xf]
        %v385 = vld [vmem:[%s2] sm:$0x1]
        %v387 = vlaneseq
        %v388 = vshrl.u32 %v387, 7
        %v389 = vsub.s32 0, %v388
        %v390 = vrot.slane %v385, %v389
        %v432 = vunpack.c.l.b16 %v201
        %v433 = vunpack.c.h.b16 %v201
        %v434 = vunpack.c.l.b16 %v202
        %v435 = vunpack.c.h.b16 %v202
        %v436 = vunpack.c.l.b16 %v203
        %v437 = vunpack.c.h.b16 %v203
        %v438 = vunpack.c.l.b16 %v204
        %v439 = vunpack.c.h.b16 %v204
        %v440 = vunpack.c.l.b16 %v205
        %v441 = vunpack.c.l.b16 %v206
        %v442 = vunpack.c.h.b16 %v206
        %v443 = vunpack.c.l.b16 %v207
        %v444 = vunpack.c.h.b16 %v207
        %v445 = vunpack.c.l.b16 %v208
        %v446 = vunpack.c.h.b16 %v208
        %v447 = vunpack.c.l.b16 %v209
        %v448 = vunpack.c.h.b16 %v209
        %v449 = vunpack.c.l.b16 %v210
        %v450 = vunpack.c.l.b16 %v211
        %v451 = vunpack.c.h.b16 %v211
        %v452 = vunpack.c.l.b16 %v212
        %v453 = vunpack.c.h.b16 %v212
        %v454 = vunpack.c.l.b16 %v213
        %v455 = vunpack.c.h.b16 %v213
        %v456 = vunpack.c.l.b16 %v214
        %v457 = vunpack.c.h.b16 %v214
        %v458 = vunpack.c.l.b16 %v215
        %v459 = vunpack.c.l.b16 %v216
        %v460 = vunpack.c.h.b16 %v216
        %v461 = vunpack.c.l.b16 %v217
        %v462 = vunpack.c.h.b16 %v217
        %v463 = vunpack.c.l.b16 %v218
        %v464 = vunpack.c.h.b16 %v218
        %v465 = vunpack.c.l.b16 %v219
        %v466 = vunpack.c.h.b16 %v219
        %v467 = vunpack.c.l.b16 %v220
        %v468 = vunpack.c.l.b16 %v221
        %v469 = vunpack.c.h.b16 %v221
        %v470 = vunpack.c.l.b16 %v222
        %v471 = vunpack.c.h.b16 %v222
        %v472 = vunpack.c.l.b16 %v223
        %v473 = vunpack.c.h.b16 %v223
        %v474 = vunpack.c.l.b16 %v224
        %v475 = vunpack.c.h.b16 %v224
        %v476 = vunpack.c.l.b16 %v225
        %v477 = vunpack.c.l.b16 %v226
        %v478 = vunpack.c.h.b16 %v226
        %v479 = vunpack.c.l.b16 %v227
        %v480 = vunpack.c.h.b16 %v227
        %v481 = vunpack.c.l.b16 %v228
        %v482 = vunpack.c.h.b16 %v228
        %v483 = vunpack.c.l.b16 %v229
        %v484 = vunpack.c.h.b16 %v229
        %v485 = vunpack.c.l.b16 %v230
        %v486 = vunpack.c.l.b16 %v231
        %v487 = vunpack.c.h.b16 %v231
        %v488 = vunpack.c.l.b16 %v232
        %v489 = vunpack.c.h.b16 %v232
        %v490 = vunpack.c.l.b16 %v233
        %v491 = vunpack.c.h.b16 %v233
        %v492 = vunpack.c.l.b16 %v234
        %v493 = vunpack.c.h.b16 %v234
        %v494 = vunpack.c.l.b16 %v235
        %v495 = vunpack.c.l.b16 %v236
        %v496 = vunpack.c.h.b16 %v236
        %v497 = vunpack.c.l.b16 %v237
        %v498 = vunpack.c.h.b16 %v237
        %v499 = vunpack.c.l.b16 %v238
        %v500 = vunpack.c.h.b16 %v238
        %v501 = vunpack.c.l.b16 %v239
        %v502 = vunpack.c.h.b16 %v239
        %v503 = vunpack.c.l.b16 %v240
        %v504 = vpack.c.b16 %v441, %v432
        %v505 = vpack.c.b16 %v442, %v433
        %v506 = vpack.c.b16 %v443, %v434
        %v507 = vpack.c.b16 %v444, %v435
        %v508 = vpack.c.b16 %v445, %v436
        %v509 = vpack.c.b16 %v446, %v437
        %v510 = vpack.c.b16 %v447, %v438
        %v511 = vpack.c.b16 %v448, %v439
        %v512 = vpack.c.b16 %v449, %v440
        %v513 = vpack.c.b16 %v459, %v450
        %v514 = vpack.c.b16 %v460, %v451
        %v515 = vpack.c.b16 %v461, %v452
        %v516 = vpack.c.b16 %v462, %v453
        %v517 = vpack.c.b16 %v463, %v454
        %v518 = vpack.c.b16 %v464, %v455
        %v519 = vpack.c.b16 %v465, %v456
        %v520 = vpack.c.b16 %v466, %v457
        %v521 = vpack.c.b16 %v467, %v458
        %v522 = vpack.c.b16 %v477, %v468
        %v523 = vpack.c.b16 %v478, %v469
        %v524 = vpack.c.b16 %v479, %v470
        %v525 = vpack.c.b16 %v480, %v471
        %v526 = vpack.c.b16 %v481, %v472
        %v527 = vpack.c.b16 %v482, %v473
        %v528 = vpack.c.b16 %v483, %v474
        %v529 = vpack.c.b16 %v484, %v475
        %v530 = vpack.c.b16 %v485, %v476
        %v531 = vpack.c.b16 %v495, %v486
        %v532 = vpack.c.b16 %v496, %v487
        %v533 = vpack.c.b16 %v497, %v488
        %v534 = vpack.c.b16 %v498, %v489
        %v535 = vpack.c.b16 %v499, %v490
        %v536 = vpack.c.b16 %v500, %v491
        %v537 = vpack.c.b16 %v501, %v492
        %v538 = vpack.c.b16 %v502, %v493
        %v539 = vpack.c.b16 %v503, %v494
        %v720 = vunpack.c.l.b16 %v241
        %v721 = vunpack.c.l.b16 %v242
        %v722 = vunpack.c.l.b16 %v243
        %v723 = vunpack.c.l.b16 %v244
        %v724 = vunpack.c.l.b16 %v245
        %v725 = vunpack.c.l.b16 %v246
        %v726 = vunpack.c.l.b16 %v247
        %v727 = vunpack.c.l.b16 %v248
        %v728 = vunpack.c.l.b16 %v249
        %v729 = vunpack.c.l.b16 %v250
        %v730 = vunpack.c.l.b16 %v251
        %v731 = vunpack.c.l.b16 %v252
        %v732 = vunpack.c.l.b16 %v253
        %v733 = vunpack.c.l.b16 %v254
        %v734 = vunpack.c.l.b16 %v255
        %v735 = vunpack.c.l.b16 %v256
        %v736 = vunpack.c.l.b16 %v257
        %v737 = vunpack.c.l.b16 %v258
        %v738 = vunpack.c.l.b16 %v259
        %v739 = vunpack.c.l.b16 %v260
        %v740 = vunpack.c.l.b16 %v261
        %v741 = vunpack.c.l.b16 %v262
        %v742 = vunpack.c.l.b16 %v263
        %v743 = vunpack.c.l.b16 %v264
        %v744 = vunpack.c.l.b16 %v265
        %v745 = vunpack.c.l.b16 %v266
        %v746 = vunpack.c.l.b16 %v267
        %v747 = vunpack.c.l.b16 %v268
        %v748 = vunpack.c.l.b16 %v269
        %v749 = vunpack.c.l.b16 %v270
        %v750 = vunpack.c.l.b16 %v271
        %v751 = vunpack.c.l.b16 %v272
        %v752 = vunpack.c.l.b16 %v273
        %v753 = vunpack.c.l.b16 %v274
        %v754 = vunpack.c.l.b16 %v275
        %v755 = vunpack.c.l.b16 %v276
        %v756 = vunpack.c.l.b16 %v277
        %v757 = vunpack.c.l.b16 %v278
        %v758 = vunpack.c.l.b16 %v279
        %v759 = vunpack.c.l.b16 %v280
        %v760 = vunpack.c.l.b16 %v281
        %v761 = vunpack.c.l.b16 %v282
        %v762 = vunpack.c.l.b16 %v283
        %v763 = vunpack.c.l.b16 %v284
        %v764 = vunpack.c.l.b16 %v285
        %v765 = vunpack.c.l.b16 %v286
        %v766 = vunpack.c.l.b16 %v287
        %v767 = vunpack.c.l.b16 %v288
        %v768 = vunpack.c.l.b16 %v289
        %v769 = vunpack.c.l.b16 %v290
        %v770 = vunpack.c.l.b16 %v291
        %v771 = vunpack.c.l.b16 %v292
        %v772 = vunpack.c.l.b16 %v293
        %v773 = vunpack.c.l.b16 %v294
        %v774 = vunpack.c.l.b16 %v295
        %v775 = vunpack.c.l.b16 %v296
        %v776 = vunpack.c.l.b16 %v297
        %v777 = vunpack.c.l.b16 %v298
        %v778 = vunpack.c.l.b16 %v299
        %v779 = vunpack.c.l.b16 %v300
        %v780 = vunpack.c.l.b16 %v301
        %v781 = vunpack.c.l.b16 %v302
        %v782 = vunpack.c.l.b16 %v303
        %v783 = vunpack.c.l.b16 %v304
        %v784 = vunpack.c.l.b16 %v305
        %v785 = vunpack.c.l.b16 %v306
        %v786 = vunpack.c.l.b16 %v307
        %v787 = vunpack.c.l.b16 %v308
        %v788 = vunpack.c.l.b16 %v309
        %v789 = vunpack.c.l.b16 %v310
        %v790 = vunpack.c.l.b16 %v311
        %v791 = vunpack.c.l.b16 %v312
        %v792 = vunpack.c.l.b16 %v313
        %v793 = vunpack.c.l.b16 %v314
        %v794 = vunpack.c.l.b16 %v315
        %v795 = vunpack.c.l.b16 %v316
        %v796 = vunpack.c.l.b16 %v317
        %v797 = vunpack.c.l.b16 %v318
        %v798 = vunpack.c.l.b16 %v319
        %v799 = vunpack.c.l.b16 %v320
        %v800 = vunpack.c.l.b16 %v321
        %v801 = vunpack.c.l.b16 %v322
        %v802 = vunpack.c.l.b16 %v323
        %v803 = vunpack.c.l.b16 %v324
        %v804 = vunpack.c.l.b16 %v325
        %v805 = vunpack.c.l.b16 %v326
        %v806 = vunpack.c.l.b16 %v327
        %v807 = vunpack.c.l.b16 %v328
        %v808 = vunpack.c.l.b16 %v329
        %v809 = vunpack.c.l.b16 %v330
        %v810 = vunpack.c.l.b16 %v331
        %v811 = vunpack.c.l.b16 %v332
        %v812 = vunpack.c.l.b16 %v333
        %v813 = vunpack.c.l.b16 %v334
        %v814 = vunpack.c.l.b16 %v335
        %v815 = vunpack.c.l.b16 %v336
        %v816 = vunpack.c.l.b16 %v337
        %v817 = vunpack.c.l.b16 %v338
        %v818 = vunpack.c.l.b16 %v339
        %v819 = vunpack.c.l.b16 %v340
        %v820 = vunpack.c.l.b16 %v341
        %v821 = vunpack.c.l.b16 %v342
        %v822 = vunpack.c.l.b16 %v343
        %v823 = vunpack.c.l.b16 %v344
        %v824 = vunpack.c.l.b16 %v345
        %v825 = vunpack.c.l.b16 %v346
        %v826 = vunpack.c.l.b16 %v347
        %v827 = vunpack.c.l.b16 %v348
        %v828 = vunpack.c.l.b16 %v349
        %v829 = vunpack.c.l.b16 %v350
        %v830 = vunpack.c.l.b16 %v351
        %v831 = vunpack.c.l.b16 %v352
        %v832 = vunpack.c.l.b16 %v353
        %v833 = vunpack.c.l.b16 %v354
        %v834 = vunpack.c.l.b16 %v355
        %v835 = vunpack.c.l.b16 %v356
        %v836 = vunpack.c.l.b16 %v357
        %v837 = vunpack.c.l.b16 %v358
        %v838 = vunpack.c.l.b16 %v359
        %v839 = vunpack.c.l.b16 %v360
        %v840 = vunpack.c.l.b16 %v361
        %v841 = vunpack.c.l.b16 %v362
        %v842 = vunpack.c.l.b16 %v363
        %v843 = vunpack.c.l.b16 %v364
        %v844 = vunpack.c.l.b16 %v365
        %v845 = vunpack.c.l.b16 %v366
        %v846 = vunpack.c.l.b16 %v367
        %v847 = vunpack.c.l.b16 %v368
        %v848 = vunpack.c.l.b16 %v369
        %v849 = vunpack.c.l.b16 %v370
        %v850 = vunpack.c.l.b16 %v371
        %v851 = vunpack.c.l.b16 %v372
        %v852 = vunpack.c.l.b16 %v373
        %v853 = vunpack.c.l.b16 %v374
        %v854 = vunpack.c.l.b16 %v375
        %v855 = vunpack.c.l.b16 %v376
        %v856 = vunpack.c.l.b16 %v377
        %v857 = vunpack.c.l.b16 %v378
        %v858 = vunpack.c.l.b16 %v379
        %v859 = vunpack.c.l.b16 %v380
        %v860 = vunpack.c.l.b16 %v381
        %v861 = vunpack.c.l.b16 %v382
        %v862 = vunpack.c.l.b16 %v383
        %v863 = vunpack.c.l.b16 %v384
        %v864 = vpack.c.b16 %v721, %v720
        %v865 = vpack.c.b16 %v723, %v722
        %v866 = vpack.c.b16 %v725, %v724
        %v867 = vpack.c.b16 %v727, %v726
        %v868 = vpack.c.b16 %v729, %v728
        %v869 = vpack.c.b16 %v731, %v730
        %v870 = vpack.c.b16 %v733, %v732
        %v871 = vpack.c.b16 %v735, %v734
        %v872 = vpack.c.b16 %v737, %v736
        %v873 = vpack.c.b16 %v739, %v738
        %v874 = vpack.c.b16 %v741, %v740
        %v875 = vpack.c.b16 %v743, %v742
        %v876 = vpack.c.b16 %v745, %v744
        %v877 = vpack.c.b16 %v747, %v746
        %v878 = vpack.c.b16 %v749, %v748
        %v879 = vpack.c.b16 %v751, %v750
        %v880 = vpack.c.b16 %v753, %v752
        %v881 = vpack.c.b16 %v755, %v754
        %v882 = vpack.c.b16 %v757, %v756
        %v883 = vpack.c.b16 %v759, %v758
        %v884 = vpack.c.b16 %v761, %v760
        %v885 = vpack.c.b16 %v763, %v762
        %v886 = vpack.c.b16 %v765, %v764
        %v887 = vpack.c.b16 %v767, %v766
        %v888 = vpack.c.b16 %v769, %v768
        %v889 = vpack.c.b16 %v771, %v770
        %v890 = vpack.c.b16 %v773, %v772
        %v891 = vpack.c.b16 %v775, %v774
        %v892 = vpack.c.b16 %v777, %v776
        %v893 = vpack.c.b16 %v779, %v778
        %v894 = vpack.c.b16 %v781, %v780
        %v895 = vpack.c.b16 %v783, %v782
        %v896 = vpack.c.b16 %v785, %v784
        %v897 = vpack.c.b16 %v787, %v786
        %v898 = vpack.c.b16 %v789, %v788
        %v899 = vpack.c.b16 %v791, %v790
        %v900 = vpack.c.b16 %v793, %v792
        %v901 = vpack.c.b16 %v795, %v794
        %v902 = vpack.c.b16 %v797, %v796
        %v903 = vpack.c.b16 %v799, %v798
        %v904 = vpack.c.b16 %v801, %v800
        %v905 = vpack.c.b16 %v803, %v802
        %v906 = vpack.c.b16 %v805, %v804
        %v907 = vpack.c.b16 %v807, %v806
        %v908 = vpack.c.b16 %v809, %v808
        %v909 = vpack.c.b16 %v811, %v810
        %v910 = vpack.c.b16 %v813, %v812
        %v911 = vpack.c.b16 %v815, %v814
        %v912 = vpack.c.b16 %v817, %v816
        %v913 = vpack.c.b16 %v819, %v818
        %v914 = vpack.c.b16 %v821, %v820
        %v915 = vpack.c.b16 %v823, %v822
        %v916 = vpack.c.b16 %v825, %v824
        %v917 = vpack.c.b16 %v827, %v826
        %v918 = vpack.c.b16 %v829, %v828
        %v919 = vpack.c.b16 %v831, %v830
        %v920 = vpack.c.b16 %v833, %v832
        %v921 = vpack.c.b16 %v835, %v834
        %v922 = vpack.c.b16 %v837, %v836
        %v923 = vpack.c.b16 %v839, %v838
        %v924 = vpack.c.b16 %v841, %v840
        %v925 = vpack.c.b16 %v843, %v842
        %v926 = vpack.c.b16 %v845, %v844
        %v927 = vpack.c.b16 %v847, %v846
        %v928 = vpack.c.b16 %v849, %v848
        %v929 = vpack.c.b16 %v851, %v850
        %v930 = vpack.c.b16 %v853, %v852
        %v931 = vpack.c.b16 %v855, %v854
        %v932 = vpack.c.b16 %v857, %v856
        %v933 = vpack.c.b16 %v859, %v858
        %v934 = vpack.c.b16 %v861, %v860
        %v935 = vpack.c.b16 %v863, %v862
        %1008 = vmatprep.subr.bf16.mxu0 0
        %1009 = vmatpush1.bf16.msra.mxu0 %v864
        %1010 = vmatprep.subr.bf16.mxu0 0
        %1011 = vmatpush1.bf16.msra.mxu0 %v865
        %1012 = vmatprep.subr.bf16.mxu0 0
        %1013 = vmatpush1.bf16.msra.mxu0 %v866
        %1014 = vmatprep.subr.bf16.mxu0 0
        %1015 = vmatpush1.bf16.msra.mxu0 %v867
        %1016 = vmatprep.subr.bf16.mxu0 0
        %1017 = vmatpush1.bf16.msra.mxu0 %v868
        %1018 = vmatprep.subr.bf16.mxu0 0
        %1019 = vmatpush1.bf16.msra.mxu0 %v869
        %1020 = vmatprep.subr.bf16.mxu0 0
        %1021 = vmatpush1.bf16.msra.mxu0 %v870
        %1022 = vmatprep.subr.bf16.mxu0 0
        %1023 = vmatpush1.bf16.msra.mxu0 %v871
        %1024 = vmatprep.subr.bf16.mxu0 0
        %1025 = vmatpush1.bf16.msra.mxu0 %v872
        %1026 = vmatprep.subr.bf16.mxu0 0
        %1027 = vmatpush1.bf16.msra.mxu0 %v873
        %1028 = vmatprep.subr.bf16.mxu0 0
        %1029 = vmatpush1.bf16.msra.mxu0 %v874
        %1030 = vmatprep.subr.bf16.mxu0 0
        %1031 = vmatpush1.bf16.msra.mxu0 %v875
        %1032 = vmatprep.subr.bf16.mxu0 0
        %1033 = vmatpush1.bf16.msra.mxu0 %v876
        %1034 = vmatprep.subr.bf16.mxu0 0
        %1035 = vmatpush1.bf16.msra.mxu0 %v877
        %1036 = vmatprep.subr.bf16.mxu0 0
        %1037 = vmatpush1.bf16.msra.mxu0 %v878
        %1038 = vmatprep.subr.bf16.mxu0 0
        %1039 = vmatpush1.bf16.msra.mxu0 %v879
        %1040 = vmatprep.mubr.bf16.mxu0 %v505
        %1041 = vmatmul.mubr.bf16.gmra.mrb[0].mxu0 %v504
        %v1042 = vpop.f32.mrb[0].mxu0
        %v1043 = vadd.f32 %v390, %v1042
        %v1044 = vpop.f32.mrb[0].mxu0
        %v1045 = vpop.f32.mrb[0].mxu0
        %v1046 = vadd.f32 %v390, %v1045
        %v1047 = vpop.f32.mrb[0].mxu0
        %1048 = vmatprep.mubr.bf16.mxu0 %v514
        %1049 = vmatmul.mubr.bf16.gmra.mrb[0].mxu0 %v513
        %v1050 = vpop.f32.mrb[0].mxu0
        %v1051 = vadd.f32 %v390, %v1050
        %v1052 = vpop.f32.mrb[0].mxu0
        %v1053 = vpop.f32.mrb[0].mxu0
        %v1054 = vadd.f32 %v390, %v1053
        %v1055 = vpop.f32.mrb[0].mxu0
        %1056 = vmatprep.mubr.bf16.mxu0 %v523
        %1057 = vmatmul.mubr.bf16.gmra.mrb[0].mxu0 %v522
        %v1058 = vpop.f32.mrb[0].mxu0
        %v1059 = vadd.f32 %v390, %v1058
        %v1060 = vpop.f32.mrb[0].mxu0
        %v1061 = vpop.f32.mrb[0].mxu0
        %v1062 = vadd.f32 %v390, %v1061
        %v1063 = vpop.f32.mrb[0].mxu0
        %1064 = vmatprep.mubr.bf16.mxu0 %v532
        %1065 = vmatmul.mubr.bf16.gmra.mrb[0].mxu0 %v531
        %v1066 = vpop.f32.mrb[0].mxu0
        %v1067 = vadd.f32 %v390, %v1066
        %v1068 = vpop.f32.mrb[0].mxu0
        %v1069 = vpop.f32.mrb[0].mxu0
        %v1070 = vadd.f32 %v390, %v1069
        %v1071 = vpop.f32.mrb[0].mxu0
        %1072 = vdwg.mxu0
        %1073 = vmatprep.subr.bf16.mxu0 0
        %1074 = vmatpush1.bf16.msra.mxu0 %v880
        %1075 = vmatprep.subr.bf16.mxu0 0
        %1076 = vmatpush1.bf16.msra.mxu0 %v881
        %1077 = vmatprep.subr.bf16.mxu0 0
        %1078 = vmatpush1.bf16.msra.mxu0 %v882
        %1079 = vmatprep.subr.bf16.mxu0 0
        %1080 = vmatpush1.bf16.msra.mxu0 %v883
        %1081 = vmatprep.subr.bf16.mxu0 0
        %1082 = vmatpush1.bf16.msra.mxu0 %v884
        %1083 = vmatprep.subr.bf16.mxu0 0
        %1084 = vmatpush1.bf16.msra.mxu0 %v885
        %1085 = vmatprep.subr.bf16.mxu0 0
        %1086 = vmatpush1.bf16.msra.mxu0 %v886
        %1087 = vmatprep.subr.bf16.mxu0 0
        %1088 = vmatpush1.bf16.msra.mxu0 %v887
        %1089 = vmatprep.subr.bf16.mxu0 0
        %1090 = vmatpush1.bf16.msra.mxu0 %v888
        %1091 = vmatprep.subr.bf16.mxu0 0
        %1092 = vmatpush1.bf16.msra.mxu0 %v889
        %1093 = vmatprep.subr.bf16.mxu0 0
        %1094 = vmatpush1.bf16.msra.mxu0 %v890
        %1095 = vmatprep.subr.bf16.mxu0 0
        %1096 = vmatpush1.bf16.msra.mxu0 %v891
        %1097 = vmatprep.subr.bf16.mxu0 0
        %1098 = vmatpush1.bf16.msra.mxu0 %v892
        %1099 = vmatprep.subr.bf16.mxu0 0
        %1100 = vmatpush1.bf16.msra.mxu0 %v893
        %1101 = vmatprep.subr.bf16.mxu0 0
        %1102 = vmatpush1.bf16.msra.mxu0 %v894
        %1103 = vmatprep.subr.bf16.mxu0 0
        %1104 = vmatpush1.bf16.msra.mxu0 %v895
        %1105 = vmatprep.mubr.bf16.mxu0 %v507
        %1106 = vmatmul.mubr.bf16.gmra.mrb[0].mxu0 %v506
        %v1107 = vpop.f32.mrb[0].mxu0
        %v1108 = vadd.f32 %v1043, %v1107
        %v1109 = vpop.f32.mrb[0].mxu0
        %v1110 = vpop.f32.mrb[0].mxu0
        %v1111 = vadd.f32 %v1046, %v1110
        %v1112 = vpop.f32.mrb[0].mxu0
        %1113 = vmatprep.mubr.bf16.mxu0 %v516
        %1114 = vmatmul.mubr.bf16.gmra.mrb[0].mxu0 %v515
        %v1115 = vpop.f32.mrb[0].mxu0
        %v1116 = vadd.f32 %v1051, %v1115
        %v1117 = vpop.f32.mrb[0].mxu0
        %v1118 = vpop.f32.mrb[0].mxu0
        %v1119 = vadd.f32 %v1054, %v1118
        %v1120 = vpop.f32.mrb[0].mxu0
        %1121 = vmatprep.mubr.bf16.mxu0 %v525
        %1122 = vmatmul.mubr.bf16.gmra.mrb[0].mxu0 %v524
        %v1123 = vpop.f32.mrb[0].mxu0
        %v1124 = vadd.f32 %v1059, %v1123
        %v1125 = vpop.f32.mrb[0].mxu0
        %v1126 = vpop.f32.mrb[0].mxu0
        %v1127 = vadd.f32 %v1062, %v1126
        %v1128 = vpop.f32.mrb[0].mxu0
        %1129 = vmatprep.mubr.bf16.mxu0 %v534
        %1130 = vmatmul.mubr.bf16.gmra.mrb[0].mxu0 %v533
        %v1131 = vpop.f32.mrb[0].mxu0
        %v1132 = vadd.f32 %v1067, %v1131
        %v1133 = vpop.f32.mrb[0].mxu0
        %v1134 = vpop.f32.mrb[0].mxu0
        %v1135 = vadd.f32 %v1070, %v1134
        %v1136 = vpop.f32.mrb[0].mxu0
        %1137 = vdwg.mxu0
        %1138 = vmatprep.subr.bf16.mxu0 0
        %1139 = vmatpush1.bf16.msra.mxu0 %v896
        %1140 = vmatprep.subr.bf16.mxu0 0
        %1141 = vmatpush1.bf16.msra.mxu0 %v897
        %1142 = vmatprep.subr.bf16.mxu0 0
        %1143 = vmatpush1.bf16.msra.mxu0 %v898
        %1144 = vmatprep.subr.bf16.mxu0 0
        %1145 = vmatpush1.bf16.msra.mxu0 %v899
        %1146 = vmatprep.subr.bf16.mxu0 0
        %1147 = vmatpush1.bf16.msra.mxu0 %v900
        %1148 = vmatprep.subr.bf16.mxu0 0
        %1149 = vmatpush1.bf16.msra.mxu0 %v901
        %1150 = vmatprep.subr.bf16.mxu0 0
        %1151 = vmatpush1.bf16.msra.mxu0 %v902
        %1152 = vmatprep.subr.bf16.mxu0 0
        %1153 = vmatpush1.bf16.msra.mxu0 %v903
        %1154 = vmatprep.subr.bf16.mxu0 0
        %1155 = vmatpush1.bf16.msra.mxu0 %v904
        %1156 = vmatprep.subr.bf16.mxu0 0
        %1157 = vmatpush1.bf16.msra.mxu0 %v905
        %1158 = vmatprep.subr.bf16.mxu0 0
        %1159 = vmatpush1.bf16.msra.mxu0 %v906
        %1160 = vmatprep.subr.bf16.mxu0 0
        %1161 = vmatpush1.bf16.msra.mxu0 %v907
        %1162 = vmatprep.subr.bf16.mxu0 0
        %1163 = vmatpush1.bf16.msra.mxu0 %v908
        %1164 = vmatprep.subr.bf16.mxu0 0
        %1165 = vmatpush1.bf16.msra.mxu0 %v909
        %1166 = vmatprep.subr.bf16.mxu0 0
        %1167 = vmatpush1.bf16.msra.mxu0 %v910
        %1168 = vmatprep.subr.bf16.mxu0 0
        %1169 = vmatpush1.bf16.msra.mxu0 %v911
        %1170 = vmatprep.mubr.bf16.mxu0 %v509
        %1171 = vmatmul.mubr.bf16.gmra.mrb[0].mxu0 %v508
        %v1172 = vpop.f32.mrb[0].mxu0
        %v1173 = vadd.f32 %v1108, %v1172
        %v1174 = vpop.f32.mrb[0].mxu0
        %v1175 = vpop.f32.mrb[0].mxu0
        %v1176 = vadd.f32 %v1111, %v1175
        %v1177 = vpop.f32.mrb[0].mxu0
        %1178 = vmatprep.mubr.bf16.mxu0 %v518
        %1179 = vmatmul.mubr.bf16.gmra.mrb[0].mxu0 %v517
        %v1180 = vpop.f32.mrb[0].mxu0
        %v1181 = vadd.f32 %v1116, %v1180
        %v1182 = vpop.f32.mrb[0].mxu0
        %v1183 = vpop.f32.mrb[0].mxu0
        %v1184 = vadd.f32 %v1119, %v1183
        %v1185 = vpop.f32.mrb[0].mxu0
        %1186 = vmatprep.mubr.bf16.mxu0 %v527
        %1187 = vmatmul.mubr.bf16.gmra.mrb[0].mxu0 %v526
        %v1188 = vpop.f32.mrb[0].mxu0
        %v1189 = vadd.f32 %v1124, %v1188
        %v1190 = vpop.f32.mrb[0].mxu0
        %v1191 = vpop.f32.mrb[0].mxu0
        %v1192 = vadd.f32 %v1127, %v1191
        %v1193 = vpop.f32.mrb[0].mxu0
        %1194 = vmatprep.mubr.bf16.mxu0 %v536
        %1195 = vmatmul.mubr.bf16.gmra.mrb[0].mxu0 %v535
        %v1196 = vpop.f32.mrb[0].mxu0
        %v1197 = vadd.f32 %v1132, %v1196
        %v1198 = vpop.f32.mrb[0].mxu0
        %v1199 = vpop.f32.mrb[0].mxu0
        %v1200 = vadd.f32 %v1135, %v1199
        %v1201 = vpop.f32.mrb[0].mxu0
        %1202 = vdwg.mxu0
        %1203 = vmatprep.subr.bf16.mxu0 0
        %1204 = vmatpush1.bf16.msra.mxu0 %v912
        %1205 = vmatprep.subr.bf16.mxu0 0
        %1206 = vmatpush1.bf16.msra.mxu0 %v913
        %1207 = vmatprep.subr.bf16.mxu0 0
        %1208 = vmatpush1.bf16.msra.mxu0 %v914
        %1209 = vmatprep.subr.bf16.mxu0 0
        %1210 = vmatpush1.bf16.msra.mxu0 %v915
        %1211 = vmatprep.subr.bf16.mxu0 0
        %1212 = vmatpush1.bf16.msra.mxu0 %v916
        %1213 = vmatprep.subr.bf16.mxu0 0
        %1214 = vmatpush1.bf16.msra.mxu0 %v917
        %1215 = vmatprep.subr.bf16.mxu0 0
        %1216 = vmatpush1.bf16.msra.mxu0 %v918
        %1217 = vmatprep.subr.bf16.mxu0 0
        %1218 = vmatpush1.bf16.msra.mxu0 %v919
        %1219 = vmatprep.subr.bf16.mxu0 0
        %1220 = vmatpush1.bf16.msra.mxu0 %v920
        %1221 = vmatprep.subr.bf16.mxu0 0
        %1222 = vmatpush1.bf16.msra.mxu0 %v921
        %1223 = vmatprep.subr.bf16.mxu0 0
        %1224 = vmatpush1.bf16.msra.mxu0 %v922
        %1225 = vmatprep.subr.bf16.mxu0 0
        %1226 = vmatpush1.bf16.msra.mxu0 %v923
        %1227 = vmatprep.subr.bf16.mxu0 0
        %1228 = vmatpush1.bf16.msra.mxu0 %v924
        %1229 = vmatprep.subr.bf16.mxu0 0
        %1230 = vmatpush1.bf16.msra.mxu0 %v925
        %1231 = vmatprep.subr.bf16.mxu0 0
        %1232 = vmatpush1.bf16.msra.mxu0 %v926
        %1233 = vmatprep.subr.bf16.mxu0 0
        %1234 = vmatpush1.bf16.msra.mxu0 %v927
        %1235 = vmatprep.mubr.bf16.mxu0 %v511
        %1236 = vmatmul.mubr.bf16.gmra.mrb[0].mxu0 %v510
        %v1237 = vpop.f32.mrb[0].mxu0
        %v1238 = vadd.f32 %v1173, %v1237
        %v1239 = vpop.f32.mrb[0].mxu0
        %v1240 = vpop.f32.mrb[0].mxu0
        %v1241 = vadd.f32 %v1176, %v1240
        %v1242 = vpop.f32.mrb[0].mxu0
        %1243 = vmatprep.mubr.bf16.mxu0 %v520
        %1244 = vmatmul.mubr.bf16.gmra.mrb[0].mxu0 %v519
        %v1245 = vpop.f32.mrb[0].mxu0
        %v1246 = vadd.f32 %v1181, %v1245
        %v1247 = vpop.f32.mrb[0].mxu0
        %v1248 = vpop.f32.mrb[0].mxu0
        %v1249 = vadd.f32 %v1184, %v1248
        %v1250 = vpop.f32.mrb[0].mxu0
        %1251 = vmatprep.mubr.bf16.mxu0 %v529
        %1252 = vmatmul.mubr.bf16.gmra.mrb[0].mxu0 %v528
        %v1253 = vpop.f32.mrb[0].mxu0
        %v1254 = vadd.f32 %v1189, %v1253
        %v1255 = vpop.f32.mrb[0].mxu0
        %v1256 = vpop.f32.mrb[0].mxu0
        %v1257 = vadd.f32 %v1192, %v1256
        %v1258 = vpop.f32.mrb[0].mxu0
        %1259 = vmatprep.mubr.bf16.mxu0 %v538
        %1260 = vmatmul.mubr.bf16.gmra.mrb[0].mxu0 %v537
        %v1261 = vpop.f32.mrb[0].mxu0
        %v1262 = vadd.f32 %v1197, %v1261
        %v1263 = vpop.f32.mrb[0].mxu0
        %v1264 = vpop.f32.mrb[0].mxu0
        %v1265 = vadd.f32 %v1200, %v1264
        %v1266 = vpop.f32.mrb[0].mxu0
        %1267 = vdwg.mxu0
        %1268 = vmatprep.subr.bf16.mxu0 0
        %1269 = vmatpush1.bf16.msra.mxu0 %v928
        %1270 = vmatprep.subr.bf16.mxu0 0
        %1271 = vmatpush1.bf16.msra.mxu0 %v929
        %1272 = vmatprep.subr.bf16.mxu0 0
        %1273 = vmatpush1.bf16.msra.mxu0 %v930
        %1274 = vmatprep.subr.bf16.mxu0 0
        %1275 = vmatpush1.bf16.msra.mxu0 %v931
        %1276 = vmatprep.subr.bf16.mxu0 0
        %1277 = vmatpush1.bf16.msra.mxu0 %v932
        %1278 = vmatprep.subr.bf16.mxu0 0
        %1279 = vmatpush1.bf16.msra.mxu0 %v933
        %1280 = vmatprep.subr.bf16.mxu0 0
        %1281 = vmatpush1.bf16.msra.mxu0 %v934
        %1282 = vmatprep.subr.bf16.mxu0 0
        %1283 = vmatpush1.bf16.msra.mxu0 %v935
        %1284 = vmatprep.subr.bf16.mxu0 0
        %1285 = vmatpush1.bf16.msra.mxu0 0
        %1286 = vmatprep.subr.bf16.mxu0 0
        %1287 = vmatpush1.bf16.msra.mxu0 0
        %1288 = vmatprep.subr.bf16.mxu0 0
        %1289 = vmatpush1.bf16.msra.mxu0 0
        %1290 = vmatprep.subr.bf16.mxu0 0
        %1291 = vmatpush1.bf16.msra.mxu0 0
        %1292 = vmatprep.subr.bf16.mxu0 0
        %1293 = vmatpush1.bf16.msra.mxu0 0
        %1294 = vmatprep.subr.bf16.mxu0 0
        %1295 = vmatpush1.bf16.msra.mxu0 0
        %1296 = vmatprep.subr.bf16.mxu0 0
        %1297 = vmatpush1.bf16.msra.mxu0 0
        %1298 = vmatprep.subr.bf16.mxu0 0
        %1299 = vmatpush1.bf16.msra.mxu0 0
        %1300 = vmatprep.mubr.bf16.mxu0 0
        %1301 = vmatmul.mubr.bf16.gmra.mrb[0].mxu0 %v512
        %v1302 = vpop.f32.mrb[0].mxu0
        %v1303 = vadd.f32 %v1238, %v1302
        %v1304 = vpop.f32.mrb[0].mxu0
        %v1305 = vpop.f32.mrb[0].mxu0
        %v1306 = vadd.f32 %v1241, %v1305
        %v1307 = vpop.f32.mrb[0].mxu0
        %1308 = vmatprep.mubr.bf16.mxu0 0
        %1309 = vmatmul.mubr.bf16.gmra.mrb[0].mxu0 %v521
        %v1310 = vpop.f32.mrb[0].mxu0
        %v1311 = vadd.f32 %v1246, %v1310
        %v1312 = vpop.f32.mrb[0].mxu0
        %v1313 = vpop.f32.mrb[0].mxu0
        %v1314 = vadd.f32 %v1249, %v1313
        %v1315 = vpop.f32.mrb[0].mxu0
        %1316 = vmatprep.mubr.bf16.mxu0 0
        %1317 = vmatmul.mubr.bf16.gmra.mrb[0].mxu0 %v530
        %v1318 = vpop.f32.mrb[0].mxu0
        %v1319 = vadd.f32 %v1254, %v1318
        %v1320 = vpop.f32.mrb[0].mxu0
        %v1321 = vpop.f32.mrb[0].mxu0
        %v1322 = vadd.f32 %v1257, %v1321
        %v1323 = vpop.f32.mrb[0].mxu0
        %1324 = vmatprep.mubr.bf16.mxu0 0
        %1325 = vmatmul.mubr.bf16.gmra.mrb[0].mxu0 %v539
        %v1326 = vpop.f32.mrb[0].mxu0
        %v1327 = vadd.f32 %v1262, %v1326
        %v1328 = vpop.f32.mrb[0].mxu0
        %v1329 = vpop.f32.mrb[0].mxu0
        %v1330 = vadd.f32 %v1265, %v1329
        %v1331 = vpop.f32.mrb[0].mxu0
        %1332 = vdwg.mxu0
        %v1333 = vmax.f32 %v1303, 0.0
        %v1334 = vmax.f32 %v1306, 0.0
        %v1335 = vmax.f32 %v1311, 0.0
        %v1336 = vmax.f32 %v1314, 0.0
        %v1337 = vmax.f32 %v1319, 0.0
        %v1338 = vmax.f32 %v1322, 0.0
        %v1339 = vmax.f32 %v1327, 0.0
        %v1340 = vmax.f32 %v1330, 0.0
        %v1341 = vpack.c.bf16 %v1334, %v1333
        %v1342 = vpack.c.bf16 %v1336, %v1335
        %v1343 = vpack.c.bf16 %v1338, %v1337
        %v1344 = vpack.c.bf16 %v1340, %v1339
        %v1349 = vunpack.c.l.b16 %v1341
        %v1350 = vunpack.c.h.b16 %v1341
        %v1351 = vunpack.c.l.b16 %v1342
        %v1352 = vunpack.c.h.b16 %v1342
        %v1353 = vunpack.c.l.b16 %v1343
        %v1354 = vunpack.c.h.b16 %v1343
        %v1355 = vunpack.c.l.b16 %v1344
        %v1356 = vunpack.c.h.b16 %v1344
        %v1357 = vpack.c.b16 %v1349, %v1349
        %v1358 = vpack.c.b16 %v1350, %v1350
        %v1359 = vpack.c.b16 %v1351, %v1351
        %v1360 = vpack.c.b16 %v1352, %v1352
        %v1361 = vpack.c.b16 %v1353, %v1353
        %v1362 = vpack.c.b16 %v1354, %v1354
        %v1363 = vpack.c.b16 %v1355, %v1355
        %v1364 = vpack.c.b16 %v1356, %v1356
        %vm1373 = vcmask 519168
        %1374 = vst.msk [vmem:[%s177] sm:$0xf] %vm1373, %v1357
        %1375 = vst.msk [vmem:[%s177 + $0x4] sm:$0xf] %vm1373, %v1358
        %1376 = vst.msk [vmem:[%s177 + $0x8] sm:$0xf] %vm1373, %v1359
        %1377 = vst.msk [vmem:[%s177 + $0xc] sm:$0xf] %vm1373, %v1360
        %1378 = vst.msk [vmem:[%s177 + $0x10] sm:$0xf] %vm1373, %v1361
        %1379 = vst.msk [vmem:[%s177 + $0x14] sm:$0xf] %vm1373, %v1362
        %1380 = vst.msk [vmem:[%s177 + $0x18] sm:$0xf] %vm1373, %v1363
        %1381 = vst.msk [vmem:[%s177 + $0x1c] sm:$0xf] %vm1373, %v1364
        %s1382 = sand.u32 %s90, 1
        %s1383 = sand.u32 %s90, 1
        %s1384 = smul.addr %s1383, 32
        %s1385 = scalar_lea.vmem [#allocation2], %s1384
        // Predicated region
        $region33: #{sep_body_conv_forward.6} parent=31 // pred_check
          %p1386 = pneg %p100
        $region34: #{sep_body_conv_forward.6} parent=31 // pred_check_branch
          %1388 = sbr.rel (%p1386) target = $region36
        $region35: #{sep_body_conv_forward.6} parent=31 // pred_region
          %s1389 = smul.u32 8, %s14
          %s1390 = ssub.s32 13, %s1389
          %p1391 = scmp.lt.s32.totalorder %s1390, 8
          %s1392 = scalar_select %p1391, %s1390, 8
          %s1393 = smul.u32 64, %s1392
          %p1394 = scmp.ne.s32.totalorder 0, %s1393
          %s1395 = smul.addr %s1389, 4
          %s1396 = scalar_lea.vmem %s3, %s1395
          // Predicated region
          $region37: #{sep_body_conv_forward.6} parent=35 // pred_check
            %p1397 = pneg %p1394
          $region38: #{sep_body_conv_forward.6} parent=35 // pred_check_branch
            %1399 = sbr.rel (%p1397) target = $region40
          $region39: #{sep_body_conv_forward.6} parent=35 // pred_region
            // Predicated region
            $region41: #{sep_body_conv_forward.6} parent=39 // pred_check
              _
            $region42: #{sep_body_conv_forward.6} parent=39 // pred_check_branch
              %1401 = sbr.rel target = $region44
            $region43: #{sep_body_conv_forward.6} parent=39 // pred_region
              // Predicated region
              $region63: #{sep_body_conv_forward.6} parent=43 // pred_check
                _
              $region64: #{sep_body_conv_forward.6} parent=43 // pred_check_branch
                %1464 = sbr.rel (0) target = $region66
              $region65: #{sep_body_conv_forward.6} parent=43 // pred_region
                %s1466 = sshrl.u32 %s1392, 3
                // While loop
                $region67: #{sep_body_conv_forward.6} parent=65 // loop_pre_header
                  _
                $region68: #{sep_body_conv_forward.6} parent=65 // loop_header
                  %s1468 = sphi 0, %s1470
                  %p1469 = scmp.ge.s32.totalorder %s1468, %s1466
                  %s1473 = sphi 0, %s1494
                  %s1474 = sphi %s1385, %s1497
                  %s1475 = sphi %s1396, %s1498
                $region69: #{sep_body_conv_forward.6} parent=65 // loop_header_branch
                  %1472 = sbr.rel (%p1469) target = $region73
                $region70: #{sep_body_conv_forward.6} parent=65 // loop_body
                  %v1476 = vld [vmem:[%s1474] sm:$0xf]
                  %1477 = vst [vmem:[%s1475] sm:$0xf] %v1476
                  %v1478 = vld [vmem:[%s1474 + $0x4] sm:$0xf]
                  %1479 = vst [vmem:[%s1475 + $0x4] sm:$0xf] %v1478
                  %v1480 = vld [vmem:[%s1474 + $0x8] sm:$0xf]
                  %1481 = vst [vmem:[%s1475 + $0x8] sm:$0xf] %v1480
                  %v1482 = vld [vmem:[%s1474 + $0xc] sm:$0xf]
                  %1483 = vst [vmem:[%s1475 + $0xc] sm:$0xf] %v1482
                  %v1484 = vld [vmem:[%s1474 + $0x10] sm:$0xf]
                  %1485 = vst [vmem:[%s1475 + $0x10] sm:$0xf] %v1484
                  %v1486 = vld [vmem:[%s1474 + $0x14] sm:$0xf]
                  %1487 = vst [vmem:[%s1475 + $0x14] sm:$0xf] %v1486
                  %v1488 = vld [vmem:[%s1474 + $0x18] sm:$0xf]
                  %1489 = vst [vmem:[%s1475 + $0x18] sm:$0xf] %v1488
                  %v1490 = vld [vmem:[%s1474 + $0x1c] sm:$0xf]
                  %1491 = vst [vmem:[%s1475 + $0x1c] sm:$0xf] %v1490
                  %s1492 = sadd.s32 1, %s1473
                  %p1493 = scmp.ge.s32.totalorder %s1492, %s1466
                  %s1494 = scalar_select %p1493, 0, %s1492
                  %s1495 = smul.u32 %s1494, 32
                  %s1496 = smul.u32 %s1494, 32
                  %s1497 = scalar_lea.vmem %s1385, %s1495 [#allocation2]
                  %s1498 = scalar_lea.vmem %s1396, %s1496
                $region71: #{sep_body_conv_forward.6} parent=65 // loop_footer
                  %s1470 = sadd.s32 %s1468, 1
                $region72: #{sep_body_conv_forward.6} parent=65 // loop_footer_branch
                  %1467 = sbr.rel target = $region68
                $region73: #{sep_body_conv_forward.6} parent=65 // loop_exit
                  _
                %s1499 = sshrl.u32 %s1392, 3
                %s1500 = sand.u32 %s1392, 7
                %s1501 = smul.u32 %s1499, 8
                %s1502 = smul.u32 4, %s1501
                %s1503 = scalar_lea.vmem %s1385, %s1502 [#allocation2]
                %s1504 = smul.u32 4, %s1501
                %s1505 = scalar_lea.vmem %s1396, %s1504
                // While loop
                $region74: #{sep_body_conv_forward.6} parent=65 // loop_pre_header
                  _
                $region75: #{sep_body_conv_forward.6} parent=65 // loop_header
                  %s1507 = sphi 0, %s1509
                  %p1508 = scmp.ge.s32.totalorder %s1507, %s1500
                  %s1512 = sphi 0, %s1519
                  %s1513 = sphi %s1503, %s1522
                  %s1514 = sphi %s1505, %s1523
                $region76: #{sep_body_conv_forward.6} parent=65 // loop_header_branch
                  %1511 = sbr.rel (%p1508) target = $region80
                $region77: #{sep_body_conv_forward.6} parent=65 // loop_body
                  %v1515 = vld [vmem:[%s1513] sm:$0xf]
                  %1516 = vst [vmem:[%s1514] sm:$0xf] %v1515
                  %s1517 = sadd.s32 1, %s1512
                  %p1518 = scmp.ge.s32.totalorder %s1517, %s1500
                  %s1519 = scalar_select %p1518, 0, %s1517
                  %s1520 = smul.u32 %s1519, 4
                  %s1521 = smul.u32 %s1519, 4
                  %s1522 = scalar_lea.vmem %s1503, %s1520 [#allocation2]
                  %s1523 = scalar_lea.vmem %s1505, %s1521
                $region78: #{sep_body_conv_forward.6} parent=65 // loop_footer
                  %s1509 = sadd.s32 %s1507, 1
                $region79: #{sep_body_conv_forward.6} parent=65 // loop_footer_branch
                  %1506 = sbr.rel target = $region75
                $region80: #{sep_body_conv_forward.6} parent=65 // loop_exit
                  _
              $region66: #{sep_body_conv_forward.6} parent=43 // pred_fallthru
                _
            $region44: #{sep_body_conv_forward.6} parent=39 // pred_fallthru
              _
            // Predicated region
            $region45: #{sep_body_conv_forward.6} parent=39 // pred_check
              _
            $region46: #{sep_body_conv_forward.6} parent=39 // pred_check_branch
              %1403 = sbr.rel (0) target = $region48
            $region47: #{sep_body_conv_forward.6} parent=39 // pred_region
              %s1405 = sshrl.u32 %s1392, 3
              // While loop
              $region49: #{sep_body_conv_forward.6} parent=47 // loop_pre_header
                _
              $region50: #{sep_body_conv_forward.6} parent=47 // loop_header
                %s1407 = sphi 0, %s1409
                %p1408 = scmp.ge.s32.totalorder %s1407, %s1405
                %s1412 = sphi 0, %s1433
                %s1413 = sphi %s1385, %s1436
                %s1414 = sphi %s1396, %s1437
              $region51: #{sep_body_conv_forward.6} parent=47 // loop_header_branch
                %1411 = sbr.rel (%p1408) target = $region55
              $region52: #{sep_body_conv_forward.6} parent=47 // loop_body
                %v1415 = vld [vmem:[%s1413] sm:$0xf]
                %1416 = vst [vmem:[%s1414] sm:$0xf] %v1415
                %v1417 = vld [vmem:[%s1413 + $0x4] sm:$0xf]
                %1418 = vst [vmem:[%s1414 + $0x4] sm:$0xf] %v1417
                %v1419 = vld [vmem:[%s1413 + $0x8] sm:$0xf]
                %1420 = vst [vmem:[%s1414 + $0x8] sm:$0xf] %v1419
                %v1421 = vld [vmem:[%s1413 + $0xc] sm:$0xf]
                %1422 = vst [vmem:[%s1414 + $0xc] sm:$0xf] %v1421
                %v1423 = vld [vmem:[%s1413 + $0x10] sm:$0xf]
                %1424 = vst [vmem:[%s1414 + $0x10] sm:$0xf] %v1423
                %v1425 = vld [vmem:[%s1413 + $0x14] sm:$0xf]
                %1426 = vst [vmem:[%s1414 + $0x14] sm:$0xf] %v1425
                %v1427 = vld [vmem:[%s1413 + $0x18] sm:$0xf]
                %1428 = vst [vmem:[%s1414 + $0x18] sm:$0xf] %v1427
                %v1429 = vld [vmem:[%s1413 + $0x1c] sm:$0xf]
                %1430 = vst [vmem:[%s1414 + $0x1c] sm:$0xf] %v1429
                %s1431 = sadd.s32 1, %s1412
                %p1432 = scmp.ge.s32.totalorder %s1431, %s1405
                %s1433 = scalar_select %p1432, 0, %s1431
                %s1434 = smul.u32 %s1433, 32
                %s1435 = smul.u32 %s1433, 32
                %s1436 = scalar_lea.vmem %s1385, %s1434 [#allocation2]
                %s1437 = scalar_lea.vmem %s1396, %s1435
              $region53: #{sep_body_conv_forward.6} parent=47 // loop_footer
                %s1409 = sadd.s32 %s1407, 1
              $region54: #{sep_body_conv_forward.6} parent=47 // loop_footer_branch
                %1406 = sbr.rel target = $region50
              $region55: #{sep_body_conv_forward.6} parent=47 // loop_exit
                _
              %s1438 = sshrl.u32 %s1392, 3
              %s1439 = sand.u32 %s1392, 7
              %s1440 = smul.u32 %s1438, 8
              %s1441 = smul.u32 4, %s1440
              %s1442 = scalar_lea.vmem %s1385, %s1441 [#allocation2]
              %s1443 = smul.u32 4, %s1440
              %s1444 = scalar_lea.vmem %s1396, %s1443
              // While loop
              $region56: #{sep_body_conv_forward.6} parent=47 // loop_pre_header
                _
              $region57: #{sep_body_conv_forward.6} parent=47 // loop_header
                %s1446 = sphi 0, %s1448
                %p1447 = scmp.ge.s32.totalorder %s1446, %s1439
                %s1451 = sphi 0, %s1458
                %s1452 = sphi %s1442, %s1461
                %s1453 = sphi %s1444, %s1462
              $region58: #{sep_body_conv_forward.6} parent=47 // loop_header_branch
                %1450 = sbr.rel (%p1447) target = $region62
              $region59: #{sep_body_conv_forward.6} parent=47 // loop_body
                %v1454 = vld [vmem:[%s1452] sm:$0xf]
                %1455 = vst [vmem:[%s1453] sm:$0xf] %v1454
                %s1456 = sadd.s32 1, %s1451
                %p1457 = scmp.ge.s32.totalorder %s1456, %s1439
                %s1458 = scalar_select %p1457, 0, %s1456
                %s1459 = smul.u32 %s1458, 4
                %s1460 = smul.u32 %s1458, 4
                %s1461 = scalar_lea.vmem %s1442, %s1459 [#allocation2]
                %s1462 = scalar_lea.vmem %s1444, %s1460
              $region60: #{sep_body_conv_forward.6} parent=47 // loop_footer
                %s1448 = sadd.s32 %s1446, 1
              $region61: #{sep_body_conv_forward.6} parent=47 // loop_footer_branch
                %1445 = sbr.rel target = $region57
              $region62: #{sep_body_conv_forward.6} parent=47 // loop_exit
                _
            $region48: #{sep_body_conv_forward.6} parent=39 // pred_fallthru
              _
          $region40: #{sep_body_conv_forward.6} parent=35 // pred_fallthru
            _
          %1524 = vnop
        $region36: #{sep_body_conv_forward.6} parent=31 // pred_fallthru
          _
      $region32: #{sep_body_conv_forward.6} parent=5 // pred_fallthru
        _
      %p1525 = scmp.le.s32.totalorder 2, %s9
      // Predicated region
      $region81: #{sep_body_conv_forward.6} parent=5 // pred_check
        %p1526 = pneg %p1525
      $region82: #{sep_body_conv_forward.6} parent=5 // pred_check_branch
        %1528 = sbr.rel (%p1526) target = $region84
      $region83: #{sep_body_conv_forward.6} parent=5 // pred_region
        %s1529 = ssub.s32 %s9, 2
        // Predicated region
        $region85: #{sep_body_conv_forward.6} parent=83 // pred_check
          %p1530 = pneg %p106
        $region86: #{sep_body_conv_forward.6} parent=83 // pred_check_branch
          %1532 = sbr.rel (%p1530) target = $region88
        $region87: #{sep_body_conv_forward.6} parent=83 // pred_region
          %s1533 = sand.u32 %s91, 1
          %s1534 = sand.u32 %s91, 1
          %s1535 = smul.addr %s1534, 32
          %s1536 = scalar_lea.vmem [#allocation2], %s1535
        $region88: #{sep_body_conv_forward.6} parent=83 // pred_fallthru
          _
      $region84: #{sep_body_conv_forward.6} parent=5 // pred_fallthru
        _
    $region6: #{sep_body_conv_forward.6} parent=1 // loop_footer
      %s13 = sadd.s32 1, %s9
    $region7: #{sep_body_conv_forward.6} parent=1 // loop_footer_branch
      %8 = sbr.rel target = $region3
    $region8: #{sep_body_conv_forward.6} parent=1 // loop_exit
      _

// kernel: sep_body_conv_forward.7
$region0: #{sep_body_conv_forward.7}
  #allocation0 [shape = 'u32[]', space=smem, size = 0x4, offset = 0x4, fixed_abs, tag = 'smem constant byte address 0x4 - core index']
  #allocation1 [shape = 'u32[144,128]{1,0:T(1,128)}', space=vmem, size = 0x12000, scoped, tag = 'internal scratch']
  %s0 = inlined_call_operand.vmem [shape: bf16[2,1568], index: 0, kind: input, shape index: {}]
  %s1 = inlined_call_operand.vmem [shape: bf16[2,1568], index: 1, kind: input, shape index: {}]
  %s2 = inlined_call_operand.vmem [shape: bf16[1568,512], index: 2, kind: input, shape index: {}]
  %s3 = inlined_call_operand.vmem [shape: f32[1,512], index: 3, kind: input, shape index: {}, may-alias: {3,5}]
  %s4 = inlined_call_operand.vmem [shape: bf16[1568,512], index: 4, kind: input, shape index: {}]
  %s5 = inlined_call_operand.vmem [shape: f32[1,512], index: 5, kind: input, shape index: {}, may-alias: {3,5}]
  %s6 = inlined_call_operand.vmem [shape: bf16[512,128], index: 6, kind: input, shape index: {}]
  %s7 = inlined_call_operand.vmem [shape: bf16[512,128], index: 7, kind: input, shape index: {}]
  %s8 = inlined_call_operand.vmem [shape: f32[1,128], index: 8, kind: input, shape index: {}]
  %s9 = inlined_call_operand.vmem [shape: f32[2,128], index: 9, kind: output, shape index: {}]
  %s10 = sld [smem:[#allocation0]]
  $region46: #{sep_body_conv_forward.7} parent=0
    _
  %s12 = ssub.s32 1, %s10
  %s13 = scalar_select 0, %s12, %s10
  // Predicated region
  $region2: #{sep_body_conv_forward.7} parent=0 // pred_check
    _
  $region3: #{sep_body_conv_forward.7} parent=0 // pred_check_branch
    %15 = sbr.rel (0) target = $region5
  $region4: #{sep_body_conv_forward.7} parent=0 // pred_region
    _
  $region5: #{sep_body_conv_forward.7} parent=0 // pred_fallthru
    _
  // Predicated region
  $region6: #{sep_body_conv_forward.7} parent=0 // pred_check
    _
  $region7: #{sep_body_conv_forward.7} parent=0 // pred_check_branch
    %17 = sbr.rel (0) target = $region9
  $region8: #{sep_body_conv_forward.7} parent=0 // pred_region
    _
  $region9: #{sep_body_conv_forward.7} parent=0 // pred_fallthru
    _
  // Predicated region
  $region10: #{sep_body_conv_forward.7} parent=0 // pred_check
    _
  $region11: #{sep_body_conv_forward.7} parent=0 // pred_check_branch
    %19 = sbr.rel (0) target = $region13
  $region12: #{sep_body_conv_forward.7} parent=0 // pred_region
    _
  $region13: #{sep_body_conv_forward.7} parent=0 // pred_fallthru
    _
  // Predicated region
  $region14: #{sep_body_conv_forward.7} parent=0 // pred_check
    _
  $region15: #{sep_body_conv_forward.7} parent=0 // pred_check_branch
    %21 = sbr.rel (0) target = $region17
  $region16: #{sep_body_conv_forward.7} parent=0 // pred_region
    _
  $region17: #{sep_body_conv_forward.7} parent=0 // pred_fallthru
    _
  // Predicated region
  $region18: #{sep_body_conv_forward.7} parent=0 // pred_check
    _
  $region19: #{sep_body_conv_forward.7} parent=0 // pred_check_branch
    %23 = sbr.rel (0) target = $region21
  $region20: #{sep_body_conv_forward.7} parent=0 // pred_region
    _
  $region21: #{sep_body_conv_forward.7} parent=0 // pred_fallthru
    _
  // Predicated region
  $region22: #{sep_body_conv_forward.7} parent=0 // pred_check
    _
  $region23: #{sep_body_conv_forward.7} parent=0 // pred_check_branch
    %25 = sbr.rel (0) target = $region25
  $region24: #{sep_body_conv_forward.7} parent=0 // pred_region
    _
  $region25: #{sep_body_conv_forward.7} parent=0 // pred_fallthru
    _
  // Predicated region
  $region26: #{sep_body_conv_forward.7} parent=0 // pred_check
    _
  $region27: #{sep_body_conv_forward.7} parent=0 // pred_check_branch
    %27 = sbr.rel (0) target = $region29
  $region28: #{sep_body_conv_forward.7} parent=0 // pred_region
    _
  $region29: #{sep_body_conv_forward.7} parent=0 // pred_fallthru
    _
  // Predicated region
  $region30: #{sep_body_conv_forward.7} parent=0 // pred_check
    _
  $region31: #{sep_body_conv_forward.7} parent=0 // pred_check_branch
    %29 = sbr.rel (0) target = $region33
  $region32: #{sep_body_conv_forward.7} parent=0 // pred_region
    _
  $region33: #{sep_body_conv_forward.7} parent=0 // pred_fallthru
    _
  // Predicated region
  $region34: #{sep_body_conv_forward.7} parent=0 // pred_check
    _
  $region35: #{sep_body_conv_forward.7} parent=0 // pred_check_branch
    %31 = sbr.rel (0) target = $region37
  $region36: #{sep_body_conv_forward.7} parent=0 // pred_region
    _
  $region37: #{sep_body_conv_forward.7} parent=0 // pred_fallthru
    _
  %v33 = vld [vmem:[%s0] sm:$0xff]
  %v34 = vld [vmem:[%s0 + $0x8] sm:$0x1f]
  %v35 = vld [vmem:[%s2] sm:$0xff]
  %v36 = vld [vmem:[%s2 + $0x8] sm:$0xff]
  %v37 = vld [vmem:[%s2 + $0x10] sm:$0xff]
  %v38 = vld [vmem:[%s2 + $0x18] sm:$0xff]
  %v39 = vld [vmem:[%s2 + $0x20] sm:$0xff]
  %v40 = vld [vmem:[%s2 + $0x28] sm:$0xff]
  %v41 = vld [vmem:[%s2 + $0x30] sm:$0xff]
  %v42 = vld [vmem:[%s2 + $0x38] sm:$0xff]
  %v43 = vld [vmem:[%s2 + $0x40] sm:$0xff]
  %v44 = vld [vmem:[%s2 + $0x48] sm:$0xff]
  %v45 = vld [vmem:[%s2 + $0x50] sm:$0xff]
  %v46 = vld [vmem:[%s2 + $0x58] sm:$0xff]
  %v47 = vld [vmem:[%s2 + $0x60] sm:$0xff]
  %v48 = vld [vmem:[%s2 + $0x68] sm:$0xff]
  %v49 = vld [vmem:[%s2 + $0x70] sm:$0xff]
  %v50 = vld [vmem:[%s2 + $0x78] sm:$0xff]
  %v51 = vld [vmem:[%s2 + $0x80] sm:$0xff]
  %v52 = vld [vmem:[%s2 + $0x88] sm:$0xff]
  %v53 = vld [vmem:[%s2 + $0x90] sm:$0xff]
  %v54 = vld [vmem:[%s2 + $0x98] sm:$0xff]
  %v55 = vld [vmem:[%s2 + $0xa0] sm:$0xff]
  %v56 = vld [vmem:[%s2 + $0xa8] sm:$0xff]
  %v57 = vld [vmem:[%s2 + $0xb0] sm:$0xff]
  %v58 = vld [vmem:[%s2 + $0xb8] sm:$0xff]
  %v59 = vld [vmem:[%s2 + $0xc0] sm:$0xff]
  %v60 = vld [vmem:[%s2 + $0xc8] sm:$0xff]
  %v61 = vld [vmem:[%s2 + $0xd0] sm:$0xff]
  %v62 = vld [vmem:[%s2 + $0xd8] sm:$0xff]
  %v63 = vld [vmem:[%s2 + $0xe0] sm:$0xff]
  %v64 = vld [vmem:[%s2 + $0xe8] sm:$0xff]
  %v65 = vld [vmem:[%s2 + $0xf0] sm:$0xff]
  %v66 = vld [vmem:[%s2 + $0xf8] sm:$0xff]
  %v67 = vld [vmem:[%s2 + $0x100] sm:$0xff]
  %v68 = vld [vmem:[%s2 + $0x108] sm:$0xff]
  %v69 = vld [vmem:[%s2 + $0x110] sm:$0xff]
  %v70 = vld [vmem:[%s2 + $0x118] sm:$0xff]
  %v71 = vld [vmem:[%s2 + $0x120] sm:$0xff]
  %v72 = vld [vmem:[%s2 + $0x128] sm:$0xff]
  %v73 = vld [vmem:[%s2 + $0x130] sm:$0xff]
  %v74 = vld [vmem:[%s2 + $0x138] sm:$0xff]
  %v75 = vld [vmem:[%s2 + $0x140] sm:$0xff]
  %v76 = vld [vmem:[%s2 + $0x148] sm:$0xff]
  %v77 = vld [vmem:[%s2 + $0x150] sm:$0xff]
  %v78 = vld [vmem:[%s2 + $0x158] sm:$0xff]
  %v79 = vld [vmem:[%s2 + $0x160] sm:$0xff]
  %v80 = vld [vmem:[%s2 + $0x168] sm:$0xff]
  %v81 = vld [vmem:[%s2 + $0x170] sm:$0xff]
  %v82 = vld [vmem:[%s2 + $0x178] sm:$0xff]
  %v83 = vld [vmem:[%s2 + $0x180] sm:$0xff]
  %v84 = vld [vmem:[%s2 + $0x188] sm:$0xff]
  %v85 = vld [vmem:[%s2 + $0x190] sm:$0xff]
  %v86 = vld [vmem:[%s2 + $0x198] sm:$0xff]
  %v87 = vld [vmem:[%s2 + $0x1a0] sm:$0xff]
  %v88 = vld [vmem:[%s2 + $0x1a8] sm:$0xff]
  %v89 = vld [vmem:[%s2 + $0x1b0] sm:$0xff]
  %v90 = vld [vmem:[%s2 + $0x1b8] sm:$0xff]
  %v91 = vld [vmem:[%s2 + $0x1c0] sm:$0xff]
  %v92 = vld [vmem:[%s2 + $0x1c8] sm:$0xff]
  %v93 = vld [vmem:[%s2 + $0x1d0] sm:$0xff]
  %v94 = vld [vmem:[%s2 + $0x1d8] sm:$0xff]
  %v95 = vld [vmem:[%s2 + $0x1e0] sm:$0xff]
  %v96 = vld [vmem:[%s2 + $0x1e8] sm:$0xff]
  %v97 = vld [vmem:[%s2 + $0x1f0] sm:$0xff]
  %v98 = vld [vmem:[%s2 + $0x1f8] sm:$0xff]
  %v99 = vld [vmem:[%s2 + $0x200] sm:$0xff]
  %v100 = vld [vmem:[%s2 + $0x208] sm:$0xff]
  %v101 = vld [vmem:[%s2 + $0x210] sm:$0xff]
  %v102 = vld [vmem:[%s2 + $0x218] sm:$0xff]
  %v103 = vld [vmem:[%s2 + $0x220] sm:$0xff]
  %v104 = vld [vmem:[%s2 + $0x228] sm:$0xff]
  %v105 = vld [vmem:[%s2 + $0x230] sm:$0xff]
  %v106 = vld [vmem:[%s2 + $0x238] sm:$0xff]
  %v107 = vld [vmem:[%s2 + $0x240] sm:$0xff]
  %v108 = vld [vmem:[%s2 + $0x248] sm:$0xff]
  %v109 = vld [vmem:[%s2 + $0x250] sm:$0xff]
  %v110 = vld [vmem:[%s2 + $0x258] sm:$0xff]
  %v111 = vld [vmem:[%s2 + $0x260] sm:$0xff]
  %v112 = vld [vmem:[%s2 + $0x268] sm:$0xff]
  %v113 = vld [vmem:[%s2 + $0x270] sm:$0xff]
  %v114 = vld [vmem:[%s2 + $0x278] sm:$0xff]
  %v115 = vld [vmem:[%s2 + $0x280] sm:$0xff]
  %v116 = vld [vmem:[%s2 + $0x288] sm:$0xff]
  %v117 = vld [vmem:[%s2 + $0x290] sm:$0xff]
  %v118 = vld [vmem:[%s2 + $0x298] sm:$0xff]
  %v119 = vld [vmem:[%s2 + $0x2a0] sm:$0xff]
  %v120 = vld [vmem:[%s2 + $0x2a8] sm:$0xff]
  %v121 = vld [vmem:[%s2 + $0x2b0] sm:$0xff]
  %v122 = vld [vmem:[%s2 + $0x2b8] sm:$0xff]
  %v123 = vld [vmem:[%s2 + $0x2c0] sm:$0xff]
  %v124 = vld [vmem:[%s2 + $0x2c8] sm:$0xff]
  %v125 = vld [vmem:[%s2 + $0x2d0] sm:$0xff]
  %v126 = vld [vmem:[%s2 + $0x2d8] sm:$0xff]
  %v127 = vld [vmem:[%s2 + $0x2e0] sm:$0xff]
  %v128 = vld [vmem:[%s2 + $0x2e8] sm:$0xff]
  %v129 = vld [vmem:[%s2 + $0x2f0] sm:$0xff]
  %v130 = vld [vmem:[%s2 + $0x2f8] sm:$0xff]
  %v131 = vld [vmem:[%s2 + $0x300] sm:$0xff]
  %v132 = vld [vmem:[%s2 + $0x308] sm:$0xff]
  %v133 = vld [vmem:[%s2 + $0x310] sm:$0xff]
  %v134 = vld [vmem:[%s2 + $0x318] sm:$0xff]
  %v135 = vld [vmem:[%s2 + $0x320] sm:$0xff]
  %v136 = vld [vmem:[%s2 + $0x328] sm:$0xff]
  %v137 = vld [vmem:[%s2 + $0x330] sm:$0xff]
  %v138 = vld [vmem:[%s2 + $0x338] sm:$0xff]
  %v139 = vld [vmem:[%s2 + $0x340] sm:$0xff]
  %v140 = vld [vmem:[%s2 + $0x348] sm:$0xff]
  %v141 = vld [vmem:[%s2 + $0x350] sm:$0xff]
  %v142 = vld [vmem:[%s2 + $0x358] sm:$0xff]
  %v143 = vld [vmem:[%s2 + $0x360] sm:$0xff]
  %v144 = vld [vmem:[%s2 + $0x368] sm:$0xff]
  %v145 = vld [vmem:[%s2 + $0x370] sm:$0xff]
  %v146 = vld [vmem:[%s2 + $0x378] sm:$0xff]
  %v147 = vld [vmem:[%s2 + $0x380] sm:$0xff]
  %v148 = vld [vmem:[%s2 + $0x388] sm:$0xff]
  %v149 = vld [vmem:[%s2 + $0x390] sm:$0xff]
  %v150 = vld [vmem:[%s2 + $0x398] sm:$0xff]
  %v151 = vld [vmem:[%s2 + $0x3a0] sm:$0xff]
  %v152 = vld [vmem:[%s2 + $0x3a8] sm:$0xff]
  %v153 = vld [vmem:[%s2 + $0x3b0] sm:$0xff]
  %v154 = vld [vmem:[%s2 + $0x3b8] sm:$0xff]
  %v155 = vld [vmem:[%s2 + $0x3c0] sm:$0xff]
  %v156 = vld [vmem:[%s2 + $0x3c8] sm:$0xff]
  %v157 = vld [vmem:[%s2 + $0x3d0] sm:$0xff]
  %v158 = vld [vmem:[%s2 + $0x3d8] sm:$0xff]
  %v159 = vld [vmem:[%s2 + $0x3e0] sm:$0xff]
  %v160 = vld [vmem:[%s2 + $0x3e8] sm:$0xff]
  %v161 = vld [vmem:[%s2 + $0x3f0] sm:$0xff]
  %v162 = vld [vmem:[%s2 + $0x3f8] sm:$0xff]
  %v163 = vld [vmem:[%s2 + $0x400] sm:$0xff]
  %v164 = vld [vmem:[%s2 + $0x408] sm:$0xff]
  %v165 = vld [vmem:[%s2 + $0x410] sm:$0xff]
  %v166 = vld [vmem:[%s2 + $0x418] sm:$0xff]
  %v167 = vld [vmem:[%s2 + $0x420] sm:$0xff]
  %v168 = vld [vmem:[%s2 + $0x428] sm:$0xff]
  %v169 = vld [vmem:[%s2 + $0x430] sm:$0xff]
  %v170 = vld [vmem:[%s2 + $0x438] sm:$0xff]
  %v171 = vld [vmem:[%s2 + $0x440] sm:$0xff]
  %v172 = vld [vmem:[%s2 + $0x448] sm:$0xff]
  %v173 = vld [vmem:[%s2 + $0x450] sm:$0xff]
  %v174 = vld [vmem:[%s2 + $0x458] sm:$0xff]
  %v175 = vld [vmem:[%s2 + $0x460] sm:$0xff]
  %v176 = vld [vmem:[%s2 + $0x468] sm:$0xff]
  %v177 = vld [vmem:[%s2 + $0x470] sm:$0xff]
  %v178 = vld [vmem:[%s2 + $0x478] sm:$0xff]
  %v179 = vld [vmem:[%s2 + $0x480] sm:$0xff]
  %v180 = vld [vmem:[%s2 + $0x488] sm:$0xff]
  %v181 = vld [vmem:[%s2 + $0x490] sm:$0xff]
  %v182 = vld [vmem:[%s2 + $0x498] sm:$0xff]
  %v183 = vld [vmem:[%s2 + $0x4a0] sm:$0xff]
  %v184 = vld [vmem:[%s2 + $0x4a8] sm:$0xff]
  %v185 = vld [vmem:[%s2 + $0x4b0] sm:$0xff]
  %v186 = vld [vmem:[%s2 + $0x4b8] sm:$0xff]
  %v187 = vld [vmem:[%s2 + $0x4c0] sm:$0xff]
  %v188 = vld [vmem:[%s2 + $0x4c8] sm:$0xff]
  %v189 = vld [vmem:[%s2 + $0x4d0] sm:$0xff]
  %v190 = vld [vmem:[%s2 + $0x4d8] sm:$0xff]
  %v191 = vld [vmem:[%s2 + $0x4e0] sm:$0xff]
  %v192 = vld [vmem:[%s2 + $0x4e8] sm:$0xff]
  %v193 = vld [vmem:[%s2 + $0x4f0] sm:$0xff]
  %v194 = vld [vmem:[%s2 + $0x4f8] sm:$0xff]
  %v195 = vld [vmem:[%s2 + $0x500] sm:$0xff]
  %v196 = vld [vmem:[%s2 + $0x508] sm:$0xff]
  %v197 = vld [vmem:[%s2 + $0x510] sm:$0xff]
  %v198 = vld [vmem:[%s2 + $0x518] sm:$0xff]
  %v199 = vld [vmem:[%s2 + $0x520] sm:$0xff]
  %v200 = vld [vmem:[%s2 + $0x528] sm:$0xff]
  %v201 = vld [vmem:[%s2 + $0x530] sm:$0xff]
  %v202 = vld [vmem:[%s2 + $0x538] sm:$0xff]
  %v203 = vld [vmem:[%s2 + $0x540] sm:$0xff]
  %v204 = vld [vmem:[%s2 + $0x548] sm:$0xff]
  %v205 = vld [vmem:[%s2 + $0x550] sm:$0xff]
  %v206 = vld [vmem:[%s2 + $0x558] sm:$0xff]
  %v207 = vld [vmem:[%s2 + $0x560] sm:$0xff]
  %v208 = vld [vmem:[%s2 + $0x568] sm:$0xff]
  %v209 = vld [vmem:[%s2 + $0x570] sm:$0xff]
  %v210 = vld [vmem:[%s2 + $0x578] sm:$0xff]
  %v211 = vld [vmem:[%s2 + $0x580] sm:$0xff]
  %v212 = vld [vmem:[%s2 + $0x588] sm:$0xff]
  %v213 = vld [vmem:[%s2 + $0x590] sm:$0xff]
  %v214 = vld [vmem:[%s2 + $0x598] sm:$0xff]
  %v215 = vld [vmem:[%s2 + $0x5a0] sm:$0xff]
  %v216 = vld [vmem:[%s2 + $0x5a8] sm:$0xff]
  %v217 = vld [vmem:[%s2 + $0x5b0] sm:$0xff]
  %v218 = vld [vmem:[%s2 + $0x5b8] sm:$0xff]
  %v219 = vld [vmem:[%s2 + $0x5c0] sm:$0xff]
  %v220 = vld [vmem:[%s2 + $0x5c8] sm:$0xff]
  %v221 = vld [vmem:[%s2 + $0x5d0] sm:$0xff]
  %v222 = vld [vmem:[%s2 + $0x5d8] sm:$0xff]
  %v223 = vld [vmem:[%s2 + $0x5e0] sm:$0xff]
  %v224 = vld [vmem:[%s2 + $0x5e8] sm:$0xff]
  %v225 = vld [vmem:[%s2 + $0x5f0] sm:$0xff]
  %v226 = vld [vmem:[%s2 + $0x5f8] sm:$0xff]
  %v227 = vld [vmem:[%s2 + $0x600] sm:$0xff]
  %v228 = vld [vmem:[%s2 + $0x608] sm:$0xff]
  %v229 = vld [vmem:[%s2 + $0x610] sm:$0xff]
  %v230 = vld [vmem:[%s2 + $0x618] sm:$0xff]
  %v231 = vld [vmem:[%s2 + $0x620] sm:$0xff]
  %v232 = vld [vmem:[%s2 + $0x628] sm:$0xff]
  %v233 = vld [vmem:[%s2 + $0x630] sm:$0xff]
  %v234 = vld [vmem:[%s2 + $0x638] sm:$0xff]
  %v235 = vld [vmem:[%s2 + $0x640] sm:$0xff]
  %v236 = vld [vmem:[%s2 + $0x648] sm:$0xff]
  %v237 = vld [vmem:[%s2 + $0x650] sm:$0xff]
  %v238 = vld [vmem:[%s2 + $0x658] sm:$0xff]
  %v239 = vld [vmem:[%s2 + $0x660] sm:$0xff]
  %v240 = vld [vmem:[%s2 + $0x668] sm:$0xff]
  %v241 = vld [vmem:[%s2 + $0x670] sm:$0xff]
  %v242 = vld [vmem:[%s2 + $0x678] sm:$0xff]
  %v243 = vld [vmem:[%s2 + $0x680] sm:$0xff]
  %v244 = vld [vmem:[%s2 + $0x688] sm:$0xff]
  %v245 = vld [vmem:[%s2 + $0x690] sm:$0xff]
  %v246 = vld [vmem:[%s2 + $0x698] sm:$0xff]
  %v247 = vld [vmem:[%s2 + $0x6a0] sm:$0xff]
  %v248 = vld [vmem:[%s2 + $0x6a8] sm:$0xff]
  %v249 = vld [vmem:[%s2 + $0x6b0] sm:$0xff]
  %v250 = vld [vmem:[%s2 + $0x6b8] sm:$0xff]
  %v251 = vld [vmem:[%s2 + $0x6c0] sm:$0xff]
  %v252 = vld [vmem:[%s2 + $0x6c8] sm:$0xff]
  %v253 = vld [vmem:[%s2 + $0x6d0] sm:$0xff]
  %v254 = vld [vmem:[%s2 + $0x6d8] sm:$0xff]
  %v255 = vld [vmem:[%s2 + $0x6e0] sm:$0xff]
  %v256 = vld [vmem:[%s2 + $0x6e8] sm:$0xff]
  %v257 = vld [vmem:[%s2 + $0x6f0] sm:$0xff]
  %v258 = vld [vmem:[%s2 + $0x6f8] sm:$0xff]
  %v259 = vld [vmem:[%s2 + $0x700] sm:$0xff]
  %v260 = vld [vmem:[%s2 + $0x708] sm:$0xff]
  %v261 = vld [vmem:[%s2 + $0x710] sm:$0xff]
  %v262 = vld [vmem:[%s2 + $0x718] sm:$0xff]
  %v263 = vld [vmem:[%s2 + $0x720] sm:$0xff]
  %v264 = vld [vmem:[%s2 + $0x728] sm:$0xff]
  %v265 = vld [vmem:[%s2 + $0x730] sm:$0xff]
  %v266 = vld [vmem:[%s2 + $0x738] sm:$0xff]
  %v267 = vld [vmem:[%s2 + $0x740] sm:$0xff]
  %v268 = vld [vmem:[%s2 + $0x748] sm:$0xff]
  %v269 = vld [vmem:[%s2 + $0x750] sm:$0xff]
  %v270 = vld [vmem:[%s2 + $0x758] sm:$0xff]
  %v271 = vld [vmem:[%s2 + $0x760] sm:$0xff]
  %v272 = vld [vmem:[%s2 + $0x768] sm:$0xff]
  %v273 = vld [vmem:[%s2 + $0x770] sm:$0xff]
  %v274 = vld [vmem:[%s2 + $0x778] sm:$0xff]
  %v275 = vld [vmem:[%s2 + $0x780] sm:$0xff]
  %v276 = vld [vmem:[%s2 + $0x788] sm:$0xff]
  %v277 = vld [vmem:[%s2 + $0x790] sm:$0xff]
  %v278 = vld [vmem:[%s2 + $0x798] sm:$0xff]
  %v279 = vld [vmem:[%s2 + $0x7a0] sm:$0xff]
  %v280 = vld [vmem:[%s2 + $0x7a8] sm:$0xff]
  %v281 = vld [vmem:[%s2 + $0x7b0] sm:$0xff]
  %v282 = vld [vmem:[%s2 + $0x7b8] sm:$0xff]
  %v283 = vld [vmem:[%s2 + $0x7c0] sm:$0xff]
  %v284 = vld [vmem:[%s2 + $0x7c8] sm:$0xff]
  %v285 = vld [vmem:[%s2 + $0x7d0] sm:$0xff]
  %v286 = vld [vmem:[%s2 + $0x7d8] sm:$0xff]
  %v287 = vld [vmem:[%s2 + $0x7e0] sm:$0xff]
  %v288 = vld [vmem:[%s2 + $0x7e8] sm:$0xff]
  %v289 = vld [vmem:[%s2 + $0x7f0] sm:$0xff]
  %v290 = vld [vmem:[%s2 + $0x7f8] sm:$0xff]
  %v291 = vld [vmem:[%s2 + $0x800] sm:$0xff]
  %v292 = vld [vmem:[%s2 + $0x808] sm:$0xff]
  %v293 = vld [vmem:[%s2 + $0x810] sm:$0xff]
  %v294 = vld [vmem:[%s2 + $0x818] sm:$0xff]
  %v295 = vld [vmem:[%s2 + $0x820] sm:$0xff]
  %v296 = vld [vmem:[%s2 + $0x828] sm:$0xff]
  %v297 = vld [vmem:[%s2 + $0x830] sm:$0xff]
  %v298 = vld [vmem:[%s2 + $0x838] sm:$0xff]
  %v299 = vld [vmem:[%s2 + $0x840] sm:$0xff]
  %v300 = vld [vmem:[%s2 + $0x848] sm:$0xff]
  %v301 = vld [vmem:[%s2 + $0x850] sm:$0xff]
  %v302 = vld [vmem:[%s2 + $0x858] sm:$0xff]
  %v303 = vld [vmem:[%s2 + $0x860] sm:$0xff]
  %v304 = vld [vmem:[%s2 + $0x868] sm:$0xff]
  %v305 = vld [vmem:[%s2 + $0x870] sm:$0xff]
  %v306 = vld [vmem:[%s2 + $0x878] sm:$0xff]
  %v307 = vld [vmem:[%s2 + $0x880] sm:$0xff]
  %v308 = vld [vmem:[%s2 + $0x888] sm:$0xff]
  %v309 = vld [vmem:[%s2 + $0x890] sm:$0xff]
  %v310 = vld [vmem:[%s2 + $0x898] sm:$0xff]
  %v311 = vld [vmem:[%s2 + $0x8a0] sm:$0xff]
  %v312 = vld [vmem:[%s2 + $0x8a8] sm:$0xff]
  %v313 = vld [vmem:[%s2 + $0x8b0] sm:$0xff]
  %v314 = vld [vmem:[%s2 + $0x8b8] sm:$0xff]
  %v315 = vld [vmem:[%s2 + $0x8c0] sm:$0xff]
  %v316 = vld [vmem:[%s2 + $0x8c8] sm:$0xff]
  %v317 = vld [vmem:[%s2 + $0x8d0] sm:$0xff]
  %v318 = vld [vmem:[%s2 + $0x8d8] sm:$0xff]
  %v319 = vld [vmem:[%s2 + $0x8e0] sm:$0xff]
  %v320 = vld [vmem:[%s2 + $0x8e8] sm:$0xff]
  %v321 = vld [vmem:[%s2 + $0x8f0] sm:$0xff]
  %v322 = vld [vmem:[%s2 + $0x8f8] sm:$0xff]
  %v323 = vld [vmem:[%s2 + $0x900] sm:$0xff]
  %v324 = vld [vmem:[%s2 + $0x908] sm:$0xff]
  %v325 = vld [vmem:[%s2 + $0x910] sm:$0xff]
  %v326 = vld [vmem:[%s2 + $0x918] sm:$0xff]
  %v327 = vld [vmem:[%s2 + $0x920] sm:$0xff]
  %v328 = vld [vmem:[%s2 + $0x928] sm:$0xff]
  %v329 = vld [vmem:[%s2 + $0x930] sm:$0xff]
  %v330 = vld [vmem:[%s2 + $0x938] sm:$0xff]
  %v331 = vld [vmem:[%s2 + $0x940] sm:$0xff]
  %v332 = vld [vmem:[%s2 + $0x948] sm:$0xff]
  %v333 = vld [vmem:[%s2 + $0x950] sm:$0xff]
  %v334 = vld [vmem:[%s2 + $0x958] sm:$0xff]
  %v335 = vld [vmem:[%s2 + $0x960] sm:$0xff]
  %v336 = vld [vmem:[%s2 + $0x968] sm:$0xff]
  %v337 = vld [vmem:[%s2 + $0x970] sm:$0xff]
  %v338 = vld [vmem:[%s2 + $0x978] sm:$0xff]
  %v339 = vld [vmem:[%s2 + $0x980] sm:$0xff]
  %v340 = vld [vmem:[%s2 + $0x988] sm:$0xff]
  %v341 = vld [vmem:[%s2 + $0x990] sm:$0xff]
  %v342 = vld [vmem:[%s2 + $0x998] sm:$0xff]
  %v343 = vld [vmem:[%s2 + $0x9a0] sm:$0xff]
  %v344 = vld [vmem:[%s2 + $0x9a8] sm:$0xff]
  %v345 = vld [vmem:[%s2 + $0x9b0] sm:$0xff]
  %v346 = vld [vmem:[%s2 + $0x9b8] sm:$0xff]
  %v347 = vld [vmem:[%s2 + $0x9c0] sm:$0xff]
  %v348 = vld [vmem:[%s2 + $0x9c8] sm:$0xff]
  %v349 = vld [vmem:[%s2 + $0x9d0] sm:$0xff]
  %v350 = vld [vmem:[%s2 + $0x9d8] sm:$0xff]
  %v351 = vld [vmem:[%s2 + $0x9e0] sm:$0xff]
  %v352 = vld [vmem:[%s2 + $0x9e8] sm:$0xff]
  %v353 = vld [vmem:[%s2 + $0x9f0] sm:$0xff]
  %v354 = vld [vmem:[%s2 + $0x9f8] sm:$0xff]
  %v355 = vld [vmem:[%s2 + $0xa00] sm:$0xff]
  %v356 = vld [vmem:[%s2 + $0xa08] sm:$0xff]
  %v357 = vld [vmem:[%s2 + $0xa10] sm:$0xff]
  %v358 = vld [vmem:[%s2 + $0xa18] sm:$0xff]
  %v359 = vld [vmem:[%s2 + $0xa20] sm:$0xff]
  %v360 = vld [vmem:[%s2 + $0xa28] sm:$0xff]
  %v361 = vld [vmem:[%s2 + $0xa30] sm:$0xff]
  %v362 = vld [vmem:[%s2 + $0xa38] sm:$0xff]
  %v363 = vld [vmem:[%s2 + $0xa40] sm:$0xff]
  %v364 = vld [vmem:[%s2 + $0xa48] sm:$0xff]
  %v365 = vld [vmem:[%s2 + $0xa50] sm:$0xff]
  %v366 = vld [vmem:[%s2 + $0xa58] sm:$0xff]
  %v367 = vld [vmem:[%s2 + $0xa60] sm:$0xff]
  %v368 = vld [vmem:[%s2 + $0xa68] sm:$0xff]
  %v369 = vld [vmem:[%s2 + $0xa70] sm:$0xff]
  %v370 = vld [vmem:[%s2 + $0xa78] sm:$0xff]
  %v371 = vld [vmem:[%s2 + $0xa80] sm:$0xff]
  %v372 = vld [vmem:[%s2 + $0xa88] sm:$0xff]
  %v373 = vld [vmem:[%s2 + $0xa90] sm:$0xff]
  %v374 = vld [vmem:[%s2 + $0xa98] sm:$0xff]
  %v375 = vld [vmem:[%s2 + $0xaa0] sm:$0xff]
  %v376 = vld [vmem:[%s2 + $0xaa8] sm:$0xff]
  %v377 = vld [vmem:[%s2 + $0xab0] sm:$0xff]
  %v378 = vld [vmem:[%s2 + $0xab8] sm:$0xff]
  %v379 = vld [vmem:[%s2 + $0xac0] sm:$0xff]
  %v380 = vld [vmem:[%s2 + $0xac8] sm:$0xff]
  %v381 = vld [vmem:[%s2 + $0xad0] sm:$0xff]
  %v382 = vld [vmem:[%s2 + $0xad8] sm:$0xff]
  %v383 = vld [vmem:[%s2 + $0xae0] sm:$0xff]
  %v384 = vld [vmem:[%s2 + $0xae8] sm:$0xff]
  %v385 = vld [vmem:[%s2 + $0xaf0] sm:$0xff]
  %v386 = vld [vmem:[%s2 + $0xaf8] sm:$0xff]
  %v387 = vld [vmem:[%s2 + $0xb00] sm:$0xff]
  %v388 = vld [vmem:[%s2 + $0xb08] sm:$0xff]
  %v389 = vld [vmem:[%s2 + $0xb10] sm:$0xff]
  %v390 = vld [vmem:[%s2 + $0xb18] sm:$0xff]
  %v391 = vld [vmem:[%s2 + $0xb20] sm:$0xff]
  %v392 = vld [vmem:[%s2 + $0xb28] sm:$0xff]
  %v393 = vld [vmem:[%s2 + $0xb30] sm:$0xff]
  %v394 = vld [vmem:[%s2 + $0xb38] sm:$0xff]
  %v395 = vld [vmem:[%s2 + $0xb40] sm:$0xff]
  %v396 = vld [vmem:[%s2 + $0xb48] sm:$0xff]
  %v397 = vld [vmem:[%s2 + $0xb50] sm:$0xff]
  %v398 = vld [vmem:[%s2 + $0xb58] sm:$0xff]
  %v399 = vld [vmem:[%s2 + $0xb60] sm:$0xff]
  %v400 = vld [vmem:[%s2 + $0xb68] sm:$0xff]
  %v401 = vld [vmem:[%s2 + $0xb70] sm:$0xff]
  %v402 = vld [vmem:[%s2 + $0xb78] sm:$0xff]
  %v403 = vld [vmem:[%s2 + $0xb80] sm:$0xff]
  %v404 = vld [vmem:[%s2 + $0xb88] sm:$0xff]
  %v405 = vld [vmem:[%s2 + $0xb90] sm:$0xff]
  %v406 = vld [vmem:[%s2 + $0xb98] sm:$0xff]
  %v407 = vld [vmem:[%s2 + $0xba0] sm:$0xff]
  %v408 = vld [vmem:[%s2 + $0xba8] sm:$0xff]
  %v409 = vld [vmem:[%s2 + $0xbb0] sm:$0xff]
  %v410 = vld [vmem:[%s2 + $0xbb8] sm:$0xff]
  %v411 = vld [vmem:[%s2 + $0xbc0] sm:$0xff]
  %v412 = vld [vmem:[%s2 + $0xbc8] sm:$0xff]
  %v413 = vld [vmem:[%s2 + $0xbd0] sm:$0xff]
  %v414 = vld [vmem:[%s2 + $0xbd8] sm:$0xff]
  %v415 = vld [vmem:[%s2 + $0xbe0] sm:$0xff]
  %v416 = vld [vmem:[%s2 + $0xbe8] sm:$0xff]
  %v417 = vld [vmem:[%s2 + $0xbf0] sm:$0xff]
  %v418 = vld [vmem:[%s2 + $0xbf8] sm:$0xff]
  %v419 = vld [vmem:[%s2 + $0xc00] sm:$0xff]
  %v420 = vld [vmem:[%s2 + $0xc08] sm:$0xff]
  %v421 = vld [vmem:[%s2 + $0xc10] sm:$0xff]
  %v422 = vld [vmem:[%s2 + $0xc18] sm:$0xff]
  %v423 = vld [vmem:[%s2 + $0xc20] sm:$0xff]
  %v424 = vld [vmem:[%s2 + $0xc28] sm:$0xff]
  %v425 = vld [vmem:[%s2 + $0xc30] sm:$0xff]
  %v426 = vld [vmem:[%s2 + $0xc38] sm:$0xff]
  %v427 = vld [vmem:[%s3] sm:$0xf]
  %v429 = vlaneseq
  %v430 = vshrl.u32 %v429, 7
  %v431 = vsub.s32 0, %v430
  %v432 = vrot.slane %v427, %v431
  %v433 = vlaneseq
  %v434 = vshrl.u32 %v433, 7
  %v435 = vsub.s32 1, %v434
  %v436 = vrot.slane %v427, %v435
  %v437 = vlaneseq
  %v438 = vshrl.u32 %v437, 7
  %v439 = vsub.s32 2, %v438
  %v440 = vrot.slane %v427, %v439
  %v441 = vlaneseq
  %v442 = vshrl.u32 %v441, 7
  %v443 = vsub.s32 3, %v442
  %v444 = vrot.slane %v427, %v443
  %v451 = vcombine.high %v33, %v33
  %v453 = vunpack.c.l.s4 1966171168
  %v454 = vunpack.c.0.s8 %v453
  %v455 = vlaneseq
  %v456 = vshrl.u32 %v455, 7
  %v457 = vsub.s32 %v454, %v456
  %v458 = vrot.slane %v33, %v457
  %v460 = vunpack.c.l.s4 1966171168
  %v461 = vunpack.c.0.s8 %v460
  %v462 = vlaneseq
  %v463 = vshrl.u32 %v462, 7
  %v464 = vsub.s32 %v461, %v463
  %v465 = vrot.slane %v451, %v464
  %v466 = vcombine.high %v458, %v458
  %v467 = vcombine.high %v465, %v465
  %v469 = vunpack.c.l.s4 1966171168
  %v470 = vunpack.c.0.s8 %v469
  %v471 = vlaneseq
  %v472 = vshrl.u32 %v471, 7
  %v473 = vsub.s32 %v470, %v472
  %v474 = vrot.slane %v458, %v473
  %v476 = vunpack.c.l.s4 1966171168
  %v477 = vunpack.c.0.s8 %v476
  %v478 = vlaneseq
  %v479 = vshrl.u32 %v478, 7
  %v480 = vsub.s32 %v477, %v479
  %v481 = vrot.slane %v465, %v480
  %v483 = vunpack.c.l.s4 1966171168
  %v484 = vunpack.c.0.s8 %v483
  %v485 = vlaneseq
  %v486 = vshrl.u32 %v485, 7
  %v487 = vsub.s32 %v484, %v486
  %v488 = vrot.slane %v466, %v487
  %v490 = vunpack.c.l.s4 1966171168
  %v491 = vunpack.c.0.s8 %v490
  %v492 = vlaneseq
  %v493 = vshrl.u32 %v492, 7
  %v494 = vsub.s32 %v491, %v493
  %v495 = vrot.slane %v467, %v494
  %v496 = vcombine.high %v474, %v474
  %v497 = vcombine.high %v481, %v481
  %v498 = vcombine.high %v488, %v488
  %v499 = vcombine.high %v495, %v495
  %v500 = vcombine.high %v34, %v34
  %v502 = vunpack.c.l.s4 1966171168
  %v503 = vunpack.c.0.s8 %v502
  %v504 = vlaneseq
  %v505 = vshrl.u32 %v504, 7
  %v506 = vsub.s32 %v503, %v505
  %v507 = vrot.slane %v34, %v506
  %v509 = vunpack.c.l.s4 1966171168
  %v510 = vunpack.c.0.s8 %v509
  %v511 = vlaneseq
  %v512 = vshrl.u32 %v511, 7
  %v513 = vsub.s32 %v510, %v512
  %v514 = vrot.slane %v500, %v513
  %v515 = vcombine.high %v507, %v507
  %v517 = vunpack.c.l.s4 1966171168
  %v518 = vunpack.c.0.s8 %v517
  %v519 = vlaneseq
  %v520 = vshrl.u32 %v519, 7
  %v521 = vsub.s32 %v518, %v520
  %v522 = vrot.slane %v507, %v521
  %v524 = vunpack.c.l.s4 1966171168
  %v525 = vunpack.c.0.s8 %v524
  %v526 = vlaneseq
  %v527 = vshrl.u32 %v526, 7
  %v528 = vsub.s32 %v525, %v527
  %v529 = vrot.slane %v514, %v528
  %v531 = vunpack.c.l.s4 1966171168
  %v532 = vunpack.c.0.s8 %v531
  %v533 = vlaneseq
  %v534 = vshrl.u32 %v533, 7
  %v535 = vsub.s32 %v532, %v534
  %v536 = vrot.slane %v515, %v535
  %v537 = vcombine.high %v522, %v522
  %v538 = vcombine.high %v536, %v536
  %v943 = vunpack.c.l.b16 %v35
  %v944 = vunpack.c.h.b16 %v35
  %v945 = vunpack.c.l.b16 %v36
  %v946 = vunpack.c.h.b16 %v36
  %v947 = vunpack.c.l.b16 %v37
  %v948 = vunpack.c.h.b16 %v37
  %v949 = vunpack.c.l.b16 %v38
  %v950 = vunpack.c.h.b16 %v38
  %v951 = vunpack.c.l.b16 %v39
  %v952 = vunpack.c.h.b16 %v39
  %v953 = vunpack.c.l.b16 %v40
  %v954 = vunpack.c.h.b16 %v40
  %v955 = vunpack.c.l.b16 %v41
  %v956 = vunpack.c.h.b16 %v41
  %v957 = vunpack.c.l.b16 %v42
  %v958 = vunpack.c.h.b16 %v42
  %v959 = vunpack.c.l.b16 %v43
  %v960 = vunpack.c.h.b16 %v43
  %v961 = vunpack.c.l.b16 %v44
  %v962 = vunpack.c.h.b16 %v44
  %v963 = vunpack.c.l.b16 %v45
  %v964 = vunpack.c.h.b16 %v45
  %v965 = vunpack.c.l.b16 %v46
  %v966 = vunpack.c.h.b16 %v46
  %v967 = vunpack.c.l.b16 %v47
  %v968 = vunpack.c.h.b16 %v47
  %v969 = vunpack.c.l.b16 %v48
  %v970 = vunpack.c.h.b16 %v48
  %v971 = vunpack.c.l.b16 %v49
  %v972 = vunpack.c.h.b16 %v49
  %v973 = vunpack.c.l.b16 %v50
  %v974 = vunpack.c.h.b16 %v50
  %v975 = vunpack.c.l.b16 %v51
  %v976 = vunpack.c.h.b16 %v51
  %v977 = vunpack.c.l.b16 %v52
  %v978 = vunpack.c.h.b16 %v52
  %v979 = vunpack.c.l.b16 %v53
  %v980 = vunpack.c.h.b16 %v53
  %v981 = vunpack.c.l.b16 %v54
  %v982 = vunpack.c.h.b16 %v54
  %v983 = vunpack.c.l.b16 %v55
  %v984 = vunpack.c.h.b16 %v55
  %v985 = vunpack.c.l.b16 %v56
  %v986 = vunpack.c.h.b16 %v56
  %v987 = vunpack.c.l.b16 %v57
  %v988 = vunpack.c.h.b16 %v57
  %v989 = vunpack.c.l.b16 %v58
  %v990 = vunpack.c.h.b16 %v58
  %v991 = vunpack.c.l.b16 %v59
  %v992 = vunpack.c.h.b16 %v59
  %v993 = vunpack.c.l.b16 %v60
  %v994 = vunpack.c.h.b16 %v60
  %v995 = vunpack.c.l.b16 %v61
  %v996 = vunpack.c.h.b16 %v61
  %v997 = vunpack.c.l.b16 %v62
  %v998 = vunpack.c.h.b16 %v62
  %v999 = vunpack.c.l.b16 %v63
  %v1000 = vunpack.c.h.b16 %v63
  %v1001 = vunpack.c.l.b16 %v64
  %v1002 = vunpack.c.h.b16 %v64
  %v1003 = vunpack.c.l.b16 %v65
  %v1004 = vunpack.c.h.b16 %v65
  %v1005 = vunpack.c.l.b16 %v66
  %v1006 = vunpack.c.h.b16 %v66
  %v1007 = vunpack.c.l.b16 %v67
  %v1008 = vunpack.c.h.b16 %v67
  %v1009 = vunpack.c.l.b16 %v68
  %v1010 = vunpack.c.h.b16 %v68
  %v1011 = vunpack.c.l.b16 %v69
  %v1012 = vunpack.c.h.b16 %v69
  %v1013 = vunpack.c.l.b16 %v70
  %v1014 = vunpack.c.h.b16 %v70
  %v1015 = vunpack.c.l.b16 %v71
  %v1016 = vunpack.c.h.b16 %v71
  %v1017 = vunpack.c.l.b16 %v72
  %v1018 = vunpack.c.h.b16 %v72
  %v1019 = vunpack.c.l.b16 %v73
  %v1020 = vunpack.c.h.b16 %v73
  %v1021 = vunpack.c.l.b16 %v74
  %v1022 = vunpack.c.h.b16 %v74
  %v1023 = vunpack.c.l.b16 %v75
  %v1024 = vunpack.c.h.b16 %v75
  %v1025 = vunpack.c.l.b16 %v76
  %v1026 = vunpack.c.h.b16 %v76
  %v1027 = vunpack.c.l.b16 %v77
  %v1028 = vunpack.c.h.b16 %v77
  %v1029 = vunpack.c.l.b16 %v78
  %v1030 = vunpack.c.h.b16 %v78
  %v1031 = vunpack.c.l.b16 %v79
  %v1032 = vunpack.c.h.b16 %v79
  %v1033 = vunpack.c.l.b16 %v80
  %v1034 = vunpack.c.h.b16 %v80
  %v1035 = vunpack.c.l.b16 %v81
  %v1036 = vunpack.c.h.b16 %v81
  %v1037 = vunpack.c.l.b16 %v82
  %v1038 = vunpack.c.h.b16 %v82
  %v1039 = vunpack.c.l.b16 %v83
  %v1040 = vunpack.c.h.b16 %v83
  %v1041 = vunpack.c.l.b16 %v84
  %v1042 = vunpack.c.h.b16 %v84
  %v1043 = vunpack.c.l.b16 %v85
  %v1044 = vunpack.c.h.b16 %v85
  %v1045 = vunpack.c.l.b16 %v86
  %v1046 = vunpack.c.h.b16 %v86
  %v1047 = vunpack.c.l.b16 %v87
  %v1048 = vunpack.c.h.b16 %v87
  %v1049 = vunpack.c.l.b16 %v88
  %v1050 = vunpack.c.h.b16 %v88
  %v1051 = vunpack.c.l.b16 %v89
  %v1052 = vunpack.c.h.b16 %v89
  %v1053 = vunpack.c.l.b16 %v90
  %v1054 = vunpack.c.h.b16 %v90
  %v1055 = vunpack.c.l.b16 %v91
  %v1056 = vunpack.c.h.b16 %v91
  %v1057 = vunpack.c.l.b16 %v92
  %v1058 = vunpack.c.h.b16 %v92
  %v1059 = vunpack.c.l.b16 %v93
  %v1060 = vunpack.c.h.b16 %v93
  %v1061 = vunpack.c.l.b16 %v94
  %v1062 = vunpack.c.h.b16 %v94
  %v1063 = vunpack.c.l.b16 %v95
  %v1064 = vunpack.c.h.b16 %v95
  %v1065 = vunpack.c.l.b16 %v96
  %v1066 = vunpack.c.h.b16 %v96
  %v1067 = vunpack.c.l.b16 %v97
  %v1068 = vunpack.c.h.b16 %v97
  %v1069 = vunpack.c.l.b16 %v98
  %v1070 = vunpack.c.h.b16 %v98
  %v1071 = vunpack.c.l.b16 %v99
  %v1072 = vunpack.c.h.b16 %v99
  %v1073 = vunpack.c.l.b16 %v100
  %v1074 = vunpack.c.h.b16 %v100
  %v1075 = vunpack.c.l.b16 %v101
  %v1076 = vunpack.c.h.b16 %v101
  %v1077 = vunpack.c.l.b16 %v102
  %v1078 = vunpack.c.h.b16 %v102
  %v1079 = vunpack.c.l.b16 %v103
  %v1080 = vunpack.c.h.b16 %v103
  %v1081 = vunpack.c.l.b16 %v104
  %v1082 = vunpack.c.h.b16 %v104
  %v1083 = vunpack.c.l.b16 %v105
  %v1084 = vunpack.c.h.b16 %v105
  %v1085 = vunpack.c.l.b16 %v106
  %v1086 = vunpack.c.h.b16 %v106
  %v1087 = vunpack.c.l.b16 %v107
  %v1088 = vunpack.c.h.b16 %v107
  %v1089 = vunpack.c.l.b16 %v108
  %v1090 = vunpack.c.h.b16 %v108
  %v1091 = vunpack.c.l.b16 %v109
  %v1092 = vunpack.c.h.b16 %v109
  %v1093 = vunpack.c.l.b16 %v110
  %v1094 = vunpack.c.h.b16 %v110
  %v1095 = vunpack.c.l.b16 %v111
  %v1096 = vunpack.c.h.b16 %v111
  %v1097 = vunpack.c.l.b16 %v112
  %v1098 = vunpack.c.h.b16 %v112
  %v1099 = vunpack.c.l.b16 %v113
  %v1100 = vunpack.c.h.b16 %v113
  %v1101 = vunpack.c.l.b16 %v114
  %v1102 = vunpack.c.h.b16 %v114
  %v1103 = vunpack.c.l.b16 %v115
  %v1104 = vunpack.c.h.b16 %v115
  %v1105 = vunpack.c.l.b16 %v116
  %v1106 = vunpack.c.h.b16 %v116
  %v1107 = vunpack.c.l.b16 %v117
  %v1108 = vunpack.c.h.b16 %v117
  %v1109 = vunpack.c.l.b16 %v118
  %v1110 = vunpack.c.h.b16 %v118
  %v1111 = vunpack.c.l.b16 %v119
  %v1112 = vunpack.c.h.b16 %v119
  %v1113 = vunpack.c.l.b16 %v120
  %v1114 = vunpack.c.h.b16 %v120
  %v1115 = vunpack.c.l.b16 %v121
  %v1116 = vunpack.c.h.b16 %v121
  %v1117 = vunpack.c.l.b16 %v122
  %v1118 = vunpack.c.h.b16 %v122
  %v1119 = vunpack.c.l.b16 %v123
  %v1120 = vunpack.c.h.b16 %v123
  %v1121 = vunpack.c.l.b16 %v124
  %v1122 = vunpack.c.h.b16 %v124
  %v1123 = vunpack.c.l.b16 %v125
  %v1124 = vunpack.c.h.b16 %v125
  %v1125 = vunpack.c.l.b16 %v126
  %v1126 = vunpack.c.h.b16 %v126
  %v1127 = vunpack.c.l.b16 %v127
  %v1128 = vunpack.c.h.b16 %v127
  %v1129 = vunpack.c.l.b16 %v128
  %v1130 = vunpack.c.h.b16 %v128
  %v1131 = vunpack.c.l.b16 %v129
  %v1132 = vunpack.c.h.b16 %v129
  %v1133 = vunpack.c.l.b16 %v130
  %v1134 = vunpack.c.h.b16 %v130
  %v1135 = vunpack.c.l.b16 %v131
  %v1136 = vunpack.c.h.b16 %v131
  %v1137 = vunpack.c.l.b16 %v132
  %v1138 = vunpack.c.h.b16 %v132
  %v1139 = vunpack.c.l.b16 %v133
  %v1140 = vunpack.c.h.b16 %v133
  %v1141 = vunpack.c.l.b16 %v134
  %v1142 = vunpack.c.h.b16 %v134
  %v1143 = vunpack.c.l.b16 %v135
  %v1144 = vunpack.c.h.b16 %v135
  %v1145 = vunpack.c.l.b16 %v136
  %v1146 = vunpack.c.h.b16 %v136
  %v1147 = vunpack.c.l.b16 %v137
  %v1148 = vunpack.c.h.b16 %v137
  %v1149 = vunpack.c.l.b16 %v138
  %v1150 = vunpack.c.h.b16 %v138
  %v1151 = vunpack.c.l.b16 %v139
  %v1152 = vunpack.c.h.b16 %v139
  %v1153 = vunpack.c.l.b16 %v140
  %v1154 = vunpack.c.h.b16 %v140
  %v1155 = vunpack.c.l.b16 %v141
  %v1156 = vunpack.c.h.b16 %v141
  %v1157 = vunpack.c.l.b16 %v142
  %v1158 = vunpack.c.h.b16 %v142
  %v1159 = vunpack.c.l.b16 %v143
  %v1160 = vunpack.c.h.b16 %v143
  %v1161 = vunpack.c.l.b16 %v144
  %v1162 = vunpack.c.h.b16 %v144
  %v1163 = vunpack.c.l.b16 %v145
  %v1164 = vunpack.c.h.b16 %v145
  %v1165 = vunpack.c.l.b16 %v146
  %v1166 = vunpack.c.h.b16 %v146
  %v1167 = vunpack.c.l.b16 %v147
  %v1168 = vunpack.c.h.b16 %v147
  %v1169 = vunpack.c.l.b16 %v148
  %v1170 = vunpack.c.h.b16 %v148
  %v1171 = vunpack.c.l.b16 %v149
  %v1172 = vunpack.c.h.b16 %v149
  %v1173 = vunpack.c.l.b16 %v150
  %v1174 = vunpack.c.h.b16 %v150
  %v1175 = vunpack.c.l.b16 %v151
  %v1176 = vunpack.c.h.b16 %v151
  %v1177 = vunpack.c.l.b16 %v152
  %v1178 = vunpack.c.h.b16 %v152
  %v1179 = vunpack.c.l.b16 %v153
  %v1180 = vunpack.c.h.b16 %v153
  %v1181 = vunpack.c.l.b16 %v154
  %v1182 = vunpack.c.h.b16 %v154
  %v1183 = vunpack.c.l.b16 %v155
  %v1184 = vunpack.c.h.b16 %v155
  %v1185 = vunpack.c.l.b16 %v156
  %v1186 = vunpack.c.h.b16 %v156
  %v1187 = vunpack.c.l.b16 %v157
  %v1188 = vunpack.c.h.b16 %v157
  %v1189 = vunpack.c.l.b16 %v158
  %v1190 = vunpack.c.h.b16 %v158
  %v1191 = vunpack.c.l.b16 %v159
  %v1192 = vunpack.c.h.b16 %v159
  %v1193 = vunpack.c.l.b16 %v160
  %v1194 = vunpack.c.h.b16 %v160
  %v1195 = vunpack.c.l.b16 %v161
  %v1196 = vunpack.c.h.b16 %v161
  %v1197 = vunpack.c.l.b16 %v162
  %v1198 = vunpack.c.h.b16 %v162
  %v1199 = vunpack.c.l.b16 %v163
  %v1200 = vunpack.c.h.b16 %v163
  %v1201 = vunpack.c.l.b16 %v164
  %v1202 = vunpack.c.h.b16 %v164
  %v1203 = vunpack.c.l.b16 %v165
  %v1204 = vunpack.c.h.b16 %v165
  %v1205 = vunpack.c.l.b16 %v166
  %v1206 = vunpack.c.h.b16 %v166
  %v1207 = vunpack.c.l.b16 %v167
  %v1208 = vunpack.c.h.b16 %v167
  %v1209 = vunpack.c.l.b16 %v168
  %v1210 = vunpack.c.h.b16 %v168
  %v1211 = vunpack.c.l.b16 %v169
  %v1212 = vunpack.c.h.b16 %v169
  %v1213 = vunpack.c.l.b16 %v170
  %v1214 = vunpack.c.h.b16 %v170
  %v1215 = vunpack.c.l.b16 %v171
  %v1216 = vunpack.c.h.b16 %v171
  %v1217 = vunpack.c.l.b16 %v172
  %v1218 = vunpack.c.h.b16 %v172
  %v1219 = vunpack.c.l.b16 %v173
  %v1220 = vunpack.c.h.b16 %v173
  %v1221 = vunpack.c.l.b16 %v174
  %v1222 = vunpack.c.h.b16 %v174
  %v1223 = vunpack.c.l.b16 %v175
  %v1224 = vunpack.c.h.b16 %v175
  %v1225 = vunpack.c.l.b16 %v176
  %v1226 = vunpack.c.h.b16 %v176
  %v1227 = vunpack.c.l.b16 %v177
  %v1228 = vunpack.c.h.b16 %v177
  %v1229 = vunpack.c.l.b16 %v178
  %v1230 = vunpack.c.h.b16 %v178
  %v1231 = vunpack.c.l.b16 %v179
  %v1232 = vunpack.c.h.b16 %v179
  %v1233 = vunpack.c.l.b16 %v180
  %v1234 = vunpack.c.h.b16 %v180
  %v1235 = vunpack.c.l.b16 %v181
  %v1236 = vunpack.c.h.b16 %v181
  %v1237 = vunpack.c.l.b16 %v182
  %v1238 = vunpack.c.h.b16 %v182
  %v1239 = vunpack.c.l.b16 %v183
  %v1240 = vunpack.c.h.b16 %v183
  %v1241 = vunpack.c.l.b16 %v184
  %v1242 = vunpack.c.h.b16 %v184
  %v1243 = vunpack.c.l.b16 %v185
  %v1244 = vunpack.c.h.b16 %v185
  %v1245 = vunpack.c.l.b16 %v186
  %v1246 = vunpack.c.h.b16 %v186
  %v1247 = vunpack.c.l.b16 %v187
  %v1248 = vunpack.c.h.b16 %v187
  %v1249 = vunpack.c.l.b16 %v188
  %v1250 = vunpack.c.h.b16 %v188
  %v1251 = vunpack.c.l.b16 %v189
  %v1252 = vunpack.c.h.b16 %v189
  %v1253 = vunpack.c.l.b16 %v190
  %v1254 = vunpack.c.h.b16 %v190
  %v1255 = vunpack.c.l.b16 %v191
  %v1256 = vunpack.c.h.b16 %v191
  %v1257 = vunpack.c.l.b16 %v192
  %v1258 = vunpack.c.h.b16 %v192
  %v1259 = vunpack.c.l.b16 %v193
  %v1260 = vunpack.c.h.b16 %v193
  %v1261 = vunpack.c.l.b16 %v194
  %v1262 = vunpack.c.h.b16 %v194
  %v1263 = vunpack.c.l.b16 %v195
  %v1264 = vunpack.c.h.b16 %v195
  %v1265 = vunpack.c.l.b16 %v196
  %v1266 = vunpack.c.h.b16 %v196
  %v1267 = vunpack.c.l.b16 %v197
  %v1268 = vunpack.c.h.b16 %v197
  %v1269 = vunpack.c.l.b16 %v198
  %v1270 = vunpack.c.h.b16 %v198
  %v1271 = vunpack.c.l.b16 %v199
  %v1272 = vunpack.c.h.b16 %v199
  %v1273 = vunpack.c.l.b16 %v200
  %v1274 = vunpack.c.h.b16 %v200
  %v1275 = vunpack.c.l.b16 %v201
  %v1276 = vunpack.c.h.b16 %v201
  %v1277 = vunpack.c.l.b16 %v202
  %v1278 = vunpack.c.h.b16 %v202
  %v1279 = vunpack.c.l.b16 %v203
  %v1280 = vunpack.c.h.b16 %v203
  %v1281 = vunpack.c.l.b16 %v204
  %v1282 = vunpack.c.h.b16 %v204
  %v1283 = vunpack.c.l.b16 %v205
  %v1284 = vunpack.c.h.b16 %v205
  %v1285 = vunpack.c.l.b16 %v206
  %v1286 = vunpack.c.h.b16 %v206
  %v1287 = vunpack.c.l.b16 %v207
  %v1288 = vunpack.c.h.b16 %v207
  %v1289 = vunpack.c.l.b16 %v208
  %v1290 = vunpack.c.h.b16 %v208
  %v1291 = vunpack.c.l.b16 %v209
  %v1292 = vunpack.c.h.b16 %v209
  %v1293 = vunpack.c.l.b16 %v210
  %v1294 = vunpack.c.h.b16 %v210
  %v1295 = vunpack.c.l.b16 %v211
  %v1296 = vunpack.c.h.b16 %v211
  %v1297 = vunpack.c.l.b16 %v212
  %v1298 = vunpack.c.h.b16 %v212
  %v1299 = vunpack.c.l.b16 %v213
  %v1300 = vunpack.c.h.b16 %v213
  %v1301 = vunpack.c.l.b16 %v214
  %v1302 = vunpack.c.h.b16 %v214
  %v1303 = vunpack.c.l.b16 %v215
  %v1304 = vunpack.c.h.b16 %v215
  %v1305 = vunpack.c.l.b16 %v216
  %v1306 = vunpack.c.h.b16 %v216
  %v1307 = vunpack.c.l.b16 %v217
  %v1308 = vunpack.c.h.b16 %v217
  %v1309 = vunpack.c.l.b16 %v218
  %v1310 = vunpack.c.h.b16 %v218
  %v1311 = vunpack.c.l.b16 %v219
  %v1312 = vunpack.c.h.b16 %v219
  %v1313 = vunpack.c.l.b16 %v220
  %v1314 = vunpack.c.h.b16 %v220
  %v1315 = vunpack.c.l.b16 %v221
  %v1316 = vunpack.c.h.b16 %v221
  %v1317 = vunpack.c.l.b16 %v222
  %v1318 = vunpack.c.h.b16 %v222
  %v1319 = vunpack.c.l.b16 %v223
  %v1320 = vunpack.c.h.b16 %v223
  %v1321 = vunpack.c.l.b16 %v224
  %v1322 = vunpack.c.h.b16 %v224
  %v1323 = vunpack.c.l.b16 %v225
  %v1324 = vunpack.c.h.b16 %v225
  %v1325 = vunpack.c.l.b16 %v226
  %v1326 = vunpack.c.h.b16 %v226
  %v1327 = vunpack.c.l.b16 %v227
  %v1328 = vunpack.c.h.b16 %v227
  %v1329 = vunpack.c.l.b16 %v228
  %v1330 = vunpack.c.h.b16 %v228
  %v1331 = vunpack.c.l.b16 %v229
  %v1332 = vunpack.c.h.b16 %v229
  %v1333 = vunpack.c.l.b16 %v230
  %v1334 = vunpack.c.h.b16 %v230
  %v1335 = vunpack.c.l.b16 %v231
  %v1336 = vunpack.c.h.b16 %v231
  %v1337 = vunpack.c.l.b16 %v232
  %v1338 = vunpack.c.h.b16 %v232
  %v1339 = vunpack.c.l.b16 %v233
  %v1340 = vunpack.c.h.b16 %v233
  %v1341 = vunpack.c.l.b16 %v234
  %v1342 = vunpack.c.h.b16 %v234
  %v1343 = vunpack.c.l.b16 %v235
  %v1344 = vunpack.c.h.b16 %v235
  %v1345 = vunpack.c.l.b16 %v236
  %v1346 = vunpack.c.h.b16 %v236
  %v1347 = vunpack.c.l.b16 %v237
  %v1348 = vunpack.c.h.b16 %v237
  %v1349 = vunpack.c.l.b16 %v238
  %v1350 = vunpack.c.h.b16 %v238
  %v1351 = vunpack.c.l.b16 %v239
  %v1352 = vunpack.c.h.b16 %v239
  %v1353 = vunpack.c.l.b16 %v240
  %v1354 = vunpack.c.h.b16 %v240
  %v1355 = vunpack.c.l.b16 %v241
  %v1356 = vunpack.c.h.b16 %v241
  %v1357 = vunpack.c.l.b16 %v242
  %v1358 = vunpack.c.h.b16 %v242
  %v1359 = vunpack.c.l.b16 %v243
  %v1360 = vunpack.c.h.b16 %v243
  %v1361 = vunpack.c.l.b16 %v244
  %v1362 = vunpack.c.h.b16 %v244
  %v1363 = vunpack.c.l.b16 %v245
  %v1364 = vunpack.c.h.b16 %v245
  %v1365 = vunpack.c.l.b16 %v246
  %v1366 = vunpack.c.h.b16 %v246
  %v1367 = vunpack.c.l.b16 %v247
  %v1368 = vunpack.c.h.b16 %v247
  %v1369 = vunpack.c.l.b16 %v248
  %v1370 = vunpack.c.h.b16 %v248
  %v1371 = vunpack.c.l.b16 %v249
  %v1372 = vunpack.c.h.b16 %v249
  %v1373 = vunpack.c.l.b16 %v250
  %v1374 = vunpack.c.h.b16 %v250
  %v1375 = vunpack.c.l.b16 %v251
  %v1376 = vunpack.c.h.b16 %v251
  %v1377 = vunpack.c.l.b16 %v252
  %v1378 = vunpack.c.h.b16 %v252
  %v1379 = vunpack.c.l.b16 %v253
  %v1380 = vunpack.c.h.b16 %v253
  %v1381 = vunpack.c.l.b16 %v254
  %v1382 = vunpack.c.h.b16 %v254
  %v1383 = vunpack.c.l.b16 %v255
  %v1384 = vunpack.c.h.b16 %v255
  %v1385 = vunpack.c.l.b16 %v256
  %v1386 = vunpack.c.h.b16 %v256
  %v1387 = vunpack.c.l.b16 %v257
  %v1388 = vunpack.c.h.b16 %v257
  %v1389 = vunpack.c.l.b16 %v258
  %v1390 = vunpack.c.h.b16 %v258
  %v1391 = vunpack.c.l.b16 %v259
  %v1392 = vunpack.c.h.b16 %v259
  %v1393 = vunpack.c.l.b16 %v260
  %v1394 = vunpack.c.h.b16 %v260
  %v1395 = vunpack.c.l.b16 %v261
  %v1396 = vunpack.c.h.b16 %v261
  %v1397 = vunpack.c.l.b16 %v262
  %v1398 = vunpack.c.h.b16 %v262
  %v1399 = vunpack.c.l.b16 %v263
  %v1400 = vunpack.c.h.b16 %v263
  %v1401 = vunpack.c.l.b16 %v264
  %v1402 = vunpack.c.h.b16 %v264
  %v1403 = vunpack.c.l.b16 %v265
  %v1404 = vunpack.c.h.b16 %v265
  %v1405 = vunpack.c.l.b16 %v266
  %v1406 = vunpack.c.h.b16 %v266
  %v1407 = vunpack.c.l.b16 %v267
  %v1408 = vunpack.c.h.b16 %v267
  %v1409 = vunpack.c.l.b16 %v268
  %v1410 = vunpack.c.h.b16 %v268
  %v1411 = vunpack.c.l.b16 %v269
  %v1412 = vunpack.c.h.b16 %v269
  %v1413 = vunpack.c.l.b16 %v270
  %v1414 = vunpack.c.h.b16 %v270
  %v1415 = vunpack.c.l.b16 %v271
  %v1416 = vunpack.c.h.b16 %v271
  %v1417 = vunpack.c.l.b16 %v272
  %v1418 = vunpack.c.h.b16 %v272
  %v1419 = vunpack.c.l.b16 %v273
  %v1420 = vunpack.c.h.b16 %v273
  %v1421 = vunpack.c.l.b16 %v274
  %v1422 = vunpack.c.h.b16 %v274
  %v1423 = vunpack.c.l.b16 %v275
  %v1424 = vunpack.c.h.b16 %v275
  %v1425 = vunpack.c.l.b16 %v276
  %v1426 = vunpack.c.h.b16 %v276
  %v1427 = vunpack.c.l.b16 %v277
  %v1428 = vunpack.c.h.b16 %v277
  %v1429 = vunpack.c.l.b16 %v278
  %v1430 = vunpack.c.h.b16 %v278
  %v1431 = vunpack.c.l.b16 %v279
  %v1432 = vunpack.c.h.b16 %v279
  %v1433 = vunpack.c.l.b16 %v280
  %v1434 = vunpack.c.h.b16 %v280
  %v1435 = vunpack.c.l.b16 %v281
  %v1436 = vunpack.c.h.b16 %v281
  %v1437 = vunpack.c.l.b16 %v282
  %v1438 = vunpack.c.h.b16 %v282
  %v1439 = vunpack.c.l.b16 %v283
  %v1440 = vunpack.c.h.b16 %v283
  %v1441 = vunpack.c.l.b16 %v284
  %v1442 = vunpack.c.h.b16 %v284
  %v1443 = vunpack.c.l.b16 %v285
  %v1444 = vunpack.c.h.b16 %v285
  %v1445 = vunpack.c.l.b16 %v286
  %v1446 = vunpack.c.h.b16 %v286
  %v1447 = vunpack.c.l.b16 %v287
  %v1448 = vunpack.c.h.b16 %v287
  %v1449 = vunpack.c.l.b16 %v288
  %v1450 = vunpack.c.h.b16 %v288
  %v1451 = vunpack.c.l.b16 %v289
  %v1452 = vunpack.c.h.b16 %v289
  %v1453 = vunpack.c.l.b16 %v290
  %v1454 = vunpack.c.h.b16 %v290
  %v1455 = vunpack.c.l.b16 %v291
  %v1456 = vunpack.c.h.b16 %v291
  %v1457 = vunpack.c.l.b16 %v292
  %v1458 = vunpack.c.h.b16 %v292
  %v1459 = vunpack.c.l.b16 %v293
  %v1460 = vunpack.c.h.b16 %v293
  %v1461 = vunpack.c.l.b16 %v294
  %v1462 = vunpack.c.h.b16 %v294
  %v1463 = vunpack.c.l.b16 %v295
  %v1464 = vunpack.c.h.b16 %v295
  %v1465 = vunpack.c.l.b16 %v296
  %v1466 = vunpack.c.h.b16 %v296
  %v1467 = vunpack.c.l.b16 %v297
  %v1468 = vunpack.c.h.b16 %v297
  %v1469 = vunpack.c.l.b16 %v298
  %v1470 = vunpack.c.h.b16 %v298
  %v1471 = vunpack.c.l.b16 %v299
  %v1472 = vunpack.c.h.b16 %v299
  %v1473 = vunpack.c.l.b16 %v300
  %v1474 = vunpack.c.h.b16 %v300
  %v1475 = vunpack.c.l.b16 %v301
  %v1476 = vunpack.c.h.b16 %v301
  %v1477 = vunpack.c.l.b16 %v302
  %v1478 = vunpack.c.h.b16 %v302
  %v1479 = vunpack.c.l.b16 %v303
  %v1480 = vunpack.c.h.b16 %v303
  %v1481 = vunpack.c.l.b16 %v304
  %v1482 = vunpack.c.h.b16 %v304
  %v1483 = vunpack.c.l.b16 %v305
  %v1484 = vunpack.c.h.b16 %v305
  %v1485 = vunpack.c.l.b16 %v306
  %v1486 = vunpack.c.h.b16 %v306
  %v1487 = vunpack.c.l.b16 %v307
  %v1488 = vunpack.c.h.b16 %v307
  %v1489 = vunpack.c.l.b16 %v308
  %v1490 = vunpack.c.h.b16 %v308
  %v1491 = vunpack.c.l.b16 %v309
  %v1492 = vunpack.c.h.b16 %v309
  %v1493 = vunpack.c.l.b16 %v310
  %v1494 = vunpack.c.h.b16 %v310
  %v1495 = vunpack.c.l.b16 %v311
  %v1496 = vunpack.c.h.b16 %v311
  %v1497 = vunpack.c.l.b16 %v312
  %v1498 = vunpack.c.h.b16 %v312
  %v1499 = vunpack.c.l.b16 %v313
  %v1500 = vunpack.c.h.b16 %v313
  %v1501 = vunpack.c.l.b16 %v314
  %v1502 = vunpack.c.h.b16 %v314
  %v1503 = vunpack.c.l.b16 %v315
  %v1504 = vunpack.c.h.b16 %v315
  %v1505 = vunpack.c.l.b16 %v316
  %v1506 = vunpack.c.h.b16 %v316
  %v1507 = vunpack.c.l.b16 %v317
  %v1508 = vunpack.c.h.b16 %v317
  %v1509 = vunpack.c.l.b16 %v318
  %v1510 = vunpack.c.h.b16 %v318
  %v1511 = vunpack.c.l.b16 %v319
  %v1512 = vunpack.c.h.b16 %v319
  %v1513 = vunpack.c.l.b16 %v320
  %v1514 = vunpack.c.h.b16 %v320
  %v1515 = vunpack.c.l.b16 %v321
  %v1516 = vunpack.c.h.b16 %v321
  %v1517 = vunpack.c.l.b16 %v322
  %v1518 = vunpack.c.h.b16 %v322
  %v1519 = vunpack.c.l.b16 %v323
  %v1520 = vunpack.c.h.b16 %v323
  %v1521 = vunpack.c.l.b16 %v324
  %v1522 = vunpack.c.h.b16 %v324
  %v1523 = vunpack.c.l.b16 %v325
  %v1524 = vunpack.c.h.b16 %v325
  %v1525 = vunpack.c.l.b16 %v326
  %v1526 = vunpack.c.h.b16 %v326
  %v1527 = vunpack.c.l.b16 %v327
  %v1528 = vunpack.c.h.b16 %v327
  %v1529 = vunpack.c.l.b16 %v328
  %v1530 = vunpack.c.h.b16 %v328
  %v1531 = vunpack.c.l.b16 %v329
  %v1532 = vunpack.c.h.b16 %v329
  %v1533 = vunpack.c.l.b16 %v330
  %v1534 = vunpack.c.h.b16 %v330
  %v1535 = vunpack.c.l.b16 %v331
  %v1536 = vunpack.c.h.b16 %v331
  %v1537 = vunpack.c.l.b16 %v332
  %v1538 = vunpack.c.h.b16 %v332
  %v1539 = vunpack.c.l.b16 %v333
  %v1540 = vunpack.c.h.b16 %v333
  %v1541 = vunpack.c.l.b16 %v334
  %v1542 = vunpack.c.h.b16 %v334
  %v1543 = vunpack.c.l.b16 %v335
  %v1544 = vunpack.c.h.b16 %v335
  %v1545 = vunpack.c.l.b16 %v336
  %v1546 = vunpack.c.h.b16 %v336
  %v1547 = vunpack.c.l.b16 %v337
  %v1548 = vunpack.c.h.b16 %v337
  %v1549 = vunpack.c.l.b16 %v338
  %v1550 = vunpack.c.h.b16 %v338
  %v1551 = vunpack.c.l.b16 %v339
  %v1552 = vunpack.c.h.b16 %v339
  %v1553 = vunpack.c.l.b16 %v340
  %v1554 = vunpack.c.h.b16 %v340
  %v1555 = vunpack.c.l.b16 %v341
  %v1556 = vunpack.c.h.b16 %v341
  %v1557 = vunpack.c.l.b16 %v342
  %v1558 = vunpack.c.h.b16 %v342
  %v1559 = vunpack.c.l.b16 %v343
  %v1560 = vunpack.c.h.b16 %v343
  %v1561 = vunpack.c.l.b16 %v344
  %v1562 = vunpack.c.h.b16 %v344
  %v1563 = vunpack.c.l.b16 %v345
  %v1564 = vunpack.c.h.b16 %v345
  %v1565 = vunpack.c.l.b16 %v346
  %v1566 = vunpack.c.h.b16 %v346
  %v1567 = vunpack.c.l.b16 %v347
  %v1568 = vunpack.c.h.b16 %v347
  %v1569 = vunpack.c.l.b16 %v348
  %v1570 = vunpack.c.h.b16 %v348
  %v1571 = vunpack.c.l.b16 %v349
  %v1572 = vunpack.c.h.b16 %v349
  %v1573 = vunpack.c.l.b16 %v350
  %v1574 = vunpack.c.h.b16 %v350
  %v1575 = vunpack.c.l.b16 %v351
  %v1576 = vunpack.c.h.b16 %v351
  %v1577 = vunpack.c.l.b16 %v352
  %v1578 = vunpack.c.h.b16 %v352
  %v1579 = vunpack.c.l.b16 %v353
  %v1580 = vunpack.c.h.b16 %v353
  %v1581 = vunpack.c.l.b16 %v354
  %v1582 = vunpack.c.h.b16 %v354
  %v1583 = vunpack.c.l.b16 %v355
  %v1584 = vunpack.c.h.b16 %v355
  %v1585 = vunpack.c.l.b16 %v356
  %v1586 = vunpack.c.h.b16 %v356
  %v1587 = vunpack.c.l.b16 %v357
  %v1588 = vunpack.c.h.b16 %v357
  %v1589 = vunpack.c.l.b16 %v358
  %v1590 = vunpack.c.h.b16 %v358
  %v1591 = vunpack.c.l.b16 %v359
  %v1592 = vunpack.c.h.b16 %v359
  %v1593 = vunpack.c.l.b16 %v360
  %v1594 = vunpack.c.h.b16 %v360
  %v1595 = vunpack.c.l.b16 %v361
  %v1596 = vunpack.c.h.b16 %v361
  %v1597 = vunpack.c.l.b16 %v362
  %v1598 = vunpack.c.h.b16 %v362
  %v1599 = vunpack.c.l.b16 %v363
  %v1600 = vunpack.c.h.b16 %v363
  %v1601 = vunpack.c.l.b16 %v364
  %v1602 = vunpack.c.h.b16 %v364
  %v1603 = vunpack.c.l.b16 %v365
  %v1604 = vunpack.c.h.b16 %v365
  %v1605 = vunpack.c.l.b16 %v366
  %v1606 = vunpack.c.h.b16 %v366
  %v1607 = vunpack.c.l.b16 %v367
  %v1608 = vunpack.c.h.b16 %v367
  %v1609 = vunpack.c.l.b16 %v368
  %v1610 = vunpack.c.h.b16 %v368
  %v1611 = vunpack.c.l.b16 %v369
  %v1612 = vunpack.c.h.b16 %v369
  %v1613 = vunpack.c.l.b16 %v370
  %v1614 = vunpack.c.h.b16 %v370
  %v1615 = vunpack.c.l.b16 %v371
  %v1616 = vunpack.c.h.b16 %v371
  %v1617 = vunpack.c.l.b16 %v372
  %v1618 = vunpack.c.h.b16 %v372
  %v1619 = vunpack.c.l.b16 %v373
  %v1620 = vunpack.c.h.b16 %v373
  %v1621 = vunpack.c.l.b16 %v374
  %v1622 = vunpack.c.h.b16 %v374
  %v1623 = vunpack.c.l.b16 %v375
  %v1624 = vunpack.c.h.b16 %v375
  %v1625 = vunpack.c.l.b16 %v376
  %v1626 = vunpack.c.h.b16 %v376
  %v1627 = vunpack.c.l.b16 %v377
  %v1628 = vunpack.c.h.b16 %v377
  %v1629 = vunpack.c.l.b16 %v378
  %v1630 = vunpack.c.h.b16 %v378
  %v1631 = vunpack.c.l.b16 %v379
  %v1632 = vunpack.c.h.b16 %v379
  %v1633 = vunpack.c.l.b16 %v380
  %v1634 = vunpack.c.h.b16 %v380
  %v1635 = vunpack.c.l.b16 %v381
  %v1636 = vunpack.c.h.b16 %v381
  %v1637 = vunpack.c.l.b16 %v382
  %v1638 = vunpack.c.h.b16 %v382
  %v1639 = vunpack.c.l.b16 %v383
  %v1640 = vunpack.c.h.b16 %v383
  %v1641 = vunpack.c.l.b16 %v384
  %v1642 = vunpack.c.h.b16 %v384
  %v1643 = vunpack.c.l.b16 %v385
  %v1644 = vunpack.c.h.b16 %v385
  %v1645 = vunpack.c.l.b16 %v386
  %v1646 = vunpack.c.h.b16 %v386
  %v1647 = vunpack.c.l.b16 %v387
  %v1648 = vunpack.c.h.b16 %v387
  %v1649 = vunpack.c.l.b16 %v388
  %v1650 = vunpack.c.h.b16 %v388
  %v1651 = vunpack.c.l.b16 %v389
  %v1652 = vunpack.c.h.b16 %v389
  %v1653 = vunpack.c.l.b16 %v390
  %v1654 = vunpack.c.h.b16 %v390
  %v1655 = vunpack.c.l.b16 %v391
  %v1656 = vunpack.c.h.b16 %v391
  %v1657 = vunpack.c.l.b16 %v392
  %v1658 = vunpack.c.h.b16 %v392
  %v1659 = vunpack.c.l.b16 %v393
  %v1660 = vunpack.c.h.b16 %v393
  %v1661 = vunpack.c.l.b16 %v394
  %v1662 = vunpack.c.h.b16 %v394
  %v1663 = vunpack.c.l.b16 %v395
  %v1664 = vunpack.c.h.b16 %v395
  %v1665 = vunpack.c.l.b16 %v396
  %v1666 = vunpack.c.h.b16 %v396
  %v1667 = vunpack.c.l.b16 %v397
  %v1668 = vunpack.c.h.b16 %v397
  %v1669 = vunpack.c.l.b16 %v398
  %v1670 = vunpack.c.h.b16 %v398
  %v1671 = vunpack.c.l.b16 %v399
  %v1672 = vunpack.c.h.b16 %v399
  %v1673 = vunpack.c.l.b16 %v400
  %v1674 = vunpack.c.h.b16 %v400
  %v1675 = vunpack.c.l.b16 %v401
  %v1676 = vunpack.c.h.b16 %v401
  %v1677 = vunpack.c.l.b16 %v402
  %v1678 = vunpack.c.h.b16 %v402
  %v1679 = vunpack.c.l.b16 %v403
  %v1680 = vunpack.c.h.b16 %v403
  %v1681 = vunpack.c.l.b16 %v404
  %v1682 = vunpack.c.h.b16 %v404
  %v1683 = vunpack.c.l.b16 %v405
  %v1684 = vunpack.c.h.b16 %v405
  %v1685 = vunpack.c.l.b16 %v406
  %v1686 = vunpack.c.h.b16 %v406
  %v1687 = vunpack.c.l.b16 %v407
  %v1688 = vunpack.c.h.b16 %v407
  %v1689 = vunpack.c.l.b16 %v408
  %v1690 = vunpack.c.h.b16 %v408
  %v1691 = vunpack.c.l.b16 %v409
  %v1692 = vunpack.c.h.b16 %v409
  %v1693 = vunpack.c.l.b16 %v410
  %v1694 = vunpack.c.h.b16 %v410
  %v1695 = vunpack.c.l.b16 %v411
  %v1696 = vunpack.c.h.b16 %v411
  %v1697 = vunpack.c.l.b16 %v412
  %v1698 = vunpack.c.h.b16 %v412
  %v1699 = vunpack.c.l.b16 %v413
  %v1700 = vunpack.c.h.b16 %v413
  %v1701 = vunpack.c.l.b16 %v414
  %v1702 = vunpack.c.h.b16 %v414
  %v1703 = vunpack.c.l.b16 %v415
  %v1704 = vunpack.c.h.b16 %v415
  %v1705 = vunpack.c.l.b16 %v416
  %v1706 = vunpack.c.h.b16 %v416
  %v1707 = vunpack.c.l.b16 %v417
  %v1708 = vunpack.c.h.b16 %v417
  %v1709 = vunpack.c.l.b16 %v418
  %v1710 = vunpack.c.h.b16 %v418
  %v1711 = vunpack.c.l.b16 %v419
  %v1712 = vunpack.c.h.b16 %v419
  %v1713 = vunpack.c.l.b16 %v420
  %v1714 = vunpack.c.h.b16 %v420
  %v1715 = vunpack.c.l.b16 %v421
  %v1716 = vunpack.c.h.b16 %v421
  %v1717 = vunpack.c.l.b16 %v422
  %v1718 = vunpack.c.h.b16 %v422
  %v1719 = vunpack.c.l.b16 %v423
  %v1720 = vunpack.c.h.b16 %v423
  %v1721 = vunpack.c.l.b16 %v424
  %v1722 = vunpack.c.h.b16 %v424
  %v1723 = vunpack.c.l.b16 %v425
  %v1724 = vunpack.c.h.b16 %v425
  %v1725 = vunpack.c.l.b16 %v426
  %v1726 = vunpack.c.h.b16 %v426
  %v1727 = vpack.c.b16 %v947, %v943
  %v1728 = vpack.c.b16 %v948, %v944
  %v1729 = vpack.c.b16 %v949, %v945
  %v1730 = vpack.c.b16 %v950, %v946
  %v1731 = vpack.c.b16 %v955, %v951
  %v1732 = vpack.c.b16 %v956, %v952
  %v1733 = vpack.c.b16 %v957, %v953
  %v1734 = vpack.c.b16 %v958, %v954
  %v1735 = vpack.c.b16 %v963, %v959
  %v1736 = vpack.c.b16 %v964, %v960
  %v1737 = vpack.c.b16 %v965, %v961
  %v1738 = vpack.c.b16 %v966, %v962
  %v1739 = vpack.c.b16 %v971, %v967
  %v1740 = vpack.c.b16 %v972, %v968
  %v1741 = vpack.c.b16 %v973, %v969
  %v1742 = vpack.c.b16 %v974, %v970
  %v1743 = vpack.c.b16 %v979, %v975
  %v1744 = vpack.c.b16 %v980, %v976
  %v1745 = vpack.c.b16 %v981, %v977
  %v1746 = vpack.c.b16 %v982, %v978
  %v1747 = vpack.c.b16 %v987, %v983
  %v1748 = vpack.c.b16 %v988, %v984
  %v1749 = vpack.c.b16 %v989, %v985
  %v1750 = vpack.c.b16 %v990, %v986
  %v1751 = vpack.c.b16 %v995, %v991
  %v1752 = vpack.c.b16 %v996, %v992
  %v1753 = vpack.c.b16 %v997, %v993
  %v1754 = vpack.c.b16 %v998, %v994
  %v1755 = vpack.c.b16 %v1003, %v999
  %v1756 = vpack.c.b16 %v1004, %v1000
  %v1757 = vpack.c.b16 %v1005, %v1001
  %v1758 = vpack.c.b16 %v1006, %v1002
  %v1759 = vpack.c.b16 %v1011, %v1007
  %v1760 = vpack.c.b16 %v1012, %v1008
  %v1761 = vpack.c.b16 %v1013, %v1009
  %v1762 = vpack.c.b16 %v1014, %v1010
  %v1763 = vpack.c.b16 %v1019, %v1015
  %v1764 = vpack.c.b16 %v1020, %v1016
  %v1765 = vpack.c.b16 %v1021, %v1017
  %v1766 = vpack.c.b16 %v1022, %v1018
  %v1767 = vpack.c.b16 %v1027, %v1023
  %v1768 = vpack.c.b16 %v1028, %v1024
  %v1769 = vpack.c.b16 %v1029, %v1025
  %v1770 = vpack.c.b16 %v1030, %v1026
  %v1771 = vpack.c.b16 %v1035, %v1031
  %v1772 = vpack.c.b16 %v1036, %v1032
  %v1773 = vpack.c.b16 %v1037, %v1033
  %v1774 = vpack.c.b16 %v1038, %v1034
  %v1775 = vpack.c.b16 %v1043, %v1039
  %v1776 = vpack.c.b16 %v1044, %v1040
  %v1777 = vpack.c.b16 %v1045, %v1041
  %v1778 = vpack.c.b16 %v1046, %v1042
  %v1779 = vpack.c.b16 %v1051, %v1047
  %v1780 = vpack.c.b16 %v1052, %v1048
  %v1781 = vpack.c.b16 %v1053, %v1049
  %v1782 = vpack.c.b16 %v1054, %v1050
  %v1783 = vpack.c.b16 %v1059, %v1055
  %v1784 = vpack.c.b16 %v1060, %v1056
  %v1785 = vpack.c.b16 %v1061, %v1057
  %v1786 = vpack.c.b16 %v1062, %v1058
  %v1787 = vpack.c.b16 %v1067, %v1063
  %v1788 = vpack.c.b16 %v1068, %v1064
  %v1789 = vpack.c.b16 %v1069, %v1065
  %v1790 = vpack.c.b16 %v1070, %v1066
  %v1791 = vpack.c.b16 %v1075, %v1071
  %v1792 = vpack.c.b16 %v1076, %v1072
  %v1793 = vpack.c.b16 %v1077, %v1073
  %v1794 = vpack.c.b16 %v1078, %v1074
  %v1795 = vpack.c.b16 %v1083, %v1079
  %v1796 = vpack.c.b16 %v1084, %v1080
  %v1797 = vpack.c.b16 %v1085, %v1081
  %v1798 = vpack.c.b16 %v1086, %v1082
  %v1799 = vpack.c.b16 %v1091, %v1087
  %v1800 = vpack.c.b16 %v1092, %v1088
  %v1801 = vpack.c.b16 %v1093, %v1089
  %v1802 = vpack.c.b16 %v1094, %v1090
  %v1803 = vpack.c.b16 %v1099, %v1095
  %v1804 = vpack.c.b16 %v1100, %v1096
  %v1805 = vpack.c.b16 %v1101, %v1097
  %v1806 = vpack.c.b16 %v1102, %v1098
  %v1807 = vpack.c.b16 %v1107, %v1103
  %v1808 = vpack.c.b16 %v1108, %v1104
  %v1809 = vpack.c.b16 %v1109, %v1105
  %v1810 = vpack.c.b16 %v1110, %v1106
  %v1811 = vpack.c.b16 %v1115, %v1111
  %v1812 = vpack.c.b16 %v1116, %v1112
  %v1813 = vpack.c.b16 %v1117, %v1113
  %v1814 = vpack.c.b16 %v1118, %v1114
  %v1815 = vpack.c.b16 %v1123, %v1119
  %v1816 = vpack.c.b16 %v1124, %v1120
  %v1817 = vpack.c.b16 %v1125, %v1121
  %v1818 = vpack.c.b16 %v1126, %v1122
  %v1819 = vpack.c.b16 %v1131, %v1127
  %v1820 = vpack.c.b16 %v1132, %v1128
  %v1821 = vpack.c.b16 %v1133, %v1129
  %v1822 = vpack.c.b16 %v1134, %v1130
  %v1823 = vpack.c.b16 %v1139, %v1135
  %v1824 = vpack.c.b16 %v1140, %v1136
  %v1825 = vpack.c.b16 %v1141, %v1137
  %v1826 = vpack.c.b16 %v1142, %v1138
  %v1827 = vpack.c.b16 %v1147, %v1143
  %v1828 = vpack.c.b16 %v1148, %v1144
  %v1829 = vpack.c.b16 %v1149, %v1145
  %v1830 = vpack.c.b16 %v1150, %v1146
  %v1831 = vpack.c.b16 %v1155, %v1151
  %v1832 = vpack.c.b16 %v1156, %v1152
  %v1833 = vpack.c.b16 %v1157, %v1153
  %v1834 = vpack.c.b16 %v1158, %v1154
  %v1835 = vpack.c.b16 %v1163, %v1159
  %v1836 = vpack.c.b16 %v1164, %v1160
  %v1837 = vpack.c.b16 %v1165, %v1161
  %v1838 = vpack.c.b16 %v1166, %v1162
  %v1839 = vpack.c.b16 %v1171, %v1167
  %v1840 = vpack.c.b16 %v1172, %v1168
  %v1841 = vpack.c.b16 %v1173, %v1169
  %v1842 = vpack.c.b16 %v1174, %v1170
  %v1843 = vpack.c.b16 %v1179, %v1175
  %v1844 = vpack.c.b16 %v1180, %v1176
  %v1845 = vpack.c.b16 %v1181, %v1177
  %v1846 = vpack.c.b16 %v1182, %v1178
  %v1847 = vpack.c.b16 %v1187, %v1183
  %v1848 = vpack.c.b16 %v1188, %v1184
  %v1849 = vpack.c.b16 %v1189, %v1185
  %v1850 = vpack.c.b16 %v1190, %v1186
  %v1851 = vpack.c.b16 %v1195, %v1191
  %v1852 = vpack.c.b16 %v1196, %v1192
  %v1853 = vpack.c.b16 %v1197, %v1193
  %v1854 = vpack.c.b16 %v1198, %v1194
  %v1855 = vpack.c.b16 %v1203, %v1199
  %v1856 = vpack.c.b16 %v1204, %v1200
  %v1857 = vpack.c.b16 %v1205, %v1201
  %v1858 = vpack.c.b16 %v1206, %v1202
  %v1859 = vpack.c.b16 %v1211, %v1207
  %v1860 = vpack.c.b16 %v1212, %v1208
  %v1861 = vpack.c.b16 %v1213, %v1209
  %v1862 = vpack.c.b16 %v1214, %v1210
  %v1863 = vpack.c.b16 %v1219, %v1215
  %v1864 = vpack.c.b16 %v1220, %v1216
  %v1865 = vpack.c.b16 %v1221, %v1217
  %v1866 = vpack.c.b16 %v1222, %v1218
  %v1867 = vpack.c.b16 %v1227, %v1223
  %v1868 = vpack.c.b16 %v1228, %v1224
  %v1869 = vpack.c.b16 %v1229, %v1225
  %v1870 = vpack.c.b16 %v1230, %v1226
  %v1871 = vpack.c.b16 %v1235, %v1231
  %v1872 = vpack.c.b16 %v1236, %v1232
  %v1873 = vpack.c.b16 %v1237, %v1233
  %v1874 = vpack.c.b16 %v1238, %v1234
  %v1875 = vpack.c.b16 %v1243, %v1239
  %v1876 = vpack.c.b16 %v1244, %v1240
  %v1877 = vpack.c.b16 %v1245, %v1241
  %v1878 = vpack.c.b16 %v1246, %v1242
  %v1879 = vpack.c.b16 %v1251, %v1247
  %v1880 = vpack.c.b16 %v1252, %v1248
  %v1881 = vpack.c.b16 %v1253, %v1249
  %v1882 = vpack.c.b16 %v1254, %v1250
  %v1883 = vpack.c.b16 %v1259, %v1255
  %v1884 = vpack.c.b16 %v1260, %v1256
  %v1885 = vpack.c.b16 %v1261, %v1257
  %v1886 = vpack.c.b16 %v1262, %v1258
  %v1887 = vpack.c.b16 %v1267, %v1263
  %v1888 = vpack.c.b16 %v1268, %v1264
  %v1889 = vpack.c.b16 %v1269, %v1265
  %v1890 = vpack.c.b16 %v1270, %v1266
  %v1891 = vpack.c.b16 %v1275, %v1271
  %v1892 = vpack.c.b16 %v1276, %v1272
  %v1893 = vpack.c.b16 %v1277, %v1273
  %v1894 = vpack.c.b16 %v1278, %v1274
  %v1895 = vpack.c.b16 %v1283, %v1279
  %v1896 = vpack.c.b16 %v1284, %v1280
  %v1897 = vpack.c.b16 %v1285, %v1281
  %v1898 = vpack.c.b16 %v1286, %v1282
  %v1899 = vpack.c.b16 %v1291, %v1287
  %v1900 = vpack.c.b16 %v1292, %v1288
  %v1901 = vpack.c.b16 %v1293, %v1289
  %v1902 = vpack.c.b16 %v1294, %v1290
  %v1903 = vpack.c.b16 %v1299, %v1295
  %v1904 = vpack.c.b16 %v1300, %v1296
  %v1905 = vpack.c.b16 %v1301, %v1297
  %v1906 = vpack.c.b16 %v1302, %v1298
  %v1907 = vpack.c.b16 %v1307, %v1303
  %v1908 = vpack.c.b16 %v1308, %v1304
  %v1909 = vpack.c.b16 %v1309, %v1305
  %v1910 = vpack.c.b16 %v1310, %v1306
  %v1911 = vpack.c.b16 %v1315, %v1311
  %v1912 = vpack.c.b16 %v1316, %v1312
  %v1913 = vpack.c.b16 %v1317, %v1313
  %v1914 = vpack.c.b16 %v1318, %v1314
  %v1915 = vpack.c.b16 %v1323, %v1319
  %v1916 = vpack.c.b16 %v1324, %v1320
  %v1917 = vpack.c.b16 %v1325, %v1321
  %v1918 = vpack.c.b16 %v1326, %v1322
  %v1919 = vpack.c.b16 %v1331, %v1327
  %v1920 = vpack.c.b16 %v1332, %v1328
  %v1921 = vpack.c.b16 %v1333, %v1329
  %v1922 = vpack.c.b16 %v1334, %v1330
  %v1923 = vpack.c.b16 %v1339, %v1335
  %v1924 = vpack.c.b16 %v1340, %v1336
  %v1925 = vpack.c.b16 %v1341, %v1337
  %v1926 = vpack.c.b16 %v1342, %v1338
  %v1927 = vpack.c.b16 %v1347, %v1343
  %v1928 = vpack.c.b16 %v1348, %v1344
  %v1929 = vpack.c.b16 %v1349, %v1345
  %v1930 = vpack.c.b16 %v1350, %v1346
  %v1931 = vpack.c.b16 %v1355, %v1351
  %v1932 = vpack.c.b16 %v1356, %v1352
  %v1933 = vpack.c.b16 %v1357, %v1353
  %v1934 = vpack.c.b16 %v1358, %v1354
  %v1935 = vpack.c.b16 %v1363, %v1359
  %v1936 = vpack.c.b16 %v1364, %v1360
  %v1937 = vpack.c.b16 %v1365, %v1361
  %v1938 = vpack.c.b16 %v1366, %v1362
  %v1939 = vpack.c.b16 %v1371, %v1367
  %v1940 = vpack.c.b16 %v1372, %v1368
  %v1941 = vpack.c.b16 %v1373, %v1369
  %v1942 = vpack.c.b16 %v1374, %v1370
  %v1943 = vpack.c.b16 %v1379, %v1375
  %v1944 = vpack.c.b16 %v1380, %v1376
  %v1945 = vpack.c.b16 %v1381, %v1377
  %v1946 = vpack.c.b16 %v1382, %v1378
  %v1947 = vpack.c.b16 %v1387, %v1383
  %v1948 = vpack.c.b16 %v1388, %v1384
  %v1949 = vpack.c.b16 %v1389, %v1385
  %v1950 = vpack.c.b16 %v1390, %v1386
  %v1951 = vpack.c.b16 %v1395, %v1391
  %v1952 = vpack.c.b16 %v1396, %v1392
  %v1953 = vpack.c.b16 %v1397, %v1393
  %v1954 = vpack.c.b16 %v1398, %v1394
  %v1955 = vpack.c.b16 %v1403, %v1399
  %v1956 = vpack.c.b16 %v1404, %v1400
  %v1957 = vpack.c.b16 %v1405, %v1401
  %v1958 = vpack.c.b16 %v1406, %v1402
  %v1959 = vpack.c.b16 %v1411, %v1407
  %v1960 = vpack.c.b16 %v1412, %v1408
  %v1961 = vpack.c.b16 %v1413, %v1409
  %v1962 = vpack.c.b16 %v1414, %v1410
  %v1963 = vpack.c.b16 %v1419, %v1415
  %v1964 = vpack.c.b16 %v1420, %v1416
  %v1965 = vpack.c.b16 %v1421, %v1417
  %v1966 = vpack.c.b16 %v1422, %v1418
  %v1967 = vpack.c.b16 %v1427, %v1423
  %v1968 = vpack.c.b16 %v1428, %v1424
  %v1969 = vpack.c.b16 %v1429, %v1425
  %v1970 = vpack.c.b16 %v1430, %v1426
  %v1971 = vpack.c.b16 %v1435, %v1431
  %v1972 = vpack.c.b16 %v1436, %v1432
  %v1973 = vpack.c.b16 %v1437, %v1433
  %v1974 = vpack.c.b16 %v1438, %v1434
  %v1975 = vpack.c.b16 %v1443, %v1439
  %v1976 = vpack.c.b16 %v1444, %v1440
  %v1977 = vpack.c.b16 %v1445, %v1441
  %v1978 = vpack.c.b16 %v1446, %v1442
  %v1979 = vpack.c.b16 %v1451, %v1447
  %v1980 = vpack.c.b16 %v1452, %v1448
  %v1981 = vpack.c.b16 %v1453, %v1449
  %v1982 = vpack.c.b16 %v1454, %v1450
  %v1983 = vpack.c.b16 %v1459, %v1455
  %v1984 = vpack.c.b16 %v1460, %v1456
  %v1985 = vpack.c.b16 %v1461, %v1457
  %v1986 = vpack.c.b16 %v1462, %v1458
  %v1987 = vpack.c.b16 %v1467, %v1463
  %v1988 = vpack.c.b16 %v1468, %v1464
  %v1989 = vpack.c.b16 %v1469, %v1465
  %v1990 = vpack.c.b16 %v1470, %v1466
  %v1991 = vpack.c.b16 %v1475, %v1471
  %v1992 = vpack.c.b16 %v1476, %v1472
  %v1993 = vpack.c.b16 %v1477, %v1473
  %v1994 = vpack.c.b16 %v1478, %v1474
  %v1995 = vpack.c.b16 %v1483, %v1479
  %v1996 = vpack.c.b16 %v1484, %v1480
  %v1997 = vpack.c.b16 %v1485, %v1481
  %v1998 = vpack.c.b16 %v1486, %v1482
  %v1999 = vpack.c.b16 %v1491, %v1487
  %v2000 = vpack.c.b16 %v1492, %v1488
  %v2001 = vpack.c.b16 %v1493, %v1489
  %v2002 = vpack.c.b16 %v1494, %v1490
  %v2003 = vpack.c.b16 %v1499, %v1495
  %v2004 = vpack.c.b16 %v1500, %v1496
  %v2005 = vpack.c.b16 %v1501, %v1497
  %v2006 = vpack.c.b16 %v1502, %v1498
  %v2007 = vpack.c.b16 %v1507, %v1503
  %v2008 = vpack.c.b16 %v1508, %v1504
  %v2009 = vpack.c.b16 %v1509, %v1505
  %v2010 = vpack.c.b16 %v1510, %v1506
  %v2011 = vpack.c.b16 %v1515, %v1511
  %v2012 = vpack.c.b16 %v1516, %v1512
  %v2013 = vpack.c.b16 %v1517, %v1513
  %v2014 = vpack.c.b16 %v1518, %v1514
  %v2015 = vpack.c.b16 %v1523, %v1519
  %v2016 = vpack.c.b16 %v1524, %v1520
  %v2017 = vpack.c.b16 %v1525, %v1521
  %v2018 = vpack.c.b16 %v1526, %v1522
  %v2019 = vpack.c.b16 %v1531, %v1527
  %v2020 = vpack.c.b16 %v1532, %v1528
  %v2021 = vpack.c.b16 %v1533, %v1529
  %v2022 = vpack.c.b16 %v1534, %v1530
  %v2023 = vpack.c.b16 %v1539, %v1535
  %v2024 = vpack.c.b16 %v1540, %v1536
  %v2025 = vpack.c.b16 %v1541, %v1537
  %v2026 = vpack.c.b16 %v1542, %v1538
  %v2027 = vpack.c.b16 %v1547, %v1543
  %v2028 = vpack.c.b16 %v1548, %v1544
  %v2029 = vpack.c.b16 %v1549, %v1545
  %v2030 = vpack.c.b16 %v1550, %v1546
  %v2031 = vpack.c.b16 %v1555, %v1551
  %v2032 = vpack.c.b16 %v1556, %v1552
  %v2033 = vpack.c.b16 %v1557, %v1553
  %v2034 = vpack.c.b16 %v1558, %v1554
  %v2035 = vpack.c.b16 %v1563, %v1559
  %v2036 = vpack.c.b16 %v1564, %v1560
  %v2037 = vpack.c.b16 %v1565, %v1561
  %v2038 = vpack.c.b16 %v1566, %v1562
  %v2039 = vpack.c.b16 %v1571, %v1567
  %v2040 = vpack.c.b16 %v1572, %v1568
  %v2041 = vpack.c.b16 %v1573, %v1569
  %v2042 = vpack.c.b16 %v1574, %v1570
  %v2043 = vpack.c.b16 %v1579, %v1575
  %v2044 = vpack.c.b16 %v1580, %v1576
  %v2045 = vpack.c.b16 %v1581, %v1577
  %v2046 = vpack.c.b16 %v1582, %v1578
  %v2047 = vpack.c.b16 %v1587, %v1583
  %v2048 = vpack.c.b16 %v1588, %v1584
  %v2049 = vpack.c.b16 %v1589, %v1585
  %v2050 = vpack.c.b16 %v1590, %v1586
  %v2051 = vpack.c.b16 %v1595, %v1591
  %v2052 = vpack.c.b16 %v1596, %v1592
  %v2053 = vpack.c.b16 %v1597, %v1593
  %v2054 = vpack.c.b16 %v1598, %v1594
  %v2055 = vpack.c.b16 %v1603, %v1599
  %v2056 = vpack.c.b16 %v1604, %v1600
  %v2057 = vpack.c.b16 %v1605, %v1601
  %v2058 = vpack.c.b16 %v1606, %v1602
  %v2059 = vpack.c.b16 %v1611, %v1607
  %v2060 = vpack.c.b16 %v1612, %v1608
  %v2061 = vpack.c.b16 %v1613, %v1609
  %v2062 = vpack.c.b16 %v1614, %v1610
  %v2063 = vpack.c.b16 %v1619, %v1615
  %v2064 = vpack.c.b16 %v1620, %v1616
  %v2065 = vpack.c.b16 %v1621, %v1617
  %v2066 = vpack.c.b16 %v1622, %v1618
  %v2067 = vpack.c.b16 %v1627, %v1623
  %v2068 = vpack.c.b16 %v1628, %v1624
  %v2069 = vpack.c.b16 %v1629, %v1625
  %v2070 = vpack.c.b16 %v1630, %v1626
  %v2071 = vpack.c.b16 %v1635, %v1631
  %v2072 = vpack.c.b16 %v1636, %v1632
  %v2073 = vpack.c.b16 %v1637, %v1633
  %v2074 = vpack.c.b16 %v1638, %v1634
  %v2075 = vpack.c.b16 %v1643, %v1639
  %v2076 = vpack.c.b16 %v1644, %v1640
  %v2077 = vpack.c.b16 %v1645, %v1641
  %v2078 = vpack.c.b16 %v1646, %v1642
  %v2079 = vpack.c.b16 %v1651, %v1647
  %v2080 = vpack.c.b16 %v1652, %v1648
  %v2081 = vpack.c.b16 %v1653, %v1649
  %v2082 = vpack.c.b16 %v1654, %v1650
  %v2083 = vpack.c.b16 %v1659, %v1655
  %v2084 = vpack.c.b16 %v1660, %v1656
  %v2085 = vpack.c.b16 %v1661, %v1657
  %v2086 = vpack.c.b16 %v1662, %v1658
  %v2087 = vpack.c.b16 %v1667, %v1663
  %v2088 = vpack.c.b16 %v1668, %v1664
  %v2089 = vpack.c.b16 %v1669, %v1665
  %v2090 = vpack.c.b16 %v1670, %v1666
  %v2091 = vpack.c.b16 %v1675, %v1671
  %v2092 = vpack.c.b16 %v1676, %v1672
  %v2093 = vpack.c.b16 %v1677, %v1673
  %v2094 = vpack.c.b16 %v1678, %v1674
  %v2095 = vpack.c.b16 %v1683, %v1679
  %v2096 = vpack.c.b16 %v1684, %v1680
  %v2097 = vpack.c.b16 %v1685, %v1681
  %v2098 = vpack.c.b16 %v1686, %v1682
  %v2099 = vpack.c.b16 %v1691, %v1687
  %v2100 = vpack.c.b16 %v1692, %v1688
  %v2101 = vpack.c.b16 %v1693, %v1689
  %v2102 = vpack.c.b16 %v1694, %v1690
  %v2103 = vpack.c.b16 %v1699, %v1695
  %v2104 = vpack.c.b16 %v1700, %v1696
  %v2105 = vpack.c.b16 %v1701, %v1697
  %v2106 = vpack.c.b16 %v1702, %v1698
  %v2107 = vpack.c.b16 %v1707, %v1703
  %v2108 = vpack.c.b16 %v1708, %v1704
  %v2109 = vpack.c.b16 %v1709, %v1705
  %v2110 = vpack.c.b16 %v1710, %v1706
  %v2111 = vpack.c.b16 %v1715, %v1711
  %v2112 = vpack.c.b16 %v1716, %v1712
  %v2113 = vpack.c.b16 %v1717, %v1713
  %v2114 = vpack.c.b16 %v1718, %v1714
  %v2115 = vpack.c.b16 %v1723, %v1719
  %v2116 = vpack.c.b16 %v1724, %v1720
  %v2117 = vpack.c.b16 %v1725, %v1721
  %v2118 = vpack.c.b16 %v1726, %v1722
  %vm2511 = vcmask 261120
  %v2513 = vsel %vm2511, %v529, 0
  %2515 = vmatprep.subr.bf16.mxu0 %v1728
  %2516 = vmatpush1.bf16.msra.mxu0 %v1727
  %2517 = vmatprep.subr.bf16.mxu0 %v1732
  %2518 = vmatpush1.bf16.msra.mxu0 %v1731
  %2519 = vmatprep.subr.bf16.mxu0 %v1736
  %2520 = vmatpush1.bf16.msra.mxu0 %v1735
  %2521 = vmatprep.subr.bf16.mxu0 %v1740
  %2522 = vmatpush1.bf16.msra.mxu0 %v1739
  %2523 = vmatprep.subr.bf16.mxu0 %v1744
  %2524 = vmatpush1.bf16.msra.mxu0 %v1743
  %2525 = vmatprep.subr.bf16.mxu0 %v1748
  %2526 = vmatpush1.bf16.msra.mxu0 %v1747
  %2527 = vmatprep.subr.bf16.mxu0 %v1752
  %2528 = vmatpush1.bf16.msra.mxu0 %v1751
  %2529 = vmatprep.subr.bf16.mxu0 %v1756
  %2530 = vmatpush1.bf16.msra.mxu0 %v1755
  %2531 = vmatprep.subr.bf16.mxu0 %v1760
  %2532 = vmatpush1.bf16.msra.mxu0 %v1759
  %2533 = vmatprep.subr.bf16.mxu0 %v1764
  %2534 = vmatpush1.bf16.msra.mxu0 %v1763
  %2535 = vmatprep.subr.bf16.mxu0 %v1768
  %2536 = vmatpush1.bf16.msra.mxu0 %v1767
  %2537 = vmatprep.subr.bf16.mxu0 %v1772
  %2538 = vmatpush1.bf16.msra.mxu0 %v1771
  %2539 = vmatprep.subr.bf16.mxu0 %v1776
  %2540 = vmatpush1.bf16.msra.mxu0 %v1775
  %2541 = vmatprep.subr.bf16.mxu0 %v1780
  %2542 = vmatpush1.bf16.msra.mxu0 %v1779
  %2543 = vmatprep.subr.bf16.mxu0 %v1784
  %2544 = vmatpush1.bf16.msra.mxu0 %v1783
  %2545 = vmatprep.subr.bf16.mxu0 %v1788
  %2546 = vmatpush1.bf16.msra.mxu0 %v1787
  %2547 = vmatprep.mubr.bf16.mxu0 %v488
  %2548 = vmatmul.mubr.bf16.gmra.mrb[0].mxu0 %v474
  %v2549 = vpop.f32.mrb[0].mxu0
  %v2550 = vadd.f32 %v432, %v2549
  %v2551 = vpop.f32.mrb[0].mxu0
  %v2552 = vadd.f32 %v436, %v2551
  %v2553 = vpop.f32.mrb[0].mxu0
  %v2554 = vpop.f32.mrb[0].mxu0
  %2555 = vdwg.mxu0
  %2556 = vmatprep.subr.bf16.mxu0 %v1792
  %2557 = vmatpush1.bf16.msra.mxu0 %v1791
  %2558 = vmatprep.subr.bf16.mxu0 %v1796
  %2559 = vmatpush1.bf16.msra.mxu0 %v1795
  %2560 = vmatprep.subr.bf16.mxu0 %v1800
  %2561 = vmatpush1.bf16.msra.mxu0 %v1799
  %2562 = vmatprep.subr.bf16.mxu0 %v1804
  %2563 = vmatpush1.bf16.msra.mxu0 %v1803
  %2564 = vmatprep.subr.bf16.mxu0 %v1808
  %2565 = vmatpush1.bf16.msra.mxu0 %v1807
  %2566 = vmatprep.subr.bf16.mxu0 %v1812
  %2567 = vmatpush1.bf16.msra.mxu0 %v1811
  %2568 = vmatprep.subr.bf16.mxu0 %v1816
  %2569 = vmatpush1.bf16.msra.mxu0 %v1815
  %2570 = vmatprep.subr.bf16.mxu0 %v1820
  %2571 = vmatpush1.bf16.msra.mxu0 %v1819
  %2572 = vmatprep.subr.bf16.mxu0 %v1824
  %2573 = vmatpush1.bf16.msra.mxu0 %v1823
  %2574 = vmatprep.subr.bf16.mxu0 %v1828
  %2575 = vmatpush1.bf16.msra.mxu0 %v1827
  %2576 = vmatprep.subr.bf16.mxu0 %v1832
  %2577 = vmatpush1.bf16.msra.mxu0 %v1831
  %2578 = vmatprep.subr.bf16.mxu0 %v1836
  %2579 = vmatpush1.bf16.msra.mxu0 %v1835
  %2580 = vmatprep.subr.bf16.mxu0 %v1840
  %2581 = vmatpush1.bf16.msra.mxu0 %v1839
  %2582 = vmatprep.subr.bf16.mxu0 %v1844
  %2583 = vmatpush1.bf16.msra.mxu0 %v1843
  %2584 = vmatprep.subr.bf16.mxu0 %v1848
  %2585 = vmatpush1.bf16.msra.mxu0 %v1847
  %2586 = vmatprep.subr.bf16.mxu0 %v1852
  %2587 = vmatpush1.bf16.msra.mxu0 %v1851
  %2588 = vmatprep.mubr.bf16.mxu0 %v498
  %2589 = vmatmul.mubr.bf16.gmra.mrb[0].mxu0 %v496
  %v2590 = vpop.f32.mrb[0].mxu0
  %v2591 = vadd.f32 %v2550, %v2590
  %v2592 = vpop.f32.mrb[0].mxu0
  %v2593 = vadd.f32 %v2552, %v2592
  %v2594 = vpop.f32.mrb[0].mxu0
  %v2595 = vpop.f32.mrb[0].mxu0
  %2596 = vdwg.mxu0
  %2597 = vmatprep.subr.bf16.mxu0 %v1856
  %2598 = vmatpush1.bf16.msra.mxu0 %v1855
  %2599 = vmatprep.subr.bf16.mxu0 %v1860
  %2600 = vmatpush1.bf16.msra.mxu0 %v1859
  %2601 = vmatprep.subr.bf16.mxu0 %v1864
  %2602 = vmatpush1.bf16.msra.mxu0 %v1863
  %2603 = vmatprep.subr.bf16.mxu0 %v1868
  %2604 = vmatpush1.bf16.msra.mxu0 %v1867
  %2605 = vmatprep.subr.bf16.mxu0 %v1872
  %2606 = vmatpush1.bf16.msra.mxu0 %v1871
  %2607 = vmatprep.subr.bf16.mxu0 %v1876
  %2608 = vmatpush1.bf16.msra.mxu0 %v1875
  %2609 = vmatprep.subr.bf16.mxu0 %v1880
  %2610 = vmatpush1.bf16.msra.mxu0 %v1879
  %2611 = vmatprep.subr.bf16.mxu0 %v1884
  %2612 = vmatpush1.bf16.msra.mxu0 %v1883
  %2613 = vmatprep.subr.bf16.mxu0 %v1888
  %2614 = vmatpush1.bf16.msra.mxu0 %v1887
  %2615 = vmatprep.subr.bf16.mxu0 %v1892
  %2616 = vmatpush1.bf16.msra.mxu0 %v1891
  %2617 = vmatprep.subr.bf16.mxu0 %v1896
  %2618 = vmatpush1.bf16.msra.mxu0 %v1895
  %2619 = vmatprep.subr.bf16.mxu0 %v1900
  %2620 = vmatpush1.bf16.msra.mxu0 %v1899
  %2621 = vmatprep.subr.bf16.mxu0 %v1904
  %2622 = vmatpush1.bf16.msra.mxu0 %v1903
  %2623 = vmatprep.subr.bf16.mxu0 %v1908
  %2624 = vmatpush1.bf16.msra.mxu0 %v1907
  %2625 = vmatprep.subr.bf16.mxu0 %v1912
  %2626 = vmatpush1.bf16.msra.mxu0 %v1911
  %2627 = vmatprep.subr.bf16.mxu0 %v1916
  %2628 = vmatpush1.bf16.msra.mxu0 %v1915
  %2629 = vmatprep.mubr.bf16.mxu0 %v495
  %2630 = vmatmul.mubr.bf16.gmra.mrb[0].mxu0 %v481
  %v2631 = vpop.f32.mrb[0].mxu0
  %v2632 = vadd.f32 %v2591, %v2631
  %v2633 = vpop.f32.mrb[0].mxu0
  %v2634 = vadd.f32 %v2593, %v2633
  %v2635 = vpop.f32.mrb[0].mxu0
  %v2636 = vpop.f32.mrb[0].mxu0
  %2637 = vdwg.mxu0
  %2638 = vmatprep.subr.bf16.mxu0 %v1920
  %2639 = vmatpush1.bf16.msra.mxu0 %v1919
  %2640 = vmatprep.subr.bf16.mxu0 %v1924
  %2641 = vmatpush1.bf16.msra.mxu0 %v1923
  %2642 = vmatprep.subr.bf16.mxu0 %v1928
  %2643 = vmatpush1.bf16.msra.mxu0 %v1927
  %2644 = vmatprep.subr.bf16.mxu0 %v1932
  %2645 = vmatpush1.bf16.msra.mxu0 %v1931
  %2646 = vmatprep.subr.bf16.mxu0 %v1936
  %2647 = vmatpush1.bf16.msra.mxu0 %v1935
  %2648 = vmatprep.subr.bf16.mxu0 %v1940
  %2649 = vmatpush1.bf16.msra.mxu0 %v1939
  %2650 = vmatprep.subr.bf16.mxu0 %v1944
  %2651 = vmatpush1.bf16.msra.mxu0 %v1943
  %2652 = vmatprep.subr.bf16.mxu0 %v1948
  %2653 = vmatpush1.bf16.msra.mxu0 %v1947
  %2654 = vmatprep.subr.bf16.mxu0 %v1952
  %2655 = vmatpush1.bf16.msra.mxu0 %v1951
  %2656 = vmatprep.subr.bf16.mxu0 %v1956
  %2657 = vmatpush1.bf16.msra.mxu0 %v1955
  %2658 = vmatprep.subr.bf16.mxu0 %v1960
  %2659 = vmatpush1.bf16.msra.mxu0 %v1959
  %2660 = vmatprep.subr.bf16.mxu0 %v1964
  %2661 = vmatpush1.bf16.msra.mxu0 %v1963
  %2662 = vmatprep.subr.bf16.mxu0 %v1968
  %2663 = vmatpush1.bf16.msra.mxu0 %v1967
  %2664 = vmatprep.subr.bf16.mxu0 %v1972
  %2665 = vmatpush1.bf16.msra.mxu0 %v1971
  %2666 = vmatprep.subr.bf16.mxu0 %v1976
  %2667 = vmatpush1.bf16.msra.mxu0 %v1975
  %2668 = vmatprep.subr.bf16.mxu0 %v1980
  %2669 = vmatpush1.bf16.msra.mxu0 %v1979
  %2670 = vmatprep.mubr.bf16.mxu0 %v499
  %2671 = vmatmul.mubr.bf16.gmra.mrb[0].mxu0 %v497
  %v2672 = vpop.f32.mrb[0].mxu0
  %v2673 = vadd.f32 %v2632, %v2672
  %v2674 = vpop.f32.mrb[0].mxu0
  %v2675 = vadd.f32 %v2634, %v2674
  %v2676 = vpop.f32.mrb[0].mxu0
  %v2677 = vpop.f32.mrb[0].mxu0
  %2678 = vdwg.mxu0
  %2679 = vmatprep.subr.bf16.mxu0 %v1984
  %2680 = vmatpush1.bf16.msra.mxu0 %v1983
  %2681 = vmatprep.subr.bf16.mxu0 %v1988
  %2682 = vmatpush1.bf16.msra.mxu0 %v1987
  %2683 = vmatprep.subr.bf16.mxu0 %v1992
  %2684 = vmatpush1.bf16.msra.mxu0 %v1991
  %2685 = vmatprep.subr.bf16.mxu0 %v1996
  %2686 = vmatpush1.bf16.msra.mxu0 %v1995
  %2687 = vmatprep.subr.bf16.mxu0 %v2000
  %2688 = vmatpush1.bf16.msra.mxu0 %v1999
  %2689 = vmatprep.subr.bf16.mxu0 %v2004
  %2690 = vmatpush1.bf16.msra.mxu0 %v2003
  %2691 = vmatprep.subr.bf16.mxu0 %v2008
  %2692 = vmatpush1.bf16.msra.mxu0 %v2007
  %2693 = vmatprep.subr.bf16.mxu0 %v2012
  %2694 = vmatpush1.bf16.msra.mxu0 %v2011
  %2695 = vmatprep.subr.bf16.mxu0 %v2016
  %2696 = vmatpush1.bf16.msra.mxu0 %v2015
  %2697 = vmatprep.subr.bf16.mxu0 %v2020
  %2698 = vmatpush1.bf16.msra.mxu0 %v2019
  %2699 = vmatprep.subr.bf16.mxu0 %v2024
  %2700 = vmatpush1.bf16.msra.mxu0 %v2023
  %2701 = vmatprep.subr.bf16.mxu0 %v2028
  %2702 = vmatpush1.bf16.msra.mxu0 %v2027
  %2703 = vmatprep.subr.bf16.mxu0 %v2032
  %2704 = vmatpush1.bf16.msra.mxu0 %v2031
  %2705 = vmatprep.subr.bf16.mxu0 %v2036
  %2706 = vmatpush1.bf16.msra.mxu0 %v2035
  %2707 = vmatprep.subr.bf16.mxu0 %v2040
  %2708 = vmatpush1.bf16.msra.mxu0 %v2039
  %2709 = vmatprep.subr.bf16.mxu0 %v2044
  %2710 = vmatpush1.bf16.msra.mxu0 %v2043
  %2711 = vmatprep.mubr.bf16.mxu0 %v536
  %2712 = vmatmul.mubr.bf16.gmra.mrb[0].mxu0 %v522
  %v2713 = vpop.f32.mrb[0].mxu0
  %v2714 = vadd.f32 %v2673, %v2713
  %v2715 = vpop.f32.mrb[0].mxu0
  %v2716 = vadd.f32 %v2675, %v2715
  %v2717 = vpop.f32.mrb[0].mxu0
  %v2718 = vpop.f32.mrb[0].mxu0
  %2719 = vdwg.mxu0
  %2720 = vmatprep.subr.bf16.mxu0 %v2048
  %2721 = vmatpush1.bf16.msra.mxu0 %v2047
  %2722 = vmatprep.subr.bf16.mxu0 %v2052
  %2723 = vmatpush1.bf16.msra.mxu0 %v2051
  %2724 = vmatprep.subr.bf16.mxu0 %v2056
  %2725 = vmatpush1.bf16.msra.mxu0 %v2055
  %2726 = vmatprep.subr.bf16.mxu0 %v2060
  %2727 = vmatpush1.bf16.msra.mxu0 %v2059
  %2728 = vmatprep.subr.bf16.mxu0 %v2064
  %2729 = vmatpush1.bf16.msra.mxu0 %v2063
  %2730 = vmatprep.subr.bf16.mxu0 %v2068
  %2731 = vmatpush1.bf16.msra.mxu0 %v2067
  %2732 = vmatprep.subr.bf16.mxu0 %v2072
  %2733 = vmatpush1.bf16.msra.mxu0 %v2071
  %2734 = vmatprep.subr.bf16.mxu0 %v2076
  %2735 = vmatpush1.bf16.msra.mxu0 %v2075
  %2736 = vmatprep.subr.bf16.mxu0 %v2080
  %2737 = vmatpush1.bf16.msra.mxu0 %v2079
  %2738 = vmatprep.subr.bf16.mxu0 %v2084
  %2739 = vmatpush1.bf16.msra.mxu0 %v2083
  %2740 = vmatprep.subr.bf16.mxu0 %v2088
  %2741 = vmatpush1.bf16.msra.mxu0 %v2087
  %2742 = vmatprep.subr.bf16.mxu0 %v2092
  %2743 = vmatpush1.bf16.msra.mxu0 %v2091
  %2744 = vmatprep.subr.bf16.mxu0 %v2096
  %2745 = vmatpush1.bf16.msra.mxu0 %v2095
  %2746 = vmatprep.subr.bf16.mxu0 %v2100
  %2747 = vmatpush1.bf16.msra.mxu0 %v2099
  %2748 = vmatprep.subr.bf16.mxu0 %v2104
  %2749 = vmatpush1.bf16.msra.mxu0 %v2103
  %2750 = vmatprep.subr.bf16.mxu0 %v2108
  %2751 = vmatpush1.bf16.msra.mxu0 %v2107
  %2752 = vmatprep.mubr.bf16.mxu0 %v538
  %2753 = vmatmul.mubr.bf16.gmra.mrb[0].mxu0 %v537
  %v2754 = vpop.f32.mrb[0].mxu0
  %v2755 = vadd.f32 %v2714, %v2754
  %v2756 = vpop.f32.mrb[0].mxu0
  %v2757 = vadd.f32 %v2716, %v2756
  %v2758 = vpop.f32.mrb[0].mxu0
  %v2759 = vpop.f32.mrb[0].mxu0
  %2760 = vdwg.mxu0
  %2761 = vmatprep.subr.bf16.mxu0 %v2112
  %2762 = vmatpush1.bf16.msra.mxu0 %v2111
  %2763 = vmatprep.subr.bf16.mxu0 %v2116
  %2764 = vmatpush1.bf16.msra.mxu0 %v2115
  %2765 = vmatprep.subr.bf16.mxu0 0
  %2766 = vmatpush1.bf16.msra.mxu0 0
  %2767 = vmatprep.subr.bf16.mxu0 0
  %2768 = vmatpush1.bf16.msra.mxu0 0
  %2769 = vmatprep.subr.bf16.mxu0 0
  %2770 = vmatpush1.bf16.msra.mxu0 0
  %2771 = vmatprep.subr.bf16.mxu0 0
  %2772 = vmatpush1.bf16.msra.mxu0 0
  %2773 = vmatprep.subr.bf16.mxu0 0
  %2774 = vmatpush1.bf16.msra.mxu0 0
  %2775 = vmatprep.subr.bf16.mxu0 0
  %2776 = vmatpush1.bf16.msra.mxu0 0
  %2777 = vmatprep.subr.bf16.mxu0 0
  %2778 = vmatpush1.bf16.msra.mxu0 0
  %2779 = vmatprep.subr.bf16.mxu0 0
  %2780 = vmatpush1.bf16.msra.mxu0 0
  %2781 = vmatprep.subr.bf16.mxu0 0
  %2782 = vmatpush1.bf16.msra.mxu0 0
  %2783 = vmatprep.subr.bf16.mxu0 0
  %2784 = vmatpush1.bf16.msra.mxu0 0
  %2785 = vmatprep.subr.bf16.mxu0 0
  %2786 = vmatpush1.bf16.msra.mxu0 0
  %2787 = vmatprep.subr.bf16.mxu0 0
  %2788 = vmatpush1.bf16.msra.mxu0 0
  %2789 = vmatprep.subr.bf16.mxu0 0
  %2790 = vmatpush1.bf16.msra.mxu0 0
  %2791 = vmatprep.subr.bf16.mxu0 0
  %2792 = vmatpush1.bf16.msra.mxu0 0
  %2793 = vmatprep.mubr.bf16.mxu0 0
  %2794 = vmatmul.mubr.bf16.gmra.mrb[0].mxu0 %v2513
  %v2795 = vpop.f32.mrb[0].mxu0
  %v2796 = vadd.f32 %v2755, %v2795
  %v2797 = vpop.f32.mrb[0].mxu0
  %v2798 = vadd.f32 %v2757, %v2797
  %v2799 = vpop.f32.mrb[0].mxu0
  %v2800 = vpop.f32.mrb[0].mxu0
  %2801 = vdwg.mxu0
  %2802 = vmatprep.subr.bf16.mxu0 %v1730
  %2803 = vmatpush1.bf16.msra.mxu0 %v1729
  %2804 = vmatprep.subr.bf16.mxu0 %v1734
  %2805 = vmatpush1.bf16.msra.mxu0 %v1733
  %2806 = vmatprep.subr.bf16.mxu0 %v1738
  %2807 = vmatpush1.bf16.msra.mxu0 %v1737
  %2808 = vmatprep.subr.bf16.mxu0 %v1742
  %2809 = vmatpush1.bf16.msra.mxu0 %v1741
  %2810 = vmatprep.subr.bf16.mxu0 %v1746
  %2811 = vmatpush1.bf16.msra.mxu0 %v1745
  %2812 = vmatprep.subr.bf16.mxu0 %v1750
  %2813 = vmatpush1.bf16.msra.mxu0 %v1749
  %2814 = vmatprep.subr.bf16.mxu0 %v1754
  %2815 = vmatpush1.bf16.msra.mxu0 %v1753
  %2816 = vmatprep.subr.bf16.mxu0 %v1758
  %2817 = vmatpush1.bf16.msra.mxu0 %v1757
  %2818 = vmatprep.subr.bf16.mxu0 %v1762
  %2819 = vmatpush1.bf16.msra.mxu0 %v1761
  %2820 = vmatprep.subr.bf16.mxu0 %v1766
  %2821 = vmatpush1.bf16.msra.mxu0 %v1765
  %2822 = vmatprep.subr.bf16.mxu0 %v1770
  %2823 = vmatpush1.bf16.msra.mxu0 %v1769
  %2824 = vmatprep.subr.bf16.mxu0 %v1774
  %2825 = vmatpush1.bf16.msra.mxu0 %v1773
  %2826 = vmatprep.subr.bf16.mxu0 %v1778
  %2827 = vmatpush1.bf16.msra.mxu0 %v1777
  %2828 = vmatprep.subr.bf16.mxu0 %v1782
  %2829 = vmatpush1.bf16.msra.mxu0 %v1781
  %2830 = vmatprep.subr.bf16.mxu0 %v1786
  %2831 = vmatpush1.bf16.msra.mxu0 %v1785
  %2832 = vmatprep.subr.bf16.mxu0 %v1790
  %2833 = vmatpush1.bf16.msra.mxu0 %v1789
  %2834 = vmatprep.mubr.bf16.mxu0 %v488
  %2835 = vmatmul.mubr.bf16.gmra.mrb[0].mxu0 %v474
  %v2836 = vpop.f32.mrb[0].mxu0
  %v2837 = vadd.f32 %v440, %v2836
  %v2838 = vpop.f32.mrb[0].mxu0
  %v2839 = vadd.f32 %v444, %v2838
  %v2840 = vpop.f32.mrb[0].mxu0
  %v2841 = vpop.f32.mrb[0].mxu0
  %2842 = vdwg.mxu0
  %2843 = vmatprep.subr.bf16.mxu0 %v1794
  %2844 = vmatpush1.bf16.msra.mxu0 %v1793
  %2845 = vmatprep.subr.bf16.mxu0 %v1798
  %2846 = vmatpush1.bf16.msra.mxu0 %v1797
  %2847 = vmatprep.subr.bf16.mxu0 %v1802
  %2848 = vmatpush1.bf16.msra.mxu0 %v1801
  %2849 = vmatprep.subr.bf16.mxu0 %v1806
  %2850 = vmatpush1.bf16.msra.mxu0 %v1805
  %2851 = vmatprep.subr.bf16.mxu0 %v1810
  %2852 = vmatpush1.bf16.msra.mxu0 %v1809
  %2853 = vmatprep.subr.bf16.mxu0 %v1814
  %2854 = vmatpush1.bf16.msra.mxu0 %v1813
  %2855 = vmatprep.subr.bf16.mxu0 %v1818
  %2856 = vmatpush1.bf16.msra.mxu0 %v1817
  %2857 = vmatprep.subr.bf16.mxu0 %v1822
  %2858 = vmatpush1.bf16.msra.mxu0 %v1821
  %2859 = vmatprep.subr.bf16.mxu0 %v1826
  %2860 = vmatpush1.bf16.msra.mxu0 %v1825
  %2861 = vmatprep.subr.bf16.mxu0 %v1830
  %2862 = vmatpush1.bf16.msra.mxu0 %v1829
  %2863 = vmatprep.subr.bf16.mxu0 %v1834
  %2864 = vmatpush1.bf16.msra.mxu0 %v1833
  %2865 = vmatprep.subr.bf16.mxu0 %v1838
  %2866 = vmatpush1.bf16.msra.mxu0 %v1837
  %2867 = vmatprep.subr.bf16.mxu0 %v1842
  %2868 = vmatpush1.bf16.msra.mxu0 %v1841
  %2869 = vmatprep.subr.bf16.mxu0 %v1846
  %2870 = vmatpush1.bf16.msra.mxu0 %v1845
  %2871 = vmatprep.subr.bf16.mxu0 %v1850
  %2872 = vmatpush1.bf16.msra.mxu0 %v1849
  %2873 = vmatprep.subr.bf16.mxu0 %v1854
  %2874 = vmatpush1.bf16.msra.mxu0 %v1853
  %2875 = vmatprep.mubr.bf16.mxu0 %v498
  %2876 = vmatmul.mubr.bf16.gmra.mrb[0].mxu0 %v496
  %v2877 = vpop.f32.mrb[0].mxu0
  %v2878 = vadd.f32 %v2837, %v2877
  %v2879 = vpop.f32.mrb[0].mxu0
  %v2880 = vadd.f32 %v2839, %v2879
  %v2881 = vpop.f32.mrb[0].mxu0
  %v2882 = vpop.f32.mrb[0].mxu0
  %2883 = vdwg.mxu0
  %2884 = vmatprep.subr.bf16.mxu0 %v1858
  %2885 = vmatpush1.bf16.msra.mxu0 %v1857
  %2886 = vmatprep.subr.bf16.mxu0 %v1862
  %2887 = vmatpush1.bf16.msra.mxu0 %v1861
  %2888 = vmatprep.subr.bf16.mxu0 %v1866
  %2889 = vmatpush1.bf16.msra.mxu0 %v1865
  %2890 = vmatprep.subr.bf16.mxu0 %v1870
  %2891 = vmatpush1.bf16.msra.mxu0 %v1869
  %2892 = vmatprep.subr.bf16.mxu0 %v1874
  %2893 = vmatpush1.bf16.msra.mxu0 %v1873
  %2894 = vmatprep.subr.bf16.mxu0 %v1878
  %2895 = vmatpush1.bf16.msra.mxu0 %v1877
  %2896 = vmatprep.subr.bf16.mxu0 %v1882
  %2897 = vmatpush1.bf16.msra.mxu0 %v1881
  %2898 = vmatprep.subr.bf16.mxu0 %v1886
  %2899 = vmatpush1.bf16.msra.mxu0 %v1885
  %2900 = vmatprep.subr.bf16.mxu0 %v1890
  %2901 = vmatpush1.bf16.msra.mxu0 %v1889
  %2902 = vmatprep.subr.bf16.mxu0 %v1894
  %2903 = vmatpush1.bf16.msra.mxu0 %v1893
  %2904 = vmatprep.subr.bf16.mxu0 %v1898
  %2905 = vmatpush1.bf16.msra.mxu0 %v1897
  %2906 = vmatprep.subr.bf16.mxu0 %v1902
  %2907 = vmatpush1.bf16.msra.mxu0 %v1901
  %2908 = vmatprep.subr.bf16.mxu0 %v1906
  %2909 = vmatpush1.bf16.msra.mxu0 %v1905
  %2910 = vmatprep.subr.bf16.mxu0 %v1910
  %2911 = vmatpush1.bf16.msra.mxu0 %v1909
  %2912 = vmatprep.subr.bf16.mxu0 %v1914
  %2913 = vmatpush1.bf16.msra.mxu0 %v1913
  %2914 = vmatprep.subr.bf16.mxu0 %v1918
  %2915 = vmatpush1.bf16.msra.mxu0 %v1917
  %2916 = vmatprep.mubr.bf16.mxu0 %v495
  %2917 = vmatmul.mubr.bf16.gmra.mrb[0].mxu0 %v481
  %v2918 = vpop.f32.mrb[0].mxu0
  %v2919 = vadd.f32 %v2878, %v2918
  %v2920 = vpop.f32.mrb[0].mxu0
  %v2921 = vadd.f32 %v2880, %v2920
  %v2922 = vpop.f32.mrb[0].mxu0
  %v2923 = vpop.f32.mrb[0].mxu0
  %2924 = vdwg.mxu0
  %2925 = vmatprep.subr.bf16.mxu0 %v1922
  %2926 = vmatpush1.bf16.msra.mxu0 %v1921
  %2927 = vmatprep.subr.bf16.mxu0 %v1926
  %2928 = vmatpush1.bf16.msra.mxu0 %v1925
  %2929 = vmatprep.subr.bf16.mxu0 %v1930
  %2930 = vmatpush1.bf16.msra.mxu0 %v1929
  %2931 = vmatprep.subr.bf16.mxu0 %v1934
  %2932 = vmatpush1.bf16.msra.mxu0 %v1933
  %2933 = vmatprep.subr.bf16.mxu0 %v1938
  %2934 = vmatpush1.bf16.msra.mxu0 %v1937
  %2935 = vmatprep.subr.bf16.mxu0 %v1942
  %2936 = vmatpush1.bf16.msra.mxu0 %v1941
  %2937 = vmatprep.subr.bf16.mxu0 %v1946
  %2938 = vmatpush1.bf16.msra.mxu0 %v1945
  %2939 = vmatprep.subr.bf16.mxu0 %v1950
  %2940 = vmatpush1.bf16.msra.mxu0 %v1949
  %2941 = vmatprep.subr.bf16.mxu0 %v1954
  %2942 = vmatpush1.bf16.msra.mxu0 %v1953
  %2943 = vmatprep.subr.bf16.mxu0 %v1958
  %2944 = vmatpush1.bf16.msra.mxu0 %v1957
  %2945 = vmatprep.subr.bf16.mxu0 %v1962
  %2946 = vmatpush1.bf16.msra.mxu0 %v1961
  %2947 = vmatprep.subr.bf16.mxu0 %v1966
  %2948 = vmatpush1.bf16.msra.mxu0 %v1965
  %2949 = vmatprep.subr.bf16.mxu0 %v1970
  %2950 = vmatpush1.bf16.msra.mxu0 %v1969
  %2951 = vmatprep.subr.bf16.mxu0 %v1974
  %2952 = vmatpush1.bf16.msra.mxu0 %v1973
  %2953 = vmatprep.subr.bf16.mxu0 %v1978
  %2954 = vmatpush1.bf16.msra.mxu0 %v1977
  %2955 = vmatprep.subr.bf16.mxu0 %v1982
  %2956 = vmatpush1.bf16.msra.mxu0 %v1981
  %2957 = vmatprep.mubr.bf16.mxu0 %v499
  %2958 = vmatmul.mubr.bf16.gmra.mrb[0].mxu0 %v497
  %v2959 = vpop.f32.mrb[0].mxu0
  %v2960 = vadd.f32 %v2919, %v2959
  %v2961 = vpop.f32.mrb[0].mxu0
  %v2962 = vadd.f32 %v2921, %v2961
  %v2963 = vpop.f32.mrb[0].mxu0
  %v2964 = vpop.f32.mrb[0].mxu0
  %2965 = vdwg.mxu0
  %2966 = vmatprep.subr.bf16.mxu0 %v1986
  %2967 = vmatpush1.bf16.msra.mxu0 %v1985
  %2968 = vmatprep.subr.bf16.mxu0 %v1990
  %2969 = vmatpush1.bf16.msra.mxu0 %v1989
  %2970 = vmatprep.subr.bf16.mxu0 %v1994
  %2971 = vmatpush1.bf16.msra.mxu0 %v1993
  %2972 = vmatprep.subr.bf16.mxu0 %v1998
  %2973 = vmatpush1.bf16.msra.mxu0 %v1997
  %2974 = vmatprep.subr.bf16.mxu0 %v2002
  %2975 = vmatpush1.bf16.msra.mxu0 %v2001
  %2976 = vmatprep.subr.bf16.mxu0 %v2006
  %2977 = vmatpush1.bf16.msra.mxu0 %v2005
  %2978 = vmatprep.subr.bf16.mxu0 %v2010
  %2979 = vmatpush1.bf16.msra.mxu0 %v2009
  %2980 = vmatprep.subr.bf16.mxu0 %v2014
  %2981 = vmatpush1.bf16.msra.mxu0 %v2013
  %2982 = vmatprep.subr.bf16.mxu0 %v2018
  %2983 = vmatpush1.bf16.msra.mxu0 %v2017
  %2984 = vmatprep.subr.bf16.mxu0 %v2022
  %2985 = vmatpush1.bf16.msra.mxu0 %v2021
  %2986 = vmatprep.subr.bf16.mxu0 %v2026
  %2987 = vmatpush1.bf16.msra.mxu0 %v2025
  %2988 = vmatprep.subr.bf16.mxu0 %v2030
  %2989 = vmatpush1.bf16.msra.mxu0 %v2029
  %2990 = vmatprep.subr.bf16.mxu0 %v2034
  %2991 = vmatpush1.bf16.msra.mxu0 %v2033
  %2992 = vmatprep.subr.bf16.mxu0 %v2038
  %2993 = vmatpush1.bf16.msra.mxu0 %v2037
  %2994 = vmatprep.subr.bf16.mxu0 %v2042
  %2995 = vmatpush1.bf16.msra.mxu0 %v2041
  %2996 = vmatprep.subr.bf16.mxu0 %v2046
  %2997 = vmatpush1.bf16.msra.mxu0 %v2045
  %2998 = vmatprep.mubr.bf16.mxu0 %v536
  %2999 = vmatmul.mubr.bf16.gmra.mrb[0].mxu0 %v522
  %v3000 = vpop.f32.mrb[0].mxu0
  %v3001 = vadd.f32 %v2960, %v3000
  %v3002 = vpop.f32.mrb[0].mxu0
  %v3003 = vadd.f32 %v2962, %v3002
  %v3004 = vpop.f32.mrb[0].mxu0
  %v3005 = vpop.f32.mrb[0].mxu0
  %3006 = vdwg.mxu0
  %3007 = vmatprep.subr.bf16.mxu0 %v2050
  %3008 = vmatpush1.bf16.msra.mxu0 %v2049
  %3009 = vmatprep.subr.bf16.mxu0 %v2054
  %3010 = vmatpush1.bf16.msra.mxu0 %v2053
  %3011 = vmatprep.subr.bf16.mxu0 %v2058
  %3012 = vmatpush1.bf16.msra.mxu0 %v2057
  %3013 = vmatprep.subr.bf16.mxu0 %v2062
  %3014 = vmatpush1.bf16.msra.mxu0 %v2061
  %3015 = vmatprep.subr.bf16.mxu0 %v2066
  %3016 = vmatpush1.bf16.msra.mxu0 %v2065
  %3017 = vmatprep.subr.bf16.mxu0 %v2070
  %3018 = vmatpush1.bf16.msra.mxu0 %v2069
  %3019 = vmatprep.subr.bf16.mxu0 %v2074
  %3020 = vmatpush1.bf16.msra.mxu0 %v2073
  %3021 = vmatprep.subr.bf16.mxu0 %v2078
  %3022 = vmatpush1.bf16.msra.mxu0 %v2077
  %3023 = vmatprep.subr.bf16.mxu0 %v2082
  %3024 = vmatpush1.bf16.msra.mxu0 %v2081
  %3025 = vmatprep.subr.bf16.mxu0 %v2086
  %3026 = vmatpush1.bf16.msra.mxu0 %v2085
  %3027 = vmatprep.subr.bf16.mxu0 %v2090
  %3028 = vmatpush1.bf16.msra.mxu0 %v2089
  %3029 = vmatprep.subr.bf16.mxu0 %v2094
  %3030 = vmatpush1.bf16.msra.mxu0 %v2093
  %3031 = vmatprep.subr.bf16.mxu0 %v2098
  %3032 = vmatpush1.bf16.msra.mxu0 %v2097
  %3033 = vmatprep.subr.bf16.mxu0 %v2102
  %3034 = vmatpush1.bf16.msra.mxu0 %v2101
  %3035 = vmatprep.subr.bf16.mxu0 %v2106
  %3036 = vmatpush1.bf16.msra.mxu0 %v2105
  %3037 = vmatprep.subr.bf16.mxu0 %v2110
  %3038 = vmatpush1.bf16.msra.mxu0 %v2109
  %3039 = vmatprep.mubr.bf16.mxu0 %v538
  %3040 = vmatmul.mubr.bf16.gmra.mrb[0].mxu0 %v537
  %v3041 = vpop.f32.mrb[0].mxu0
  %v3042 = vadd.f32 %v3001, %v3041
  %v3043 = vpop.f32.mrb[0].mxu0
  %v3044 = vadd.f32 %v3003, %v3043
  %v3045 = vpop.f32.mrb[0].mxu0
  %v3046 = vpop.f32.mrb[0].mxu0
  %3047 = vdwg.mxu0
  %3048 = vmatprep.subr.bf16.mxu0 %v2114
  %3049 = vmatpush1.bf16.msra.mxu0 %v2113
  %3050 = vmatprep.subr.bf16.mxu0 %v2118
  %3051 = vmatpush1.bf16.msra.mxu0 %v2117
  %3052 = vmatprep.subr.bf16.mxu0 0
  %3053 = vmatpush1.bf16.msra.mxu0 0
  %3054 = vmatprep.subr.bf16.mxu0 0
  %3055 = vmatpush1.bf16.msra.mxu0 0
  %3056 = vmatprep.subr.bf16.mxu0 0
  %3057 = vmatpush1.bf16.msra.mxu0 0
  %3058 = vmatprep.subr.bf16.mxu0 0
  %3059 = vmatpush1.bf16.msra.mxu0 0
  %3060 = vmatprep.subr.bf16.mxu0 0
  %3061 = vmatpush1.bf16.msra.mxu0 0
  %3062 = vmatprep.subr.bf16.mxu0 0
  %3063 = vmatpush1.bf16.msra.mxu0 0
  %3064 = vmatprep.subr.bf16.mxu0 0
  %3065 = vmatpush1.bf16.msra.mxu0 0
  %3066 = vmatprep.subr.bf16.mxu0 0
  %3067 = vmatpush1.bf16.msra.mxu0 0
  %3068 = vmatprep.subr.bf16.mxu0 0
  %3069 = vmatpush1.bf16.msra.mxu0 0
  %3070 = vmatprep.subr.bf16.mxu0 0
  %3071 = vmatpush1.bf16.msra.mxu0 0
  %3072 = vmatprep.subr.bf16.mxu0 0
  %3073 = vmatpush1.bf16.msra.mxu0 0
  %3074 = vmatprep.subr.bf16.mxu0 0
  %3075 = vmatpush1.bf16.msra.mxu0 0
  %3076 = vmatprep.subr.bf16.mxu0 0
  %3077 = vmatpush1.bf16.msra.mxu0 0
  %3078 = vmatprep.subr.bf16.mxu0 0
  %3079 = vmatpush1.bf16.msra.mxu0 0
  %3080 = vmatprep.mubr.bf16.mxu0 0
  %3081 = vmatmul.mubr.bf16.gmra.mrb[0].mxu0 %v2513
  %v3082 = vpop.f32.mrb[0].mxu0
  %v3083 = vadd.f32 %v3042, %v3082
  %v3084 = vpop.f32.mrb[0].mxu0
  %v3085 = vadd.f32 %v3044, %v3084
  %v3086 = vpop.f32.mrb[0].mxu0
  %v3087 = vpop.f32.mrb[0].mxu0
  %3088 = vdwg.mxu0
  %v3089 = vmax.f32 %v2796, 0.0
  %v3090 = vmax.f32 %v2798, 0.0
  %v3091 = vmax.f32 %v3083, 0.0
  %v3092 = vmax.f32 %v3085, 0.0
  %v3093 = vld [vmem:[%s1] sm:$0xff]
  %v3094 = vld [vmem:[%s1 + $0x8] sm:$0x1f]
  %v3095 = vld [vmem:[%s4] sm:$0xff]
  %v3096 = vld [vmem:[%s4 + $0x8] sm:$0xff]
  %v3097 = vld [vmem:[%s4 + $0x10] sm:$0xff]
  %v3098 = vld [vmem:[%s4 + $0x18] sm:$0xff]
  %v3099 = vld [vmem:[%s4 + $0x20] sm:$0xff]
  %v3100 = vld [vmem:[%s4 + $0x28] sm:$0xff]
  %v3101 = vld [vmem:[%s4 + $0x30] sm:$0xff]
  %v3102 = vld [vmem:[%s4 + $0x38] sm:$0xff]
  %v3103 = vld [vmem:[%s4 + $0x40] sm:$0xff]
  %v3104 = vld [vmem:[%s4 + $0x48] sm:$0xff]
  %v3105 = vld [vmem:[%s4 + $0x50] sm:$0xff]
  %v3106 = vld [vmem:[%s4 + $0x58] sm:$0xff]
  %v3107 = vld [vmem:[%s4 + $0x60] sm:$0xff]
  %v3108 = vld [vmem:[%s4 + $0x68] sm:$0xff]
  %v3109 = vld [vmem:[%s4 + $0x70] sm:$0xff]
  %v3110 = vld [vmem:[%s4 + $0x78] sm:$0xff]
  %v3111 = vld [vmem:[%s4 + $0x80] sm:$0xff]
  %v3112 = vld [vmem:[%s4 + $0x88] sm:$0xff]
  %v3113 = vld [vmem:[%s4 + $0x90] sm:$0xff]
  %v3114 = vld [vmem:[%s4 + $0x98] sm:$0xff]
  %v3115 = vld [vmem:[%s4 + $0xa0] sm:$0xff]
  %v3116 = vld [vmem:[%s4 + $0xa8] sm:$0xff]
  %v3117 = vld [vmem:[%s4 + $0xb0] sm:$0xff]
  %v3118 = vld [vmem:[%s4 + $0xb8] sm:$0xff]
  %v3119 = vld [vmem:[%s4 + $0xc0] sm:$0xff]
  %v3120 = vld [vmem:[%s4 + $0xc8] sm:$0xff]
  %v3121 = vld [vmem:[%s4 + $0xd0] sm:$0xff]
  %v3122 = vld [vmem:[%s4 + $0xd8] sm:$0xff]
  %v3123 = vld [vmem:[%s4 + $0xe0] sm:$0xff]
  %v3124 = vld [vmem:[%s4 + $0xe8] sm:$0xff]
  %v3125 = vld [vmem:[%s4 + $0xf0] sm:$0xff]
  %v3126 = vld [vmem:[%s4 + $0xf8] sm:$0xff]
  %v3127 = vld [vmem:[%s4 + $0x100] sm:$0xff]
  %v3128 = vld [vmem:[%s4 + $0x108] sm:$0xff]
  %v3129 = vld [vmem:[%s4 + $0x110] sm:$0xff]
  %v3130 = vld [vmem:[%s4 + $0x118] sm:$0xff]
  %v3131 = vld [vmem:[%s4 + $0x120] sm:$0xff]
  %v3132 = vld [vmem:[%s4 + $0x128] sm:$0xff]
  %v3133 = vld [vmem:[%s4 + $0x130] sm:$0xff]
  %v3134 = vld [vmem:[%s4 + $0x138] sm:$0xff]
  %v3135 = vld [vmem:[%s4 + $0x140] sm:$0xff]
  %v3136 = vld [vmem:[%s4 + $0x148] sm:$0xff]
  %v3137 = vld [vmem:[%s4 + $0x150] sm:$0xff]
  %v3138 = vld [vmem:[%s4 + $0x158] sm:$0xff]
  %v3139 = vld [vmem:[%s4 + $0x160] sm:$0xff]
  %v3140 = vld [vmem:[%s4 + $0x168] sm:$0xff]
  %v3141 = vld [vmem:[%s4 + $0x170] sm:$0xff]
  %v3142 = vld [vmem:[%s4 + $0x178] sm:$0xff]
  %v3143 = vld [vmem:[%s4 + $0x180] sm:$0xff]
  %v3144 = vld [vmem:[%s4 + $0x188] sm:$0xff]
  %v3145 = vld [vmem:[%s4 + $0x190] sm:$0xff]
  %v3146 = vld [vmem:[%s4 + $0x198] sm:$0xff]
  %v3147 = vld [vmem:[%s4 + $0x1a0] sm:$0xff]
  %v3148 = vld [vmem:[%s4 + $0x1a8] sm:$0xff]
  %v3149 = vld [vmem:[%s4 + $0x1b0] sm:$0xff]
  %v3150 = vld [vmem:[%s4 + $0x1b8] sm:$0xff]
  %v3151 = vld [vmem:[%s4 + $0x1c0] sm:$0xff]
  %v3152 = vld [vmem:[%s4 + $0x1c8] sm:$0xff]
  %v3153 = vld [vmem:[%s4 + $0x1d0] sm:$0xff]
  %v3154 = vld [vmem:[%s4 + $0x1d8] sm:$0xff]
  %v3155 = vld [vmem:[%s4 + $0x1e0] sm:$0xff]
  %v3156 = vld [vmem:[%s4 + $0x1e8] sm:$0xff]
  %v3157 = vld [vmem:[%s4 + $0x1f0] sm:$0xff]
  %v3158 = vld [vmem:[%s4 + $0x1f8] sm:$0xff]
  %v3159 = vld [vmem:[%s4 + $0x200] sm:$0xff]
  %v3160 = vld [vmem:[%s4 + $0x208] sm:$0xff]
  %v3161 = vld [vmem:[%s4 + $0x210] sm:$0xff]
  %v3162 = vld [vmem:[%s4 + $0x218] sm:$0xff]
  %v3163 = vld [vmem:[%s4 + $0x220] sm:$0xff]
  %v3164 = vld [vmem:[%s4 + $0x228] sm:$0xff]
  %v3165 = vld [vmem:[%s4 + $0x230] sm:$0xff]
  %v3166 = vld [vmem:[%s4 + $0x238] sm:$0xff]
  %v3167 = vld [vmem:[%s4 + $0x240] sm:$0xff]
  %v3168 = vld [vmem:[%s4 + $0x248] sm:$0xff]
  %v3169 = vld [vmem:[%s4 + $0x250] sm:$0xff]
  %v3170 = vld [vmem:[%s4 + $0x258] sm:$0xff]
  %v3171 = vld [vmem:[%s4 + $0x260] sm:$0xff]
  %v3172 = vld [vmem:[%s4 + $0x268] sm:$0xff]
  %v3173 = vld [vmem:[%s4 + $0x270] sm:$0xff]
  %v3174 = vld [vmem:[%s4 + $0x278] sm:$0xff]
  %v3175 = vld [vmem:[%s4 + $0x280] sm:$0xff]
  %v3176 = vld [vmem:[%s4 + $0x288] sm:$0xff]
  %v3177 = vld [vmem:[%s4 + $0x290] sm:$0xff]
  %v3178 = vld [vmem:[%s4 + $0x298] sm:$0xff]
  %v3179 = vld [vmem:[%s4 + $0x2a0] sm:$0xff]
  %v3180 = vld [vmem:[%s4 + $0x2a8] sm:$0xff]
  %v3181 = vld [vmem:[%s4 + $0x2b0] sm:$0xff]
  %v3182 = vld [vmem:[%s4 + $0x2b8] sm:$0xff]
  %v3183 = vld [vmem:[%s4 + $0x2c0] sm:$0xff]
  %v3184 = vld [vmem:[%s4 + $0x2c8] sm:$0xff]
  %v3185 = vld [vmem:[%s4 + $0x2d0] sm:$0xff]
  %v3186 = vld [vmem:[%s4 + $0x2d8] sm:$0xff]
  %v3187 = vld [vmem:[%s4 + $0x2e0] sm:$0xff]
  %v3188 = vld [vmem:[%s4 + $0x2e8] sm:$0xff]
  %v3189 = vld [vmem:[%s4 + $0x2f0] sm:$0xff]
  %v3190 = vld [vmem:[%s4 + $0x2f8] sm:$0xff]
  %v3191 = vld [vmem:[%s4 + $0x300] sm:$0xff]
  %v3192 = vld [vmem:[%s4 + $0x308] sm:$0xff]
  %v3193 = vld [vmem:[%s4 + $0x310] sm:$0xff]
  %v3194 = vld [vmem:[%s4 + $0x318] sm:$0xff]
  %v3195 = vld [vmem:[%s4 + $0x320] sm:$0xff]
  %v3196 = vld [vmem:[%s4 + $0x328] sm:$0xff]
  %v3197 = vld [vmem:[%s4 + $0x330] sm:$0xff]
  %v3198 = vld [vmem:[%s4 + $0x338] sm:$0xff]
  %v3199 = vld [vmem:[%s4 + $0x340] sm:$0xff]
  %v3200 = vld [vmem:[%s4 + $0x348] sm:$0xff]
  %v3201 = vld [vmem:[%s4 + $0x350] sm:$0xff]
  %v3202 = vld [vmem:[%s4 + $0x358] sm:$0xff]
  %v3203 = vld [vmem:[%s4 + $0x360] sm:$0xff]
  %v3204 = vld [vmem:[%s4 + $0x368] sm:$0xff]
  %v3205 = vld [vmem:[%s4 + $0x370] sm:$0xff]
  %v3206 = vld [vmem:[%s4 + $0x378] sm:$0xff]
  %v3207 = vld [vmem:[%s4 + $0x380] sm:$0xff]
  %v3208 = vld [vmem:[%s4 + $0x388] sm:$0xff]
  %v3209 = vld [vmem:[%s4 + $0x390] sm:$0xff]
  %v3210 = vld [vmem:[%s4 + $0x398] sm:$0xff]
  %v3211 = vld [vmem:[%s4 + $0x3a0] sm:$0xff]
  %v3212 = vld [vmem:[%s4 + $0x3a8] sm:$0xff]
  %v3213 = vld [vmem:[%s4 + $0x3b0] sm:$0xff]
  %v3214 = vld [vmem:[%s4 + $0x3b8] sm:$0xff]
  %v3215 = vld [vmem:[%s4 + $0x3c0] sm:$0xff]
  %v3216 = vld [vmem:[%s4 + $0x3c8] sm:$0xff]
  %v3217 = vld [vmem:[%s4 + $0x3d0] sm:$0xff]
  %v3218 = vld [vmem:[%s4 + $0x3d8] sm:$0xff]
  %v3219 = vld [vmem:[%s4 + $0x3e0] sm:$0xff]
  %v3220 = vld [vmem:[%s4 + $0x3e8] sm:$0xff]
  %v3221 = vld [vmem:[%s4 + $0x3f0] sm:$0xff]
  %v3222 = vld [vmem:[%s4 + $0x3f8] sm:$0xff]
  %v3223 = vld [vmem:[%s4 + $0x400] sm:$0xff]
  %v3224 = vld [vmem:[%s4 + $0x408] sm:$0xff]
  %v3225 = vld [vmem:[%s4 + $0x410] sm:$0xff]
  %v3226 = vld [vmem:[%s4 + $0x418] sm:$0xff]
  %v3227 = vld [vmem:[%s4 + $0x420] sm:$0xff]
  %v3228 = vld [vmem:[%s4 + $0x428] sm:$0xff]
  %v3229 = vld [vmem:[%s4 + $0x430] sm:$0xff]
  %v3230 = vld [vmem:[%s4 + $0x438] sm:$0xff]
  %v3231 = vld [vmem:[%s4 + $0x440] sm:$0xff]
  %v3232 = vld [vmem:[%s4 + $0x448] sm:$0xff]
  %v3233 = vld [vmem:[%s4 + $0x450] sm:$0xff]
  %v3234 = vld [vmem:[%s4 + $0x458] sm:$0xff]
  %v3235 = vld [vmem:[%s4 + $0x460] sm:$0xff]
  %v3236 = vld [vmem:[%s4 + $0x468] sm:$0xff]
  %v3237 = vld [vmem:[%s4 + $0x470] sm:$0xff]
  %v3238 = vld [vmem:[%s4 + $0x478] sm:$0xff]
  %v3239 = vld [vmem:[%s4 + $0x480] sm:$0xff]
  %v3240 = vld [vmem:[%s4 + $0x488] sm:$0xff]
  %v3241 = vld [vmem:[%s4 + $0x490] sm:$0xff]
  %v3242 = vld [vmem:[%s4 + $0x498] sm:$0xff]
  %v3243 = vld [vmem:[%s4 + $0x4a0] sm:$0xff]
  %v3244 = vld [vmem:[%s4 + $0x4a8] sm:$0xff]
  %v3245 = vld [vmem:[%s4 + $0x4b0] sm:$0xff]
  %v3246 = vld [vmem:[%s4 + $0x4b8] sm:$0xff]
  %v3247 = vld [vmem:[%s4 + $0x4c0] sm:$0xff]
  %v3248 = vld [vmem:[%s4 + $0x4c8] sm:$0xff]
  %v3249 = vld [vmem:[%s4 + $0x4d0] sm:$0xff]
  %v3250 = vld [vmem:[%s4 + $0x4d8] sm:$0xff]
  %v3251 = vld [vmem:[%s4 + $0x4e0] sm:$0xff]
  %v3252 = vld [vmem:[%s4 + $0x4e8] sm:$0xff]
  %v3253 = vld [vmem:[%s4 + $0x4f0] sm:$0xff]
  %v3254 = vld [vmem:[%s4 + $0x4f8] sm:$0xff]
  %v3255 = vld [vmem:[%s4 + $0x500] sm:$0xff]
  %v3256 = vld [vmem:[%s4 + $0x508] sm:$0xff]
  %v3257 = vld [vmem:[%s4 + $0x510] sm:$0xff]
  %v3258 = vld [vmem:[%s4 + $0x518] sm:$0xff]
  %v3259 = vld [vmem:[%s4 + $0x520] sm:$0xff]
  %v3260 = vld [vmem:[%s4 + $0x528] sm:$0xff]
  %v3261 = vld [vmem:[%s4 + $0x530] sm:$0xff]
  %v3262 = vld [vmem:[%s4 + $0x538] sm:$0xff]
  %v3263 = vld [vmem:[%s4 + $0x540] sm:$0xff]
  %v3264 = vld [vmem:[%s4 + $0x548] sm:$0xff]
  %v3265 = vld [vmem:[%s4 + $0x550] sm:$0xff]
  %v3266 = vld [vmem:[%s4 + $0x558] sm:$0xff]
  %v3267 = vld [vmem:[%s4 + $0x560] sm:$0xff]
  %v3268 = vld [vmem:[%s4 + $0x568] sm:$0xff]
  %v3269 = vld [vmem:[%s4 + $0x570] sm:$0xff]
  %v3270 = vld [vmem:[%s4 + $0x578] sm:$0xff]
  %v3271 = vld [vmem:[%s4 + $0x580] sm:$0xff]
  %v3272 = vld [vmem:[%s4 + $0x588] sm:$0xff]
  %v3273 = vld [vmem:[%s4 + $0x590] sm:$0xff]
  %v3274 = vld [vmem:[%s4 + $0x598] sm:$0xff]
  %v3275 = vld [vmem:[%s4 + $0x5a0] sm:$0xff]
  %v3276 = vld [vmem:[%s4 + $0x5a8] sm:$0xff]
  %v3277 = vld [vmem:[%s4 + $0x5b0] sm:$0xff]
  %v3278 = vld [vmem:[%s4 + $0x5b8] sm:$0xff]
  %v3279 = vld [vmem:[%s4 + $0x5c0] sm:$0xff]
  %v3280 = vld [vmem:[%s4 + $0x5c8] sm:$0xff]
  %v3281 = vld [vmem:[%s4 + $0x5d0] sm:$0xff]
  %v3282 = vld [vmem:[%s4 + $0x5d8] sm:$0xff]
  %v3283 = vld [vmem:[%s4 + $0x5e0] sm:$0xff]
  %v3284 = vld [vmem:[%s4 + $0x5e8] sm:$0xff]
  %v3285 = vld [vmem:[%s4 + $0x5f0] sm:$0xff]
  %v3286 = vld [vmem:[%s4 + $0x5f8] sm:$0xff]
  %v3287 = vld [vmem:[%s4 + $0x600] sm:$0xff]
  %v3288 = vld [vmem:[%s4 + $0x608] sm:$0xff]
  %v3289 = vld [vmem:[%s4 + $0x610] sm:$0xff]
  %v3290 = vld [vmem:[%s4 + $0x618] sm:$0xff]
  %v3291 = vld [vmem:[%s4 + $0x620] sm:$0xff]
  %v3292 = vld [vmem:[%s4 + $0x628] sm:$0xff]
  %v3293 = vld [vmem:[%s4 + $0x630] sm:$0xff]
  %v3294 = vld [vmem:[%s4 + $0x638] sm:$0xff]
  %v3295 = vld [vmem:[%s4 + $0x640] sm:$0xff]
  %v3296 = vld [vmem:[%s4 + $0x648] sm:$0xff]
  %v3297 = vld [vmem:[%s4 + $0x650] sm:$0xff]
  %v3298 = vld [vmem:[%s4 + $0x658] sm:$0xff]
  %v3299 = vld [vmem:[%s4 + $0x660] sm:$0xff]
  %v3300 = vld [vmem:[%s4 + $0x668] sm:$0xff]
  %v3301 = vld [vmem:[%s4 + $0x670] sm:$0xff]
  %v3302 = vld [vmem:[%s4 + $0x678] sm:$0xff]
  %v3303 = vld [vmem:[%s4 + $0x680] sm:$0xff]
  %v3304 = vld [vmem:[%s4 + $0x688] sm:$0xff]
  %v3305 = vld [vmem:[%s4 + $0x690] sm:$0xff]
  %v3306 = vld [vmem:[%s4 + $0x698] sm:$0xff]
  %v3307 = vld [vmem:[%s4 + $0x6a0] sm:$0xff]
  %v3308 = vld [vmem:[%s4 + $0x6a8] sm:$0xff]
  %v3309 = vld [vmem:[%s4 + $0x6b0] sm:$0xff]
  %v3310 = vld [vmem:[%s4 + $0x6b8] sm:$0xff]
  %v3311 = vld [vmem:[%s4 + $0x6c0] sm:$0xff]
  %v3312 = vld [vmem:[%s4 + $0x6c8] sm:$0xff]
  %v3313 = vld [vmem:[%s4 + $0x6d0] sm:$0xff]
  %v3314 = vld [vmem:[%s4 + $0x6d8] sm:$0xff]
  %v3315 = vld [vmem:[%s4 + $0x6e0] sm:$0xff]
  %v3316 = vld [vmem:[%s4 + $0x6e8] sm:$0xff]
  %v3317 = vld [vmem:[%s4 + $0x6f0] sm:$0xff]
  %v3318 = vld [vmem:[%s4 + $0x6f8] sm:$0xff]
  %v3319 = vld [vmem:[%s4 + $0x700] sm:$0xff]
  %v3320 = vld [vmem:[%s4 + $0x708] sm:$0xff]
  %v3321 = vld [vmem:[%s4 + $0x710] sm:$0xff]
  %v3322 = vld [vmem:[%s4 + $0x718] sm:$0xff]
  %v3323 = vld [vmem:[%s4 + $0x720] sm:$0xff]
  %v3324 = vld [vmem:[%s4 + $0x728] sm:$0xff]
  %v3325 = vld [vmem:[%s4 + $0x730] sm:$0xff]
  %v3326 = vld [vmem:[%s4 + $0x738] sm:$0xff]
  %v3327 = vld [vmem:[%s4 + $0x740] sm:$0xff]
  %v3328 = vld [vmem:[%s4 + $0x748] sm:$0xff]
  %v3329 = vld [vmem:[%s4 + $0x750] sm:$0xff]
  %v3330 = vld [vmem:[%s4 + $0x758] sm:$0xff]
  %v3331 = vld [vmem:[%s4 + $0x760] sm:$0xff]
  %v3332 = vld [vmem:[%s4 + $0x768] sm:$0xff]
  %v3333 = vld [vmem:[%s4 + $0x770] sm:$0xff]
  %v3334 = vld [vmem:[%s4 + $0x778] sm:$0xff]
  %v3335 = vld [vmem:[%s4 + $0x780] sm:$0xff]
  %v3336 = vld [vmem:[%s4 + $0x788] sm:$0xff]
  %v3337 = vld [vmem:[%s4 + $0x790] sm:$0xff]
  %v3338 = vld [vmem:[%s4 + $0x798] sm:$0xff]
  %v3339 = vld [vmem:[%s4 + $0x7a0] sm:$0xff]
  %v3340 = vld [vmem:[%s4 + $0x7a8] sm:$0xff]
  %v3341 = vld [vmem:[%s4 + $0x7b0] sm:$0xff]
  %v3342 = vld [vmem:[%s4 + $0x7b8] sm:$0xff]
  %v3343 = vld [vmem:[%s4 + $0x7c0] sm:$0xff]
  %v3344 = vld [vmem:[%s4 + $0x7c8] sm:$0xff]
  %v3345 = vld [vmem:[%s4 + $0x7d0] sm:$0xff]
  %v3346 = vld [vmem:[%s4 + $0x7d8] sm:$0xff]
  %v3347 = vld [vmem:[%s4 + $0x7e0] sm:$0xff]
  %v3348 = vld [vmem:[%s4 + $0x7e8] sm:$0xff]
  %v3349 = vld [vmem:[%s4 + $0x7f0] sm:$0xff]
  %v3350 = vld [vmem:[%s4 + $0x7f8] sm:$0xff]
  %v3351 = vld [vmem:[%s4 + $0x800] sm:$0xff]
  %v3352 = vld [vmem:[%s4 + $0x808] sm:$0xff]
  %v3353 = vld [vmem:[%s4 + $0x810] sm:$0xff]
  %v3354 = vld [vmem:[%s4 + $0x818] sm:$0xff]
  %v3355 = vld [vmem:[%s4 + $0x820] sm:$0xff]
  %v3356 = vld [vmem:[%s4 + $0x828] sm:$0xff]
  %v3357 = vld [vmem:[%s4 + $0x830] sm:$0xff]
  %v3358 = vld [vmem:[%s4 + $0x838] sm:$0xff]
  %v3359 = vld [vmem:[%s4 + $0x840] sm:$0xff]
  %v3360 = vld [vmem:[%s4 + $0x848] sm:$0xff]
  %v3361 = vld [vmem:[%s4 + $0x850] sm:$0xff]
  %v3362 = vld [vmem:[%s4 + $0x858] sm:$0xff]
  %v3363 = vld [vmem:[%s4 + $0x860] sm:$0xff]
  %v3364 = vld [vmem:[%s4 + $0x868] sm:$0xff]
  %v3365 = vld [vmem:[%s4 + $0x870] sm:$0xff]
  %v3366 = vld [vmem:[%s4 + $0x878] sm:$0xff]
  %v3367 = vld [vmem:[%s4 + $0x880] sm:$0xff]
  %v3368 = vld [vmem:[%s4 + $0x888] sm:$0xff]
  %v3369 = vld [vmem:[%s4 + $0x890] sm:$0xff]
  %v3370 = vld [vmem:[%s4 + $0x898] sm:$0xff]
  %v3371 = vld [vmem:[%s4 + $0x8a0] sm:$0xff]
  %v3372 = vld [vmem:[%s4 + $0x8a8] sm:$0xff]
  %v3373 = vld [vmem:[%s4 + $0x8b0] sm:$0xff]
  %v3374 = vld [vmem:[%s4 + $0x8b8] sm:$0xff]
  %v3375 = vld [vmem:[%s4 + $0x8c0] sm:$0xff]
  %v3376 = vld [vmem:[%s4 + $0x8c8] sm:$0xff]
  %v3377 = vld [vmem:[%s4 + $0x8d0] sm:$0xff]
  %v3378 = vld [vmem:[%s4 + $0x8d8] sm:$0xff]
  %v3379 = vld [vmem:[%s4 + $0x8e0] sm:$0xff]
  %v3380 = vld [vmem:[%s4 + $0x8e8] sm:$0xff]
  %v3381 = vld [vmem:[%s4 + $0x8f0] sm:$0xff]
  %v3382 = vld [vmem:[%s4 + $0x8f8] sm:$0xff]
  %v3383 = vld [vmem:[%s4 + $0x900] sm:$0xff]
  %v3384 = vld [vmem:[%s4 + $0x908] sm:$0xff]
  %v3385 = vld [vmem:[%s4 + $0x910] sm:$0xff]
  %v3386 = vld [vmem:[%s4 + $0x918] sm:$0xff]
  %v3387 = vld [vmem:[%s4 + $0x920] sm:$0xff]
  %v3388 = vld [vmem:[%s4 + $0x928] sm:$0xff]
  %v3389 = vld [vmem:[%s4 + $0x930] sm:$0xff]
  %v3390 = vld [vmem:[%s4 + $0x938] sm:$0xff]
  %v3391 = vld [vmem:[%s4 + $0x940] sm:$0xff]
  %v3392 = vld [vmem:[%s4 + $0x948] sm:$0xff]
  %v3393 = vld [vmem:[%s4 + $0x950] sm:$0xff]
  %v3394 = vld [vmem:[%s4 + $0x958] sm:$0xff]
  %v3395 = vld [vmem:[%s4 + $0x960] sm:$0xff]
  %v3396 = vld [vmem:[%s4 + $0x968] sm:$0xff]
  %v3397 = vld [vmem:[%s4 + $0x970] sm:$0xff]
  %v3398 = vld [vmem:[%s4 + $0x978] sm:$0xff]
  %v3399 = vld [vmem:[%s4 + $0x980] sm:$0xff]
  %v3400 = vld [vmem:[%s4 + $0x988] sm:$0xff]
  %v3401 = vld [vmem:[%s4 + $0x990] sm:$0xff]
  %v3402 = vld [vmem:[%s4 + $0x998] sm:$0xff]
  %v3403 = vld [vmem:[%s4 + $0x9a0] sm:$0xff]
  %v3404 = vld [vmem:[%s4 + $0x9a8] sm:$0xff]
  %v3405 = vld [vmem:[%s4 + $0x9b0] sm:$0xff]
  %v3406 = vld [vmem:[%s4 + $0x9b8] sm:$0xff]
  %v3407 = vld [vmem:[%s4 + $0x9c0] sm:$0xff]
  %v3408 = vld [vmem:[%s4 + $0x9c8] sm:$0xff]
  %v3409 = vld [vmem:[%s4 + $0x9d0] sm:$0xff]
  %v3410 = vld [vmem:[%s4 + $0x9d8] sm:$0xff]
  %v3411 = vld [vmem:[%s4 + $0x9e0] sm:$0xff]
  %v3412 = vld [vmem:[%s4 + $0x9e8] sm:$0xff]
  %v3413 = vld [vmem:[%s4 + $0x9f0] sm:$0xff]
  %v3414 = vld [vmem:[%s4 + $0x9f8] sm:$0xff]
  %v3415 = vld [vmem:[%s4 + $0xa00] sm:$0xff]
  %v3416 = vld [vmem:[%s4 + $0xa08] sm:$0xff]
  %v3417 = vld [vmem:[%s4 + $0xa10] sm:$0xff]
  %v3418 = vld [vmem:[%s4 + $0xa18] sm:$0xff]
  %v3419 = vld [vmem:[%s4 + $0xa20] sm:$0xff]
  %v3420 = vld [vmem:[%s4 + $0xa28] sm:$0xff]
  %v3421 = vld [vmem:[%s4 + $0xa30] sm:$0xff]
  %v3422 = vld [vmem:[%s4 + $0xa38] sm:$0xff]
  %v3423 = vld [vmem:[%s4 + $0xa40] sm:$0xff]
  %v3424 = vld [vmem:[%s4 + $0xa48] sm:$0xff]
  %v3425 = vld [vmem:[%s4 + $0xa50] sm:$0xff]
  %v3426 = vld [vmem:[%s4 + $0xa58] sm:$0xff]
  %v3427 = vld [vmem:[%s4 + $0xa60] sm:$0xff]
  %v3428 = vld [vmem:[%s4 + $0xa68] sm:$0xff]
  %v3429 = vld [vmem:[%s4 + $0xa70] sm:$0xff]
  %v3430 = vld [vmem:[%s4 + $0xa78] sm:$0xff]
  %v3431 = vld [vmem:[%s4 + $0xa80] sm:$0xff]
  %v3432 = vld [vmem:[%s4 + $0xa88] sm:$0xff]
  %v3433 = vld [vmem:[%s4 + $0xa90] sm:$0xff]
  %v3434 = vld [vmem:[%s4 + $0xa98] sm:$0xff]
  %v3435 = vld [vmem:[%s4 + $0xaa0] sm:$0xff]
  %v3436 = vld [vmem:[%s4 + $0xaa8] sm:$0xff]
  %v3437 = vld [vmem:[%s4 + $0xab0] sm:$0xff]
  %v3438 = vld [vmem:[%s4 + $0xab8] sm:$0xff]
  %v3439 = vld [vmem:[%s4 + $0xac0] sm:$0xff]
  %v3440 = vld [vmem:[%s4 + $0xac8] sm:$0xff]
  %v3441 = vld [vmem:[%s4 + $0xad0] sm:$0xff]
  %v3442 = vld [vmem:[%s4 + $0xad8] sm:$0xff]
  %v3443 = vld [vmem:[%s4 + $0xae0] sm:$0xff]
  %v3444 = vld [vmem:[%s4 + $0xae8] sm:$0xff]
  %v3445 = vld [vmem:[%s4 + $0xaf0] sm:$0xff]
  %v3446 = vld [vmem:[%s4 + $0xaf8] sm:$0xff]
  %v3447 = vld [vmem:[%s4 + $0xb00] sm:$0xff]
  %v3448 = vld [vmem:[%s4 + $0xb08] sm:$0xff]
  %v3449 = vld [vmem:[%s4 + $0xb10] sm:$0xff]
  %v3450 = vld [vmem:[%s4 + $0xb18] sm:$0xff]
  %v3451 = vld [vmem:[%s4 + $0xb20] sm:$0xff]
  %v3452 = vld [vmem:[%s4 + $0xb28] sm:$0xff]
  %v3453 = vld [vmem:[%s4 + $0xb30] sm:$0xff]
  %v3454 = vld [vmem:[%s4 + $0xb38] sm:$0xff]
  %v3455 = vld [vmem:[%s4 + $0xb40] sm:$0xff]
  %v3456 = vld [vmem:[%s4 + $0xb48] sm:$0xff]
  %v3457 = vld [vmem:[%s4 + $0xb50] sm:$0xff]
  %v3458 = vld [vmem:[%s4 + $0xb58] sm:$0xff]
  %v3459 = vld [vmem:[%s4 + $0xb60] sm:$0xff]
  %v3460 = vld [vmem:[%s4 + $0xb68] sm:$0xff]
  %v3461 = vld [vmem:[%s4 + $0xb70] sm:$0xff]
  %v3462 = vld [vmem:[%s4 + $0xb78] sm:$0xff]
  %v3463 = vld [vmem:[%s4 + $0xb80] sm:$0xff]
  %v3464 = vld [vmem:[%s4 + $0xb88] sm:$0xff]
  %v3465 = vld [vmem:[%s4 + $0xb90] sm:$0xff]
  %v3466 = vld [vmem:[%s4 + $0xb98] sm:$0xff]
  %v3467 = vld [vmem:[%s4 + $0xba0] sm:$0xff]
  %v3468 = vld [vmem:[%s4 + $0xba8] sm:$0xff]
  %v3469 = vld [vmem:[%s4 + $0xbb0] sm:$0xff]
  %v3470 = vld [vmem:[%s4 + $0xbb8] sm:$0xff]
  %v3471 = vld [vmem:[%s4 + $0xbc0] sm:$0xff]
  %v3472 = vld [vmem:[%s4 + $0xbc8] sm:$0xff]
  %v3473 = vld [vmem:[%s4 + $0xbd0] sm:$0xff]
  %v3474 = vld [vmem:[%s4 + $0xbd8] sm:$0xff]
  %v3475 = vld [vmem:[%s4 + $0xbe0] sm:$0xff]
  %v3476 = vld [vmem:[%s4 + $0xbe8] sm:$0xff]
  %v3477 = vld [vmem:[%s4 + $0xbf0] sm:$0xff]
  %v3478 = vld [vmem:[%s4 + $0xbf8] sm:$0xff]
  %v3479 = vld [vmem:[%s4 + $0xc00] sm:$0xff]
  %v3480 = vld [vmem:[%s4 + $0xc08] sm:$0xff]
  %v3481 = vld [vmem:[%s4 + $0xc10] sm:$0xff]
  %v3482 = vld [vmem:[%s4 + $0xc18] sm:$0xff]
  %v3483 = vld [vmem:[%s4 + $0xc20] sm:$0xff]
  %v3484 = vld [vmem:[%s4 + $0xc28] sm:$0xff]
  %v3485 = vld [vmem:[%s4 + $0xc30] sm:$0xff]
  %v3486 = vld [vmem:[%s4 + $0xc38] sm:$0xff]
  %v3487 = vld [vmem:[%s5] sm:$0xf]
  %v3489 = vlaneseq
  %v3490 = vshrl.u32 %v3489, 7
  %v3491 = vsub.s32 0, %v3490
  %v3492 = vrot.slane %v3487, %v3491
  %v3493 = vlaneseq
  %v3494 = vshrl.u32 %v3493, 7
  %v3495 = vsub.s32 1, %v3494
  %v3496 = vrot.slane %v3487, %v3495
  %v3497 = vlaneseq
  %v3498 = vshrl.u32 %v3497, 7
  %v3499 = vsub.s32 2, %v3498
  %v3500 = vrot.slane %v3487, %v3499
  %v3501 = vlaneseq
  %v3502 = vshrl.u32 %v3501, 7
  %v3503 = vsub.s32 3, %v3502
  %v3504 = vrot.slane %v3487, %v3503
  %v3511 = vcombine.high %v3093, %v3093
  %v3513 = vunpack.c.l.s4 1966171168
  %v3514 = vunpack.c.0.s8 %v3513
  %v3515 = vlaneseq
  %v3516 = vshrl.u32 %v3515, 7
  %v3517 = vsub.s32 %v3514, %v3516
  %v3518 = vrot.slane %v3093, %v3517
  %v3520 = vunpack.c.l.s4 1966171168
  %v3521 = vunpack.c.0.s8 %v3520
  %v3522 = vlaneseq
  %v3523 = vshrl.u32 %v3522, 7
  %v3524 = vsub.s32 %v3521, %v3523
  %v3525 = vrot.slane %v3511, %v3524
  %v3526 = vcombine.high %v3518, %v3518
  %v3527 = vcombine.high %v3525, %v3525
  %v3529 = vunpack.c.l.s4 1966171168
  %v3530 = vunpack.c.0.s8 %v3529
  %v3531 = vlaneseq
  %v3532 = vshrl.u32 %v3531, 7
  %v3533 = vsub.s32 %v3530, %v3532
  %v3534 = vrot.slane %v3518, %v3533
  %v3536 = vunpack.c.l.s4 1966171168
  %v3537 = vunpack.c.0.s8 %v3536
  %v3538 = vlaneseq
  %v3539 = vshrl.u32 %v3538, 7
  %v3540 = vsub.s32 %v3537, %v3539
  %v3541 = vrot.slane %v3525, %v3540
  %v3543 = vunpack.c.l.s4 1966171168
  %v3544 = vunpack.c.0.s8 %v3543
  %v3545 = vlaneseq
  %v3546 = vshrl.u32 %v3545, 7
  %v3547 = vsub.s32 %v3544, %v3546
  %v3548 = vrot.slane %v3526, %v3547
  %v3550 = vunpack.c.l.s4 1966171168
  %v3551 = vunpack.c.0.s8 %v3550
  %v3552 = vlaneseq
  %v3553 = vshrl.u32 %v3552, 7
  %v3554 = vsub.s32 %v3551, %v3553
  %v3555 = vrot.slane %v3527, %v3554
  %v3556 = vcombine.high %v3534, %v3534
  %v3557 = vcombine.high %v3541, %v3541
  %v3558 = vcombine.high %v3548, %v3548
  %v3559 = vcombine.high %v3555, %v3555
  %v3560 = vcombine.high %v3094, %v3094
  %v3562 = vunpack.c.l.s4 1966171168
  %v3563 = vunpack.c.0.s8 %v3562
  %v3564 = vlaneseq
  %v3565 = vshrl.u32 %v3564, 7
  %v3566 = vsub.s32 %v3563, %v3565
  %v3567 = vrot.slane %v3094, %v3566
  %v3569 = vunpack.c.l.s4 1966171168
  %v3570 = vunpack.c.0.s8 %v3569
  %v3571 = vlaneseq
  %v3572 = vshrl.u32 %v3571, 7
  %v3573 = vsub.s32 %v3570, %v3572
  %v3574 = vrot.slane %v3560, %v3573
  %v3575 = vcombine.high %v3567, %v3567
  %v3577 = vunpack.c.l.s4 1966171168
  %v3578 = vunpack.c.0.s8 %v3577
  %v3579 = vlaneseq
  %v3580 = vshrl.u32 %v3579, 7
  %v3581 = vsub.s32 %v3578, %v3580
  %v3582 = vrot.slane %v3567, %v3581
  %v3584 = vunpack.c.l.s4 1966171168
  %v3585 = vunpack.c.0.s8 %v3584
  %v3586 = vlaneseq
  %v3587 = vshrl.u32 %v3586, 7
  %v3588 = vsub.s32 %v3585, %v3587
  %v3589 = vrot.slane %v3574, %v3588
  %v3591 = vunpack.c.l.s4 1966171168
  %v3592 = vunpack.c.0.s8 %v3591
  %v3593 = vlaneseq
  %v3594 = vshrl.u32 %v3593, 7
  %v3595 = vsub.s32 %v3592, %v3594
  %v3596 = vrot.slane %v3575, %v3595
  %v3597 = vcombine.high %v3582, %v3582
  %v3598 = vcombine.high %v3596, %v3596
  %v4003 = vunpack.c.l.b16 %v3095
  %v4004 = vunpack.c.h.b16 %v3095
  %v4005 = vunpack.c.l.b16 %v3096
  %v4006 = vunpack.c.h.b16 %v3096
  %v4007 = vunpack.c.l.b16 %v3097
  %v4008 = vunpack.c.h.b16 %v3097
  %v4009 = vunpack.c.l.b16 %v3098
  %v4010 = vunpack.c.h.b16 %v3098
  %v4011 = vunpack.c.l.b16 %v3099
  %v4012 = vunpack.c.h.b16 %v3099
  %v4013 = vunpack.c.l.b16 %v3100
  %v4014 = vunpack.c.h.b16 %v3100
  %v4015 = vunpack.c.l.b16 %v3101
  %v4016 = vunpack.c.h.b16 %v3101
  %v4017 = vunpack.c.l.b16 %v3102
  %v4018 = vunpack.c.h.b16 %v3102
  %v4019 = vunpack.c.l.b16 %v3103
  %v4020 = vunpack.c.h.b16 %v3103
  %v4021 = vunpack.c.l.b16 %v3104
  %v4022 = vunpack.c.h.b16 %v3104
  %v4023 = vunpack.c.l.b16 %v3105
  %v4024 = vunpack.c.h.b16 %v3105
  %v4025 = vunpack.c.l.b16 %v3106
  %v4026 = vunpack.c.h.b16 %v3106
  %v4027 = vunpack.c.l.b16 %v3107
  %v4028 = vunpack.c.h.b16 %v3107
  %v4029 = vunpack.c.l.b16 %v3108
  %v4030 = vunpack.c.h.b16 %v3108
  %v4031 = vunpack.c.l.b16 %v3109
  %v4032 = vunpack.c.h.b16 %v3109
  %v4033 = vunpack.c.l.b16 %v3110
  %v4034 = vunpack.c.h.b16 %v3110
  %v4035 = vunpack.c.l.b16 %v3111
  %v4036 = vunpack.c.h.b16 %v3111
  %v4037 = vunpack.c.l.b16 %v3112
  %v4038 = vunpack.c.h.b16 %v3112
  %v4039 = vunpack.c.l.b16 %v3113
  %v4040 = vunpack.c.h.b16 %v3113
  %v4041 = vunpack.c.l.b16 %v3114
  %v4042 = vunpack.c.h.b16 %v3114
  %v4043 = vunpack.c.l.b16 %v3115
  %v4044 = vunpack.c.h.b16 %v3115
  %v4045 = vunpack.c.l.b16 %v3116
  %v4046 = vunpack.c.h.b16 %v3116
  %v4047 = vunpack.c.l.b16 %v3117
  %v4048 = vunpack.c.h.b16 %v3117
  %v4049 = vunpack.c.l.b16 %v3118
  %v4050 = vunpack.c.h.b16 %v3118
  %v4051 = vunpack.c.l.b16 %v3119
  %v4052 = vunpack.c.h.b16 %v3119
  %v4053 = vunpack.c.l.b16 %v3120
  %v4054 = vunpack.c.h.b16 %v3120
  %v4055 = vunpack.c.l.b16 %v3121
  %v4056 = vunpack.c.h.b16 %v3121
  %v4057 = vunpack.c.l.b16 %v3122
  %v4058 = vunpack.c.h.b16 %v3122
  %v4059 = vunpack.c.l.b16 %v3123
  %v4060 = vunpack.c.h.b16 %v3123
  %v4061 = vunpack.c.l.b16 %v3124
  %v4062 = vunpack.c.h.b16 %v3124
  %v4063 = vunpack.c.l.b16 %v3125
  %v4064 = vunpack.c.h.b16 %v3125
  %v4065 = vunpack.c.l.b16 %v3126
  %v4066 = vunpack.c.h.b16 %v3126
  %v4067 = vunpack.c.l.b16 %v3127
  %v4068 = vunpack.c.h.b16 %v3127
  %v4069 = vunpack.c.l.b16 %v3128
  %v4070 = vunpack.c.h.b16 %v3128
  %v4071 = vunpack.c.l.b16 %v3129
  %v4072 = vunpack.c.h.b16 %v3129
  %v4073 = vunpack.c.l.b16 %v3130
  %v4074 = vunpack.c.h.b16 %v3130
  %v4075 = vunpack.c.l.b16 %v3131
  %v4076 = vunpack.c.h.b16 %v3131
  %v4077 = vunpack.c.l.b16 %v3132
  %v4078 = vunpack.c.h.b16 %v3132
  %v4079 = vunpack.c.l.b16 %v3133
  %v4080 = vunpack.c.h.b16 %v3133
  %v4081 = vunpack.c.l.b16 %v3134
  %v4082 = vunpack.c.h.b16 %v3134
  %v4083 = vunpack.c.l.b16 %v3135
  %v4084 = vunpack.c.h.b16 %v3135
  %v4085 = vunpack.c.l.b16 %v3136
  %v4086 = vunpack.c.h.b16 %v3136
  %v4087 = vunpack.c.l.b16 %v3137
  %v4088 = vunpack.c.h.b16 %v3137
  %v4089 = vunpack.c.l.b16 %v3138
  %v4090 = vunpack.c.h.b16 %v3138
  %v4091 = vunpack.c.l.b16 %v3139
  %v4092 = vunpack.c.h.b16 %v3139
  %v4093 = vunpack.c.l.b16 %v3140
  %v4094 = vunpack.c.h.b16 %v3140
  %v4095 = vunpack.c.l.b16 %v3141
  %v4096 = vunpack.c.h.b16 %v3141
  %v4097 = vunpack.c.l.b16 %v3142
  %v4098 = vunpack.c.h.b16 %v3142
  %v4099 = vunpack.c.l.b16 %v3143
  %v4100 = vunpack.c.h.b16 %v3143
  %v4101 = vunpack.c.l.b16 %v3144
  %v4102 = vunpack.c.h.b16 %v3144
  %v4103 = vunpack.c.l.b16 %v3145
  %v4104 = vunpack.c.h.b16 %v3145
  %v4105 = vunpack.c.l.b16 %v3146
  %v4106 = vunpack.c.h.b16 %v3146
  %v4107 = vunpack.c.l.b16 %v3147
  %v4108 = vunpack.c.h.b16 %v3147
  %v4109 = vunpack.c.l.b16 %v3148
  %v4110 = vunpack.c.h.b16 %v3148
  %v4111 = vunpack.c.l.b16 %v3149
  %v4112 = vunpack.c.h.b16 %v3149
  %v4113 = vunpack.c.l.b16 %v3150
  %v4114 = vunpack.c.h.b16 %v3150
  %v4115 = vunpack.c.l.b16 %v3151
  %v4116 = vunpack.c.h.b16 %v3151
  %v4117 = vunpack.c.l.b16 %v3152
  %v4118 = vunpack.c.h.b16 %v3152
  %v4119 = vunpack.c.l.b16 %v3153
  %v4120 = vunpack.c.h.b16 %v3153
  %v4121 = vunpack.c.l.b16 %v3154
  %v4122 = vunpack.c.h.b16 %v3154
  %v4123 = vunpack.c.l.b16 %v3155
  %v4124 = vunpack.c.h.b16 %v3155
  %v4125 = vunpack.c.l.b16 %v3156
  %v4126 = vunpack.c.h.b16 %v3156
  %v4127 = vunpack.c.l.b16 %v3157
  %v4128 = vunpack.c.h.b16 %v3157
  %v4129 = vunpack.c.l.b16 %v3158
  %v4130 = vunpack.c.h.b16 %v3158
  %v4131 = vunpack.c.l.b16 %v3159
  %v4132 = vunpack.c.h.b16 %v3159
  %v4133 = vunpack.c.l.b16 %v3160
  %v4134 = vunpack.c.h.b16 %v3160
  %v4135 = vunpack.c.l.b16 %v3161
  %v4136 = vunpack.c.h.b16 %v3161
  %v4137 = vunpack.c.l.b16 %v3162
  %v4138 = vunpack.c.h.b16 %v3162
  %v4139 = vunpack.c.l.b16 %v3163
  %v4140 = vunpack.c.h.b16 %v3163
  %v4141 = vunpack.c.l.b16 %v3164
  %v4142 = vunpack.c.h.b16 %v3164
  %v4143 = vunpack.c.l.b16 %v3165
  %v4144 = vunpack.c.h.b16 %v3165
  %v4145 = vunpack.c.l.b16 %v3166
  %v4146 = vunpack.c.h.b16 %v3166
  %v4147 = vunpack.c.l.b16 %v3167
  %v4148 = vunpack.c.h.b16 %v3167
  %v4149 = vunpack.c.l.b16 %v3168
  %v4150 = vunpack.c.h.b16 %v3168
  %v4151 = vunpack.c.l.b16 %v3169
  %v4152 = vunpack.c.h.b16 %v3169
  %v4153 = vunpack.c.l.b16 %v3170
  %v4154 = vunpack.c.h.b16 %v3170
  %v4155 = vunpack.c.l.b16 %v3171
  %v4156 = vunpack.c.h.b16 %v3171
  %v4157 = vunpack.c.l.b16 %v3172
  %v4158 = vunpack.c.h.b16 %v3172
  %v4159 = vunpack.c.l.b16 %v3173
  %v4160 = vunpack.c.h.b16 %v3173
  %v4161 = vunpack.c.l.b16 %v3174
  %v4162 = vunpack.c.h.b16 %v3174
  %v4163 = vunpack.c.l.b16 %v3175
  %v4164 = vunpack.c.h.b16 %v3175
  %v4165 = vunpack.c.l.b16 %v3176
  %v4166 = vunpack.c.h.b16 %v3176
  %v4167 = vunpack.c.l.b16 %v3177
  %v4168 = vunpack.c.h.b16 %v3177
  %v4169 = vunpack.c.l.b16 %v3178
  %v4170 = vunpack.c.h.b16 %v3178
  %v4171 = vunpack.c.l.b16 %v3179
  %v4172 = vunpack.c.h.b16 %v3179
  %v4173 = vunpack.c.l.b16 %v3180
  %v4174 = vunpack.c.h.b16 %v3180
  %v4175 = vunpack.c.l.b16 %v3181
  %v4176 = vunpack.c.h.b16 %v3181
  %v4177 = vunpack.c.l.b16 %v3182
  %v4178 = vunpack.c.h.b16 %v3182
  %v4179 = vunpack.c.l.b16 %v3183
  %v4180 = vunpack.c.h.b16 %v3183
  %v4181 = vunpack.c.l.b16 %v3184
  %v4182 = vunpack.c.h.b16 %v3184
  %v4183 = vunpack.c.l.b16 %v3185
  %v4184 = vunpack.c.h.b16 %v3185
  %v4185 = vunpack.c.l.b16 %v3186
  %v4186 = vunpack.c.h.b16 %v3186
  %v4187 = vunpack.c.l.b16 %v3187
  %v4188 = vunpack.c.h.b16 %v3187
  %v4189 = vunpack.c.l.b16 %v3188
  %v4190 = vunpack.c.h.b16 %v3188
  %v4191 = vunpack.c.l.b16 %v3189
  %v4192 = vunpack.c.h.b16 %v3189
  %v4193 = vunpack.c.l.b16 %v3190
  %v4194 = vunpack.c.h.b16 %v3190
  %v4195 = vunpack.c.l.b16 %v3191
  %v4196 = vunpack.c.h.b16 %v3191
  %v4197 = vunpack.c.l.b16 %v3192
  %v4198 = vunpack.c.h.b16 %v3192
  %v4199 = vunpack.c.l.b16 %v3193
  %v4200 = vunpack.c.h.b16 %v3193
  %v4201 = vunpack.c.l.b16 %v3194
  %v4202 = vunpack.c.h.b16 %v3194
  %v4203 = vunpack.c.l.b16 %v3195
  %v4204 = vunpack.c.h.b16 %v3195
  %v4205 = vunpack.c.l.b16 %v3196
  %v4206 = vunpack.c.h.b16 %v3196
  %v4207 = vunpack.c.l.b16 %v3197
  %v4208 = vunpack.c.h.b16 %v3197
  %v4209 = vunpack.c.l.b16 %v3198
  %v4210 = vunpack.c.h.b16 %v3198
  %v4211 = vunpack.c.l.b16 %v3199
  %v4212 = vunpack.c.h.b16 %v3199
  %v4213 = vunpack.c.l.b16 %v3200
  %v4214 = vunpack.c.h.b16 %v3200
  %v4215 = vunpack.c.l.b16 %v3201
  %v4216 = vunpack.c.h.b16 %v3201
  %v4217 = vunpack.c.l.b16 %v3202
  %v4218 = vunpack.c.h.b16 %v3202
  %v4219 = vunpack.c.l.b16 %v3203
  %v4220 = vunpack.c.h.b16 %v3203
  %v4221 = vunpack.c.l.b16 %v3204
  %v4222 = vunpack.c.h.b16 %v3204
  %v4223 = vunpack.c.l.b16 %v3205
  %v4224 = vunpack.c.h.b16 %v3205
  %v4225 = vunpack.c.l.b16 %v3206
  %v4226 = vunpack.c.h.b16 %v3206
  %v4227 = vunpack.c.l.b16 %v3207
  %v4228 = vunpack.c.h.b16 %v3207
  %v4229 = vunpack.c.l.b16 %v3208
  %v4230 = vunpack.c.h.b16 %v3208
  %v4231 = vunpack.c.l.b16 %v3209
  %v4232 = vunpack.c.h.b16 %v3209
  %v4233 = vunpack.c.l.b16 %v3210
  %v4234 = vunpack.c.h.b16 %v3210
  %v4235 = vunpack.c.l.b16 %v3211
  %v4236 = vunpack.c.h.b16 %v3211
  %v4237 = vunpack.c.l.b16 %v3212
  %v4238 = vunpack.c.h.b16 %v3212
  %v4239 = vunpack.c.l.b16 %v3213
  %v4240 = vunpack.c.h.b16 %v3213
  %v4241 = vunpack.c.l.b16 %v3214
  %v4242 = vunpack.c.h.b16 %v3214
  %v4243 = vunpack.c.l.b16 %v3215
  %v4244 = vunpack.c.h.b16 %v3215
  %v4245 = vunpack.c.l.b16 %v3216
  %v4246 = vunpack.c.h.b16 %v3216
  %v4247 = vunpack.c.l.b16 %v3217
  %v4248 = vunpack.c.h.b16 %v3217
  %v4249 = vunpack.c.l.b16 %v3218
  %v4250 = vunpack.c.h.b16 %v3218
  %v4251 = vunpack.c.l.b16 %v3219
  %v4252 = vunpack.c.h.b16 %v3219
  %v4253 = vunpack.c.l.b16 %v3220
  %v4254 = vunpack.c.h.b16 %v3220
  %v4255 = vunpack.c.l.b16 %v3221
  %v4256 = vunpack.c.h.b16 %v3221
  %v4257 = vunpack.c.l.b16 %v3222
  %v4258 = vunpack.c.h.b16 %v3222
  %v4259 = vunpack.c.l.b16 %v3223
  %v4260 = vunpack.c.h.b16 %v3223
  %v4261 = vunpack.c.l.b16 %v3224
  %v4262 = vunpack.c.h.b16 %v3224
  %v4263 = vunpack.c.l.b16 %v3225
  %v4264 = vunpack.c.h.b16 %v3225
  %v4265 = vunpack.c.l.b16 %v3226
  %v4266 = vunpack.c.h.b16 %v3226
  %v4267 = vunpack.c.l.b16 %v3227
  %v4268 = vunpack.c.h.b16 %v3227
  %v4269 = vunpack.c.l.b16 %v3228
  %v4270 = vunpack.c.h.b16 %v3228
  %v4271 = vunpack.c.l.b16 %v3229
  %v4272 = vunpack.c.h.b16 %v3229
  %v4273 = vunpack.c.l.b16 %v3230
  %v4274 = vunpack.c.h.b16 %v3230
  %v4275 = vunpack.c.l.b16 %v3231
  %v4276 = vunpack.c.h.b16 %v3231
  %v4277 = vunpack.c.l.b16 %v3232
  %v4278 = vunpack.c.h.b16 %v3232
  %v4279 = vunpack.c.l.b16 %v3233
  %v4280 = vunpack.c.h.b16 %v3233
  %v4281 = vunpack.c.l.b16 %v3234
  %v4282 = vunpack.c.h.b16 %v3234
  %v4283 = vunpack.c.l.b16 %v3235
  %v4284 = vunpack.c.h.b16 %v3235
  %v4285 = vunpack.c.l.b16 %v3236
  %v4286 = vunpack.c.h.b16 %v3236
  %v4287 = vunpack.c.l.b16 %v3237
  %v4288 = vunpack.c.h.b16 %v3237
  %v4289 = vunpack.c.l.b16 %v3238
  %v4290 = vunpack.c.h.b16 %v3238
  %v4291 = vunpack.c.l.b16 %v3239
  %v4292 = vunpack.c.h.b16 %v3239
  %v4293 = vunpack.c.l.b16 %v3240
  %v4294 = vunpack.c.h.b16 %v3240
  %v4295 = vunpack.c.l.b16 %v3241
  %v4296 = vunpack.c.h.b16 %v3241
  %v4297 = vunpack.c.l.b16 %v3242
  %v4298 = vunpack.c.h.b16 %v3242
  %v4299 = vunpack.c.l.b16 %v3243
  %v4300 = vunpack.c.h.b16 %v3243
  %v4301 = vunpack.c.l.b16 %v3244
  %v4302 = vunpack.c.h.b16 %v3244
  %v4303 = vunpack.c.l.b16 %v3245
  %v4304 = vunpack.c.h.b16 %v3245
  %v4305 = vunpack.c.l.b16 %v3246
  %v4306 = vunpack.c.h.b16 %v3246
  %v4307 = vunpack.c.l.b16 %v3247
  %v4308 = vunpack.c.h.b16 %v3247
  %v4309 = vunpack.c.l.b16 %v3248
  %v4310 = vunpack.c.h.b16 %v3248
  %v4311 = vunpack.c.l.b16 %v3249
  %v4312 = vunpack.c.h.b16 %v3249
  %v4313 = vunpack.c.l.b16 %v3250
  %v4314 = vunpack.c.h.b16 %v3250
  %v4315 = vunpack.c.l.b16 %v3251
  %v4316 = vunpack.c.h.b16 %v3251
  %v4317 = vunpack.c.l.b16 %v3252
  %v4318 = vunpack.c.h.b16 %v3252
  %v4319 = vunpack.c.l.b16 %v3253
  %v4320 = vunpack.c.h.b16 %v3253
  %v4321 = vunpack.c.l.b16 %v3254
  %v4322 = vunpack.c.h.b16 %v3254
  %v4323 = vunpack.c.l.b16 %v3255
  %v4324 = vunpack.c.h.b16 %v3255
  %v4325 = vunpack.c.l.b16 %v3256
  %v4326 = vunpack.c.h.b16 %v3256
  %v4327 = vunpack.c.l.b16 %v3257
  %v4328 = vunpack.c.h.b16 %v3257
  %v4329 = vunpack.c.l.b16 %v3258
  %v4330 = vunpack.c.h.b16 %v3258
  %v4331 = vunpack.c.l.b16 %v3259
  %v4332 = vunpack.c.h.b16 %v3259
  %v4333 = vunpack.c.l.b16 %v3260
  %v4334 = vunpack.c.h.b16 %v3260
  %v4335 = vunpack.c.l.b16 %v3261
  %v4336 = vunpack.c.h.b16 %v3261
  %v4337 = vunpack.c.l.b16 %v3262
  %v4338 = vunpack.c.h.b16 %v3262
  %v4339 = vunpack.c.l.b16 %v3263
  %v4340 = vunpack.c.h.b16 %v3263
  %v4341 = vunpack.c.l.b16 %v3264
  %v4342 = vunpack.c.h.b16 %v3264
  %v4343 = vunpack.c.l.b16 %v3265
  %v4344 = vunpack.c.h.b16 %v3265
  %v4345 = vunpack.c.l.b16 %v3266
  %v4346 = vunpack.c.h.b16 %v3266
  %v4347 = vunpack.c.l.b16 %v3267
  %v4348 = vunpack.c.h.b16 %v3267
  %v4349 = vunpack.c.l.b16 %v3268
  %v4350 = vunpack.c.h.b16 %v3268
  %v4351 = vunpack.c.l.b16 %v3269
  %v4352 = vunpack.c.h.b16 %v3269
  %v4353 = vunpack.c.l.b16 %v3270
  %v4354 = vunpack.c.h.b16 %v3270
  %v4355 = vunpack.c.l.b16 %v3271
  %v4356 = vunpack.c.h.b16 %v3271
  %v4357 = vunpack.c.l.b16 %v3272
  %v4358 = vunpack.c.h.b16 %v3272
  %v4359 = vunpack.c.l.b16 %v3273
  %v4360 = vunpack.c.h.b16 %v3273
  %v4361 = vunpack.c.l.b16 %v3274
  %v4362 = vunpack.c.h.b16 %v3274
  %v4363 = vunpack.c.l.b16 %v3275
  %v4364 = vunpack.c.h.b16 %v3275
  %v4365 = vunpack.c.l.b16 %v3276
  %v4366 = vunpack.c.h.b16 %v3276
  %v4367 = vunpack.c.l.b16 %v3277
  %v4368 = vunpack.c.h.b16 %v3277
  %v4369 = vunpack.c.l.b16 %v3278
  %v4370 = vunpack.c.h.b16 %v3278
  %v4371 = vunpack.c.l.b16 %v3279
  %v4372 = vunpack.c.h.b16 %v3279
  %v4373 = vunpack.c.l.b16 %v3280
  %v4374 = vunpack.c.h.b16 %v3280
  %v4375 = vunpack.c.l.b16 %v3281
  %v4376 = vunpack.c.h.b16 %v3281
  %v4377 = vunpack.c.l.b16 %v3282
  %v4378 = vunpack.c.h.b16 %v3282
  %v4379 = vunpack.c.l.b16 %v3283
  %v4380 = vunpack.c.h.b16 %v3283
  %v4381 = vunpack.c.l.b16 %v3284
  %v4382 = vunpack.c.h.b16 %v3284
  %v4383 = vunpack.c.l.b16 %v3285
  %v4384 = vunpack.c.h.b16 %v3285
  %v4385 = vunpack.c.l.b16 %v3286
  %v4386 = vunpack.c.h.b16 %v3286
  %v4387 = vunpack.c.l.b16 %v3287
  %v4388 = vunpack.c.h.b16 %v3287
  %v4389 = vunpack.c.l.b16 %v3288
  %v4390 = vunpack.c.h.b16 %v3288
  %v4391 = vunpack.c.l.b16 %v3289
  %v4392 = vunpack.c.h.b16 %v3289
  %v4393 = vunpack.c.l.b16 %v3290
  %v4394 = vunpack.c.h.b16 %v3290
  %v4395 = vunpack.c.l.b16 %v3291
  %v4396 = vunpack.c.h.b16 %v3291
  %v4397 = vunpack.c.l.b16 %v3292
  %v4398 = vunpack.c.h.b16 %v3292
  %v4399 = vunpack.c.l.b16 %v3293
  %v4400 = vunpack.c.h.b16 %v3293
  %v4401 = vunpack.c.l.b16 %v3294
  %v4402 = vunpack.c.h.b16 %v3294
  %v4403 = vunpack.c.l.b16 %v3295
  %v4404 = vunpack.c.h.b16 %v3295
  %v4405 = vunpack.c.l.b16 %v3296
  %v4406 = vunpack.c.h.b16 %v3296
  %v4407 = vunpack.c.l.b16 %v3297
  %v4408 = vunpack.c.h.b16 %v3297
  %v4409 = vunpack.c.l.b16 %v3298
  %v4410 = vunpack.c.h.b16 %v3298
  %v4411 = vunpack.c.l.b16 %v3299
  %v4412 = vunpack.c.h.b16 %v3299
  %v4413 = vunpack.c.l.b16 %v3300
  %v4414 = vunpack.c.h.b16 %v3300
  %v4415 = vunpack.c.l.b16 %v3301
  %v4416 = vunpack.c.h.b16 %v3301
  %v4417 = vunpack.c.l.b16 %v3302
  %v4418 = vunpack.c.h.b16 %v3302
  %v4419 = vunpack.c.l.b16 %v3303
  %v4420 = vunpack.c.h.b16 %v3303
  %v4421 = vunpack.c.l.b16 %v3304
  %v4422 = vunpack.c.h.b16 %v3304
  %v4423 = vunpack.c.l.b16 %v3305
  %v4424 = vunpack.c.h.b16 %v3305
  %v4425 = vunpack.c.l.b16 %v3306
  %v4426 = vunpack.c.h.b16 %v3306
  %v4427 = vunpack.c.l.b16 %v3307
  %v4428 = vunpack.c.h.b16 %v3307
  %v4429 = vunpack.c.l.b16 %v3308
  %v4430 = vunpack.c.h.b16 %v3308
  %v4431 = vunpack.c.l.b16 %v3309
  %v4432 = vunpack.c.h.b16 %v3309
  %v4433 = vunpack.c.l.b16 %v3310
  %v4434 = vunpack.c.h.b16 %v3310
  %v4435 = vunpack.c.l.b16 %v3311
  %v4436 = vunpack.c.h.b16 %v3311
  %v4437 = vunpack.c.l.b16 %v3312
  %v4438 = vunpack.c.h.b16 %v3312
  %v4439 = vunpack.c.l.b16 %v3313
  %v4440 = vunpack.c.h.b16 %v3313
  %v4441 = vunpack.c.l.b16 %v3314
  %v4442 = vunpack.c.h.b16 %v3314
  %v4443 = vunpack.c.l.b16 %v3315
  %v4444 = vunpack.c.h.b16 %v3315
  %v4445 = vunpack.c.l.b16 %v3316
  %v4446 = vunpack.c.h.b16 %v3316
  %v4447 = vunpack.c.l.b16 %v3317
  %v4448 = vunpack.c.h.b16 %v3317
  %v4449 = vunpack.c.l.b16 %v3318
  %v4450 = vunpack.c.h.b16 %v3318
  %v4451 = vunpack.c.l.b16 %v3319
  %v4452 = vunpack.c.h.b16 %v3319
  %v4453 = vunpack.c.l.b16 %v3320
  %v4454 = vunpack.c.h.b16 %v3320
  %v4455 = vunpack.c.l.b16 %v3321
  %v4456 = vunpack.c.h.b16 %v3321
  %v4457 = vunpack.c.l.b16 %v3322
  %v4458 = vunpack.c.h.b16 %v3322
  %v4459 = vunpack.c.l.b16 %v3323
  %v4460 = vunpack.c.h.b16 %v3323
  %v4461 = vunpack.c.l.b16 %v3324
  %v4462 = vunpack.c.h.b16 %v3324
  %v4463 = vunpack.c.l.b16 %v3325
  %v4464 = vunpack.c.h.b16 %v3325
  %v4465 = vunpack.c.l.b16 %v3326
  %v4466 = vunpack.c.h.b16 %v3326
  %v4467 = vunpack.c.l.b16 %v3327
  %v4468 = vunpack.c.h.b16 %v3327
  %v4469 = vunpack.c.l.b16 %v3328
  %v4470 = vunpack.c.h.b16 %v3328
  %v4471 = vunpack.c.l.b16 %v3329
  %v4472 = vunpack.c.h.b16 %v3329
  %v4473 = vunpack.c.l.b16 %v3330
  %v4474 = vunpack.c.h.b16 %v3330
  %v4475 = vunpack.c.l.b16 %v3331
  %v4476 = vunpack.c.h.b16 %v3331
  %v4477 = vunpack.c.l.b16 %v3332
  %v4478 = vunpack.c.h.b16 %v3332
  %v4479 = vunpack.c.l.b16 %v3333
  %v4480 = vunpack.c.h.b16 %v3333
  %v4481 = vunpack.c.l.b16 %v3334
  %v4482 = vunpack.c.h.b16 %v3334
  %v4483 = vunpack.c.l.b16 %v3335
  %v4484 = vunpack.c.h.b16 %v3335
  %v4485 = vunpack.c.l.b16 %v3336
  %v4486 = vunpack.c.h.b16 %v3336
  %v4487 = vunpack.c.l.b16 %v3337
  %v4488 = vunpack.c.h.b16 %v3337
  %v4489 = vunpack.c.l.b16 %v3338
  %v4490 = vunpack.c.h.b16 %v3338
  %v4491 = vunpack.c.l.b16 %v3339
  %v4492 = vunpack.c.h.b16 %v3339
  %v4493 = vunpack.c.l.b16 %v3340
  %v4494 = vunpack.c.h.b16 %v3340
  %v4495 = vunpack.c.l.b16 %v3341
  %v4496 = vunpack.c.h.b16 %v3341
  %v4497 = vunpack.c.l.b16 %v3342
  %v4498 = vunpack.c.h.b16 %v3342
  %v4499 = vunpack.c.l.b16 %v3343
  %v4500 = vunpack.c.h.b16 %v3343
  %v4501 = vunpack.c.l.b16 %v3344
  %v4502 = vunpack.c.h.b16 %v3344
  %v4503 = vunpack.c.l.b16 %v3345
  %v4504 = vunpack.c.h.b16 %v3345
  %v4505 = vunpack.c.l.b16 %v3346
  %v4506 = vunpack.c.h.b16 %v3346
  %v4507 = vunpack.c.l.b16 %v3347
  %v4508 = vunpack.c.h.b16 %v3347
  %v4509 = vunpack.c.l.b16 %v3348
  %v4510 = vunpack.c.h.b16 %v3348
  %v4511 = vunpack.c.l.b16 %v3349
  %v4512 = vunpack.c.h.b16 %v3349
  %v4513 = vunpack.c.l.b16 %v3350
  %v4514 = vunpack.c.h.b16 %v3350
  %v4515 = vunpack.c.l.b16 %v3351
  %v4516 = vunpack.c.h.b16 %v3351
  %v4517 = vunpack.c.l.b16 %v3352
  %v4518 = vunpack.c.h.b16 %v3352
  %v4519 = vunpack.c.l.b16 %v3353
  %v4520 = vunpack.c.h.b16 %v3353
  %v4521 = vunpack.c.l.b16 %v3354
  %v4522 = vunpack.c.h.b16 %v3354
  %v4523 = vunpack.c.l.b16 %v3355
  %v4524 = vunpack.c.h.b16 %v3355
  %v4525 = vunpack.c.l.b16 %v3356
  %v4526 = vunpack.c.h.b16 %v3356
  %v4527 = vunpack.c.l.b16 %v3357
  %v4528 = vunpack.c.h.b16 %v3357
  %v4529 = vunpack.c.l.b16 %v3358
  %v4530 = vunpack.c.h.b16 %v3358
  %v4531 = vunpack.c.l.b16 %v3359
  %v4532 = vunpack.c.h.b16 %v3359
  %v4533 = vunpack.c.l.b16 %v3360
  %v4534 = vunpack.c.h.b16 %v3360
  %v4535 = vunpack.c.l.b16 %v3361
  %v4536 = vunpack.c.h.b16 %v3361
  %v4537 = vunpack.c.l.b16 %v3362
  %v4538 = vunpack.c.h.b16 %v3362
  %v4539 = vunpack.c.l.b16 %v3363
  %v4540 = vunpack.c.h.b16 %v3363
  %v4541 = vunpack.c.l.b16 %v3364
  %v4542 = vunpack.c.h.b16 %v3364
  %v4543 = vunpack.c.l.b16 %v3365
  %v4544 = vunpack.c.h.b16 %v3365
  %v4545 = vunpack.c.l.b16 %v3366
  %v4546 = vunpack.c.h.b16 %v3366
  %v4547 = vunpack.c.l.b16 %v3367
  %v4548 = vunpack.c.h.b16 %v3367
  %v4549 = vunpack.c.l.b16 %v3368
  %v4550 = vunpack.c.h.b16 %v3368
  %v4551 = vunpack.c.l.b16 %v3369
  %v4552 = vunpack.c.h.b16 %v3369
  %v4553 = vunpack.c.l.b16 %v3370
  %v4554 = vunpack.c.h.b16 %v3370
  %v4555 = vunpack.c.l.b16 %v3371
  %v4556 = vunpack.c.h.b16 %v3371
  %v4557 = vunpack.c.l.b16 %v3372
  %v4558 = vunpack.c.h.b16 %v3372
  %v4559 = vunpack.c.l.b16 %v3373
  %v4560 = vunpack.c.h.b16 %v3373
  %v4561 = vunpack.c.l.b16 %v3374
  %v4562 = vunpack.c.h.b16 %v3374
  %v4563 = vunpack.c.l.b16 %v3375
  %v4564 = vunpack.c.h.b16 %v3375
  %v4565 = vunpack.c.l.b16 %v3376
  %v4566 = vunpack.c.h.b16 %v3376
  %v4567 = vunpack.c.l.b16 %v3377
  %v4568 = vunpack.c.h.b16 %v3377
  %v4569 = vunpack.c.l.b16 %v3378
  %v4570 = vunpack.c.h.b16 %v3378
  %v4571 = vunpack.c.l.b16 %v3379
  %v4572 = vunpack.c.h.b16 %v3379
  %v4573 = vunpack.c.l.b16 %v3380
  %v4574 = vunpack.c.h.b16 %v3380
  %v4575 = vunpack.c.l.b16 %v3381
  %v4576 = vunpack.c.h.b16 %v3381
  %v4577 = vunpack.c.l.b16 %v3382
  %v4578 = vunpack.c.h.b16 %v3382
  %v4579 = vunpack.c.l.b16 %v3383
  %v4580 = vunpack.c.h.b16 %v3383
  %v4581 = vunpack.c.l.b16 %v3384
  %v4582 = vunpack.c.h.b16 %v3384
  %v4583 = vunpack.c.l.b16 %v3385
  %v4584 = vunpack.c.h.b16 %v3385
  %v4585 = vunpack.c.l.b16 %v3386
  %v4586 = vunpack.c.h.b16 %v3386
  %v4587 = vunpack.c.l.b16 %v3387
  %v4588 = vunpack.c.h.b16 %v3387
  %v4589 = vunpack.c.l.b16 %v3388
  %v4590 = vunpack.c.h.b16 %v3388
  %v4591 = vunpack.c.l.b16 %v3389
  %v4592 = vunpack.c.h.b16 %v3389
  %v4593 = vunpack.c.l.b16 %v3390
  %v4594 = vunpack.c.h.b16 %v3390
  %v4595 = vunpack.c.l.b16 %v3391
  %v4596 = vunpack.c.h.b16 %v3391
  %v4597 = vunpack.c.l.b16 %v3392
  %v4598 = vunpack.c.h.b16 %v3392
  %v4599 = vunpack.c.l.b16 %v3393
  %v4600 = vunpack.c.h.b16 %v3393
  %v4601 = vunpack.c.l.b16 %v3394
  %v4602 = vunpack.c.h.b16 %v3394
  %v4603 = vunpack.c.l.b16 %v3395
  %v4604 = vunpack.c.h.b16 %v3395
  %v4605 = vunpack.c.l.b16 %v3396
  %v4606 = vunpack.c.h.b16 %v3396
  %v4607 = vunpack.c.l.b16 %v3397
  %v4608 = vunpack.c.h.b16 %v3397
  %v4609 = vunpack.c.l.b16 %v3398
  %v4610 = vunpack.c.h.b16 %v3398
  %v4611 = vunpack.c.l.b16 %v3399
  %v4612 = vunpack.c.h.b16 %v3399
  %v4613 = vunpack.c.l.b16 %v3400
  %v4614 = vunpack.c.h.b16 %v3400
  %v4615 = vunpack.c.l.b16 %v3401
  %v4616 = vunpack.c.h.b16 %v3401
  %v4617 = vunpack.c.l.b16 %v3402
  %v4618 = vunpack.c.h.b16 %v3402
  %v4619 = vunpack.c.l.b16 %v3403
  %v4620 = vunpack.c.h.b16 %v3403
  %v4621 = vunpack.c.l.b16 %v3404
  %v4622 = vunpack.c.h.b16 %v3404
  %v4623 = vunpack.c.l.b16 %v3405
  %v4624 = vunpack.c.h.b16 %v3405
  %v4625 = vunpack.c.l.b16 %v3406
  %v4626 = vunpack.c.h.b16 %v3406
  %v4627 = vunpack.c.l.b16 %v3407
  %v4628 = vunpack.c.h.b16 %v3407
  %v4629 = vunpack.c.l.b16 %v3408
  %v4630 = vunpack.c.h.b16 %v3408
  %v4631 = vunpack.c.l.b16 %v3409
  %v4632 = vunpack.c.h.b16 %v3409
  %v4633 = vunpack.c.l.b16 %v3410
  %v4634 = vunpack.c.h.b16 %v3410
  %v4635 = vunpack.c.l.b16 %v3411
  %v4636 = vunpack.c.h.b16 %v3411
  %v4637 = vunpack.c.l.b16 %v3412
  %v4638 = vunpack.c.h.b16 %v3412
  %v4639 = vunpack.c.l.b16 %v3413
  %v4640 = vunpack.c.h.b16 %v3413
  %v4641 = vunpack.c.l.b16 %v3414
  %v4642 = vunpack.c.h.b16 %v3414
  %v4643 = vunpack.c.l.b16 %v3415
  %v4644 = vunpack.c.h.b16 %v3415
  %v4645 = vunpack.c.l.b16 %v3416
  %v4646 = vunpack.c.h.b16 %v3416
  %v4647 = vunpack.c.l.b16 %v3417
  %v4648 = vunpack.c.h.b16 %v3417
  %v4649 = vunpack.c.l.b16 %v3418
  %v4650 = vunpack.c.h.b16 %v3418
  %v4651 = vunpack.c.l.b16 %v3419
  %v4652 = vunpack.c.h.b16 %v3419
  %v4653 = vunpack.c.l.b16 %v3420
  %v4654 = vunpack.c.h.b16 %v3420
  %v4655 = vunpack.c.l.b16 %v3421
  %v4656 = vunpack.c.h.b16 %v3421
  %v4657 = vunpack.c.l.b16 %v3422
  %v4658 = vunpack.c.h.b16 %v3422
  %v4659 = vunpack.c.l.b16 %v3423
  %v4660 = vunpack.c.h.b16 %v3423
  %v4661 = vunpack.c.l.b16 %v3424
  %v4662 = vunpack.c.h.b16 %v3424
  %v4663 = vunpack.c.l.b16 %v3425
  %v4664 = vunpack.c.h.b16 %v3425
  %v4665 = vunpack.c.l.b16 %v3426
  %v4666 = vunpack.c.h.b16 %v3426
  %v4667 = vunpack.c.l.b16 %v3427
  %v4668 = vunpack.c.h.b16 %v3427
  %v4669 = vunpack.c.l.b16 %v3428
  %v4670 = vunpack.c.h.b16 %v3428
  %v4671 = vunpack.c.l.b16 %v3429
  %v4672 = vunpack.c.h.b16 %v3429
  %v4673 = vunpack.c.l.b16 %v3430
  %v4674 = vunpack.c.h.b16 %v3430
  %v4675 = vunpack.c.l.b16 %v3431
  %v4676 = vunpack.c.h.b16 %v3431
  %v4677 = vunpack.c.l.b16 %v3432
  %v4678 = vunpack.c.h.b16 %v3432
  %v4679 = vunpack.c.l.b16 %v3433
  %v4680 = vunpack.c.h.b16 %v3433
  %v4681 = vunpack.c.l.b16 %v3434
  %v4682 = vunpack.c.h.b16 %v3434
  %v4683 = vunpack.c.l.b16 %v3435
  %v4684 = vunpack.c.h.b16 %v3435
  %v4685 = vunpack.c.l.b16 %v3436
  %v4686 = vunpack.c.h.b16 %v3436
  %v4687 = vunpack.c.l.b16 %v3437
  %v4688 = vunpack.c.h.b16 %v3437
  %v4689 = vunpack.c.l.b16 %v3438
  %v4690 = vunpack.c.h.b16 %v3438
  %v4691 = vunpack.c.l.b16 %v3439
  %v4692 = vunpack.c.h.b16 %v3439
  %v4693 = vunpack.c.l.b16 %v3440
  %v4694 = vunpack.c.h.b16 %v3440
  %v4695 = vunpack.c.l.b16 %v3441
  %v4696 = vunpack.c.h.b16 %v3441
  %v4697 = vunpack.c.l.b16 %v3442
  %v4698 = vunpack.c.h.b16 %v3442
  %v4699 = vunpack.c.l.b16 %v3443
  %v4700 = vunpack.c.h.b16 %v3443
  %v4701 = vunpack.c.l.b16 %v3444
  %v4702 = vunpack.c.h.b16 %v3444
  %v4703 = vunpack.c.l.b16 %v3445
  %v4704 = vunpack.c.h.b16 %v3445
  %v4705 = vunpack.c.l.b16 %v3446
  %v4706 = vunpack.c.h.b16 %v3446
  %v4707 = vunpack.c.l.b16 %v3447
  %v4708 = vunpack.c.h.b16 %v3447
  %v4709 = vunpack.c.l.b16 %v3448
  %v4710 = vunpack.c.h.b16 %v3448
  %v4711 = vunpack.c.l.b16 %v3449
  %v4712 = vunpack.c.h.b16 %v3449
  %v4713 = vunpack.c.l.b16 %v3450
  %v4714 = vunpack.c.h.b16 %v3450
  %v4715 = vunpack.c.l.b16 %v3451
  %v4716 = vunpack.c.h.b16 %v3451
  %v4717 = vunpack.c.l.b16 %v3452
  %v4718 = vunpack.c.h.b16 %v3452
  %v4719 = vunpack.c.l.b16 %v3453
  %v4720 = vunpack.c.h.b16 %v3453
  %v4721 = vunpack.c.l.b16 %v3454
  %v4722 = vunpack.c.h.b16 %v3454
  %v4723 = vunpack.c.l.b16 %v3455
  %v4724 = vunpack.c.h.b16 %v3455
  %v4725 = vunpack.c.l.b16 %v3456
  %v4726 = vunpack.c.h.b16 %v3456
  %v4727 = vunpack.c.l.b16 %v3457
  %v4728 = vunpack.c.h.b16 %v3457
  %v4729 = vunpack.c.l.b16 %v3458
  %v4730 = vunpack.c.h.b16 %v3458
  %v4731 = vunpack.c.l.b16 %v3459
  %v4732 = vunpack.c.h.b16 %v3459
  %v4733 = vunpack.c.l.b16 %v3460
  %v4734 = vunpack.c.h.b16 %v3460
  %v4735 = vunpack.c.l.b16 %v3461
  %v4736 = vunpack.c.h.b16 %v3461
  %v4737 = vunpack.c.l.b16 %v3462
  %v4738 = vunpack.c.h.b16 %v3462
  %v4739 = vunpack.c.l.b16 %v3463
  %v4740 = vunpack.c.h.b16 %v3463
  %v4741 = vunpack.c.l.b16 %v3464
  %v4742 = vunpack.c.h.b16 %v3464
  %v4743 = vunpack.c.l.b16 %v3465
  %v4744 = vunpack.c.h.b16 %v3465
  %v4745 = vunpack.c.l.b16 %v3466
  %v4746 = vunpack.c.h.b16 %v3466
  %v4747 = vunpack.c.l.b16 %v3467
  %v4748 = vunpack.c.h.b16 %v3467
  %v4749 = vunpack.c.l.b16 %v3468
  %v4750 = vunpack.c.h.b16 %v3468
  %v4751 = vunpack.c.l.b16 %v3469
  %v4752 = vunpack.c.h.b16 %v3469
  %v4753 = vunpack.c.l.b16 %v3470
  %v4754 = vunpack.c.h.b16 %v3470
  %v4755 = vunpack.c.l.b16 %v3471
  %v4756 = vunpack.c.h.b16 %v3471
  %v4757 = vunpack.c.l.b16 %v3472
  %v4758 = vunpack.c.h.b16 %v3472
  %v4759 = vunpack.c.l.b16 %v3473
  %v4760 = vunpack.c.h.b16 %v3473
  %v4761 = vunpack.c.l.b16 %v3474
  %v4762 = vunpack.c.h.b16 %v3474
  %v4763 = vunpack.c.l.b16 %v3475
  %v4764 = vunpack.c.h.b16 %v3475
  %v4765 = vunpack.c.l.b16 %v3476
  %v4766 = vunpack.c.h.b16 %v3476
  %v4767 = vunpack.c.l.b16 %v3477
  %v4768 = vunpack.c.h.b16 %v3477
  %v4769 = vunpack.c.l.b16 %v3478
  %v4770 = vunpack.c.h.b16 %v3478
  %v4771 = vunpack.c.l.b16 %v3479
  %v4772 = vunpack.c.h.b16 %v3479
  %v4773 = vunpack.c.l.b16 %v3480
  %v4774 = vunpack.c.h.b16 %v3480
  %v4775 = vunpack.c.l.b16 %v3481
  %v4776 = vunpack.c.h.b16 %v3481
  %v4777 = vunpack.c.l.b16 %v3482
  %v4778 = vunpack.c.h.b16 %v3482
  %v4779 = vunpack.c.l.b16 %v3483
  %v4780 = vunpack.c.h.b16 %v3483
  %v4781 = vunpack.c.l.b16 %v3484
  %v4782 = vunpack.c.h.b16 %v3484
  %v4783 = vunpack.c.l.b16 %v3485
  %v4784 = vunpack.c.h.b16 %v3485
  %v4785 = vunpack.c.l.b16 %v3486
  %v4786 = vunpack.c.h.b16 %v3486
  %v4787 = vpack.c.b16 %v4007, %v4003
  %v4788 = vpack.c.b16 %v4008, %v4004
  %v4789 = vpack.c.b16 %v4009, %v4005
  %v4790 = vpack.c.b16 %v4010, %v4006
  %v4791 = vpack.c.b16 %v4015, %v4011
  %v4792 = vpack.c.b16 %v4016, %v4012
  %v4793 = vpack.c.b16 %v4017, %v4013
  %v4794 = vpack.c.b16 %v4018, %v4014
  %v4795 = vpack.c.b16 %v4023, %v4019
  %v4796 = vpack.c.b16 %v4024, %v4020
  %v4797 = vpack.c.b16 %v4025, %v4021
  %v4798 = vpack.c.b16 %v4026, %v4022
  %v4799 = vpack.c.b16 %v4031, %v4027
  %v4800 = vpack.c.b16 %v4032, %v4028
  %v4801 = vpack.c.b16 %v4033, %v4029
  %v4802 = vpack.c.b16 %v4034, %v4030
  %v4803 = vpack.c.b16 %v4039, %v4035
  %v4804 = vpack.c.b16 %v4040, %v4036
  %v4805 = vpack.c.b16 %v4041, %v4037
  %v4806 = vpack.c.b16 %v4042, %v4038
  %v4807 = vpack.c.b16 %v4047, %v4043
  %v4808 = vpack.c.b16 %v4048, %v4044
  %v4809 = vpack.c.b16 %v4049, %v4045
  %v4810 = vpack.c.b16 %v4050, %v4046
  %v4811 = vpack.c.b16 %v4055, %v4051
  %v4812 = vpack.c.b16 %v4056, %v4052
  %v4813 = vpack.c.b16 %v4057, %v4053
  %v4814 = vpack.c.b16 %v4058, %v4054
  %v4815 = vpack.c.b16 %v4063, %v4059
  %v4816 = vpack.c.b16 %v4064, %v4060
  %v4817 = vpack.c.b16 %v4065, %v4061
  %v4818 = vpack.c.b16 %v4066, %v4062
  %v4819 = vpack.c.b16 %v4071, %v4067
  %v4820 = vpack.c.b16 %v4072, %v4068
  %v4821 = vpack.c.b16 %v4073, %v4069
  %v4822 = vpack.c.b16 %v4074, %v4070
  %v4823 = vpack.c.b16 %v4079, %v4075
  %v4824 = vpack.c.b16 %v4080, %v4076
  %v4825 = vpack.c.b16 %v4081, %v4077
  %v4826 = vpack.c.b16 %v4082, %v4078
  %v4827 = vpack.c.b16 %v4087, %v4083
  %v4828 = vpack.c.b16 %v4088, %v4084
  %v4829 = vpack.c.b16 %v4089, %v4085
  %v4830 = vpack.c.b16 %v4090, %v4086
  %v4831 = vpack.c.b16 %v4095, %v4091
  %v4832 = vpack.c.b16 %v4096, %v4092
  %v4833 = vpack.c.b16 %v4097, %v4093
  %v4834 = vpack.c.b16 %v4098, %v4094
  %v4835 = vpack.c.b16 %v4103, %v4099
  %v4836 = vpack.c.b16 %v4104, %v4100
  %v4837 = vpack.c.b16 %v4105, %v4101
  %v4838 = vpack.c.b16 %v4106, %v4102
  %v4839 = vpack.c.b16 %v4111, %v4107
  %v4840 = vpack.c.b16 %v4112, %v4108
  %v4841 = vpack.c.b16 %v4113, %v4109
  %v4842 = vpack.c.b16 %v4114, %v4110
  %v4843 = vpack.c.b16 %v4119, %v4115
  %v4844 = vpack.c.b16 %v4120, %v4116
  %v4845 = vpack.c.b16 %v4121, %v4117
  %v4846 = vpack.c.b16 %v4122, %v4118
  %v4847 = vpack.c.b16 %v4127, %v4123
  %v4848 = vpack.c.b16 %v4128, %v4124
  %v4849 = vpack.c.b16 %v4129, %v4125
  %v4850 = vpack.c.b16 %v4130, %v4126
  %v4851 = vpack.c.b16 %v4135, %v4131
  %v4852 = vpack.c.b16 %v4136, %v4132
  %v4853 = vpack.c.b16 %v4137, %v4133
  %v4854 = vpack.c.b16 %v4138, %v4134
  %v4855 = vpack.c.b16 %v4143, %v4139
  %v4856 = vpack.c.b16 %v4144, %v4140
  %v4857 = vpack.c.b16 %v4145, %v4141
  %v4858 = vpack.c.b16 %v4146, %v4142
  %v4859 = vpack.c.b16 %v4151, %v4147
  %v4860 = vpack.c.b16 %v4152, %v4148
  %v4861 = vpack.c.b16 %v4153, %v4149
  %v4862 = vpack.c.b16 %v4154, %v4150
  %v4863 = vpack.c.b16 %v4159, %v4155
  %v4864 = vpack.c.b16 %v4160, %v4156
  %v4865 = vpack.c.b16 %v4161, %v4157
  %v4866 = vpack.c.b16 %v4162, %v4158
  %v4867 = vpack.c.b16 %v4167, %v4163
  %v4868 = vpack.c.b16 %v4168, %v4164
  %v4869 = vpack.c.b16 %v4169, %v4165
  %v4870 = vpack.c.b16 %v4170, %v4166
  %v4871 = vpack.c.b16 %v4175, %v4171
  %v4872 = vpack.c.b16 %v4176, %v4172
  %v4873 = vpack.c.b16 %v4177, %v4173
  %v4874 = vpack.c.b16 %v4178, %v4174
  %v4875 = vpack.c.b16 %v4183, %v4179
  %v4876 = vpack.c.b16 %v4184, %v4180
  %v4877 = vpack.c.b16 %v4185, %v4181
  %v4878 = vpack.c.b16 %v4186, %v4182
  %v4879 = vpack.c.b16 %v4191, %v4187
  %v4880 = vpack.c.b16 %v4192, %v4188
  %v4881 = vpack.c.b16 %v4193, %v4189
  %v4882 = vpack.c.b16 %v4194, %v4190
  %v4883 = vpack.c.b16 %v4199, %v4195
  %v4884 = vpack.c.b16 %v4200, %v4196
  %v4885 = vpack.c.b16 %v4201, %v4197
  %v4886 = vpack.c.b16 %v4202, %v4198
  %v4887 = vpack.c.b16 %v4207, %v4203
  %v4888 = vpack.c.b16 %v4208, %v4204
  %v4889 = vpack.c.b16 %v4209, %v4205
  %v4890 = vpack.c.b16 %v4210, %v4206
  %v4891 = vpack.c.b16 %v4215, %v4211
  %v4892 = vpack.c.b16 %v4216, %v4212
  %v4893 = vpack.c.b16 %v4217, %v4213
  %v4894 = vpack.c.b16 %v4218, %v4214
  %v4895 = vpack.c.b16 %v4223, %v4219
  %v4896 = vpack.c.b16 %v4224, %v4220
  %v4897 = vpack.c.b16 %v4225, %v4221
  %v4898 = vpack.c.b16 %v4226, %v4222
  %v4899 = vpack.c.b16 %v4231, %v4227
  %v4900 = vpack.c.b16 %v4232, %v4228
  %v4901 = vpack.c.b16 %v4233, %v4229
  %v4902 = vpack.c.b16 %v4234, %v4230
  %v4903 = vpack.c.b16 %v4239, %v4235
  %v4904 = vpack.c.b16 %v4240, %v4236
  %v4905 = vpack.c.b16 %v4241, %v4237
  %v4906 = vpack.c.b16 %v4242, %v4238
  %v4907 = vpack.c.b16 %v4247, %v4243
  %v4908 = vpack.c.b16 %v4248, %v4244
  %v4909 = vpack.c.b16 %v4249, %v4245
  %v4910 = vpack.c.b16 %v4250, %v4246
  %v4911 = vpack.c.b16 %v4255, %v4251
  %v4912 = vpack.c.b16 %v4256, %v4252
  %v4913 = vpack.c.b16 %v4257, %v4253
  %v4914 = vpack.c.b16 %v4258, %v4254
  %v4915 = vpack.c.b16 %v4263, %v4259
  %v4916 = vpack.c.b16 %v4264, %v4260
  %v4917 = vpack.c.b16 %v4265, %v4261
  %v4918 = vpack.c.b16 %v4266, %v4262
  %v4919 = vpack.c.b16 %v4271, %v4267
  %v4920 = vpack.c.b16 %v4272, %v4268
  %v4921 = vpack.c.b16 %v4273, %v4269
  %v4922 = vpack.c.b16 %v4274, %v4270
  %v4923 = vpack.c.b16 %v4279, %v4275
  %v4924 = vpack.c.b16 %v4280, %v4276
  %v4925 = vpack.c.b16 %v4281, %v4277
  %v4926 = vpack.c.b16 %v4282, %v4278
  %v4927 = vpack.c.b16 %v4287, %v4283
  %v4928 = vpack.c.b16 %v4288, %v4284
  %v4929 = vpack.c.b16 %v4289, %v4285
  %v4930 = vpack.c.b16 %v4290, %v4286
  %v4931 = vpack.c.b16 %v4295, %v4291
  %v4932 = vpack.c.b16 %v4296, %v4292
  %v4933 = vpack.c.b16 %v4297, %v4293
  %v4934 = vpack.c.b16 %v4298, %v4294
  %v4935 = vpack.c.b16 %v4303, %v4299
  %v4936 = vpack.c.b16 %v4304, %v4300
  %v4937 = vpack.c.b16 %v4305, %v4301
  %v4938 = vpack.c.b16 %v4306, %v4302
  %v4939 = vpack.c.b16 %v4311, %v4307
  %v4940 = vpack.c.b16 %v4312, %v4308
  %v4941 = vpack.c.b16 %v4313, %v4309
  %v4942 = vpack.c.b16 %v4314, %v4310
  %v4943 = vpack.c.b16 %v4319, %v4315
  %v4944 = vpack.c.b16 %v4320, %v4316
  %v4945 = vpack.c.b16 %v4321, %v4317
  %v4946 = vpack.c.b16 %v4322, %v4318
  %v4947 = vpack.c.b16 %v4327, %v4323
  %v4948 = vpack.c.b16 %v4328, %v4324
  %v4949 = vpack.c.b16 %v4329, %v4325
  %v4950 = vpack.c.b16 %v4330, %v4326
  %v4951 = vpack.c.b16 %v4335, %v4331
  %v4952 = vpack.c.b16 %v4336, %v4332
  %v4953 = vpack.c.b16 %v4337, %v4333
  %v4954 = vpack.c.b16 %v4338, %v4334
  %v4955 = vpack.c.b16 %v4343, %v4339
  %v4956 = vpack.c.b16 %v4344, %v4340
  %v4957 = vpack.c.b16 %v4345, %v4341
  %v4958 = vpack.c.b16 %v4346, %v4342
  %v4959 = vpack.c.b16 %v4351, %v4347
  %v4960 = vpack.c.b16 %v4352, %v4348
  %v4961 = vpack.c.b16 %v4353, %v4349
  %v4962 = vpack.c.b16 %v4354, %v4350
  %v4963 = vpack.c.b16 %v4359, %v4355
  %v4964 = vpack.c.b16 %v4360, %v4356
  %v4965 = vpack.c.b16 %v4361, %v4357
  %v4966 = vpack.c.b16 %v4362, %v4358
  %v4967 = vpack.c.b16 %v4367, %v4363
  %v4968 = vpack.c.b16 %v4368, %v4364
  %v4969 = vpack.c.b16 %v4369, %v4365
  %v4970 = vpack.c.b16 %v4370, %v4366
  %v4971 = vpack.c.b16 %v4375, %v4371
  %v4972 = vpack.c.b16 %v4376, %v4372
  %v4973 = vpack.c.b16 %v4377, %v4373
  %v4974 = vpack.c.b16 %v4378, %v4374
  %v4975 = vpack.c.b16 %v4383, %v4379
  %v4976 = vpack.c.b16 %v4384, %v4380
  %v4977 = vpack.c.b16 %v4385, %v4381
  %v4978 = vpack.c.b16 %v4386, %v4382
  %v4979 = vpack.c.b16 %v4391, %v4387
  %v4980 = vpack.c.b16 %v4392, %v4388
  %v4981 = vpack.c.b16 %v4393, %v4389
  %v4982 = vpack.c.b16 %v4394, %v4390
  %v4983 = vpack.c.b16 %v4399, %v4395
  %v4984 = vpack.c.b16 %v4400, %v4396
  %v4985 = vpack.c.b16 %v4401, %v4397
  %v4986 = vpack.c.b16 %v4402, %v4398
  %v4987 = vpack.c.b16 %v4407, %v4403
  %v4988 = vpack.c.b16 %v4408, %v4404
  %v4989 = vpack.c.b16 %v4409, %v4405
  %v4990 = vpack.c.b16 %v4410, %v4406
  %v4991 = vpack.c.b16 %v4415, %v4411
  %v4992 = vpack.c.b16 %v4416, %v4412
  %v4993 = vpack.c.b16 %v4417, %v4413
  %v4994 = vpack.c.b16 %v4418, %v4414
  %v4995 = vpack.c.b16 %v4423, %v4419
  %v4996 = vpack.c.b16 %v4424, %v4420
  %v4997 = vpack.c.b16 %v4425, %v4421
  %v4998 = vpack.c.b16 %v4426, %v4422
  %v4999 = vpack.c.b16 %v4431, %v4427
  %v5000 = vpack.c.b16 %v4432, %v4428
  %v5001 = vpack.c.b16 %v4433, %v4429
  %v5002 = vpack.c.b16 %v4434, %v4430
  %v5003 = vpack.c.b16 %v4439, %v4435
  %v5004 = vpack.c.b16 %v4440, %v4436
  %v5005 = vpack.c.b16 %v4441, %v4437
  %v5006 = vpack.c.b16 %v4442, %v4438
  %v5007 = vpack.c.b16 %v4447, %v4443
  %v5008 = vpack.c.b16 %v4448, %v4444
  %v5009 = vpack.c.b16 %v4449, %v4445
  %v5010 = vpack.c.b16 %v4450, %v4446
  %v5011 = vpack.c.b16 %v4455, %v4451
  %v5012 = vpack.c.b16 %v4456, %v4452
  %v5013 = vpack.c.b16 %v4457, %v4453
  %v5014 = vpack.c.b16 %v4458, %v4454
  %v5015 = vpack.c.b16 %v4463, %v4459
  %v5016 = vpack.c.b16 %v4464, %v4460
  %v5017 = vpack.c.b16 %v4465, %v4461
  %v5018 = vpack.c.b16 %v4466, %v4462
  %v5019 = vpack.c.b16 %v4471, %v4467
  %v5020 = vpack.c.b16 %v4472, %v4468
  %v5021 = vpack.c.b16 %v4473, %v4469
  %v5022 = vpack.c.b16 %v4474, %v4470
  %v5023 = vpack.c.b16 %v4479, %v4475
  %v5024 = vpack.c.b16 %v4480, %v4476
  %v5025 = vpack.c.b16 %v4481, %v4477
  %v5026 = vpack.c.b16 %v4482, %v4478
  %v5027 = vpack.c.b16 %v4487, %v4483
  %v5028 = vpack.c.b16 %v4488, %v4484
  %v5029 = vpack.c.b16 %v4489, %v4485
  %v5030 = vpack.c.b16 %v4490, %v4486
  %v5031 = vpack.c.b16 %v4495, %v4491
  %v5032 = vpack.c.b16 %v4496, %v4492
  %v5033 = vpack.c.b16 %v4497, %v4493
  %v5034 = vpack.c.b16 %v4498, %v4494
  %v5035 = vpack.c.b16 %v4503, %v4499
  %v5036 = vpack.c.b16 %v4504, %v4500
  %v5037 = vpack.c.b16 %v4505, %v4501
  %v5038 = vpack.c.b16 %v4506, %v4502
  %v5039 = vpack.c.b16 %v4511, %v4507
  %v5040 = vpack.c.b16 %v4512, %v4508
  %v5041 = vpack.c.b16 %v4513, %v4509
  %v5042 = vpack.c.b16 %v4514, %v4510
  %v5043 = vpack.c.b16 %v4519, %v4515
  %v5044 = vpack.c.b16 %v4520, %v4516
  %v5045 = vpack.c.b16 %v4521, %v4517
  %v5046 = vpack.c.b16 %v4522, %v4518
  %v5047 = vpack.c.b16 %v4527, %v4523
  %v5048 = vpack.c.b16 %v4528, %v4524
  %v5049 = vpack.c.b16 %v4529, %v4525
  %v5050 = vpack.c.b16 %v4530, %v4526
  %v5051 = vpack.c.b16 %v4535, %v4531
  %v5052 = vpack.c.b16 %v4536, %v4532
  %v5053 = vpack.c.b16 %v4537, %v4533
  %v5054 = vpack.c.b16 %v4538, %v4534
  %v5055 = vpack.c.b16 %v4543, %v4539
  %v5056 = vpack.c.b16 %v4544, %v4540
  %v5057 = vpack.c.b16 %v4545, %v4541
  %v5058 = vpack.c.b16 %v4546, %v4542
  %v5059 = vpack.c.b16 %v4551, %v4547
  %v5060 = vpack.c.b16 %v4552, %v4548
  %v5061 = vpack.c.b16 %v4553, %v4549
  %v5062 = vpack.c.b16 %v4554, %v4550
  %v5063 = vpack.c.b16 %v4559, %v4555
  %v5064 = vpack.c.b16 %v4560, %v4556
  %v5065 = vpack.c.b16 %v4561, %v4557
  %v5066 = vpack.c.b16 %v4562, %v4558
  %v5067 = vpack.c.b16 %v4567, %v4563
  %v5068 = vpack.c.b16 %v4568, %v4564
  %v5069 = vpack.c.b16 %v4569, %v4565
  %v5070 = vpack.c.b16 %v4570, %v4566
  %v5071 = vpack.c.b16 %v4575, %v4571
  %v5072 = vpack.c.b16 %v4576, %v4572
  %v5073 = vpack.c.b16 %v4577, %v4573
  %v5074 = vpack.c.b16 %v4578, %v4574
  %v5075 = vpack.c.b16 %v4583, %v4579
  %v5076 = vpack.c.b16 %v4584, %v4580
  %v5077 = vpack.c.b16 %v4585, %v4581
  %v5078 = vpack.c.b16 %v4586, %v4582
  %v5079 = vpack.c.b16 %v4591, %v4587
  %v5080 = vpack.c.b16 %v4592, %v4588
  %v5081 = vpack.c.b16 %v4593, %v4589
  %v5082 = vpack.c.b16 %v4594, %v4590
  %v5083 = vpack.c.b16 %v4599, %v4595
  %v5084 = vpack.c.b16 %v4600, %v4596
  %v5085 = vpack.c.b16 %v4601, %v4597
  %v5086 = vpack.c.b16 %v4602, %v4598
  %v5087 = vpack.c.b16 %v4607, %v4603
  %v5088 = vpack.c.b16 %v4608, %v4604
  %v5089 = vpack.c.b16 %v4609, %v4605
  %v5090 = vpack.c.b16 %v4610, %v4606
  %v5091 = vpack.c.b16 %v4615, %v4611
  %v5092 = vpack.c.b16 %v4616, %v4612
  %v5093 = vpack.c.b16 %v4617, %v4613
  %v5094 = vpack.c.b16 %v4618, %v4614
  %v5095 = vpack.c.b16 %v4623, %v4619
  %v5096 = vpack.c.b16 %v4624, %v4620
  %v5097 = vpack.c.b16 %v4625, %v4621
  %v5098 = vpack.c.b16 %v4626, %v4622
  %v5099 = vpack.c.b16 %v4631, %v4627
  %v5100 = vpack.c.b16 %v4632, %v4628
  %v5101 = vpack.c.b16 %v4633, %v4629
  %v5102 = vpack.c.b16 %v4634, %v4630
  %v5103 = vpack.c.b16 %v4639, %v4635
  %v5104 = vpack.c.b16 %v4640, %v4636
  %v5105 = vpack.c.b16 %v4641, %v4637
  %v5106 = vpack.c.b16 %v4642, %v4638
  %v5107 = vpack.c.b16 %v4647, %v4643
  %v5108 = vpack.c.b16 %v4648, %v4644
  %v5109 = vpack.c.b16 %v4649, %v4645
  %v5110 = vpack.c.b16 %v4650, %v4646
  %v5111 = vpack.c.b16 %v4655, %v4651
  %v5112 = vpack.c.b16 %v4656, %v4652
  %v5113 = vpack.c.b16 %v4657, %v4653
  %v5114 = vpack.c.b16 %v4658, %v4654
  %v5115 = vpack.c.b16 %v4663, %v4659
  %v5116 = vpack.c.b16 %v4664, %v4660
  %v5117 = vpack.c.b16 %v4665, %v4661
  %v5118 = vpack.c.b16 %v4666, %v4662
  %v5119 = vpack.c.b16 %v4671, %v4667
  %v5120 = vpack.c.b16 %v4672, %v4668
  %v5121 = vpack.c.b16 %v4673, %v4669
  %v5122 = vpack.c.b16 %v4674, %v4670
  %v5123 = vpack.c.b16 %v4679, %v4675
  %v5124 = vpack.c.b16 %v4680, %v4676
  %v5125 = vpack.c.b16 %v4681, %v4677
  %v5126 = vpack.c.b16 %v4682, %v4678
  %v5127 = vpack.c.b16 %v4687, %v4683
  %v5128 = vpack.c.b16 %v4688, %v4684
  %v5129 = vpack.c.b16 %v4689, %v4685
  %v5130 = vpack.c.b16 %v4690, %v4686
  %v5131 = vpack.c.b16 %v4695, %v4691
  %v5132 = vpack.c.b16 %v4696, %v4692
  %v5133 = vpack.c.b16 %v4697, %v4693
  %v5134 = vpack.c.b16 %v4698, %v4694
  %v5135 = vpack.c.b16 %v4703, %v4699
  %v5136 = vpack.c.b16 %v4704, %v4700
  %v5137 = vpack.c.b16 %v4705, %v4701
  %v5138 = vpack.c.b16 %v4706, %v4702
  %v5139 = vpack.c.b16 %v4711, %v4707
  %v5140 = vpack.c.b16 %v4712, %v4708
  %v5141 = vpack.c.b16 %v4713, %v4709
  %v5142 = vpack.c.b16 %v4714, %v4710
  %v5143 = vpack.c.b16 %v4719, %v4715
  %v5144 = vpack.c.b16 %v4720, %v4716
  %v5145 = vpack.c.b16 %v4721, %v4717
  %v5146 = vpack.c.b16 %v4722, %v4718
  %v5147 = vpack.c.b16 %v4727, %v4723
  %v5148 = vpack.c.b16 %v4728, %v4724
  %v5149 = vpack.c.b16 %v4729, %v4725
  %v5150 = vpack.c.b16 %v4730, %v4726
  %v5151 = vpack.c.b16 %v4735, %v4731
  %v5152 = vpack.c.b16 %v4736, %v4732
  %v5153 = vpack.c.b16 %v4737, %v4733
  %v5154 = vpack.c.b16 %v4738, %v4734
  %v5155 = vpack.c.b16 %v4743, %v4739
  %v5156 = vpack.c.b16 %v4744, %v4740
  %v5157 = vpack.c.b16 %v4745, %v4741
  %v5158 = vpack.c.b16 %v4746, %v4742
  %v5159 = vpack.c.b16 %v4751, %v4747
  %v5160 = vpack.c.b16 %v4752, %v4748
  %v5161 = vpack.c.b16 %v4753, %v4749
  %v5162 = vpack.c.b16 %v4754, %v4750
  %v5163 = vpack.c.b16 %v4759, %v4755
  %v5164 = vpack.c.b16 %v4760, %v4756
  %v5165 = vpack.c.b16 %v4761, %v4757
  %v5166 = vpack.c.b16 %v4762, %v4758
  %v5167 = vpack.c.b16 %v4767, %v4763
  %v5168 = vpack.c.b16 %v4768, %v4764
  %v5169 = vpack.c.b16 %v4769, %v4765
  %v5170 = vpack.c.b16 %v4770, %v4766
  %v5171 = vpack.c.b16 %v4775, %v4771
  %v5172 = vpack.c.b16 %v4776, %v4772
  %v5173 = vpack.c.b16 %v4777, %v4773
  %v5174 = vpack.c.b16 %v4778, %v4774
  %v5175 = vpack.c.b16 %v4783, %v4779
  %v5176 = vpack.c.b16 %v4784, %v4780
  %v5177 = vpack.c.b16 %v4785, %v4781
  %v5178 = vpack.c.b16 %v4786, %v4782
  %v5572 = vsel %vm2511, %v3589, 0
  %5574 = vmatprep.subr.bf16.mxu0 %v4788
  %5575 = vmatpush1.bf16.msra.mxu0 %v4787
  %5576 = vmatprep.subr.bf16.mxu0 %v4792
  %5577 = vmatpush1.bf16.msra.mxu0 %v4791
  %5578 = vmatprep.subr.bf16.mxu0 %v4796
  %5579 = vmatpush1.bf16.msra.mxu0 %v4795
  %5580 = vmatprep.subr.bf16.mxu0 %v4800
  %5581 = vmatpush1.bf16.msra.mxu0 %v4799
  %5582 = vmatprep.subr.bf16.mxu0 %v4804
  %5583 = vmatpush1.bf16.msra.mxu0 %v4803
  %5584 = vmatprep.subr.bf16.mxu0 %v4808
  %5585 = vmatpush1.bf16.msra.mxu0 %v4807
  %5586 = vmatprep.subr.bf16.mxu0 %v4812
  %5587 = vmatpush1.bf16.msra.mxu0 %v4811
  %5588 = vmatprep.subr.bf16.mxu0 %v4816
  %5589 = vmatpush1.bf16.msra.mxu0 %v4815
  %5590 = vmatprep.subr.bf16.mxu0 %v4820
  %5591 = vmatpush1.bf16.msra.mxu0 %v4819
  %5592 = vmatprep.subr.bf16.mxu0 %v4824
  %5593 = vmatpush1.bf16.msra.mxu0 %v4823
  %5594 = vmatprep.subr.bf16.mxu0 %v4828
  %5595 = vmatpush1.bf16.msra.mxu0 %v4827
  %5596 = vmatprep.subr.bf16.mxu0 %v4832
  %5597 = vmatpush1.bf16.msra.mxu0 %v4831
  %5598 = vmatprep.subr.bf16.mxu0 %v4836
  %5599 = vmatpush1.bf16.msra.mxu0 %v4835
  %5600 = vmatprep.subr.bf16.mxu0 %v4840
  %5601 = vmatpush1.bf16.msra.mxu0 %v4839
  %5602 = vmatprep.subr.bf16.mxu0 %v4844
  %5603 = vmatpush1.bf16.msra.mxu0 %v4843
  %5604 = vmatprep.subr.bf16.mxu0 %v4848
  %5605 = vmatpush1.bf16.msra.mxu0 %v4847
  %5606 = vmatprep.mubr.bf16.mxu0 %v3548
  %5607 = vmatmul.mubr.bf16.gmra.mrb[0].mxu0 %v3534
  %v5608 = vpop.f32.mrb[0].mxu0
  %v5609 = vadd.f32 %v3492, %v5608
  %v5610 = vpop.f32.mrb[0].mxu0
  %v5611 = vadd.f32 %v3496, %v5610
  %v5612 = vpop.f32.mrb[0].mxu0
  %v5613 = vpop.f32.mrb[0].mxu0
  %5614 = vdwg.mxu0
  %5615 = vmatprep.subr.bf16.mxu0 %v4852
  %5616 = vmatpush1.bf16.msra.mxu0 %v4851
  %5617 = vmatprep.subr.bf16.mxu0 %v4856
  %5618 = vmatpush1.bf16.msra.mxu0 %v4855
  %5619 = vmatprep.subr.bf16.mxu0 %v4860
  %5620 = vmatpush1.bf16.msra.mxu0 %v4859
  %5621 = vmatprep.subr.bf16.mxu0 %v4864
  %5622 = vmatpush1.bf16.msra.mxu0 %v4863
  %5623 = vmatprep.subr.bf16.mxu0 %v4868
  %5624 = vmatpush1.bf16.msra.mxu0 %v4867
  %5625 = vmatprep.subr.bf16.mxu0 %v4872
  %5626 = vmatpush1.bf16.msra.mxu0 %v4871
  %5627 = vmatprep.subr.bf16.mxu0 %v4876
  %5628 = vmatpush1.bf16.msra.mxu0 %v4875
  %5629 = vmatprep.subr.bf16.mxu0 %v4880
  %5630 = vmatpush1.bf16.msra.mxu0 %v4879
  %5631 = vmatprep.subr.bf16.mxu0 %v4884
  %5632 = vmatpush1.bf16.msra.mxu0 %v4883
  %5633 = vmatprep.subr.bf16.mxu0 %v4888
  %5634 = vmatpush1.bf16.msra.mxu0 %v4887
  %5635 = vmatprep.subr.bf16.mxu0 %v4892
  %5636 = vmatpush1.bf16.msra.mxu0 %v4891
  %5637 = vmatprep.subr.bf16.mxu0 %v4896
  %5638 = vmatpush1.bf16.msra.mxu0 %v4895
  %5639 = vmatprep.subr.bf16.mxu0 %v4900
  %5640 = vmatpush1.bf16.msra.mxu0 %v4899
  %5641 = vmatprep.subr.bf16.mxu0 %v4904
  %5642 = vmatpush1.bf16.msra.mxu0 %v4903
  %5643 = vmatprep.subr.bf16.mxu0 %v4908
  %5644 = vmatpush1.bf16.msra.mxu0 %v4907
  %5645 = vmatprep.subr.bf16.mxu0 %v4912
  %5646 = vmatpush1.bf16.msra.mxu0 %v4911
  %5647 = vmatprep.mubr.bf16.mxu0 %v3558
  %5648 = vmatmul.mubr.bf16.gmra.mrb[0].mxu0 %v3556
  %v5649 = vpop.f32.mrb[0].mxu0
  %v5650 = vadd.f32 %v5609, %v5649
  %v5651 = vpop.f32.mrb[0].mxu0
  %v5652 = vadd.f32 %v5611, %v5651
  %v5653 = vpop.f32.mrb[0].mxu0
  %v5654 = vpop.f32.mrb[0].mxu0
  %5655 = vdwg.mxu0
  %5656 = vmatprep.subr.bf16.mxu0 %v4916
  %5657 = vmatpush1.bf16.msra.mxu0 %v4915
  %5658 = vmatprep.subr.bf16.mxu0 %v4920
  %5659 = vmatpush1.bf16.msra.mxu0 %v4919
  %5660 = vmatprep.subr.bf16.mxu0 %v4924
  %5661 = vmatpush1.bf16.msra.mxu0 %v4923
  %5662 = vmatprep.subr.bf16.mxu0 %v4928
  %5663 = vmatpush1.bf16.msra.mxu0 %v4927
  %5664 = vmatprep.subr.bf16.mxu0 %v4932
  %5665 = vmatpush1.bf16.msra.mxu0 %v4931
  %5666 = vmatprep.subr.bf16.mxu0 %v4936
  %5667 = vmatpush1.bf16.msra.mxu0 %v4935
  %5668 = vmatprep.subr.bf16.mxu0 %v4940
  %5669 = vmatpush1.bf16.msra.mxu0 %v4939
  %5670 = vmatprep.subr.bf16.mxu0 %v4944
  %5671 = vmatpush1.bf16.msra.mxu0 %v4943
  %5672 = vmatprep.subr.bf16.mxu0 %v4948
  %5673 = vmatpush1.bf16.msra.mxu0 %v4947
  %5674 = vmatprep.subr.bf16.mxu0 %v4952
  %5675 = vmatpush1.bf16.msra.mxu0 %v4951
  %5676 = vmatprep.subr.bf16.mxu0 %v4956
  %5677 = vmatpush1.bf16.msra.mxu0 %v4955
  %5678 = vmatprep.subr.bf16.mxu0 %v4960
  %5679 = vmatpush1.bf16.msra.mxu0 %v4959
  %5680 = vmatprep.subr.bf16.mxu0 %v4964
  %5681 = vmatpush1.bf16.msra.mxu0 %v4963
  %5682 = vmatprep.subr.bf16.mxu0 %v4968
  %5683 = vmatpush1.bf16.msra.mxu0 %v4967
  %5684 = vmatprep.subr.bf16.mxu0 %v4972
  %5685 = vmatpush1.bf16.msra.mxu0 %v4971
  %5686 = vmatprep.subr.bf16.mxu0 %v4976
  %5687 = vmatpush1.bf16.msra.mxu0 %v4975
  %5688 = vmatprep.mubr.bf16.mxu0 %v3555
  %5689 = vmatmul.mubr.bf16.gmra.mrb[0].mxu0 %v3541
  %v5690 = vpop.f32.mrb[0].mxu0
  %v5691 = vadd.f32 %v5650, %v5690
  %v5692 = vpop.f32.mrb[0].mxu0
  %v5693 = vadd.f32 %v5652, %v5692
  %v5694 = vpop.f32.mrb[0].mxu0
  %v5695 = vpop.f32.mrb[0].mxu0
  %5696 = vdwg.mxu0
  %5697 = vmatprep.subr.bf16.mxu0 %v4980
  %5698 = vmatpush1.bf16.msra.mxu0 %v4979
  %5699 = vmatprep.subr.bf16.mxu0 %v4984
  %5700 = vmatpush1.bf16.msra.mxu0 %v4983
  %5701 = vmatprep.subr.bf16.mxu0 %v4988
  %5702 = vmatpush1.bf16.msra.mxu0 %v4987
  %5703 = vmatprep.subr.bf16.mxu0 %v4992
  %5704 = vmatpush1.bf16.msra.mxu0 %v4991
  %5705 = vmatprep.subr.bf16.mxu0 %v4996
  %5706 = vmatpush1.bf16.msra.mxu0 %v4995
  %5707 = vmatprep.subr.bf16.mxu0 %v5000
  %5708 = vmatpush1.bf16.msra.mxu0 %v4999
  %5709 = vmatprep.subr.bf16.mxu0 %v5004
  %5710 = vmatpush1.bf16.msra.mxu0 %v5003
  %5711 = vmatprep.subr.bf16.mxu0 %v5008
  %5712 = vmatpush1.bf16.msra.mxu0 %v5007
  %5713 = vmatprep.subr.bf16.mxu0 %v5012
  %5714 = vmatpush1.bf16.msra.mxu0 %v5011
  %5715 = vmatprep.subr.bf16.mxu0 %v5016
  %5716 = vmatpush1.bf16.msra.mxu0 %v5015
  %5717 = vmatprep.subr.bf16.mxu0 %v5020
  %5718 = vmatpush1.bf16.msra.mxu0 %v5019
  %5719 = vmatprep.subr.bf16.mxu0 %v5024
  %5720 = vmatpush1.bf16.msra.mxu0 %v5023
  %5721 = vmatprep.subr.bf16.mxu0 %v5028
  %5722 = vmatpush1.bf16.msra.mxu0 %v5027
  %5723 = vmatprep.subr.bf16.mxu0 %v5032
  %5724 = vmatpush1.bf16.msra.mxu0 %v5031
  %5725 = vmatprep.subr.bf16.mxu0 %v5036
  %5726 = vmatpush1.bf16.msra.mxu0 %v5035
  %5727 = vmatprep.subr.bf16.mxu0 %v5040
  %5728 = vmatpush1.bf16.msra.mxu0 %v5039
  %5729 = vmatprep.mubr.bf16.mxu0 %v3559
  %5730 = vmatmul.mubr.bf16.gmra.mrb[0].mxu0 %v3557
  %v5731 = vpop.f32.mrb[0].mxu0
  %v5732 = vadd.f32 %v5691, %v5731
  %v5733 = vpop.f32.mrb[0].mxu0
  %v5734 = vadd.f32 %v5693, %v5733
  %v5735 = vpop.f32.mrb[0].mxu0
  %v5736 = vpop.f32.mrb[0].mxu0
  %5737 = vdwg.mxu0
  %5738 = vmatprep.subr.bf16.mxu0 %v5044
  %5739 = vmatpush1.bf16.msra.mxu0 %v5043
  %5740 = vmatprep.subr.bf16.mxu0 %v5048
  %5741 = vmatpush1.bf16.msra.mxu0 %v5047
  %5742 = vmatprep.subr.bf16.mxu0 %v5052
  %5743 = vmatpush1.bf16.msra.mxu0 %v5051
  %5744 = vmatprep.subr.bf16.mxu0 %v5056
  %5745 = vmatpush1.bf16.msra.mxu0 %v5055
  %5746 = vmatprep.subr.bf16.mxu0 %v5060
  %5747 = vmatpush1.bf16.msra.mxu0 %v5059
  %5748 = vmatprep.subr.bf16.mxu0 %v5064
  %5749 = vmatpush1.bf16.msra.mxu0 %v5063
  %5750 = vmatprep.subr.bf16.mxu0 %v5068
  %5751 = vmatpush1.bf16.msra.mxu0 %v5067
  %5752 = vmatprep.subr.bf16.mxu0 %v5072
  %5753 = vmatpush1.bf16.msra.mxu0 %v5071
  %5754 = vmatprep.subr.bf16.mxu0 %v5076
  %5755 = vmatpush1.bf16.msra.mxu0 %v5075
  %5756 = vmatprep.subr.bf16.mxu0 %v5080
  %5757 = vmatpush1.bf16.msra.mxu0 %v5079
  %5758 = vmatprep.subr.bf16.mxu0 %v5084
  %5759 = vmatpush1.bf16.msra.mxu0 %v5083
  %5760 = vmatprep.subr.bf16.mxu0 %v5088
  %5761 = vmatpush1.bf16.msra.mxu0 %v5087
  %5762 = vmatprep.subr.bf16.mxu0 %v5092
  %5763 = vmatpush1.bf16.msra.mxu0 %v5091
  %5764 = vmatprep.subr.bf16.mxu0 %v5096
  %5765 = vmatpush1.bf16.msra.mxu0 %v5095
  %5766 = vmatprep.subr.bf16.mxu0 %v5100
  %5767 = vmatpush1.bf16.msra.mxu0 %v5099
  %5768 = vmatprep.subr.bf16.mxu0 %v5104
  %5769 = vmatpush1.bf16.msra.mxu0 %v5103
  %5770 = vmatprep.mubr.bf16.mxu0 %v3596
  %5771 = vmatmul.mubr.bf16.gmra.mrb[0].mxu0 %v3582
  %v5772 = vpop.f32.mrb[0].mxu0
  %v5773 = vadd.f32 %v5732, %v5772
  %v5774 = vpop.f32.mrb[0].mxu0
  %v5775 = vadd.f32 %v5734, %v5774
  %v5776 = vpop.f32.mrb[0].mxu0
  %v5777 = vpop.f32.mrb[0].mxu0
  %5778 = vdwg.mxu0
  %5779 = vmatprep.subr.bf16.mxu0 %v5108
  %5780 = vmatpush1.bf16.msra.mxu0 %v5107
  %5781 = vmatprep.subr.bf16.mxu0 %v5112
  %5782 = vmatpush1.bf16.msra.mxu0 %v5111
  %5783 = vmatprep.subr.bf16.mxu0 %v5116
  %5784 = vmatpush1.bf16.msra.mxu0 %v5115
  %5785 = vmatprep.subr.bf16.mxu0 %v5120
  %5786 = vmatpush1.bf16.msra.mxu0 %v5119
  %5787 = vmatprep.subr.bf16.mxu0 %v5124
  %5788 = vmatpush1.bf16.msra.mxu0 %v5123
  %5789 = vmatprep.subr.bf16.mxu0 %v5128
  %5790 = vmatpush1.bf16.msra.mxu0 %v5127
  %5791 = vmatprep.subr.bf16.mxu0 %v5132
  %5792 = vmatpush1.bf16.msra.mxu0 %v5131
  %5793 = vmatprep.subr.bf16.mxu0 %v5136
  %5794 = vmatpush1.bf16.msra.mxu0 %v5135
  %5795 = vmatprep.subr.bf16.mxu0 %v5140
  %5796 = vmatpush1.bf16.msra.mxu0 %v5139
  %5797 = vmatprep.subr.bf16.mxu0 %v5144
  %5798 = vmatpush1.bf16.msra.mxu0 %v5143
  %5799 = vmatprep.subr.bf16.mxu0 %v5148
  %5800 = vmatpush1.bf16.msra.mxu0 %v5147
  %5801 = vmatprep.subr.bf16.mxu0 %v5152
  %5802 = vmatpush1.bf16.msra.mxu0 %v5151
  %5803 = vmatprep.subr.bf16.mxu0 %v5156
  %5804 = vmatpush1.bf16.msra.mxu0 %v5155
  %5805 = vmatprep.subr.bf16.mxu0 %v5160
  %5806 = vmatpush1.bf16.msra.mxu0 %v5159
  %5807 = vmatprep.subr.bf16.mxu0 %v5164
  %5808 = vmatpush1.bf16.msra.mxu0 %v5163
  %5809 = vmatprep.subr.bf16.mxu0 %v5168
  %5810 = vmatpush1.bf16.msra.mxu0 %v5167
  %5811 = vmatprep.mubr.bf16.mxu0 %v3598
  %5812 = vmatmul.mubr.bf16.gmra.mrb[0].mxu0 %v3597
  %v5813 = vpop.f32.mrb[0].mxu0
  %v5814 = vadd.f32 %v5773, %v5813
  %v5815 = vpop.f32.mrb[0].mxu0
  %v5816 = vadd.f32 %v5775, %v5815
  %v5817 = vpop.f32.mrb[0].mxu0
  %v5818 = vpop.f32.mrb[0].mxu0
  %5819 = vdwg.mxu0
  %5820 = vmatprep.subr.bf16.mxu0 %v5172
  %5821 = vmatpush1.bf16.msra.mxu0 %v5171
  %5822 = vmatprep.subr.bf16.mxu0 %v5176
  %5823 = vmatpush1.bf16.msra.mxu0 %v5175
  %5824 = vmatprep.subr.bf16.mxu0 0
  %5825 = vmatpush1.bf16.msra.mxu0 0
  %5826 = vmatprep.subr.bf16.mxu0 0
  %5827 = vmatpush1.bf16.msra.mxu0 0
  %5828 = vmatprep.subr.bf16.mxu0 0
  %5829 = vmatpush1.bf16.msra.mxu0 0
  %5830 = vmatprep.subr.bf16.mxu0 0
  %5831 = vmatpush1.bf16.msra.mxu0 0
  %5832 = vmatprep.subr.bf16.mxu0 0
  %5833 = vmatpush1.bf16.msra.mxu0 0
  %5834 = vmatprep.subr.bf16.mxu0 0
  %5835 = vmatpush1.bf16.msra.mxu0 0
  %5836 = vmatprep.subr.bf16.mxu0 0
  %5837 = vmatpush1.bf16.msra.mxu0 0
  %5838 = vmatprep.subr.bf16.mxu0 0
  %5839 = vmatpush1.bf16.msra.mxu0 0
  %5840 = vmatprep.subr.bf16.mxu0 0
  %5841 = vmatpush1.bf16.msra.mxu0 0
  %5842 = vmatprep.subr.bf16.mxu0 0
  %5843 = vmatpush1.bf16.msra.mxu0 0
  %5844 = vmatprep.subr.bf16.mxu0 0
  %5845 = vmatpush1.bf16.msra.mxu0 0
  %5846 = vmatprep.subr.bf16.mxu0 0
  %5847 = vmatpush1.bf16.msra.mxu0 0
  %5848 = vmatprep.subr.bf16.mxu0 0
  %5849 = vmatpush1.bf16.msra.mxu0 0
  %5850 = vmatprep.subr.bf16.mxu0 0
  %5851 = vmatpush1.bf16.msra.mxu0 0
  %5852 = vmatprep.mubr.bf16.mxu0 0
  %5853 = vmatmul.mubr.bf16.gmra.mrb[0].mxu0 %v5572
  %v5854 = vpop.f32.mrb[0].mxu0
  %v5855 = vadd.f32 %v5814, %v5854
  %v5856 = vpop.f32.mrb[0].mxu0
  %v5857 = vadd.f32 %v5816, %v5856
  %v5858 = vpop.f32.mrb[0].mxu0
  %v5859 = vpop.f32.mrb[0].mxu0
  %5860 = vdwg.mxu0
  %5861 = vmatprep.subr.bf16.mxu0 %v4790
  %5862 = vmatpush1.bf16.msra.mxu0 %v4789
  %5863 = vmatprep.subr.bf16.mxu0 %v4794
  %5864 = vmatpush1.bf16.msra.mxu0 %v4793
  %5865 = vmatprep.subr.bf16.mxu0 %v4798
  %5866 = vmatpush1.bf16.msra.mxu0 %v4797
  %5867 = vmatprep.subr.bf16.mxu0 %v4802
  %5868 = vmatpush1.bf16.msra.mxu0 %v4801
  %5869 = vmatprep.subr.bf16.mxu0 %v4806
  %5870 = vmatpush1.bf16.msra.mxu0 %v4805
  %5871 = vmatprep.subr.bf16.mxu0 %v4810
  %5872 = vmatpush1.bf16.msra.mxu0 %v4809
  %5873 = vmatprep.subr.bf16.mxu0 %v4814
  %5874 = vmatpush1.bf16.msra.mxu0 %v4813
  %5875 = vmatprep.subr.bf16.mxu0 %v4818
  %5876 = vmatpush1.bf16.msra.mxu0 %v4817
  %5877 = vmatprep.subr.bf16.mxu0 %v4822
  %5878 = vmatpush1.bf16.msra.mxu0 %v4821
  %5879 = vmatprep.subr.bf16.mxu0 %v4826
  %5880 = vmatpush1.bf16.msra.mxu0 %v4825
  %5881 = vmatprep.subr.bf16.mxu0 %v4830
  %5882 = vmatpush1.bf16.msra.mxu0 %v4829
  %5883 = vmatprep.subr.bf16.mxu0 %v4834
  %5884 = vmatpush1.bf16.msra.mxu0 %v4833
  %5885 = vmatprep.subr.bf16.mxu0 %v4838
  %5886 = vmatpush1.bf16.msra.mxu0 %v4837
  %5887 = vmatprep.subr.bf16.mxu0 %v4842
  %5888 = vmatpush1.bf16.msra.mxu0 %v4841
  %5889 = vmatprep.subr.bf16.mxu0 %v4846
  %5890 = vmatpush1.bf16.msra.mxu0 %v4845
  %5891 = vmatprep.subr.bf16.mxu0 %v4850
  %5892 = vmatpush1.bf16.msra.mxu0 %v4849
  %5893 = vmatprep.mubr.bf16.mxu0 %v3548
  %5894 = vmatmul.mubr.bf16.gmra.mrb[0].mxu0 %v3534
  %v5895 = vpop.f32.mrb[0].mxu0
  %v5896 = vadd.f32 %v3500, %v5895
  %v5897 = vpop.f32.mrb[0].mxu0
  %v5898 = vadd.f32 %v3504, %v5897
  %v5899 = vpop.f32.mrb[0].mxu0
  %v5900 = vpop.f32.mrb[0].mxu0
  %5901 = vdwg.mxu0
  %5902 = vmatprep.subr.bf16.mxu0 %v4854
  %5903 = vmatpush1.bf16.msra.mxu0 %v4853
  %5904 = vmatprep.subr.bf16.mxu0 %v4858
  %5905 = vmatpush1.bf16.msra.mxu0 %v4857
  %5906 = vmatprep.subr.bf16.mxu0 %v4862
  %5907 = vmatpush1.bf16.msra.mxu0 %v4861
  %5908 = vmatprep.subr.bf16.mxu0 %v4866
  %5909 = vmatpush1.bf16.msra.mxu0 %v4865
  %5910 = vmatprep.subr.bf16.mxu0 %v4870
  %5911 = vmatpush1.bf16.msra.mxu0 %v4869
  %5912 = vmatprep.subr.bf16.mxu0 %v4874
  %5913 = vmatpush1.bf16.msra.mxu0 %v4873
  %5914 = vmatprep.subr.bf16.mxu0 %v4878
  %5915 = vmatpush1.bf16.msra.mxu0 %v4877
  %5916 = vmatprep.subr.bf16.mxu0 %v4882
  %5917 = vmatpush1.bf16.msra.mxu0 %v4881
  %5918 = vmatprep.subr.bf16.mxu0 %v4886
  %5919 = vmatpush1.bf16.msra.mxu0 %v4885
  %5920 = vmatprep.subr.bf16.mxu0 %v4890
  %5921 = vmatpush1.bf16.msra.mxu0 %v4889
  %5922 = vmatprep.subr.bf16.mxu0 %v4894
  %5923 = vmatpush1.bf16.msra.mxu0 %v4893
  %5924 = vmatprep.subr.bf16.mxu0 %v4898
  %5925 = vmatpush1.bf16.msra.mxu0 %v4897
  %5926 = vmatprep.subr.bf16.mxu0 %v4902
  %5927 = vmatpush1.bf16.msra.mxu0 %v4901
  %5928 = vmatprep.subr.bf16.mxu0 %v4906
  %5929 = vmatpush1.bf16.msra.mxu0 %v4905
  %5930 = vmatprep.subr.bf16.mxu0 %v4910
  %5931 = vmatpush1.bf16.msra.mxu0 %v4909
  %5932 = vmatprep.subr.bf16.mxu0 %v4914
  %5933 = vmatpush1.bf16.msra.mxu0 %v4913
  %5934 = vmatprep.mubr.bf16.mxu0 %v3558
  %5935 = vmatmul.mubr.bf16.gmra.mrb[0].mxu0 %v3556
  %v5936 = vpop.f32.mrb[0].mxu0
  %v5937 = vadd.f32 %v5896, %v5936
  %v5938 = vpop.f32.mrb[0].mxu0
  %v5939 = vadd.f32 %v5898, %v5938
  %v5940 = vpop.f32.mrb[0].mxu0
  %v5941 = vpop.f32.mrb[0].mxu0
  %5942 = vdwg.mxu0
  %5943 = vmatprep.subr.bf16.mxu0 %v4918
  %5944 = vmatpush1.bf16.msra.mxu0 %v4917
  %5945 = vmatprep.subr.bf16.mxu0 %v4922
  %5946 = vmatpush1.bf16.msra.mxu0 %v4921
  %5947 = vmatprep.subr.bf16.mxu0 %v4926
  %5948 = vmatpush1.bf16.msra.mxu0 %v4925
  %5949 = vmatprep.subr.bf16.mxu0 %v4930
  %5950 = vmatpush1.bf16.msra.mxu0 %v4929
  %5951 = vmatprep.subr.bf16.mxu0 %v4934
  %5952 = vmatpush1.bf16.msra.mxu0 %v4933
  %5953 = vmatprep.subr.bf16.mxu0 %v4938
  %5954 = vmatpush1.bf16.msra.mxu0 %v4937
  %5955 = vmatprep.subr.bf16.mxu0 %v4942
  %5956 = vmatpush1.bf16.msra.mxu0 %v4941
  %5957 = vmatprep.subr.bf16.mxu0 %v4946
  %5958 = vmatpush1.bf16.msra.mxu0 %v4945
  %5959 = vmatprep.subr.bf16.mxu0 %v4950
  %5960 = vmatpush1.bf16.msra.mxu0 %v4949
  %5961 = vmatprep.subr.bf16.mxu0 %v4954
  %5962 = vmatpush1.bf16.msra.mxu0 %v4953
  %5963 = vmatprep.subr.bf16.mxu0 %v4958
  %5964 = vmatpush1.bf16.msra.mxu0 %v4957
  %5965 = vmatprep.subr.bf16.mxu0 %v4962
  %5966 = vmatpush1.bf16.msra.mxu0 %v4961
  %5967 = vmatprep.subr.bf16.mxu0 %v4966
  %5968 = vmatpush1.bf16.msra.mxu0 %v4965
  %5969 = vmatprep.subr.bf16.mxu0 %v4970
  %5970 = vmatpush1.bf16.msra.mxu0 %v4969
  %5971 = vmatprep.subr.bf16.mxu0 %v4974
  %5972 = vmatpush1.bf16.msra.mxu0 %v4973
  %5973 = vmatprep.subr.bf16.mxu0 %v4978
  %5974 = vmatpush1.bf16.msra.mxu0 %v4977
  %5975 = vmatprep.mubr.bf16.mxu0 %v3555
  %5976 = vmatmul.mubr.bf16.gmra.mrb[0].mxu0 %v3541
  %v5977 = vpop.f32.mrb[0].mxu0
  %v5978 = vadd.f32 %v5937, %v5977
  %v5979 = vpop.f32.mrb[0].mxu0
  %v5980 = vadd.f32 %v5939, %v5979
  %v5981 = vpop.f32.mrb[0].mxu0
  %v5982 = vpop.f32.mrb[0].mxu0
  %5983 = vdwg.mxu0
  %5984 = vmatprep.subr.bf16.mxu0 %v4982
  %5985 = vmatpush1.bf16.msra.mxu0 %v4981
  %5986 = vmatprep.subr.bf16.mxu0 %v4986
  %5987 = vmatpush1.bf16.msra.mxu0 %v4985
  %5988 = vmatprep.subr.bf16.mxu0 %v4990
  %5989 = vmatpush1.bf16.msra.mxu0 %v4989
  %5990 = vmatprep.subr.bf16.mxu0 %v4994
  %5991 = vmatpush1.bf16.msra.mxu0 %v4993
  %5992 = vmatprep.subr.bf16.mxu0 %v4998
  %5993 = vmatpush1.bf16.msra.mxu0 %v4997
  %5994 = vmatprep.subr.bf16.mxu0 %v5002
  %5995 = vmatpush1.bf16.msra.mxu0 %v5001
  %5996 = vmatprep.subr.bf16.mxu0 %v5006
  %5997 = vmatpush1.bf16.msra.mxu0 %v5005
  %5998 = vmatprep.subr.bf16.mxu0 %v5010
  %5999 = vmatpush1.bf16.msra.mxu0 %v5009
  %6000 = vmatprep.subr.bf16.mxu0 %v5014
  %6001 = vmatpush1.bf16.msra.mxu0 %v5013
  %6002 = vmatprep.subr.bf16.mxu0 %v5018
  %6003 = vmatpush1.bf16.msra.mxu0 %v5017
  %6004 = vmatprep.subr.bf16.mxu0 %v5022
  %6005 = vmatpush1.bf16.msra.mxu0 %v5021
  %6006 = vmatprep.subr.bf16.mxu0 %v5026
  %6007 = vmatpush1.bf16.msra.mxu0 %v5025
  %6008 = vmatprep.subr.bf16.mxu0 %v5030
  %6009 = vmatpush1.bf16.msra.mxu0 %v5029
  %6010 = vmatprep.subr.bf16.mxu0 %v5034
  %6011 = vmatpush1.bf16.msra.mxu0 %v5033
  %6012 = vmatprep.subr.bf16.mxu0 %v5038
  %6013 = vmatpush1.bf16.msra.mxu0 %v5037
  %6014 = vmatprep.subr.bf16.mxu0 %v5042
  %6015 = vmatpush1.bf16.msra.mxu0 %v5041
  %6016 = vmatprep.mubr.bf16.mxu0 %v3559
  %6017 = vmatmul.mubr.bf16.gmra.mrb[0].mxu0 %v3557
  %v6018 = vpop.f32.mrb[0].mxu0
  %v6019 = vadd.f32 %v5978, %v6018
  %v6020 = vpop.f32.mrb[0].mxu0
  %v6021 = vadd.f32 %v5980, %v6020
  %v6022 = vpop.f32.mrb[0].mxu0
  %v6023 = vpop.f32.mrb[0].mxu0
  %6024 = vdwg.mxu0
  %6025 = vmatprep.subr.bf16.mxu0 %v5046
  %6026 = vmatpush1.bf16.msra.mxu0 %v5045
  %6027 = vmatprep.subr.bf16.mxu0 %v5050
  %6028 = vmatpush1.bf16.msra.mxu0 %v5049
  %6029 = vmatprep.subr.bf16.mxu0 %v5054
  %6030 = vmatpush1.bf16.msra.mxu0 %v5053
  %6031 = vmatprep.subr.bf16.mxu0 %v5058
  %6032 = vmatpush1.bf16.msra.mxu0 %v5057
  %6033 = vmatprep.subr.bf16.mxu0 %v5062
  %6034 = vmatpush1.bf16.msra.mxu0 %v5061
  %6035 = vmatprep.subr.bf16.mxu0 %v5066
  %6036 = vmatpush1.bf16.msra.mxu0 %v5065
  %6037 = vmatprep.subr.bf16.mxu0 %v5070
  %6038 = vmatpush1.bf16.msra.mxu0 %v5069
  %6039 = vmatprep.subr.bf16.mxu0 %v5074
  %6040 = vmatpush1.bf16.msra.mxu0 %v5073
  %6041 = vmatprep.subr.bf16.mxu0 %v5078
  %6042 = vmatpush1.bf16.msra.mxu0 %v5077
  %6043 = vmatprep.subr.bf16.mxu0 %v5082
  %6044 = vmatpush1.bf16.msra.mxu0 %v5081
  %6045 = vmatprep.subr.bf16.mxu0 %v5086
  %6046 = vmatpush1.bf16.msra.mxu0 %v5085
  %6047 = vmatprep.subr.bf16.mxu0 %v5090
  %6048 = vmatpush1.bf16.msra.mxu0 %v5089
  %6049 = vmatprep.subr.bf16.mxu0 %v5094
  %6050 = vmatpush1.bf16.msra.mxu0 %v5093
  %6051 = vmatprep.subr.bf16.mxu0 %v5098
  %6052 = vmatpush1.bf16.msra.mxu0 %v5097
  %6053 = vmatprep.subr.bf16.mxu0 %v5102
  %6054 = vmatpush1.bf16.msra.mxu0 %v5101
  %6055 = vmatprep.subr.bf16.mxu0 %v5106
  %6056 = vmatpush1.bf16.msra.mxu0 %v5105
  %6057 = vmatprep.mubr.bf16.mxu0 %v3596
  %6058 = vmatmul.mubr.bf16.gmra.mrb[0].mxu0 %v3582
  %v6059 = vpop.f32.mrb[0].mxu0
  %v6060 = vadd.f32 %v6019, %v6059
  %v6061 = vpop.f32.mrb[0].mxu0
  %v6062 = vadd.f32 %v6021, %v6061
  %v6063 = vpop.f32.mrb[0].mxu0
  %v6064 = vpop.f32.mrb[0].mxu0
  %6065 = vdwg.mxu0
  %6066 = vmatprep.subr.bf16.mxu0 %v5110
  %6067 = vmatpush1.bf16.msra.mxu0 %v5109
  %6068 = vmatprep.subr.bf16.mxu0 %v5114
  %6069 = vmatpush1.bf16.msra.mxu0 %v5113
  %6070 = vmatprep.subr.bf16.mxu0 %v5118
  %6071 = vmatpush1.bf16.msra.mxu0 %v5117
  %6072 = vmatprep.subr.bf16.mxu0 %v5122
  %6073 = vmatpush1.bf16.msra.mxu0 %v5121
  %6074 = vmatprep.subr.bf16.mxu0 %v5126
  %6075 = vmatpush1.bf16.msra.mxu0 %v5125
  %6076 = vmatprep.subr.bf16.mxu0 %v5130
  %6077 = vmatpush1.bf16.msra.mxu0 %v5129
  %6078 = vmatprep.subr.bf16.mxu0 %v5134
  %6079 = vmatpush1.bf16.msra.mxu0 %v5133
  %6080 = vmatprep.subr.bf16.mxu0 %v5138
  %6081 = vmatpush1.bf16.msra.mxu0 %v5137
  %6082 = vmatprep.subr.bf16.mxu0 %v5142
  %6083 = vmatpush1.bf16.msra.mxu0 %v5141
  %6084 = vmatprep.subr.bf16.mxu0 %v5146
  %6085 = vmatpush1.bf16.msra.mxu0 %v5145
  %6086 = vmatprep.subr.bf16.mxu0 %v5150
  %6087 = vmatpush1.bf16.msra.mxu0 %v5149
  %6088 = vmatprep.subr.bf16.mxu0 %v5154
  %6089 = vmatpush1.bf16.msra.mxu0 %v5153
  %6090 = vmatprep.subr.bf16.mxu0 %v5158
  %6091 = vmatpush1.bf16.msra.mxu0 %v5157
  %6092 = vmatprep.subr.bf16.mxu0 %v5162
  %6093 = vmatpush1.bf16.msra.mxu0 %v5161
  %6094 = vmatprep.subr.bf16.mxu0 %v5166
  %6095 = vmatpush1.bf16.msra.mxu0 %v5165
  %6096 = vmatprep.subr.bf16.mxu0 %v5170
  %6097 = vmatpush1.bf16.msra.mxu0 %v5169
  %6098 = vmatprep.mubr.bf16.mxu0 %v3598
  %6099 = vmatmul.mubr.bf16.gmra.mrb[0].mxu0 %v3597
  %v6100 = vpop.f32.mrb[0].mxu0
  %v6101 = vadd.f32 %v6060, %v6100
  %v6102 = vpop.f32.mrb[0].mxu0
  %v6103 = vadd.f32 %v6062, %v6102
  %v6104 = vpop.f32.mrb[0].mxu0
  %v6105 = vpop.f32.mrb[0].mxu0
  %6106 = vdwg.mxu0
  %6107 = vmatprep.subr.bf16.mxu0 %v5174
  %6108 = vmatpush1.bf16.msra.mxu0 %v5173
  %6109 = vmatprep.subr.bf16.mxu0 %v5178
  %6110 = vmatpush1.bf16.msra.mxu0 %v5177
  %6111 = vmatprep.subr.bf16.mxu0 0
  %6112 = vmatpush1.bf16.msra.mxu0 0
  %6113 = vmatprep.subr.bf16.mxu0 0
  %6114 = vmatpush1.bf16.msra.mxu0 0
  %6115 = vmatprep.subr.bf16.mxu0 0
  %6116 = vmatpush1.bf16.msra.mxu0 0
  %6117 = vmatprep.subr.bf16.mxu0 0
  %6118 = vmatpush1.bf16.msra.mxu0 0
  %6119 = vmatprep.subr.bf16.mxu0 0
  %6120 = vmatpush1.bf16.msra.mxu0 0
  %6121 = vmatprep.subr.bf16.mxu0 0
  %6122 = vmatpush1.bf16.msra.mxu0 0
  %6123 = vmatprep.subr.bf16.mxu0 0
  %6124 = vmatpush1.bf16.msra.mxu0 0
  %6125 = vmatprep.subr.bf16.mxu0 0
  %6126 = vmatpush1.bf16.msra.mxu0 0
  %6127 = vmatprep.subr.bf16.mxu0 0
  %6128 = vmatpush1.bf16.msra.mxu0 0
  %6129 = vmatprep.subr.bf16.mxu0 0
  %6130 = vmatpush1.bf16.msra.mxu0 0
  %6131 = vmatprep.subr.bf16.mxu0 0
  %6132 = vmatpush1.bf16.msra.mxu0 0
  %6133 = vmatprep.subr.bf16.mxu0 0
  %6134 = vmatpush1.bf16.msra.mxu0 0
  %6135 = vmatprep.subr.bf16.mxu0 0
  %6136 = vmatpush1.bf16.msra.mxu0 0
  %6137 = vmatprep.subr.bf16.mxu0 0
  %6138 = vmatpush1.bf16.msra.mxu0 0
  %6139 = vmatprep.mubr.bf16.mxu0 0
  %6140 = vmatmul.mubr.bf16.gmra.mrb[0].mxu0 %v5572
  %v6141 = vpop.f32.mrb[0].mxu0
  %v6142 = vadd.f32 %v6101, %v6141
  %v6143 = vpop.f32.mrb[0].mxu0
  %v6144 = vadd.f32 %v6103, %v6143
  %v6145 = vpop.f32.mrb[0].mxu0
  %v6146 = vpop.f32.mrb[0].mxu0
  %6147 = vdwg.mxu0
  %v6148 = vmax.f32 %v5855, 0.0
  %v6149 = vmax.f32 %v5857, 0.0
  %v6150 = vmax.f32 %v6142, 0.0
  %v6151 = vmax.f32 %v6144, 0.0
  %v6152 = vpack.c.bf16 %v3089, %v3089
  %v6153 = vpack.c.bf16 %v3090, %v3090
  %v6154 = vpack.c.bf16 %v3091, %v3091
  %v6155 = vpack.c.bf16 %v3092, %v3092
  %v6156 = vld [vmem:[%s6] sm:$0xf]
  %v6157 = vld [vmem:[%s6 + $0x4] sm:$0xf]
  %v6158 = vld [vmem:[%s6 + $0x8] sm:$0xf]
  %v6159 = vld [vmem:[%s6 + $0xc] sm:$0xf]
  %v6160 = vld [vmem:[%s6 + $0x10] sm:$0xf]
  %v6161 = vld [vmem:[%s6 + $0x14] sm:$0xf]
  %v6162 = vld [vmem:[%s6 + $0x18] sm:$0xf]
  %v6163 = vld [vmem:[%s6 + $0x1c] sm:$0xf]
  %v6164 = vld [vmem:[%s6 + $0x20] sm:$0xf]
  %v6165 = vld [vmem:[%s6 + $0x24] sm:$0xf]
  %v6166 = vld [vmem:[%s6 + $0x28] sm:$0xf]
  %v6167 = vld [vmem:[%s6 + $0x2c] sm:$0xf]
  %v6168 = vld [vmem:[%s6 + $0x30] sm:$0xf]
  %v6169 = vld [vmem:[%s6 + $0x34] sm:$0xf]
  %v6170 = vld [vmem:[%s6 + $0x38] sm:$0xf]
  %v6171 = vld [vmem:[%s6 + $0x3c] sm:$0xf]
  %v6172 = vld [vmem:[%s6 + $0x40] sm:$0xf]
  %v6173 = vld [vmem:[%s6 + $0x44] sm:$0xf]
  %v6174 = vld [vmem:[%s6 + $0x48] sm:$0xf]
  %v6175 = vld [vmem:[%s6 + $0x4c] sm:$0xf]
  %v6176 = vld [vmem:[%s6 + $0x50] sm:$0xf]
  %v6177 = vld [vmem:[%s6 + $0x54] sm:$0xf]
  %v6178 = vld [vmem:[%s6 + $0x58] sm:$0xf]
  %v6179 = vld [vmem:[%s6 + $0x5c] sm:$0xf]
  %v6180 = vld [vmem:[%s6 + $0x60] sm:$0xf]
  %v6181 = vld [vmem:[%s6 + $0x64] sm:$0xf]
  %v6182 = vld [vmem:[%s6 + $0x68] sm:$0xf]
  %v6183 = vld [vmem:[%s6 + $0x6c] sm:$0xf]
  %v6184 = vld [vmem:[%s6 + $0x70] sm:$0xf]
  %v6185 = vld [vmem:[%s6 + $0x74] sm:$0xf]
  %v6186 = vld [vmem:[%s6 + $0x78] sm:$0xf]
  %v6187 = vld [vmem:[%s6 + $0x7c] sm:$0xf]
  %v6188 = vld [vmem:[%s6 + $0x80] sm:$0xf]
  %v6189 = vld [vmem:[%s6 + $0x84] sm:$0xf]
  %v6190 = vld [vmem:[%s6 + $0x88] sm:$0xf]
  %v6191 = vld [vmem:[%s6 + $0x8c] sm:$0xf]
  %v6192 = vld [vmem:[%s6 + $0x90] sm:$0xf]
  %v6193 = vld [vmem:[%s6 + $0x94] sm:$0xf]
  %v6194 = vld [vmem:[%s6 + $0x98] sm:$0xf]
  %v6195 = vld [vmem:[%s6 + $0x9c] sm:$0xf]
  %v6196 = vld [vmem:[%s6 + $0xa0] sm:$0xf]
  %v6197 = vld [vmem:[%s6 + $0xa4] sm:$0xf]
  %v6198 = vld [vmem:[%s6 + $0xa8] sm:$0xf]
  %v6199 = vld [vmem:[%s6 + $0xac] sm:$0xf]
  %v6200 = vld [vmem:[%s6 + $0xb0] sm:$0xf]
  %v6201 = vld [vmem:[%s6 + $0xb4] sm:$0xf]
  %v6202 = vld [vmem:[%s6 + $0xb8] sm:$0xf]
  %v6203 = vld [vmem:[%s6 + $0xbc] sm:$0xf]
  %v6204 = vld [vmem:[%s6 + $0xc0] sm:$0xf]
  %v6205 = vld [vmem:[%s6 + $0xc4] sm:$0xf]
  %v6206 = vld [vmem:[%s6 + $0xc8] sm:$0xf]
  %v6207 = vld [vmem:[%s6 + $0xcc] sm:$0xf]
  %v6208 = vld [vmem:[%s6 + $0xd0] sm:$0xf]
  %v6209 = vld [vmem:[%s6 + $0xd4] sm:$0xf]
  %v6210 = vld [vmem:[%s6 + $0xd8] sm:$0xf]
  %v6211 = vld [vmem:[%s6 + $0xdc] sm:$0xf]
  %v6212 = vld [vmem:[%s6 + $0xe0] sm:$0xf]
  %v6213 = vld [vmem:[%s6 + $0xe4] sm:$0xf]
  %v6214 = vld [vmem:[%s6 + $0xe8] sm:$0xf]
  %v6215 = vld [vmem:[%s6 + $0xec] sm:$0xf]
  %v6216 = vld [vmem:[%s6 + $0xf0] sm:$0xf]
  %v6217 = vld [vmem:[%s6 + $0xf4] sm:$0xf]
  %v6218 = vld [vmem:[%s6 + $0xf8] sm:$0xf]
  %v6219 = vld [vmem:[%s6 + $0xfc] sm:$0xf]
  %v6220 = vpack.c.bf16 %v6148, %v6148
  %v6221 = vpack.c.bf16 %v6149, %v6149
  %v6222 = vpack.c.bf16 %v6150, %v6150
  %v6223 = vpack.c.bf16 %v6151, %v6151
  %v6224 = vld [vmem:[%s7] sm:$0xf]
  %v6225 = vld [vmem:[%s7 + $0x4] sm:$0xf]
  %v6226 = vld [vmem:[%s7 + $0x8] sm:$0xf]
  %v6227 = vld [vmem:[%s7 + $0xc] sm:$0xf]
  %v6228 = vld [vmem:[%s7 + $0x10] sm:$0xf]
  %v6229 = vld [vmem:[%s7 + $0x14] sm:$0xf]
  %v6230 = vld [vmem:[%s7 + $0x18] sm:$0xf]
  %v6231 = vld [vmem:[%s7 + $0x1c] sm:$0xf]
  %v6232 = vld [vmem:[%s7 + $0x20] sm:$0xf]
  %v6233 = vld [vmem:[%s7 + $0x24] sm:$0xf]
  %v6234 = vld [vmem:[%s7 + $0x28] sm:$0xf]
  %v6235 = vld [vmem:[%s7 + $0x2c] sm:$0xf]
  %v6236 = vld [vmem:[%s7 + $0x30] sm:$0xf]
  %v6237 = vld [vmem:[%s7 + $0x34] sm:$0xf]
  %v6238 = vld [vmem:[%s7 + $0x38] sm:$0xf]
  %v6239 = vld [vmem:[%s7 + $0x3c] sm:$0xf]
  %v6240 = vld [vmem:[%s7 + $0x40] sm:$0xf]
  %v6241 = vld [vmem:[%s7 + $0x44] sm:$0xf]
  %v6242 = vld [vmem:[%s7 + $0x48] sm:$0xf]
  %v6243 = vld [vmem:[%s7 + $0x4c] sm:$0xf]
  %v6244 = vld [vmem:[%s7 + $0x50] sm:$0xf]
  %v6245 = vld [vmem:[%s7 + $0x54] sm:$0xf]
  %v6246 = vld [vmem:[%s7 + $0x58] sm:$0xf]
  %v6247 = vld [vmem:[%s7 + $0x5c] sm:$0xf]
  %v6248 = vld [vmem:[%s7 + $0x60] sm:$0xf]
  %v6249 = vld [vmem:[%s7 + $0x64] sm:$0xf]
  %v6250 = vld [vmem:[%s7 + $0x68] sm:$0xf]
  %v6251 = vld [vmem:[%s7 + $0x6c] sm:$0xf]
  %v6252 = vld [vmem:[%s7 + $0x70] sm:$0xf]
  %v6253 = vld [vmem:[%s7 + $0x74] sm:$0xf]
  %v6254 = vld [vmem:[%s7 + $0x78] sm:$0xf]
  %v6255 = vld [vmem:[%s7 + $0x7c] sm:$0xf]
  %v6256 = vld [vmem:[%s7 + $0x80] sm:$0xf]
  %v6257 = vld [vmem:[%s7 + $0x84] sm:$0xf]
  %v6258 = vld [vmem:[%s7 + $0x88] sm:$0xf]
  %v6259 = vld [vmem:[%s7 + $0x8c] sm:$0xf]
  %v6260 = vld [vmem:[%s7 + $0x90] sm:$0xf]
  %v6261 = vld [vmem:[%s7 + $0x94] sm:$0xf]
  %v6262 = vld [vmem:[%s7 + $0x98] sm:$0xf]
  %v6263 = vld [vmem:[%s7 + $0x9c] sm:$0xf]
  %v6264 = vld [vmem:[%s7 + $0xa0] sm:$0xf]
  %v6265 = vld [vmem:[%s7 + $0xa4] sm:$0xf]
  %v6266 = vld [vmem:[%s7 + $0xa8] sm:$0xf]
  %v6267 = vld [vmem:[%s7 + $0xac] sm:$0xf]
  %v6268 = vld [vmem:[%s7 + $0xb0] sm:$0xf]
  %v6269 = vld [vmem:[%s7 + $0xb4] sm:$0xf]
  %v6270 = vld [vmem:[%s7 + $0xb8] sm:$0xf]
  %v6271 = vld [vmem:[%s7 + $0xbc] sm:$0xf]
  %v6272 = vld [vmem:[%s7 + $0xc0] sm:$0xf]
  %v6273 = vld [vmem:[%s7 + $0xc4] sm:$0xf]
  %v6274 = vld [vmem:[%s7 + $0xc8] sm:$0xf]
  %v6275 = vld [vmem:[%s7 + $0xcc] sm:$0xf]
  %v6276 = vld [vmem:[%s7 + $0xd0] sm:$0xf]
  %v6277 = vld [vmem:[%s7 + $0xd4] sm:$0xf]
  %v6278 = vld [vmem:[%s7 + $0xd8] sm:$0xf]
  %v6279 = vld [vmem:[%s7 + $0xdc] sm:$0xf]
  %v6280 = vld [vmem:[%s7 + $0xe0] sm:$0xf]
  %v6281 = vld [vmem:[%s7 + $0xe4] sm:$0xf]
  %v6282 = vld [vmem:[%s7 + $0xe8] sm:$0xf]
  %v6283 = vld [vmem:[%s7 + $0xec] sm:$0xf]
  %v6284 = vld [vmem:[%s7 + $0xf0] sm:$0xf]
  %v6285 = vld [vmem:[%s7 + $0xf4] sm:$0xf]
  %v6286 = vld [vmem:[%s7 + $0xf8] sm:$0xf]
  %v6287 = vld [vmem:[%s7 + $0xfc] sm:$0xf]
  %v6352 = vunpack.c.l.b16 %v6224
  %v6353 = vunpack.c.l.b16 %v6225
  %v6354 = vunpack.c.l.b16 %v6226
  %v6355 = vunpack.c.l.b16 %v6227
  %v6356 = vunpack.c.l.b16 %v6228
  %v6357 = vunpack.c.l.b16 %v6229
  %v6358 = vunpack.c.l.b16 %v6230
  %v6359 = vunpack.c.l.b16 %v6231
  %v6360 = vunpack.c.l.b16 %v6232
  %v6361 = vunpack.c.l.b16 %v6233
  %v6362 = vunpack.c.l.b16 %v6234
  %v6363 = vunpack.c.l.b16 %v6235
  %v6364 = vunpack.c.l.b16 %v6236
  %v6365 = vunpack.c.l.b16 %v6237
  %v6366 = vunpack.c.l.b16 %v6238
  %v6367 = vunpack.c.l.b16 %v6239
  %v6368 = vunpack.c.l.b16 %v6240
  %v6369 = vunpack.c.l.b16 %v6241
  %v6370 = vunpack.c.l.b16 %v6242
  %v6371 = vunpack.c.l.b16 %v6243
  %v6372 = vunpack.c.l.b16 %v6244
  %v6373 = vunpack.c.l.b16 %v6245
  %v6374 = vunpack.c.l.b16 %v6246
  %v6375 = vunpack.c.l.b16 %v6247
  %v6376 = vunpack.c.l.b16 %v6248
  %v6377 = vunpack.c.l.b16 %v6249
  %v6378 = vunpack.c.l.b16 %v6250
  %v6379 = vunpack.c.l.b16 %v6251
  %v6380 = vunpack.c.l.b16 %v6252
  %v6381 = vunpack.c.l.b16 %v6253
  %v6382 = vunpack.c.l.b16 %v6254
  %v6383 = vunpack.c.l.b16 %v6255
  %v6384 = vunpack.c.l.b16 %v6256
  %v6385 = vunpack.c.l.b16 %v6257
  %v6386 = vunpack.c.l.b16 %v6258
  %v6387 = vunpack.c.l.b16 %v6259
  %v6388 = vunpack.c.l.b16 %v6260
  %v6389 = vunpack.c.l.b16 %v6261
  %v6390 = vunpack.c.l.b16 %v6262
  %v6391 = vunpack.c.l.b16 %v6263
  %v6392 = vunpack.c.l.b16 %v6264
  %v6393 = vunpack.c.l.b16 %v6265
  %v6394 = vunpack.c.l.b16 %v6266
  %v6395 = vunpack.c.l.b16 %v6267
  %v6396 = vunpack.c.l.b16 %v6268
  %v6397 = vunpack.c.l.b16 %v6269
  %v6398 = vunpack.c.l.b16 %v6270
  %v6399 = vunpack.c.l.b16 %v6271
  %v6400 = vunpack.c.l.b16 %v6272
  %v6401 = vunpack.c.l.b16 %v6273
  %v6402 = vunpack.c.l.b16 %v6274
  %v6403 = vunpack.c.l.b16 %v6275
  %v6404 = vunpack.c.l.b16 %v6276
  %v6405 = vunpack.c.l.b16 %v6277
  %v6406 = vunpack.c.l.b16 %v6278
  %v6407 = vunpack.c.l.b16 %v6279
  %v6408 = vunpack.c.l.b16 %v6280
  %v6409 = vunpack.c.l.b16 %v6281
  %v6410 = vunpack.c.l.b16 %v6282
  %v6411 = vunpack.c.l.b16 %v6283
  %v6412 = vunpack.c.l.b16 %v6284
  %v6413 = vunpack.c.l.b16 %v6285
  %v6414 = vunpack.c.l.b16 %v6286
  %v6415 = vunpack.c.l.b16 %v6287
  %v6416 = vpack.c.b16 %v6353, %v6352
  %v6417 = vpack.c.b16 %v6355, %v6354
  %v6418 = vpack.c.b16 %v6357, %v6356
  %v6419 = vpack.c.b16 %v6359, %v6358
  %v6420 = vpack.c.b16 %v6361, %v6360
  %v6421 = vpack.c.b16 %v6363, %v6362
  %v6422 = vpack.c.b16 %v6365, %v6364
  %v6423 = vpack.c.b16 %v6367, %v6366
  %v6424 = vpack.c.b16 %v6369, %v6368
  %v6425 = vpack.c.b16 %v6371, %v6370
  %v6426 = vpack.c.b16 %v6373, %v6372
  %v6427 = vpack.c.b16 %v6375, %v6374
  %v6428 = vpack.c.b16 %v6377, %v6376
  %v6429 = vpack.c.b16 %v6379, %v6378
  %v6430 = vpack.c.b16 %v6381, %v6380
  %v6431 = vpack.c.b16 %v6383, %v6382
  %v6432 = vpack.c.b16 %v6385, %v6384
  %v6433 = vpack.c.b16 %v6387, %v6386
  %v6434 = vpack.c.b16 %v6389, %v6388
  %v6435 = vpack.c.b16 %v6391, %v6390
  %v6436 = vpack.c.b16 %v6393, %v6392
  %v6437 = vpack.c.b16 %v6395, %v6394
  %v6438 = vpack.c.b16 %v6397, %v6396
  %v6439 = vpack.c.b16 %v6399, %v6398
  %v6440 = vpack.c.b16 %v6401, %v6400
  %v6441 = vpack.c.b16 %v6403, %v6402
  %v6442 = vpack.c.b16 %v6405, %v6404
  %v6443 = vpack.c.b16 %v6407, %v6406
  %v6444 = vpack.c.b16 %v6409, %v6408
  %v6445 = vpack.c.b16 %v6411, %v6410
  %v6446 = vpack.c.b16 %v6413, %v6412
  %v6447 = vpack.c.b16 %v6415, %v6414
  %6480 = vmatprep.subr.bf16.mxu0 0
  %6481 = vmatpush1.bf16.msra.mxu0 %v6416
  %6482 = vmatprep.subr.bf16.mxu0 0
  %6483 = vmatpush1.bf16.msra.mxu0 %v6417
  %6484 = vmatprep.subr.bf16.mxu0 0
  %6485 = vmatpush1.bf16.msra.mxu0 %v6418
  %6486 = vmatprep.subr.bf16.mxu0 0
  %6487 = vmatpush1.bf16.msra.mxu0 %v6419
  %6488 = vmatprep.subr.bf16.mxu0 0
  %6489 = vmatpush1.bf16.msra.mxu0 %v6420
  %6490 = vmatprep.subr.bf16.mxu0 0
  %6491 = vmatpush1.bf16.msra.mxu0 %v6421
  %6492 = vmatprep.subr.bf16.mxu0 0
  %6493 = vmatpush1.bf16.msra.mxu0 %v6422
  %6494 = vmatprep.subr.bf16.mxu0 0
  %6495 = vmatpush1.bf16.msra.mxu0 %v6423
  %6496 = vmatprep.subr.bf16.mxu0 0
  %6497 = vmatpush1.bf16.msra.mxu0 %v6424
  %6498 = vmatprep.subr.bf16.mxu0 0
  %6499 = vmatpush1.bf16.msra.mxu0 %v6425
  %6500 = vmatprep.subr.bf16.mxu0 0
  %6501 = vmatpush1.bf16.msra.mxu0 %v6426
  %6502 = vmatprep.subr.bf16.mxu0 0
  %6503 = vmatpush1.bf16.msra.mxu0 %v6427
  %6504 = vmatprep.subr.bf16.mxu0 0
  %6505 = vmatpush1.bf16.msra.mxu0 %v6428
  %6506 = vmatprep.subr.bf16.mxu0 0
  %6507 = vmatpush1.bf16.msra.mxu0 %v6429
  %6508 = vmatprep.subr.bf16.mxu0 0
  %6509 = vmatpush1.bf16.msra.mxu0 %v6430
  %6510 = vmatprep.subr.bf16.mxu0 0
  %6511 = vmatpush1.bf16.msra.mxu0 %v6431
  %6512 = vmatprep.mubr.bf16.mxu0 %v6221
  %6513 = vmatmul.mubr.bf16.gmra.mrb[0].mxu0 %v6220
  %v6514 = vpop.f32.mrb[0].mxu0
  %v6515 = vadd.f32 0.0, %v6514
  %v6516 = vpop.f32.mrb[0].mxu0
  %v6517 = vpop.f32.mrb[0].mxu0
  %v6518 = vpop.f32.mrb[0].mxu0
  %6519 = vdwg.mxu0
  %6520 = vmatprep.subr.bf16.mxu0 0
  %6521 = vmatpush1.bf16.msra.mxu0 %v6432
  %6522 = vmatprep.subr.bf16.mxu0 0
  %6523 = vmatpush1.bf16.msra.mxu0 %v6433
  %6524 = vmatprep.subr.bf16.mxu0 0
  %6525 = vmatpush1.bf16.msra.mxu0 %v6434
  %6526 = vmatprep.subr.bf16.mxu0 0
  %6527 = vmatpush1.bf16.msra.mxu0 %v6435
  %6528 = vmatprep.subr.bf16.mxu0 0
  %6529 = vmatpush1.bf16.msra.mxu0 %v6436
  %6530 = vmatprep.subr.bf16.mxu0 0
  %6531 = vmatpush1.bf16.msra.mxu0 %v6437
  %6532 = vmatprep.subr.bf16.mxu0 0
  %6533 = vmatpush1.bf16.msra.mxu0 %v6438
  %6534 = vmatprep.subr.bf16.mxu0 0
  %6535 = vmatpush1.bf16.msra.mxu0 %v6439
  %6536 = vmatprep.subr.bf16.mxu0 0
  %6537 = vmatpush1.bf16.msra.mxu0 %v6440
  %6538 = vmatprep.subr.bf16.mxu0 0
  %6539 = vmatpush1.bf16.msra.mxu0 %v6441
  %6540 = vmatprep.subr.bf16.mxu0 0
  %6541 = vmatpush1.bf16.msra.mxu0 %v6442
  %6542 = vmatprep.subr.bf16.mxu0 0
  %6543 = vmatpush1.bf16.msra.mxu0 %v6443
  %6544 = vmatprep.subr.bf16.mxu0 0
  %6545 = vmatpush1.bf16.msra.mxu0 %v6444
  %6546 = vmatprep.subr.bf16.mxu0 0
  %6547 = vmatpush1.bf16.msra.mxu0 %v6445
  %6548 = vmatprep.subr.bf16.mxu0 0
  %6549 = vmatpush1.bf16.msra.mxu0 %v6446
  %6550 = vmatprep.subr.bf16.mxu0 0
  %6551 = vmatpush1.bf16.msra.mxu0 %v6447
  %6552 = vmatprep.mubr.bf16.mxu0 %v6223
  %6553 = vmatmul.mubr.bf16.gmra.mrb[0].mxu0 %v6222
  %v6554 = vpop.f32.mrb[0].mxu0
  %v6555 = vadd.f32 %v6515, %v6554
  %v6556 = vpop.f32.mrb[0].mxu0
  %v6557 = vpop.f32.mrb[0].mxu0
  %v6558 = vpop.f32.mrb[0].mxu0
  %6559 = vdwg.mxu0
  %v6624 = vunpack.c.l.b16 %v6156
  %v6625 = vunpack.c.l.b16 %v6157
  %v6626 = vunpack.c.l.b16 %v6158
  %v6627 = vunpack.c.l.b16 %v6159
  %v6628 = vunpack.c.l.b16 %v6160
  %v6629 = vunpack.c.l.b16 %v6161
  %v6630 = vunpack.c.l.b16 %v6162
  %v6631 = vunpack.c.l.b16 %v6163
  %v6632 = vunpack.c.l.b16 %v6164
  %v6633 = vunpack.c.l.b16 %v6165
  %v6634 = vunpack.c.l.b16 %v6166
  %v6635 = vunpack.c.l.b16 %v6167
  %v6636 = vunpack.c.l.b16 %v6168
  %v6637 = vunpack.c.l.b16 %v6169
  %v6638 = vunpack.c.l.b16 %v6170
  %v6639 = vunpack.c.l.b16 %v6171
  %v6640 = vunpack.c.l.b16 %v6172
  %v6641 = vunpack.c.l.b16 %v6173
  %v6642 = vunpack.c.l.b16 %v6174
  %v6643 = vunpack.c.l.b16 %v6175
  %v6644 = vunpack.c.l.b16 %v6176
  %v6645 = vunpack.c.l.b16 %v6177
  %v6646 = vunpack.c.l.b16 %v6178
  %v6647 = vunpack.c.l.b16 %v6179
  %v6648 = vunpack.c.l.b16 %v6180
  %v6649 = vunpack.c.l.b16 %v6181
  %v6650 = vunpack.c.l.b16 %v6182
  %v6651 = vunpack.c.l.b16 %v6183
  %v6652 = vunpack.c.l.b16 %v6184
  %v6653 = vunpack.c.l.b16 %v6185
  %v6654 = vunpack.c.l.b16 %v6186
  %v6655 = vunpack.c.l.b16 %v6187
  %v6656 = vunpack.c.l.b16 %v6188
  %v6657 = vunpack.c.l.b16 %v6189
  %v6658 = vunpack.c.l.b16 %v6190
  %v6659 = vunpack.c.l.b16 %v6191
  %v6660 = vunpack.c.l.b16 %v6192
  %v6661 = vunpack.c.l.b16 %v6193
  %v6662 = vunpack.c.l.b16 %v6194
  %v6663 = vunpack.c.l.b16 %v6195
  %v6664 = vunpack.c.l.b16 %v6196
  %v6665 = vunpack.c.l.b16 %v6197
  %v6666 = vunpack.c.l.b16 %v6198
  %v6667 = vunpack.c.l.b16 %v6199
  %v6668 = vunpack.c.l.b16 %v6200
  %v6669 = vunpack.c.l.b16 %v6201
  %v6670 = vunpack.c.l.b16 %v6202
  %v6671 = vunpack.c.l.b16 %v6203
  %v6672 = vunpack.c.l.b16 %v6204
  %v6673 = vunpack.c.l.b16 %v6205
  %v6674 = vunpack.c.l.b16 %v6206
  %v6675 = vunpack.c.l.b16 %v6207
  %v6676 = vunpack.c.l.b16 %v6208
  %v6677 = vunpack.c.l.b16 %v6209
  %v6678 = vunpack.c.l.b16 %v6210
  %v6679 = vunpack.c.l.b16 %v6211
  %v6680 = vunpack.c.l.b16 %v6212
  %v6681 = vunpack.c.l.b16 %v6213
  %v6682 = vunpack.c.l.b16 %v6214
  %v6683 = vunpack.c.l.b16 %v6215
  %v6684 = vunpack.c.l.b16 %v6216
  %v6685 = vunpack.c.l.b16 %v6217
  %v6686 = vunpack.c.l.b16 %v6218
  %v6687 = vunpack.c.l.b16 %v6219
  %v6688 = vpack.c.b16 %v6625, %v6624
  %v6689 = vpack.c.b16 %v6627, %v6626
  %v6690 = vpack.c.b16 %v6629, %v6628
  %v6691 = vpack.c.b16 %v6631, %v6630
  %v6692 = vpack.c.b16 %v6633, %v6632
  %v6693 = vpack.c.b16 %v6635, %v6634
  %v6694 = vpack.c.b16 %v6637, %v6636
  %v6695 = vpack.c.b16 %v6639, %v6638
  %v6696 = vpack.c.b16 %v6641, %v6640
  %v6697 = vpack.c.b16 %v6643, %v6642
  %v6698 = vpack.c.b16 %v6645, %v6644
  %v6699 = vpack.c.b16 %v6647, %v6646
  %v6700 = vpack.c.b16 %v6649, %v6648
  %v6701 = vpack.c.b16 %v6651, %v6650
  %v6702 = vpack.c.b16 %v6653, %v6652
  %v6703 = vpack.c.b16 %v6655, %v6654
  %v6704 = vpack.c.b16 %v6657, %v6656
  %v6705 = vpack.c.b16 %v6659, %v6658
  %v6706 = vpack.c.b16 %v6661, %v6660
  %v6707 = vpack.c.b16 %v6663, %v6662
  %v6708 = vpack.c.b16 %v6665, %v6664
  %v6709 = vpack.c.b16 %v6667, %v6666
  %v6710 = vpack.c.b16 %v6669, %v6668
  %v6711 = vpack.c.b16 %v6671, %v6670
  %v6712 = vpack.c.b16 %v6673, %v6672
  %v6713 = vpack.c.b16 %v6675, %v6674
  %v6714 = vpack.c.b16 %v6677, %v6676
  %v6715 = vpack.c.b16 %v6679, %v6678
  %v6716 = vpack.c.b16 %v6681, %v6680
  %v6717 = vpack.c.b16 %v6683, %v6682
  %v6718 = vpack.c.b16 %v6685, %v6684
  %v6719 = vpack.c.b16 %v6687, %v6686
  %6752 = vmatprep.subr.bf16.mxu0 0
  %6753 = vmatpush1.bf16.msra.mxu0 %v6688
  %6754 = vmatprep.subr.bf16.mxu0 0
  %6755 = vmatpush1.bf16.msra.mxu0 %v6689
  %6756 = vmatprep.subr.bf16.mxu0 0
  %6757 = vmatpush1.bf16.msra.mxu0 %v6690
  %6758 = vmatprep.subr.bf16.mxu0 0
  %6759 = vmatpush1.bf16.msra.mxu0 %v6691
  %6760 = vmatprep.subr.bf16.mxu0 0
  %6761 = vmatpush1.bf16.msra.mxu0 %v6692
  %6762 = vmatprep.subr.bf16.mxu0 0
  %6763 = vmatpush1.bf16.msra.mxu0 %v6693
  %6764 = vmatprep.subr.bf16.mxu0 0
  %6765 = vmatpush1.bf16.msra.mxu0 %v6694
  %6766 = vmatprep.subr.bf16.mxu0 0
  %6767 = vmatpush1.bf16.msra.mxu0 %v6695
  %6768 = vmatprep.subr.bf16.mxu0 0
  %6769 = vmatpush1.bf16.msra.mxu0 %v6696
  %6770 = vmatprep.subr.bf16.mxu0 0
  %6771 = vmatpush1.bf16.msra.mxu0 %v6697
  %6772 = vmatprep.subr.bf16.mxu0 0
  %6773 = vmatpush1.bf16.msra.mxu0 %v6698
  %6774 = vmatprep.subr.bf16.mxu0 0
  %6775 = vmatpush1.bf16.msra.mxu0 %v6699
  %6776 = vmatprep.subr.bf16.mxu0 0
  %6777 = vmatpush1.bf16.msra.mxu0 %v6700
  %6778 = vmatprep.subr.bf16.mxu0 0
  %6779 = vmatpush1.bf16.msra.mxu0 %v6701
  %6780 = vmatprep.subr.bf16.mxu0 0
  %6781 = vmatpush1.bf16.msra.mxu0 %v6702
  %6782 = vmatprep.subr.bf16.mxu0 0
  %6783 = vmatpush1.bf16.msra.mxu0 %v6703
  %6784 = vmatprep.mubr.bf16.mxu0 %v6153
  %6785 = vmatmul.mubr.bf16.gmra.mrb[0].mxu0 %v6152
  %v6786 = vpop.f32.mrb[0].mxu0
  %v6787 = vadd.f32 %v6555, %v6786
  %v6788 = vpop.f32.mrb[0].mxu0
  %v6789 = vpop.f32.mrb[0].mxu0
  %v6790 = vpop.f32.mrb[0].mxu0
  %6791 = vdwg.mxu0
  %6792 = vmatprep.subr.bf16.mxu0 0
  %6793 = vmatpush1.bf16.msra.mxu0 %v6704
  %6794 = vmatprep.subr.bf16.mxu0 0
  %6795 = vmatpush1.bf16.msra.mxu0 %v6705
  %6796 = vmatprep.subr.bf16.mxu0 0
  %6797 = vmatpush1.bf16.msra.mxu0 %v6706
  %6798 = vmatprep.subr.bf16.mxu0 0
  %6799 = vmatpush1.bf16.msra.mxu0 %v6707
  %6800 = vmatprep.subr.bf16.mxu0 0
  %6801 = vmatpush1.bf16.msra.mxu0 %v6708
  %6802 = vmatprep.subr.bf16.mxu0 0
  %6803 = vmatpush1.bf16.msra.mxu0 %v6709
  %6804 = vmatprep.subr.bf16.mxu0 0
  %6805 = vmatpush1.bf16.msra.mxu0 %v6710
  %6806 = vmatprep.subr.bf16.mxu0 0
  %6807 = vmatpush1.bf16.msra.mxu0 %v6711
  %6808 = vmatprep.subr.bf16.mxu0 0
  %6809 = vmatpush1.bf16.msra.mxu0 %v6712
  %6810 = vmatprep.subr.bf16.mxu0 0
  %6811 = vmatpush1.bf16.msra.mxu0 %v6713
  %6812 = vmatprep.subr.bf16.mxu0 0
  %6813 = vmatpush1.bf16.msra.mxu0 %v6714
  %6814 = vmatprep.subr.bf16.mxu0 0
  %6815 = vmatpush1.bf16.msra.mxu0 %v6715
  %6816 = vmatprep.subr.bf16.mxu0 0
  %6817 = vmatpush1.bf16.msra.mxu0 %v6716
  %6818 = vmatprep.subr.bf16.mxu0 0
  %6819 = vmatpush1.bf16.msra.mxu0 %v6717
  %6820 = vmatprep.subr.bf16.mxu0 0
  %6821 = vmatpush1.bf16.msra.mxu0 %v6718
  %6822 = vmatprep.subr.bf16.mxu0 0
  %6823 = vmatpush1.bf16.msra.mxu0 %v6719
  %6824 = vmatprep.mubr.bf16.mxu0 %v6155
  %6825 = vmatmul.mubr.bf16.gmra.mrb[0].mxu0 %v6154
  %v6826 = vpop.f32.mrb[0].mxu0
  %v6827 = vadd.f32 %v6787, %v6826
  %v6828 = vpop.f32.mrb[0].mxu0
  %v6829 = vpop.f32.mrb[0].mxu0
  %v6830 = vpop.f32.mrb[0].mxu0
  %6831 = vdwg.mxu0
  %v6832 = vld [vmem:[%s8] sm:$0x1]
  %v6834 = vlaneseq
  %v6835 = vshrl.u32 %v6834, 7
  %v6836 = vsub.s32 0, %v6835
  %v6837 = vrot.slane %v6832, %v6836
  %v6839 = vadd.f32 %v6827, %v6837
  %6840 = vst [vmem:[%s9] sm:$0x3] %v6839
  // Predicated region
  $region38: #{sep_body_conv_forward.7} parent=0 // pred_check
    _
  $region39: #{sep_body_conv_forward.7} parent=0 // pred_check_branch
    %6842 = sbr.rel (0) target = $region41
  $region40: #{sep_body_conv_forward.7} parent=0 // pred_region
    _
  $region41: #{sep_body_conv_forward.7} parent=0 // pred_fallthru
    _
  // Predicated region
  $region42: #{sep_body_conv_forward.7} parent=0 // pred_check
    _
  $region43: #{sep_body_conv_forward.7} parent=0 // pred_check_branch
    %6844 = sbr.rel (0) target = $region45
  $region44: #{sep_body_conv_forward.7} parent=0 // pred_region
    _
  $region45: #{sep_body_conv_forward.7} parent=0 // pred_fallthru
    _

</llo_original>
